<compile_context>
chip_gen: v5e
topology: v5e:2x2
jax: 0.10.0
libtpu: 0.0.40
codegen_flags: <defaults>
</compile_context>

<pallas_src>
import functools

import jax
import jax.numpy as jnp
from jax.experimental import pallas as pl
from jax.experimental.pallas import tpu as pltpu


# ---------------------------------------------------------------------------
# in-kernel helpers
# ---------------------------------------------------------------------------
def _layernorm(x, gamma, beta, eps=1e-5):
    # PyTorch nn.LayerNorm: biased variance, eps inside sqrt.
    mean = jnp.mean(x, axis=-1, keepdims=True)
    var = jnp.mean((x - mean) ** 2, axis=-1, keepdims=True)
    return (x - mean) * jax.lax.rsqrt(var + eps) * gamma + beta


def _gelu_exact(x):
    # PyTorch nn.GELU() default (approximate='none') -> exact erf formulation.
    return 0.5 * x * (1.0 + jax.lax.erf(x * (1.0 / jnp.sqrt(2.0).astype(x.dtype))))


# ---------------------------------------------------------------------------
# Pallas kernel: full TransformerEncoder forward for one (TB, N, F) batch tile
# ---------------------------------------------------------------------------
def transformer_encoder_kernel(
    x_ref,
    ln1_g_ref, ln1_b_ref,
    wq_ref, bq_ref, wk_ref, bk_ref, wv_ref, bv_ref, wo_ref, bo_ref,
    ln2_g_ref, ln2_b_ref,
    w1_ref, b1_ref, w2_ref, b2_ref,
    out_ref,
    *, head,
):
    TB, N, F = x_ref.shape
    D = F // head
    R = TB * N
    cdt = wq_ref.dtype  # matmul operand dtype (bf16 by default); accumulation is f32

    x = x_ref[...].reshape(R, F).astype(jnp.float32)

    # ---- LayerNorm 1 ----
    xn = _layernorm(x, ln1_g_ref[...], ln1_b_ref[...]).astype(cdt)

    # ---- full-width Q/K/V projections (1/sqrt(F) already folded into wq/bq) ----
    q = jnp.dot(xn, wq_ref[...], preferred_element_type=jnp.float32) + bq_ref[...]
    k = jnp.dot(xn, wk_ref[...], preferred_element_type=jnp.float32) + bk_ref[...]
    v = jnp.dot(xn, wv_ref[...], preferred_element_type=jnp.float32) + bv_ref[...]

    # heads -> batch axis: (R, F) -> (TB*head, N, D)
    def split_heads(t):
        return (t.reshape(TB, N, head, D)
                 .transpose(0, 2, 1, 3)
                 .reshape(TB * head, N, D)
                 .astype(cdt))

    qh, kh, vh = split_heads(q), split_heads(k), split_heads(v)

    # ---- attention (scores pre-scaled; dropout p=0 -> identity) ----
    s = jnp.einsum("gnd,gmd->gnm", qh, kh, preferred_element_type=jnp.float32)
    s = s - jnp.max(s, axis=-1, keepdims=True)
    e = jnp.exp(s)
    p = e * pl.reciprocal(jnp.sum(e, axis=-1, keepdims=True), approx=True)
    ho = jnp.einsum("gnm,gmd->gnd", p.astype(cdt), vh,
                    preferred_element_type=jnp.float32)          # (TB*head, N, D)

    # merge heads back: token-major rows, head-major columns (== attn.flatten(2))
    attn = (ho.reshape(TB, head, N, D)
              .transpose(0, 2, 1, 3)
              .reshape(R, F)
              .astype(cdt))

    # ---- output projection (single K=F contraction) + residual ----
    out1 = (jnp.dot(attn, wo_ref[...], preferred_element_type=jnp.float32)
            + bo_ref[...] + x)

    # ---- LayerNorm 2 + MLP (GELU after BOTH linears, matching the module) ----
    yn = _layernorm(out1, ln2_g_ref[...], ln2_b_ref[...]).astype(cdt)
    h1 = _gelu_exact(jnp.dot(yn, w1_ref[...],
                             preferred_element_type=jnp.float32) + b1_ref[...])
    h2 = _gelu_exact(jnp.dot(h1.astype(cdt), w2_ref[...],
                             preferred_element_type=jnp.float32) + b2_ref[...])

    out_ref[...] = (h2 + out1).reshape(TB, N, F).astype(out_ref.dtype)


# ---------------------------------------------------------------------------
# Wrapper
# ---------------------------------------------------------------------------
_PARAM_ORDER = (
    "ln1_g", "ln1_b",
    "wq", "bq", "wk", "bk", "wv", "bv", "wo", "bo",
    "ln2_g", "ln2_b",
    "w1", "b1", "w2", "b2",
)


def _pick_batch_tile(B, N, target_rows=512, dense_rows=128):
    """Largest batch tile with <= target_rows rows per grid step. Prefer >=2 grid
    steps (v7x megacore) only when each step still keeps >= dense_rows rows, so
    single-TensorCore chips (v5e/v6e) are not forced into tiny tiles."""
    divisors = [tb for tb in range(1, B + 1) if B % tb == 0]
    fits = [tb for tb in divisors if tb * N <= target_rows] or [1]
    tb = max(fits)
    if B // tb < 2:
        split = [t for t in fits if B // t >= 2 and t * N >= dense_rows]
        if split:
            tb = max(split)
    return tb


def _default_vmem_limit_bytes(headroom_frac=0.85):
    """Per-generation VMEM budget with ~15% headroom (v7x: ~54 MiB of 64;
    v5e/v6e: ~108 MiB of 128). Conservative fallback if the query fails."""
    try:
        cap = int(getattr(pltpu.get_tpu_info(), "vmem_capacity_bytes", 0) or 0)
    except Exception:
        cap = 0
    if cap <= 0:
        cap = 64 * 1024 * 1024
    limit = int(cap * headroom_frac)
    return max(32 * 1024 * 1024, min(limit, 112 * 1024 * 1024))


def _prepare_params(params, head, compute_dtype):
    """Cast weights to the MXU compute dtype; fold the 1/sqrt(F) score scale into
    wq/bq; reshape biases / LN params to (1, dim) f32 rows."""
    F = params["wq"].shape[0]
    mlp_hidden = params["w1"].shape[1]
    scale = 1.0 / (float(F) ** 0.5)   # the module scales scores by sqrt(feats), not sqrt(D)

    return dict(
        ln1_g=params["ln1_g"].reshape(1, F).astype(jnp.float32),
        ln1_b=params["ln1_b"].reshape(1, F).astype(jnp.float32),
        wq=(params["wq"] * scale).astype(compute_dtype),
        bq=(params["bq"] * scale).reshape(1, F).astype(jnp.float32),
        wk=params["wk"].astype(compute_dtype),
        bk=params["bk"].reshape(1, F).astype(jnp.float32),
        wv=params["wv"].astype(compute_dtype),
        bv=params["bv"].reshape(1, F).astype(jnp.float32),
        wo=params["wo"].astype(compute_dtype),
        bo=params["bo"].reshape(1, F).astype(jnp.float32),
        ln2_g=params["ln2_g"].reshape(1, F).astype(jnp.float32),
        ln2_b=params["ln2_b"].reshape(1, F).astype(jnp.float32),
        w1=params["w1"].astype(compute_dtype),
        b1=params["b1"].reshape(1, mlp_hidden).astype(jnp.float32),
        w2=params["w2"].astype(compute_dtype),
        b2=params["b2"].reshape(1, F).astype(jnp.float32),
    )


def transformer_encoder(x, params, *, head=8, compute_dtype=jnp.bfloat16,
                        batch_tile=None, vmem_limit_bytes=None):
    B, N, F = x.shape
    assert F % head == 0
    if batch_tile is None:
        batch_tile = _pick_batch_tile(B, N)
    assert B % batch_tile == 0
    if vmem_limit_bytes is None:
        vmem_limit_bytes = _default_vmem_limit_bytes()

    prepared = _prepare_params(params, head, compute_dtype)
    kernel = functools.partial(transformer_encoder_kernel, head=head)

    def build_and_run(single_buffer_weights):
        args = [x]
        in_specs = [pl.BlockSpec((batch_tile, N, F), lambda b: (b, 0, 0))]
        for name in _PARAM_ORDER:
            a = prepared[name]
            args.append(a)
            idx_map = (lambda b, _nd=a.ndim: (0,) * _nd)  # constant: revisited, not re-fetched
            if single_buffer_weights:
                spec = pl.BlockSpec(a.shape, idx_map, pipeline_mode=pl.Buffered(1))
            else:
                spec = pl.BlockSpec(a.shape, idx_map)
            in_specs.append(spec)

        call = pl.pallas_call(
            kernel,
            out_shape=jax.ShapeDtypeStruct((B, N, F), x.dtype),
            grid=(B // batch_tile,),
            in_specs=in_specs,
            out_specs=pl.BlockSpec((batch_tile, N, F), lambda b: (b, 0, 0)),
            compiler_params=pltpu.CompilerParams(
                dimension_semantics=("parallel",),
                vmem_limit_bytes=int(vmem_limit_bytes),
            ),
        )
        return call(*args)

    try:
        return build_and_run(True)
    except Exception:
        # TODO(synk): pl.Buffered(1) single-buffering unavailable in this Pallas build;
        # fall back to default double-buffered (but still resident) weights.
        return build_and_run(False)


# ---------------------------------------------------------------------------
# Deterministic parameter init (synthetic; no checkpoint loading)
# ---------------------------------------------------------------------------
def init_params(key, feats, mlp_hidden):
    ks = jax.random.split(key, 12)

    def lin(kw, kb, fin, fout):
        w = 0.05 * jax.random.normal(kw, (fin, fout), jnp.float32)
        b = 0.05 * jax.random.normal(kb, (fout,), jnp.float32)
        return w, b

    wq, bq = lin(ks[0], ks[1], feats, feats)
    wk, bk = lin(ks[2], ks[3], feats, feats)
    wv, bv = lin(ks[4], ks[5], feats, feats)
    wo, bo = lin(ks[6], ks[7], feats, feats)
    w1, b1 = lin(ks[8], ks[9], feats, mlp_hidden)
    w2, b2 = lin(ks[10], ks[11], mlp_hidden, feats)

    return dict(
        ln1_g=jnp.ones((feats,), jnp.float32), ln1_b=jnp.zeros((feats,), jnp.float32),
        wq=wq, bq=bq, wk=wk, bk=bk, wv=wv, bv=bv, wo=wo, bo=bo,
        ln2_g=jnp.ones((feats,), jnp.float32), ln2_b=jnp.zeros((feats,), jnp.float32),
        w1=w1, b1=b1, w2=w2, b2=b2,
    )


# ---------------------------------------------------------------------------
# Pure-JAX reference (mirrors the PyTorch forward exactly)
# ---------------------------------------------------------------------------
def reference(x, p, *, head):
    def ln(t, g, b):
        m = t.mean(-1, keepdims=True)
        v = ((t - m) ** 2).mean(-1, keepdims=True)
        return (t - m) / jnp.sqrt(v + 1e-5) * g + b

    B, N, F = x.shape
    D = F // head
    xn = ln(x, p["ln1_g"], p["ln1_b"])
    q = (xn @ p["wq"] + p["bq"]).reshape(B, N, head, D).transpose(0, 2, 1, 3)
    k = (xn @ p["wk"] + p["bk"]).reshape(B, N, head, D).transpose(0, 2, 1, 3)
    v = (xn @ p["wv"] + p["bv"]).reshape(B, N, head, D).transpose(0, 2, 1, 3)
    score = jax.nn.softmax(
        jnp.einsum("bhif,bhjf->bhij", q, k) / (float(F) ** 0.5), axis=-1
    )
    attn = jnp.einsum("bhij,bhjf->bihf", score, v).reshape(B, N, F)
    o = attn @ p["wo"] + p["bo"]
    out1 = o + x

    gelu = lambda t: 0.5 * t * (1.0 + jax.lax.erf(t / jnp.sqrt(2.0)))
    yn = ln(out1, p["ln2_g"], p["ln2_b"])
    h1 = gelu(yn @ p["w1"] + p["b1"])
    h2 = gelu(h1 @ p["w2"] + p["b2"])
    return h2 + out1


# ---------------------------------------------------------------------------
if __name__ == "__main__":
    B, N, F, HEAD, MLP_HIDDEN = 2, 8, 32, 8, 64

    key = jax.random.PRNGKey(0)
    kx, kp = jax.random.split(key)
    x = jax.random.normal(kx, (B, N, F), jnp.float32)
    params = init_params(kp, F, MLP_HIDDEN)

    ref = reference(x, params, head=HEAD)

    # exact-semantics path (f32 operands; only the softmax reciprocal is approximate)
    out_f32 = jax.block_until_ready(
        transformer_encoder(x, params, head=HEAD, compute_dtype=jnp.float32))
    assert out_f32.shape == (B, N, F)
    assert jnp.allclose(out_f32, ref, atol=2e-3, rtol=2e-3), "f32 Pallas output mismatch"

    # default fast path (bf16 MXU operands, f32 accumulation)
    out_bf16 = jax.block_until_ready(transformer_encoder(x, params, head=HEAD))
    assert out_bf16.shape == (B, N, F)
    assert jnp.allclose(out_bf16, ref, atol=3e-2, rtol=3e-2), "bf16 Pallas output mismatch"

    print("KERNEL_OK")
</pallas_src>

<mosaic_0001>
module attributes {stable_mosaic.version = 11 : i64} {
  func.func @transformer_encoder_kernel(%arg0: i32, %arg1: memref<2x8x32xf32, #tpu.memory_space<vmem>>, %arg2: memref<1x32xf32, #tpu.memory_space<vmem>>, %arg3: memref<1x32xf32, #tpu.memory_space<vmem>>, %arg4: memref<32x32xf32, #tpu.memory_space<vmem>>, %arg5: memref<1x32xf32, #tpu.memory_space<vmem>>, %arg6: memref<32x32xf32, #tpu.memory_space<vmem>>, %arg7: memref<1x32xf32, #tpu.memory_space<vmem>>, %arg8: memref<32x32xf32, #tpu.memory_space<vmem>>, %arg9: memref<1x32xf32, #tpu.memory_space<vmem>>, %arg10: memref<32x32xf32, #tpu.memory_space<vmem>>, %arg11: memref<1x32xf32, #tpu.memory_space<vmem>>, %arg12: memref<1x32xf32, #tpu.memory_space<vmem>>, %arg13: memref<1x32xf32, #tpu.memory_space<vmem>>, %arg14: memref<32x64xf32, #tpu.memory_space<vmem>>, %arg15: memref<1x64xf32, #tpu.memory_space<vmem>>, %arg16: memref<64x32xf32, #tpu.memory_space<vmem>>, %arg17: memref<1x32xf32, #tpu.memory_space<vmem>>, %arg18: memref<2x8x32xf32, #tpu.memory_space<vmem>>) attributes {dimension_semantics = [#tpu.dimension_semantics<parallel>], iteration_bounds = array<i64: 1>, scalar_prefetch = 0 : i64, scratch_operands = 0 : i64, tpu.core_type = #tpu.core_type<tc>, window_params = [{transform_indices = @transform_0, window_bounds = array<i64: 2, 8, 32>}, {pipeline_mode = #tpu.pipeline_mode<synchronous>, transform_indices = @transform_1, window_bounds = array<i64: 1, 32>}, {pipeline_mode = #tpu.pipeline_mode<synchronous>, transform_indices = @transform_2, window_bounds = array<i64: 1, 32>}, {pipeline_mode = #tpu.pipeline_mode<synchronous>, transform_indices = @transform_3, window_bounds = array<i64: 32, 32>}, {pipeline_mode = #tpu.pipeline_mode<synchronous>, transform_indices = @transform_4, window_bounds = array<i64: 1, 32>}, {pipeline_mode = #tpu.pipeline_mode<synchronous>, transform_indices = @transform_5, window_bounds = array<i64: 32, 32>}, {pipeline_mode = #tpu.pipeline_mode<synchronous>, transform_indices = @transform_6, window_bounds = array<i64: 1, 32>}, {pipeline_mode = #tpu.pipeline_mode<synchronous>, transform_indices = @transform_7, window_bounds = array<i64: 32, 32>}, {pipeline_mode = #tpu.pipeline_mode<synchronous>, transform_indices = @transform_8, window_bounds = array<i64: 1, 32>}, {pipeline_mode = #tpu.pipeline_mode<synchronous>, transform_indices = @transform_9, window_bounds = array<i64: 32, 32>}, {pipeline_mode = #tpu.pipeline_mode<synchronous>, transform_indices = @transform_10, window_bounds = array<i64: 1, 32>}, {pipeline_mode = #tpu.pipeline_mode<synchronous>, transform_indices = @transform_11, window_bounds = array<i64: 1, 32>}, {pipeline_mode = #tpu.pipeline_mode<synchronous>, transform_indices = @transform_12, window_bounds = array<i64: 1, 32>}, {pipeline_mode = #tpu.pipeline_mode<synchronous>, transform_indices = @transform_13, window_bounds = array<i64: 32, 64>}, {pipeline_mode = #tpu.pipeline_mode<synchronous>, transform_indices = @transform_14, window_bounds = array<i64: 1, 64>}, {pipeline_mode = #tpu.pipeline_mode<synchronous>, transform_indices = @transform_15, window_bounds = array<i64: 64, 32>}, {pipeline_mode = #tpu.pipeline_mode<synchronous>, transform_indices = @transform_16, window_bounds = array<i64: 1, 32>}, {transform_indices = @transform_17, window_bounds = array<i64: 2, 8, 32>}]} {
    %c0 = arith.constant 0 : index
    %c0_0 = arith.constant 0 : index
    %c0_1 = arith.constant 0 : index
    %0 = vector.load %arg1[%c0, %c0_0, %c0_1] : memref<2x8x32xf32, #tpu.memory_space<vmem>>, vector<2x8x32xf32>
    %1 = vector.shape_cast %0 : vector<2x8x32xf32> to vector<16x32xf32>
    %c0_2 = arith.constant 0 : index
    %c0_3 = arith.constant 0 : index
    %2 = vector.load %arg2[%c0_2, %c0_3] : memref<1x32xf32, #tpu.memory_space<vmem>>, vector<1x32xf32>
    %c0_4 = arith.constant 0 : index
    %c0_5 = arith.constant 0 : index
    %3 = vector.load %arg3[%c0_4, %c0_5] : memref<1x32xf32, #tpu.memory_space<vmem>>, vector<1x32xf32>
    %cst = arith.constant dense<0.000000e+00> : vector<16xf32>
    %4 = vector.multi_reduction <add>, %1, %cst [1] : vector<16x32xf32> to vector<16xf32>
    %5 = vector.shape_cast %4 : vector<16xf32> to vector<16x1xf32>
    %cst_6 = arith.constant 3.200000e+01 : f32
    %6 = vector.broadcast %cst_6 : f32 to vector<16x1xf32>
    %7 = arith.divf %5, %6 : vector<16x1xf32>
    %8 = vector.broadcast %7 : vector<16x1xf32> to vector<16x32xf32>
    %9 = arith.subf %1, %8 : vector<16x32xf32>
    %10 = arith.mulf %9, %9 : vector<16x32xf32>
    %cst_7 = arith.constant dense<0.000000e+00> : vector<16xf32>
    %11 = vector.multi_reduction <add>, %10, %cst_7 [1] : vector<16x32xf32> to vector<16xf32>
    %12 = vector.shape_cast %11 : vector<16xf32> to vector<16x1xf32>
    %cst_8 = arith.constant 3.200000e+01 : f32
    %13 = vector.broadcast %cst_8 : f32 to vector<16x1xf32>
    %14 = arith.divf %12, %13 : vector<16x1xf32>
    %15 = vector.broadcast %7 : vector<16x1xf32> to vector<16x32xf32>
    %16 = arith.subf %1, %15 : vector<16x32xf32>
    %cst_9 = arith.constant 9.99999974E-6 : f32
    %17 = vector.broadcast %cst_9 : f32 to vector<16x1xf32>
    %18 = arith.addf %14, %17 : vector<16x1xf32>
    %19 = math.rsqrt %18 : vector<16x1xf32>
    %20 = vector.broadcast %19 : vector<16x1xf32> to vector<16x32xf32>
    %21 = arith.mulf %16, %20 : vector<16x32xf32>
    %22 = vector.broadcast %2 : vector<1x32xf32> to vector<16x32xf32>
    %23 = arith.mulf %21, %22 : vector<16x32xf32>
    %24 = vector.broadcast %3 : vector<1x32xf32> to vector<16x32xf32>
    %25 = arith.addf %23, %24 : vector<16x32xf32>
    %c0_10 = arith.constant 0 : index
    %c0_11 = arith.constant 0 : index
    %26 = vector.load %arg4[%c0_10, %c0_11] : memref<32x32xf32, #tpu.memory_space<vmem>>, vector<32x32xf32>
    %cst_12 = arith.constant dense<0.000000e+00> : vector<16x32xf32>
    %27 = tpu.matmul %25, %26, %cst_12 {dimension_numbers = #tpu.dot_dimension_numbers<[1], [0], [0], [1], [0, 0, 1, 1], [], []>} : vector<16x32xf32>, vector<32x32xf32>, vector<16x32xf32> -> vector<16x32xf32>
    %c0_13 = arith.constant 0 : index
    %c0_14 = arith.constant 0 : index
    %28 = vector.load %arg5[%c0_13, %c0_14] : memref<1x32xf32, #tpu.memory_space<vmem>>, vector<1x32xf32>
    %29 = vector.broadcast %28 : vector<1x32xf32> to vector<16x32xf32>
    %30 = arith.addf %27, %29 : vector<16x32xf32>
    %c0_15 = arith.constant 0 : index
    %c0_16 = arith.constant 0 : index
    %31 = vector.load %arg6[%c0_15, %c0_16] : memref<32x32xf32, #tpu.memory_space<vmem>>, vector<32x32xf32>
    %cst_17 = arith.constant dense<0.000000e+00> : vector<16x32xf32>
    %32 = tpu.matmul %25, %31, %cst_17 {dimension_numbers = #tpu.dot_dimension_numbers<[1], [0], [0], [1], [0, 0, 1, 1], [], []>} : vector<16x32xf32>, vector<32x32xf32>, vector<16x32xf32> -> vector<16x32xf32>
    %c0_18 = arith.constant 0 : index
    %c0_19 = arith.constant 0 : index
    %33 = vector.load %arg7[%c0_18, %c0_19] : memref<1x32xf32, #tpu.memory_space<vmem>>, vector<1x32xf32>
    %34 = vector.broadcast %33 : vector<1x32xf32> to vector<16x32xf32>
    %35 = arith.addf %32, %34 : vector<16x32xf32>
    %c0_20 = arith.constant 0 : index
    %c0_21 = arith.constant 0 : index
    %36 = vector.load %arg8[%c0_20, %c0_21] : memref<32x32xf32, #tpu.memory_space<vmem>>, vector<32x32xf32>
    %cst_22 = arith.constant dense<0.000000e+00> : vector<16x32xf32>
    %37 = tpu.matmul %25, %36, %cst_22 {dimension_numbers = #tpu.dot_dimension_numbers<[1], [0], [0], [1], [0, 0, 1, 1], [], []>} : vector<16x32xf32>, vector<32x32xf32>, vector<16x32xf32> -> vector<16x32xf32>
    %c0_23 = arith.constant 0 : index
    %c0_24 = arith.constant 0 : index
    %38 = vector.load %arg9[%c0_23, %c0_24] : memref<1x32xf32, #tpu.memory_space<vmem>>, vector<1x32xf32>
    %39 = vector.broadcast %38 : vector<1x32xf32> to vector<16x32xf32>
    %40 = arith.addf %37, %39 : vector<16x32xf32>
    %41 = vector.shape_cast %30 : vector<16x32xf32> to vector<2x8x8x4xf32>
    %42 = tpu.transpose %41, [0, 2, 1, 3] : vector<2x8x8x4xf32> -> vector<2x8x8x4xf32>
    %43 = vector.shape_cast %42 : vector<2x8x8x4xf32> to vector<16x8x4xf32>
    %44 = vector.shape_cast %35 : vector<16x32xf32> to vector<2x8x8x4xf32>
    %45 = tpu.transpose %44, [0, 2, 1, 3] : vector<2x8x8x4xf32> -> vector<2x8x8x4xf32>
    %46 = vector.shape_cast %45 : vector<2x8x8x4xf32> to vector<16x8x4xf32>
    %47 = vector.shape_cast %40 : vector<16x32xf32> to vector<2x8x8x4xf32>
    %48 = tpu.transpose %47, [0, 2, 1, 3] : vector<2x8x8x4xf32> -> vector<2x8x8x4xf32>
    %49 = vector.shape_cast %48 : vector<2x8x8x4xf32> to vector<16x8x4xf32>
    "tpu.trace_start"() <{level = 10 : i32, message = "gnd,gmd->gnm"}> : () -> ()
    %cst_25 = arith.constant dense<0.000000e+00> : vector<16x8x8xf32>
    %50 = tpu.matmul %43, %46, %cst_25 {dimension_numbers = #tpu.dot_dimension_numbers<[2], [2], [1], [1], [0, 0, 0, 1, 1, 1], [0], [0]>} : vector<16x8x4xf32>, vector<16x8x4xf32>, vector<16x8x8xf32> -> vector<16x8x8xf32>
    "tpu.trace_stop"() : () -> ()
    %cst_26 = arith.constant dense<0xFF800000> : vector<16x8xf32>
    %51 = vector.multi_reduction <maximumf>, %50, %cst_26 [2] : vector<16x8x8xf32> to vector<16x8xf32>
    %52 = vector.shape_cast %51 : vector<16x8xf32> to vector<16x8x1xf32>
    %53 = vector.broadcast %52 : vector<16x8x1xf32> to vector<16x8x8xf32>
    %54 = arith.subf %50, %53 : vector<16x8x8xf32>
    %55 = math.exp %54 : vector<16x8x8xf32>
    %cst_27 = arith.constant dense<0.000000e+00> : vector<16x8xf32>
    %56 = vector.multi_reduction <add>, %55, %cst_27 [2] : vector<16x8x8xf32> to vector<16x8xf32>
    %57 = vector.shape_cast %56 : vector<16x8xf32> to vector<16x8x1xf32>
    %58 = tpu.reciprocal %57 {approx = true} : vector<16x8x1xf32> -> vector<16x8x1xf32>
    %59 = vector.broadcast %58 : vector<16x8x1xf32> to vector<16x8x8xf32>
    %60 = arith.mulf %55, %59 : vector<16x8x8xf32>
    "tpu.trace_start"() <{level = 10 : i32, message = "gnm,gmd->gnd"}> : () -> ()
    %cst_28 = arith.constant dense<0.000000e+00> : vector<16x8x4xf32>
    %61 = tpu.matmul %60, %49, %cst_28 {dimension_numbers = #tpu.dot_dimension_numbers<[2], [1], [1], [2], [0, 0, 0, 1, 1, 2], [0], [0]>} : vector<16x8x8xf32>, vector<16x8x4xf32>, vector<16x8x4xf32> -> vector<16x8x4xf32>
    "tpu.trace_stop"() : () -> ()
    %62 = vector.shape_cast %61 : vector<16x8x4xf32> to vector<2x8x8x4xf32>
    %63 = tpu.transpose %62, [0, 2, 1, 3] : vector<2x8x8x4xf32> -> vector<2x8x8x4xf32>
    %64 = vector.shape_cast %63 : vector<2x8x8x4xf32> to vector<16x32xf32>
    %c0_29 = arith.constant 0 : index
    %c0_30 = arith.constant 0 : index
    %65 = vector.load %arg10[%c0_29, %c0_30] : memref<32x32xf32, #tpu.memory_space<vmem>>, vector<32x32xf32>
    %cst_31 = arith.constant dense<0.000000e+00> : vector<16x32xf32>
    %66 = tpu.matmul %64, %65, %cst_31 {dimension_numbers = #tpu.dot_dimension_numbers<[1], [0], [0], [1], [0, 0, 1, 1], [], []>} : vector<16x32xf32>, vector<32x32xf32>, vector<16x32xf32> -> vector<16x32xf32>
    %c0_32 = arith.constant 0 : index
    %c0_33 = arith.constant 0 : index
    %67 = vector.load %arg11[%c0_32, %c0_33] : memref<1x32xf32, #tpu.memory_space<vmem>>, vector<1x32xf32>
    %68 = vector.broadcast %67 : vector<1x32xf32> to vector<16x32xf32>
    %69 = arith.addf %66, %68 : vector<16x32xf32>
    %70 = arith.addf %69, %1 : vector<16x32xf32>
    %c0_34 = arith.constant 0 : index
    %c0_35 = arith.constant 0 : index
    %71 = vector.load %arg12[%c0_34, %c0_35] : memref<1x32xf32, #tpu.memory_space<vmem>>, vector<1x32xf32>
    %c0_36 = arith.constant 0 : index
    %c0_37 = arith.constant 0 : index
    %72 = vector.load %arg13[%c0_36, %c0_37] : memref<1x32xf32, #tpu.memory_space<vmem>>, vector<1x32xf32>
    %cst_38 = arith.constant dense<0.000000e+00> : vector<16xf32>
    %73 = vector.multi_reduction <add>, %70, %cst_38 [1] : vector<16x32xf32> to vector<16xf32>
    %74 = vector.shape_cast %73 : vector<16xf32> to vector<16x1xf32>
    %cst_39 = arith.constant 3.200000e+01 : f32
    %75 = vector.broadcast %cst_39 : f32 to vector<16x1xf32>
    %76 = arith.divf %74, %75 : vector<16x1xf32>
    %77 = vector.broadcast %76 : vector<16x1xf32> to vector<16x32xf32>
    %78 = arith.subf %70, %77 : vector<16x32xf32>
    %79 = arith.mulf %78, %78 : vector<16x32xf32>
    %cst_40 = arith.constant dense<0.000000e+00> : vector<16xf32>
    %80 = vector.multi_reduction <add>, %79, %cst_40 [1] : vector<16x32xf32> to vector<16xf32>
    %81 = vector.shape_cast %80 : vector<16xf32> to vector<16x1xf32>
    %cst_41 = arith.constant 3.200000e+01 : f32
    %82 = vector.broadcast %cst_41 : f32 to vector<16x1xf32>
    %83 = arith.divf %81, %82 : vector<16x1xf32>
    %84 = vector.broadcast %76 : vector<16x1xf32> to vector<16x32xf32>
    %85 = arith.subf %70, %84 : vector<16x32xf32>
    %cst_42 = arith.constant 9.99999974E-6 : f32
    %86 = vector.broadcast %cst_42 : f32 to vector<16x1xf32>
    %87 = arith.addf %83, %86 : vector<16x1xf32>
    %88 = math.rsqrt %87 : vector<16x1xf32>
    %89 = vector.broadcast %88 : vector<16x1xf32> to vector<16x32xf32>
    %90 = arith.mulf %85, %89 : vector<16x32xf32>
    %91 = vector.broadcast %71 : vector<1x32xf32> to vector<16x32xf32>
    %92 = arith.mulf %90, %91 : vector<16x32xf32>
    %93 = vector.broadcast %72 : vector<1x32xf32> to vector<16x32xf32>
    %94 = arith.addf %92, %93 : vector<16x32xf32>
    %c0_43 = arith.constant 0 : index
    %c0_44 = arith.constant 0 : index
    %95 = vector.load %arg14[%c0_43, %c0_44] : memref<32x64xf32, #tpu.memory_space<vmem>>, vector<32x64xf32>
    %cst_45 = arith.constant dense<0.000000e+00> : vector<16x64xf32>
    %96 = tpu.matmul %94, %95, %cst_45 {dimension_numbers = #tpu.dot_dimension_numbers<[1], [0], [0], [1], [0, 0, 1, 1], [], []>} : vector<16x32xf32>, vector<32x64xf32>, vector<16x64xf32> -> vector<16x64xf32>
    %c0_46 = arith.constant 0 : index
    %c0_47 = arith.constant 0 : index
    %97 = vector.load %arg15[%c0_46, %c0_47] : memref<1x64xf32, #tpu.memory_space<vmem>>, vector<1x64xf32>
    %98 = vector.broadcast %97 : vector<1x64xf32> to vector<16x64xf32>
    %99 = arith.addf %96, %98 : vector<16x64xf32>
    %cst_48 = arith.constant 5.000000e-01 : f32
    %100 = vector.broadcast %cst_48 : f32 to vector<16x64xf32>
    %101 = arith.mulf %100, %99 : vector<16x64xf32>
    %cst_49 = arith.constant 2.000000e+00 : f32
    %102 = math.sqrt %cst_49 : f32
    %cst_50 = arith.constant 1.000000e+00 : f32
    %103 = arith.divf %cst_50, %102 : f32
    %104 = vector.broadcast %103 : f32 to vector<16x64xf32>
    %105 = arith.mulf %99, %104 : vector<16x64xf32>
    %106 = math.erf %105 : vector<16x64xf32>
    %cst_51 = arith.constant 1.000000e+00 : f32
    %107 = vector.broadcast %cst_51 : f32 to vector<16x64xf32>
    %108 = arith.addf %107, %106 : vector<16x64xf32>
    %109 = arith.mulf %101, %108 : vector<16x64xf32>
    %c0_52 = arith.constant 0 : index
    %c0_53 = arith.constant 0 : index
    %110 = vector.load %arg16[%c0_52, %c0_53] : memref<64x32xf32, #tpu.memory_space<vmem>>, vector<64x32xf32>
    %cst_54 = arith.constant dense<0.000000e+00> : vector<16x32xf32>
    %111 = tpu.matmul %109, %110, %cst_54 {dimension_numbers = #tpu.dot_dimension_numbers<[1], [0], [0], [1], [0, 0, 1, 1], [], []>} : vector<16x64xf32>, vector<64x32xf32>, vector<16x32xf32> -> vector<16x32xf32>
    %c0_55 = arith.constant 0 : index
    %c0_56 = arith.constant 0 : index
    %112 = vector.load %arg17[%c0_55, %c0_56] : memref<1x32xf32, #tpu.memory_space<vmem>>, vector<1x32xf32>
    %113 = vector.broadcast %112 : vector<1x32xf32> to vector<16x32xf32>
    %114 = arith.addf %111, %113 : vector<16x32xf32>
    %cst_57 = arith.constant 5.000000e-01 : f32
    %115 = vector.broadcast %cst_57 : f32 to vector<16x32xf32>
    %116 = arith.mulf %115, %114 : vector<16x32xf32>
    %cst_58 = arith.constant 2.000000e+00 : f32
    %117 = math.sqrt %cst_58 : f32
    %cst_59 = arith.constant 1.000000e+00 : f32
    %118 = arith.divf %cst_59, %117 : f32
    %119 = vector.broadcast %118 : f32 to vector<16x32xf32>
    %120 = arith.mulf %114, %119 : vector<16x32xf32>
    %121 = math.erf %120 : vector<16x32xf32>
    %cst_60 = arith.constant 1.000000e+00 : f32
    %122 = vector.broadcast %cst_60 : f32 to vector<16x32xf32>
    %123 = arith.addf %122, %121 : vector<16x32xf32>
    %124 = arith.mulf %116, %123 : vector<16x32xf32>
    %125 = arith.addf %124, %70 : vector<16x32xf32>
    %126 = vector.shape_cast %125 : vector<16x32xf32> to vector<2x8x32xf32>
    %c0_61 = arith.constant 0 : index
    %c0_62 = arith.constant 0 : index
    %c0_63 = arith.constant 0 : index
    %127 = vector.load %arg18[%c0_61, %c0_62, %c0_63] : memref<2x8x32xf32, #tpu.memory_space<vmem>>, vector<2x8x32xf32>
    tpu.vector_store %arg18[%c0_61, %c0_62, %c0_63], %126 {strides = array<i32>} : memref<2x8x32xf32, #tpu.memory_space<vmem>>, vector<2x8x32xf32>,
    return
  }
  func.func @transform_0(%arg0: i32) -> (i32, i32, i32) {
    %c0_i32 = arith.constant 0 : i32
    %c0_i32_0 = arith.constant 0 : i32
    %c0_i32_1 = arith.constant 0 : i32
    return %arg0, %c0_i32, %c0_i32_0 : i32, i32, i32
  }
  func.func @transform_1(%arg0: i32) -> (i32, i32) {
    %c0_i32 = arith.constant 0 : i32
    %c0_i32_0 = arith.constant 0 : i32
    %c0_i32_1 = arith.constant 0 : i32
    return %c0_i32, %c0_i32_0 : i32, i32
  }
  func.func @transform_2(%arg0: i32) -> (i32, i32) {
    %c0_i32 = arith.constant 0 : i32
    %c0_i32_0 = arith.constant 0 : i32
    %c0_i32_1 = arith.constant 0 : i32
    return %c0_i32, %c0_i32_0 : i32, i32
  }
  func.func @transform_3(%arg0: i32) -> (i32, i32) {
    %c0_i32 = arith.constant 0 : i32
    %c0_i32_0 = arith.constant 0 : i32
    %c0_i32_1 = arith.constant 0 : i32
    return %c0_i32, %c0_i32_0 : i32, i32
  }
  func.func @transform_4(%arg0: i32) -> (i32, i32) {
    %c0_i32 = arith.constant 0 : i32
    %c0_i32_0 = arith.constant 0 : i32
    %c0_i32_1 = arith.constant 0 : i32
    return %c0_i32, %c0_i32_0 : i32, i32
  }
  func.func @transform_5(%arg0: i32) -> (i32, i32) {
    %c0_i32 = arith.constant 0 : i32
    %c0_i32_0 = arith.constant 0 : i32
    %c0_i32_1 = arith.constant 0 : i32
    return %c0_i32, %c0_i32_0 : i32, i32
  }
  func.func @transform_6(%arg0: i32) -> (i32, i32) {
    %c0_i32 = arith.constant 0 : i32
    %c0_i32_0 = arith.constant 0 : i32
    %c0_i32_1 = arith.constant 0 : i32
    return %c0_i32, %c0_i32_0 : i32, i32
  }
  func.func @transform_7(%arg0: i32) -> (i32, i32) {
    %c0_i32 = arith.constant 0 : i32
    %c0_i32_0 = arith.constant 0 : i32
    %c0_i32_1 = arith.constant 0 : i32
    return %c0_i32, %c0_i32_0 : i32, i32
  }
  func.func @transform_8(%arg0: i32) -> (i32, i32) {
    %c0_i32 = arith.constant 0 : i32
    %c0_i32_0 = arith.constant 0 : i32
    %c0_i32_1 = arith.constant 0 : i32
    return %c0_i32, %c0_i32_0 : i32, i32
  }
  func.func @transform_9(%arg0: i32) -> (i32, i32) {
    %c0_i32 = arith.constant 0 : i32
    %c0_i32_0 = arith.constant 0 : i32
    %c0_i32_1 = arith.constant 0 : i32
    return %c0_i32, %c0_i32_0 : i32, i32
  }
  func.func @transform_10(%arg0: i32) -> (i32, i32) {
    %c0_i32 = arith.constant 0 : i32
    %c0_i32_0 = arith.constant 0 : i32
    %c0_i32_1 = arith.constant 0 : i32
    return %c0_i32, %c0_i32_0 : i32, i32
  }
  func.func @transform_11(%arg0: i32) -> (i32, i32) {
    %c0_i32 = arith.constant 0 : i32
    %c0_i32_0 = arith.constant 0 : i32
    %c0_i32_1 = arith.constant 0 : i32
    return %c0_i32, %c0_i32_0 : i32, i32
  }
  func.func @transform_12(%arg0: i32) -> (i32, i32) {
    %c0_i32 = arith.constant 0 : i32
    %c0_i32_0 = arith.constant 0 : i32
    %c0_i32_1 = arith.constant 0 : i32
    return %c0_i32, %c0_i32_0 : i32, i32
  }
  func.func @transform_13(%arg0: i32) -> (i32, i32) {
    %c0_i32 = arith.constant 0 : i32
    %c0_i32_0 = arith.constant 0 : i32
    %c0_i32_1 = arith.constant 0 : i32
    return %c0_i32, %c0_i32_0 : i32, i32
  }
  func.func @transform_14(%arg0: i32) -> (i32, i32) {
    %c0_i32 = arith.constant 0 : i32
    %c0_i32_0 = arith.constant 0 : i32
    %c0_i32_1 = arith.constant 0 : i32
    return %c0_i32, %c0_i32_0 : i32, i32
  }
  func.func @transform_15(%arg0: i32) -> (i32, i32) {
    %c0_i32 = arith.constant 0 : i32
    %c0_i32_0 = arith.constant 0 : i32
    %c0_i32_1 = arith.constant 0 : i32
    return %c0_i32, %c0_i32_0 : i32, i32
  }
  func.func @transform_16(%arg0: i32) -> (i32, i32) {
    %c0_i32 = arith.constant 0 : i32
    %c0_i32_0 = arith.constant 0 : i32
    %c0_i32_1 = arith.constant 0 : i32
    return %c0_i32, %c0_i32_0 : i32, i32
  }
  func.func @transform_17(%arg0: i32) -> (i32, i32, i32) {
    %c0_i32 = arith.constant 0 : i32
    %c0_i32_0 = arith.constant 0 : i32
    %c0_i32_1 = arith.constant 0 : i32
    return %arg0, %c0_i32, %c0_i32_0 : i32, i32, i32
  }
}

module attributes {stable_mosaic.version = 11 : i64} {
  func.func @transformer_encoder_kernel(%arg0: i32, %arg1: memref<2x8x32xf32, #tpu.memory_space<vmem>>, %arg2: memref<1x32xf32, #tpu.memory_space<vmem>>, %arg3: memref<1x32xf32, #tpu.memory_space<vmem>>, %arg4: memref<32x32xf32, #tpu.memory_space<vmem>>, %arg5: memref<1x32xf32, #tpu.memory_space<vmem>>, %arg6: memref<32x32xf32, #tpu.memory_space<vmem>>, %arg7: memref<1x32xf32, #tpu.memory_space<vmem>>, %arg8: memref<32x32xf32, #tpu.memory_space<vmem>>, %arg9: memref<1x32xf32, #tpu.memory_space<vmem>>, %arg10: memref<32x32xf32, #tpu.memory_space<vmem>>, %arg11: memref<1x32xf32, #tpu.memory_space<vmem>>, %arg12: memref<1x32xf32, #tpu.memory_space<vmem>>, %arg13: memref<1x32xf32, #tpu.memory_space<vmem>>, %arg14: memref<32x64xf32, #tpu.memory_space<vmem>>, %arg15: memref<1x64xf32, #tpu.memory_space<vmem>>, %arg16: memref<64x32xf32, #tpu.memory_space<vmem>>, %arg17: memref<1x32xf32, #tpu.memory_space<vmem>>, %arg18: memref<2x8x32xf32, #tpu.memory_space<vmem>>) attributes {dimension_semantics = [#tpu.dimension_semantics<parallel>], iteration_bounds = array<i64: 1>, scalar_prefetch = 0 : i64, scratch_operands = 0 : i64, tpu.core_type = #tpu.core_type<tc>, window_params = [{transform_indices = @transform_0, window_bounds = array<i64: 2, 8, 32>}, {pipeline_mode = #tpu.pipeline_mode<synchronous>, transform_indices = @transform_1, window_bounds = array<i64: 1, 32>}, {pipeline_mode = #tpu.pipeline_mode<synchronous>, transform_indices = @transform_2, window_bounds = array<i64: 1, 32>}, {pipeline_mode = #tpu.pipeline_mode<synchronous>, transform_indices = @transform_3, window_bounds = array<i64: 32, 32>}, {pipeline_mode = #tpu.pipeline_mode<synchronous>, transform_indices = @transform_4, window_bounds = array<i64: 1, 32>}, {pipeline_mode = #tpu.pipeline_mode<synchronous>, transform_indices = @transform_5, window_bounds = array<i64: 32, 32>}, {pipeline_mode = #tpu.pipeline_mode<synchronous>, transform_indices = @transform_6, window_bounds = array<i64: 1, 32>}, {pipeline_mode = #tpu.pipeline_mode<synchronous>, transform_indices = @transform_7, window_bounds = array<i64: 32, 32>}, {pipeline_mode = #tpu.pipeline_mode<synchronous>, transform_indices = @transform_8, window_bounds = array<i64: 1, 32>}, {pipeline_mode = #tpu.pipeline_mode<synchronous>, transform_indices = @transform_9, window_bounds = array<i64: 32, 32>}, {pipeline_mode = #tpu.pipeline_mode<synchronous>, transform_indices = @transform_10, window_bounds = array<i64: 1, 32>}, {pipeline_mode = #tpu.pipeline_mode<synchronous>, transform_indices = @transform_11, window_bounds = array<i64: 1, 32>}, {pipeline_mode = #tpu.pipeline_mode<synchronous>, transform_indices = @transform_12, window_bounds = array<i64: 1, 32>}, {pipeline_mode = #tpu.pipeline_mode<synchronous>, transform_indices = @transform_13, window_bounds = array<i64: 32, 64>}, {pipeline_mode = #tpu.pipeline_mode<synchronous>, transform_indices = @transform_14, window_bounds = array<i64: 1, 64>}, {pipeline_mode = #tpu.pipeline_mode<synchronous>, transform_indices = @transform_15, window_bounds = array<i64: 64, 32>}, {pipeline_mode = #tpu.pipeline_mode<synchronous>, transform_indices = @transform_16, window_bounds = array<i64: 1, 32>}, {transform_indices = @transform_17, window_bounds = array<i64: 2, 8, 32>}]} {
    %c0 = arith.constant 0 : index
    %c0_0 = arith.constant 0 : index
    %c0_1 = arith.constant 0 : index
    %0 = vector.load %arg1[%c0, %c0_0, %c0_1] : memref<2x8x32xf32, #tpu.memory_space<vmem>>, vector<2x8x32xf32>
    %1 = vector.shape_cast %0 : vector<2x8x32xf32> to vector<16x32xf32>
    %c0_2 = arith.constant 0 : index
    %c0_3 = arith.constant 0 : index
    %2 = vector.load %arg2[%c0_2, %c0_3] : memref<1x32xf32, #tpu.memory_space<vmem>>, vector<1x32xf32>
    %c0_4 = arith.constant 0 : index
    %c0_5 = arith.constant 0 : index
    %3 = vector.load %arg3[%c0_4, %c0_5] : memref<1x32xf32, #tpu.memory_space<vmem>>, vector<1x32xf32>
    %cst = arith.constant dense<0.000000e+00> : vector<16xf32>
    %4 = vector.multi_reduction <add>, %1, %cst [1] : vector<16x32xf32> to vector<16xf32>
    %5 = vector.shape_cast %4 : vector<16xf32> to vector<16x1xf32>
    %cst_6 = arith.constant 3.200000e+01 : f32
    %6 = vector.broadcast %cst_6 : f32 to vector<16x1xf32>
    %7 = arith.divf %5, %6 : vector<16x1xf32>
    %8 = vector.broadcast %7 : vector<16x1xf32> to vector<16x32xf32>
    %9 = arith.subf %1, %8 : vector<16x32xf32>
    %10 = arith.mulf %9, %9 : vector<16x32xf32>
    %cst_7 = arith.constant dense<0.000000e+00> : vector<16xf32>
    %11 = vector.multi_reduction <add>, %10, %cst_7 [1] : vector<16x32xf32> to vector<16xf32>
    %12 = vector.shape_cast %11 : vector<16xf32> to vector<16x1xf32>
    %cst_8 = arith.constant 3.200000e+01 : f32
    %13 = vector.broadcast %cst_8 : f32 to vector<16x1xf32>
    %14 = arith.divf %12, %13 : vector<16x1xf32>
    %15 = vector.broadcast %7 : vector<16x1xf32> to vector<16x32xf32>
    %16 = arith.subf %1, %15 : vector<16x32xf32>
    %cst_9 = arith.constant 9.99999974E-6 : f32
    %17 = vector.broadcast %cst_9 : f32 to vector<16x1xf32>
    %18 = arith.addf %14, %17 : vector<16x1xf32>
    %19 = math.rsqrt %18 : vector<16x1xf32>
    %20 = vector.broadcast %19 : vector<16x1xf32> to vector<16x32xf32>
    %21 = arith.mulf %16, %20 : vector<16x32xf32>
    %22 = vector.broadcast %2 : vector<1x32xf32> to vector<16x32xf32>
    %23 = arith.mulf %21, %22 : vector<16x32xf32>
    %24 = vector.broadcast %3 : vector<1x32xf32> to vector<16x32xf32>
    %25 = arith.addf %23, %24 : vector<16x32xf32>
    %c0_10 = arith.constant 0 : index
    %c0_11 = arith.constant 0 : index
    %26 = vector.load %arg4[%c0_10, %c0_11] : memref<32x32xf32, #tpu.memory_space<vmem>>, vector<32x32xf32>
    %cst_12 = arith.constant dense<0.000000e+00> : vector<16x32xf32>
    %27 = tpu.matmul %25, %26, %cst_12 {dimension_numbers = #tpu.dot_dimension_numbers<[1], [0], [0], [1], [0, 0, 1, 1], [], []>} : vector<16x32xf32>, vector<32x32xf32>, vector<16x32xf32> -> vector<16x32xf32>
    %c0_13 = arith.constant 0 : index
    %c0_14 = arith.constant 0 : index
    %28 = vector.load %arg5[%c0_13, %c0_14] : memref<1x32xf32, #tpu.memory_space<vmem>>, vector<1x32xf32>
    %29 = vector.broadcast %28 : vector<1x32xf32> to vector<16x32xf32>
    %30 = arith.addf %27, %29 : vector<16x32xf32>
    %c0_15 = arith.constant 0 : index
    %c0_16 = arith.constant 0 : index
    %31 = vector.load %arg6[%c0_15, %c0_16] : memref<32x32xf32, #tpu.memory_space<vmem>>, vector<32x32xf32>
    %cst_17 = arith.constant dense<0.000000e+00> : vector<16x32xf32>
    %32 = tpu.matmul %25, %31, %cst_17 {dimension_numbers = #tpu.dot_dimension_numbers<[1], [0], [0], [1], [0, 0, 1, 1], [], []>} : vector<16x32xf32>, vector<32x32xf32>, vector<16x32xf32> -> vector<16x32xf32>
    %c0_18 = arith.constant 0 : index
    %c0_19 = arith.constant 0 : index
    %33 = vector.load %arg7[%c0_18, %c0_19] : memref<1x32xf32, #tpu.memory_space<vmem>>, vector<1x32xf32>
    %34 = vector.broadcast %33 : vector<1x32xf32> to vector<16x32xf32>
    %35 = arith.addf %32, %34 : vector<16x32xf32>
    %c0_20 = arith.constant 0 : index
    %c0_21 = arith.constant 0 : index
    %36 = vector.load %arg8[%c0_20, %c0_21] : memref<32x32xf32, #tpu.memory_space<vmem>>, vector<32x32xf32>
    %cst_22 = arith.constant dense<0.000000e+00> : vector<16x32xf32>
    %37 = tpu.matmul %25, %36, %cst_22 {dimension_numbers = #tpu.dot_dimension_numbers<[1], [0], [0], [1], [0, 0, 1, 1], [], []>} : vector<16x32xf32>, vector<32x32xf32>, vector<16x32xf32> -> vector<16x32xf32>
    %c0_23 = arith.constant 0 : index
    %c0_24 = arith.constant 0 : index
    %38 = vector.load %arg9[%c0_23, %c0_24] : memref<1x32xf32, #tpu.memory_space<vmem>>, vector<1x32xf32>
    %39 = vector.broadcast %38 : vector<1x32xf32> to vector<16x32xf32>
    %40 = arith.addf %37, %39 : vector<16x32xf32>
    %41 = vector.shape_cast %30 : vector<16x32xf32> to vector<2x8x8x4xf32>
    %42 = tpu.transpose %41, [0, 2, 1, 3] : vector<2x8x8x4xf32> -> vector<2x8x8x4xf32>
    %43 = vector.shape_cast %42 : vector<2x8x8x4xf32> to vector<16x8x4xf32>
    %44 = vector.shape_cast %35 : vector<16x32xf32> to vector<2x8x8x4xf32>
    %45 = tpu.transpose %44, [0, 2, 1, 3] : vector<2x8x8x4xf32> -> vector<2x8x8x4xf32>
    %46 = vector.shape_cast %45 : vector<2x8x8x4xf32> to vector<16x8x4xf32>
    %47 = vector.shape_cast %40 : vector<16x32xf32> to vector<2x8x8x4xf32>
    %48 = tpu.transpose %47, [0, 2, 1, 3] : vector<2x8x8x4xf32> -> vector<2x8x8x4xf32>
    %49 = vector.shape_cast %48 : vector<2x8x8x4xf32> to vector<16x8x4xf32>
    "tpu.trace_start"() <{level = 10 : i32, message = "gnd,gmd->gnm"}> : () -> ()
    %cst_25 = arith.constant dense<0.000000e+00> : vector<16x8x8xf32>
    %50 = tpu.matmul %43, %46, %cst_25 {dimension_numbers = #tpu.dot_dimension_numbers<[2], [2], [1], [1], [0, 0, 0, 1, 1, 1], [0], [0]>} : vector<16x8x4xf32>, vector<16x8x4xf32>, vector<16x8x8xf32> -> vector<16x8x8xf32>
    "tpu.trace_stop"() : () -> ()
    %cst_26 = arith.constant dense<0xFF800000> : vector<16x8xf32>
    %51 = vector.multi_reduction <maximumf>, %50, %cst_26 [2] : vector<16x8x8xf32> to vector<16x8xf32>
    %52 = vector.shape_cast %51 : vector<16x8xf32> to vector<16x8x1xf32>
    %53 = vector.broadcast %52 : vector<16x8x1xf32> to vector<16x8x8xf32>
    %54 = arith.subf %50, %53 : vector<16x8x8xf32>
    %55 = math.exp %54 : vector<16x8x8xf32>
    %cst_27 = arith.constant dense<0.000000e+00> : vector<16x8xf32>
    %56 = vector.multi_reduction <add>, %55, %cst_27 [2] : vector<16x8x8xf32> to vector<16x8xf32>
    %57 = vector.shape_cast %56 : vector<16x8xf32> to vector<16x8x1xf32>
    %58 = tpu.reciprocal %57 {approx = true} : vector<16x8x1xf32> -> vector<16x8x1xf32>
    %59 = vector.broadcast %58 : vector<16x8x1xf32> to vector<16x8x8xf32>
    %60 = arith.mulf %55, %59 : vector<16x8x8xf32>
    "tpu.trace_start"() <{level = 10 : i32, message = "gnm,gmd->gnd"}> : () -> ()
    %cst_28 = arith.constant dense<0.000000e+00> : vector<16x8x4xf32>
    %61 = tpu.matmul %60, %49, %cst_28 {dimension_numbers = #tpu.dot_dimension_numbers<[2], [1], [1], [2], [0, 0, 0, 1, 1, 2], [0], [0]>} : vector<16x8x8xf32>, vector<16x8x4xf32>, vector<16x8x4xf32> -> vector<16x8x4xf32>
    "tpu.trace_stop"() : () -> ()
    %62 = vector.shape_cast %61 : vector<16x8x4xf32> to vector<2x8x8x4xf32>
    %63 = tpu.transpose %62, [0, 2, 1, 3] : vector<2x8x8x4xf32> -> vector<2x8x8x4xf32>
    %64 = vector.shape_cast %63 : vector<2x8x8x4xf32> to vector<16x32xf32>
    %c0_29 = arith.constant 0 : index
    %c0_30 = arith.constant 0 : index
    %65 = vector.load %arg10[%c0_29, %c0_30] : memref<32x32xf32, #tpu.memory_space<vmem>>, vector<32x32xf32>
    %cst_31 = arith.constant dense<0.000000e+00> : vector<16x32xf32>
    %66 = tpu.matmul %64, %65, %cst_31 {dimension_numbers = #tpu.dot_dimension_numbers<[1], [0], [0], [1], [0, 0, 1, 1], [], []>} : vector<16x32xf32>, vector<32x32xf32>, vector<16x32xf32> -> vector<16x32xf32>
    %c0_32 = arith.constant 0 : index
    %c0_33 = arith.constant 0 : index
    %67 = vector.load %arg11[%c0_32, %c0_33] : memref<1x32xf32, #tpu.memory_space<vmem>>, vector<1x32xf32>
    %68 = vector.broadcast %67 : vector<1x32xf32> to vector<16x32xf32>
    %69 = arith.addf %66, %68 : vector<16x32xf32>
    %70 = arith.addf %69, %1 : vector<16x32xf32>
    %c0_34 = arith.constant 0 : index
    %c0_35 = arith.constant 0 : index
    %71 = vector.load %arg12[%c0_34, %c0_35] : memref<1x32xf32, #tpu.memory_space<vmem>>, vector<1x32xf32>
    %c0_36 = arith.constant 0 : index
    %c0_37 = arith.constant 0 : index
    %72 = vector.load %arg13[%c0_36, %c0_37] : memref<1x32xf32, #tpu.memory_space<vmem>>, vector<1x32xf32>
    %cst_38 = arith.constant dense<0.000000e+00> : vector<16xf32>
    %73 = vector.multi_reduction <add>, %70, %cst_38 [1] : vector<16x32xf32> to vector<16xf32>
    %74 = vector.shape_cast %73 : vector<16xf32> to vector<16x1xf32>
    %cst_39 = arith.constant 3.200000e+01 : f32
    %75 = vector.broadcast %cst_39 : f32 to vector<16x1xf32>
    %76 = arith.divf %74, %75 : vector<16x1xf32>
    %77 = vector.broadcast %76 : vector<16x1xf32> to vector<16x32xf32>
    %78 = arith.subf %70, %77 : vector<16x32xf32>
    %79 = arith.mulf %78, %78 : vector<16x32xf32>
    %cst_40 = arith.constant dense<0.000000e+00> : vector<16xf32>
    %80 = vector.multi_reduction <add>, %79, %cst_40 [1] : vector<16x32xf32> to vector<16xf32>
    %81 = vector.shape_cast %80 : vector<16xf32> to vector<16x1xf32>
    %cst_41 = arith.constant 3.200000e+01 : f32
    %82 = vector.broadcast %cst_41 : f32 to vector<16x1xf32>
    %83 = arith.divf %81, %82 : vector<16x1xf32>
    %84 = vector.broadcast %76 : vector<16x1xf32> to vector<16x32xf32>
    %85 = arith.subf %70, %84 : vector<16x32xf32>
    %cst_42 = arith.constant 9.99999974E-6 : f32
    %86 = vector.broadcast %cst_42 : f32 to vector<16x1xf32>
    %87 = arith.addf %83, %86 : vector<16x1xf32>
    %88 = math.rsqrt %87 : vector<16x1xf32>
    %89 = vector.broadcast %88 : vector<16x1xf32> to vector<16x32xf32>
    %90 = arith.mulf %85, %89 : vector<16x32xf32>
    %91 = vector.broadcast %71 : vector<1x32xf32> to vector<16x32xf32>
    %92 = arith.mulf %90, %91 : vector<16x32xf32>
    %93 = vector.broadcast %72 : vector<1x32xf32> to vector<16x32xf32>
    %94 = arith.addf %92, %93 : vector<16x32xf32>
    %c0_43 = arith.constant 0 : index
    %c0_44 = arith.constant 0 : index
    %95 = vector.load %arg14[%c0_43, %c0_44] : memref<32x64xf32, #tpu.memory_space<vmem>>, vector<32x64xf32>
    %cst_45 = arith.constant dense<0.000000e+00> : vector<16x64xf32>
    %96 = tpu.matmul %94, %95, %cst_45 {dimension_numbers = #tpu.dot_dimension_numbers<[1], [0], [0], [1], [0, 0, 1, 1], [], []>} : vector<16x32xf32>, vector<32x64xf32>, vector<16x64xf32> -> vector<16x64xf32>
    %c0_46 = arith.constant 0 : index
    %c0_47 = arith.constant 0 : index
    %97 = vector.load %arg15[%c0_46, %c0_47] : memref<1x64xf32, #tpu.memory_space<vmem>>, vector<1x64xf32>
    %98 = vector.broadcast %97 : vector<1x64xf32> to vector<16x64xf32>
    %99 = arith.addf %96, %98 : vector<16x64xf32>
    %cst_48 = arith.constant 5.000000e-01 : f32
    %100 = vector.broadcast %cst_48 : f32 to vector<16x64xf32>
    %101 = arith.mulf %100, %99 : vector<16x64xf32>
    %cst_49 = arith.constant 2.000000e+00 : f32
    %102 = math.sqrt %cst_49 : f32
    %cst_50 = arith.constant 1.000000e+00 : f32
    %103 = arith.divf %cst_50, %102 : f32
    %104 = vector.broadcast %103 : f32 to vector<16x64xf32>
    %105 = arith.mulf %99, %104 : vector<16x64xf32>
    %106 = math.erf %105 : vector<16x64xf32>
    %cst_51 = arith.constant 1.000000e+00 : f32
    %107 = vector.broadcast %cst_51 : f32 to vector<16x64xf32>
    %108 = arith.addf %107, %106 : vector<16x64xf32>
    %109 = arith.mulf %101, %108 : vector<16x64xf32>
    %c0_52 = arith.constant 0 : index
    %c0_53 = arith.constant 0 : index
    %110 = vector.load %arg16[%c0_52, %c0_53] : memref<64x32xf32, #tpu.memory_space<vmem>>, vector<64x32xf32>
    %cst_54 = arith.constant dense<0.000000e+00> : vector<16x32xf32>
    %111 = tpu.matmul %109, %110, %cst_54 {dimension_numbers = #tpu.dot_dimension_numbers<[1], [0], [0], [1], [0, 0, 1, 1], [], []>} : vector<16x64xf32>, vector<64x32xf32>, vector<16x32xf32> -> vector<16x32xf32>
    %c0_55 = arith.constant 0 : index
    %c0_56 = arith.constant 0 : index
    %112 = vector.load %arg17[%c0_55, %c0_56] : memref<1x32xf32, #tpu.memory_space<vmem>>, vector<1x32xf32>
    %113 = vector.broadcast %112 : vector<1x32xf32> to vector<16x32xf32>
    %114 = arith.addf %111, %113 : vector<16x32xf32>
    %cst_57 = arith.constant 5.000000e-01 : f32
    %115 = vector.broadcast %cst_57 : f32 to vector<16x32xf32>
    %116 = arith.mulf %115, %114 : vector<16x32xf32>
    %cst_58 = arith.constant 2.000000e+00 : f32
    %117 = math.sqrt %cst_58 : f32
    %cst_59 = arith.constant 1.000000e+00 : f32
    %118 = arith.divf %cst_59, %117 : f32
    %119 = vector.broadcast %118 : f32 to vector<16x32xf32>
    %120 = arith.mulf %114, %119 : vector<16x32xf32>
    %121 = math.erf %120 : vector<16x32xf32>
    %cst_60 = arith.constant 1.000000e+00 : f32
    %122 = vector.broadcast %cst_60 : f32 to vector<16x32xf32>
    %123 = arith.addf %122, %121 : vector<16x32xf32>
    %124 = arith.mulf %116, %123 : vector<16x32xf32>
    %125 = arith.addf %124, %70 : vector<16x32xf32>
    %126 = vector.shape_cast %125 : vector<16x32xf32> to vector<2x8x32xf32>
    %c0_61 = arith.constant 0 : index
    %c0_62 = arith.constant 0 : index
    %c0_63 = arith.constant 0 : index
    %127 = vector.load %arg18[%c0_61, %c0_62, %c0_63] : memref<2x8x32xf32, #tpu.memory_space<vmem>>, vector<2x8x32xf32>
    tpu.vector_store %arg18[%c0_61, %c0_62, %c0_63], %126 {strides = array<i32>} : memref<2x8x32xf32, #tpu.memory_space<vmem>>, vector<2x8x32xf32>,
    return
  }
  func.func @transform_0(%arg0: i32) -> (i32, i32, i32) {
    %c0_i32 = arith.constant 0 : i32
    %c0_i32_0 = arith.constant 0 : i32
    %c0_i32_1 = arith.constant 0 : i32
    return %arg0, %c0_i32, %c0_i32_0 : i32, i32, i32
  }
  func.func @transform_1(%arg0: i32) -> (i32, i32) {
    %c0_i32 = arith.constant 0 : i32
    %c0_i32_0 = arith.constant 0 : i32
    %c0_i32_1 = arith.constant 0 : i32
    return %c0_i32, %c0_i32_0 : i32, i32
  }
  func.func @transform_2(%arg0: i32) -> (i32, i32) {
    %c0_i32 = arith.constant 0 : i32
    %c0_i32_0 = arith.constant 0 : i32
    %c0_i32_1 = arith.constant 0 : i32
    return %c0_i32, %c0_i32_0 : i32, i32
  }
  func.func @transform_3(%arg0: i32) -> (i32, i32) {
    %c0_i32 = arith.constant 0 : i32
    %c0_i32_0 = arith.constant 0 : i32
    %c0_i32_1 = arith.constant 0 : i32
    return %c0_i32, %c0_i32_0 : i32, i32
  }
  func.func @transform_4(%arg0: i32) -> (i32, i32) {
    %c0_i32 = arith.constant 0 : i32
    %c0_i32_0 = arith.constant 0 : i32
    %c0_i32_1 = arith.constant 0 : i32
    return %c0_i32, %c0_i32_0 : i32, i32
  }
  func.func @transform_5(%arg0: i32) -> (i32, i32) {
    %c0_i32 = arith.constant 0 : i32
    %c0_i32_0 = arith.constant 0 : i32
    %c0_i32_1 = arith.constant 0 : i32
    return %c0_i32, %c0_i32_0 : i32, i32
  }
  func.func @transform_6(%arg0: i32) -> (i32, i32) {
    %c0_i32 = arith.constant 0 : i32
    %c0_i32_0 = arith.constant 0 : i32
    %c0_i32_1 = arith.constant 0 : i32
    return %c0_i32, %c0_i32_0 : i32, i32
  }
  func.func @transform_7(%arg0: i32) -> (i32, i32) {
    %c0_i32 = arith.constant 0 : i32
    %c0_i32_0 = arith.constant 0 : i32
    %c0_i32_1 = arith.constant 0 : i32
    return %c0_i32, %c0_i32_0 : i32, i32
  }
  func.func @transform_8(%arg0: i32) -> (i32, i32) {
    %c0_i32 = arith.constant 0 : i32
    %c0_i32_0 = arith.constant 0 : i32
    %c0_i32_1 = arith.constant 0 : i32
    return %c0_i32, %c0_i32_0 : i32, i32
  }
  func.func @transform_9(%arg0: i32) -> (i32, i32) {
    %c0_i32 = arith.constant 0 : i32
    %c0_i32_0 = arith.constant 0 : i32
    %c0_i32_1 = arith.constant 0 : i32
    return %c0_i32, %c0_i32_0 : i32, i32
  }
  func.func @transform_10(%arg0: i32) -> (i32, i32) {
    %c0_i32 = arith.constant 0 : i32
    %c0_i32_0 = arith.constant 0 : i32
    %c0_i32_1 = arith.constant 0 : i32
    return %c0_i32, %c0_i32_0 : i32, i32
  }
  func.func @transform_11(%arg0: i32) -> (i32, i32) {
    %c0_i32 = arith.constant 0 : i32
    %c0_i32_0 = arith.constant 0 : i32
    %c0_i32_1 = arith.constant 0 : i32
    return %c0_i32, %c0_i32_0 : i32, i32
  }
  func.func @transform_12(%arg0: i32) -> (i32, i32) {
    %c0_i32 = arith.constant 0 : i32
    %c0_i32_0 = arith.constant 0 : i32
    %c0_i32_1 = arith.constant 0 : i32
    return %c0_i32, %c0_i32_0 : i32, i32
  }
  func.func @transform_13(%arg0: i32) -> (i32, i32) {
    %c0_i32 = arith.constant 0 : i32
    %c0_i32_0 = arith.constant 0 : i32
    %c0_i32_1 = arith.constant 0 : i32
    return %c0_i32, %c0_i32_0 : i32, i32
  }
  func.func @transform_14(%arg0: i32) -> (i32, i32) {
    %c0_i32 = arith.constant 0 : i32
    %c0_i32_0 = arith.constant 0 : i32
    %c0_i32_1 = arith.constant 0 : i32
    return %c0_i32, %c0_i32_0 : i32, i32
  }
  func.func @transform_15(%arg0: i32) -> (i32, i32) {
    %c0_i32 = arith.constant 0 : i32
    %c0_i32_0 = arith.constant 0 : i32
    %c0_i32_1 = arith.constant 0 : i32
    return %c0_i32, %c0_i32_0 : i32, i32
  }
  func.func @transform_16(%arg0: i32) -> (i32, i32) {
    %c0_i32 = arith.constant 0 : i32
    %c0_i32_0 = arith.constant 0 : i32
    %c0_i32_1 = arith.constant 0 : i32
    return %c0_i32, %c0_i32_0 : i32, i32
  }
  func.func @transform_17(%arg0: i32) -> (i32, i32, i32) {
    %c0_i32 = arith.constant 0 : i32
    %c0_i32_0 = arith.constant 0 : i32
    %c0_i32_1 = arith.constant 0 : i32
    return %arg0, %c0_i32, %c0_i32_0 : i32, i32, i32
  }
}

</mosaic_0001>

<llo_original>
// kernel: tpu_custom_call.1
$region0: #{tpu_custom_call.1}
  #allocation0 [shape = 'u32[]', space=smem, size = 0x4, offset = 0x4, fixed_abs, tag = 'smem constant byte address 0x4 - core index']
  #allocation1 [shape = 'u32[72,128]{1,0:T(1,128)}', space=vmem, size = 0x9000, scoped, tag = 'internal scratch']
  %s0 = inlined_call_operand.hbm [shape: f32[2,8,32], index: 0, kind: input, shape index: {}]
  %s1 = inlined_call_operand.hbm [shape: f32[1,32], index: 1, kind: input, shape index: {}]
  %s2 = inlined_call_operand.vmem [shape: f32[1,32], index: 2, kind: input, shape index: {}]
  %s3 = inlined_call_operand.vmem [shape: f32[32,32], index: 3, kind: input, shape index: {}]
  %s4 = inlined_call_operand.vmem [shape: f32[1,32], index: 4, kind: input, shape index: {}]
  %s5 = inlined_call_operand.vmem [shape: f32[32,32], index: 5, kind: input, shape index: {}]
  %s6 = inlined_call_operand.vmem [shape: f32[1,32], index: 6, kind: input, shape index: {}]
  %s7 = inlined_call_operand.vmem [shape: f32[32,32], index: 7, kind: input, shape index: {}]
  %s8 = inlined_call_operand.vmem [shape: f32[1,32], index: 8, kind: input, shape index: {}]
  %s9 = inlined_call_operand.hbm [shape: f32[32,32], index: 9, kind: input, shape index: {}]
  %s10 = inlined_call_operand.vmem [shape: f32[1,32], index: 10, kind: input, shape index: {}]
  %s11 = inlined_call_operand.vmem [shape: f32[1,32], index: 11, kind: input, shape index: {}]
  %s12 = inlined_call_operand.vmem [shape: f32[1,32], index: 12, kind: input, shape index: {}]
  %s13 = inlined_call_operand.hbm [shape: f32[32,64], index: 13, kind: input, shape index: {}]
  %s14 = inlined_call_operand.vmem [shape: f32[1,64], index: 14, kind: input, shape index: {}]
  %s15 = inlined_call_operand.vmem [shape: f32[64,32], index: 15, kind: input, shape index: {}]
  %s16 = inlined_call_operand.vmem [shape: f32[1,32], index: 16, kind: input, shape index: {}]
  %s17 = inlined_call_operand.hbm [shape: f32[2,8,32], index: 17, kind: output, shape index: {}]
  %s18 = sld [smem:[#allocation0]]
  $region94: #{tpu_custom_call.1} parent=0
    _
  %s20 = ssub.s32 1, %s18
  %s21 = scalar_select 0, %s20, %s18
  $region1: #{tpu_custom_call.1} parent=0
    #allocation2 [shape = 'u8[8192]{0}', space=vmem, size = 0x2000, scoped, tag = 'input window, operand 0, single buffered']
    #allocation3 [shape = 's32[1]{0}', space=sflag, size = 0x4, scoped, tag = 'scoped memory for tpu_custom_call.1']
    #allocation4 [shape = 's32[1]{0}', space=sflag, size = 0x4, scoped, tag = 'scoped memory for tpu_custom_call.1']
    #allocation5 [shape = 'u8[512]{0}', space=vmem, size = 0x400, scoped, tag = 'input window, operand 1, single buffered']
    #allocation6 [shape = 's32[1]{0}', space=sflag, size = 0x4, scoped, tag = 'scoped memory for tpu_custom_call.1']
    #allocation7 [shape = 'u8[16384]{0}', space=vmem, size = 0x4000, scoped, tag = 'input window, operand 9, single buffered']
    #allocation8 [shape = 'u8[16384]{0}', space=vmem, size = 0x4000, scoped, tag = 'input window, operand 13, single buffered']
    #allocation9 [shape = 's32[1]{0}', space=sflag, size = 0x4, scoped, tag = 'scoped memory for tpu_custom_call.1']
    #allocation10 [shape = 'u8[8192]{0}', space=vmem, size = 0x2000, scoped, tag = 'output window, operand 0, single buffered']
    %22 = vsyncpa [#allocation3], 0
    %23 = vsyncpa [#allocation6], 0
    %24 = vsyncpa [#allocation9], 0
    %25 = vsyncpa [#allocation4], 0
    // Predicated region
    $region2: #{tpu_custom_call.1} parent=1 // pred_check
      _
    $region3: #{tpu_custom_call.1} parent=1 // pred_check_branch
      %27 = sbr.rel (0) target = $region5
    $region4: #{tpu_custom_call.1} parent=1 // pred_region
      %29 = vsyncadd [#allocation3], 0
      %s30 = sshll.u32 %s0, 4
      %s31 = int_to_ptr.hbm [resolvable:$true] %s30
      %s32 = sshll.u32 [#allocation2], 4
      %s33 = int_to_ptr.vmem [resolvable:$true] %s32
      %38 = dma.hbm_to_vmem [thread:$0]  %s31, 256, %s33, [#allocation3], 128, 128, 8
    $region5: #{tpu_custom_call.1} parent=1 // pred_fallthru
      _
    // Predicated region
    $region6: #{tpu_custom_call.1} parent=1 // pred_check
      _
    $region7: #{tpu_custom_call.1} parent=1 // pred_check_branch
      %40 = sbr.rel (0) target = $region9
    $region8: #{tpu_custom_call.1} parent=1 // pred_region
      %42 = vsyncadd [#allocation6], 0
      %s44 = sshll.u32 %s1, 4
      %s45 = int_to_ptr.hbm [resolvable:$true] %s44
      %s46 = sshll.u32 [#allocation5], 4
      %s47 = int_to_ptr.vmem [resolvable:$true] %s46
      %49 = dma.hbm_to_vmem [thread:$0]  %s45, 16, %s47, [#allocation6]
    $region9: #{tpu_custom_call.1} parent=1 // pred_fallthru
      _
    // Predicated region
    $region10: #{tpu_custom_call.1} parent=1 // pred_check
      _
    $region11: #{tpu_custom_call.1} parent=1 // pred_check_branch
      %51 = sbr.rel (0) target = $region13
    $region12: #{tpu_custom_call.1} parent=1 // pred_region
      _
    $region13: #{tpu_custom_call.1} parent=1 // pred_fallthru
      _
    // Predicated region
    $region14: #{tpu_custom_call.1} parent=1 // pred_check
      _
    $region15: #{tpu_custom_call.1} parent=1 // pred_check_branch
      %53 = sbr.rel (0) target = $region17
    $region16: #{tpu_custom_call.1} parent=1 // pred_region
      _
    $region17: #{tpu_custom_call.1} parent=1 // pred_fallthru
      _
    // Predicated region
    $region18: #{tpu_custom_call.1} parent=1 // pred_check
      _
    $region19: #{tpu_custom_call.1} parent=1 // pred_check_branch
      %55 = sbr.rel (0) target = $region21
    $region20: #{tpu_custom_call.1} parent=1 // pred_region
      _
    $region21: #{tpu_custom_call.1} parent=1 // pred_fallthru
      _
    // Predicated region
    $region22: #{tpu_custom_call.1} parent=1 // pred_check
      _
    $region23: #{tpu_custom_call.1} parent=1 // pred_check_branch
      %57 = sbr.rel (0) target = $region25
    $region24: #{tpu_custom_call.1} parent=1 // pred_region
      _
    $region25: #{tpu_custom_call.1} parent=1 // pred_fallthru
      _
    // Predicated region
    $region26: #{tpu_custom_call.1} parent=1 // pred_check
      _
    $region27: #{tpu_custom_call.1} parent=1 // pred_check_branch
      %59 = sbr.rel (0) target = $region29
    $region28: #{tpu_custom_call.1} parent=1 // pred_region
      _
    $region29: #{tpu_custom_call.1} parent=1 // pred_fallthru
      _
    // Predicated region
    $region30: #{tpu_custom_call.1} parent=1 // pred_check
      _
    $region31: #{tpu_custom_call.1} parent=1 // pred_check_branch
      %61 = sbr.rel (0) target = $region33
    $region32: #{tpu_custom_call.1} parent=1 // pred_region
      _
    $region33: #{tpu_custom_call.1} parent=1 // pred_fallthru
      _
    // Predicated region
    $region34: #{tpu_custom_call.1} parent=1 // pred_check
      _
    $region35: #{tpu_custom_call.1} parent=1 // pred_check_branch
      %63 = sbr.rel (0) target = $region37
    $region36: #{tpu_custom_call.1} parent=1 // pred_region
      _
    $region37: #{tpu_custom_call.1} parent=1 // pred_fallthru
      _
    // Predicated region
    $region38: #{tpu_custom_call.1} parent=1 // pred_check
      _
    $region39: #{tpu_custom_call.1} parent=1 // pred_check_branch
      %65 = sbr.rel (0) target = $region41
    $region40: #{tpu_custom_call.1} parent=1 // pred_region
      %67 = vsyncadd [#allocation6], 0
      %s68 = sshll.u32 %s9, 4
      %s69 = int_to_ptr.hbm [resolvable:$true] %s68
      %s70 = sshll.u32 [#allocation7], 4
      %s71 = int_to_ptr.vmem [resolvable:$true] %s70
      %76 = dma.hbm_to_vmem [thread:$0]  %s69, 512, %s71, [#allocation6], 128, 128, 8
    $region41: #{tpu_custom_call.1} parent=1 // pred_fallthru
      _
    // Predicated region
    $region42: #{tpu_custom_call.1} parent=1 // pred_check
      _
    $region43: #{tpu_custom_call.1} parent=1 // pred_check_branch
      %78 = sbr.rel (0) target = $region45
    $region44: #{tpu_custom_call.1} parent=1 // pred_region
      _
    $region45: #{tpu_custom_call.1} parent=1 // pred_fallthru
      _
    // Predicated region
    $region46: #{tpu_custom_call.1} parent=1 // pred_check
      _
    $region47: #{tpu_custom_call.1} parent=1 // pred_check_branch
      %80 = sbr.rel (0) target = $region49
    $region48: #{tpu_custom_call.1} parent=1 // pred_region
      _
    $region49: #{tpu_custom_call.1} parent=1 // pred_fallthru
      _
    // Predicated region
    $region50: #{tpu_custom_call.1} parent=1 // pred_check
      _
    $region51: #{tpu_custom_call.1} parent=1 // pred_check_branch
      %82 = sbr.rel (0) target = $region53
    $region52: #{tpu_custom_call.1} parent=1 // pred_region
      _
    $region53: #{tpu_custom_call.1} parent=1 // pred_fallthru
      _
    // Predicated region
    $region54: #{tpu_custom_call.1} parent=1 // pred_check
      _
    $region55: #{tpu_custom_call.1} parent=1 // pred_check_branch
      %84 = sbr.rel (0) target = $region57
    $region56: #{tpu_custom_call.1} parent=1 // pred_region
      %86 = vsyncadd [#allocation9], 0
      %s87 = sshll.u32 %s13, 4
      %s88 = int_to_ptr.hbm [resolvable:$true] %s87
      %s89 = sshll.u32 [#allocation8], 4
      %s90 = int_to_ptr.vmem [resolvable:$true] %s89
      %95 = dma.hbm_to_vmem [thread:$0]  %s88, 512, %s90, [#allocation9], 128, 128, 8
    $region57: #{tpu_custom_call.1} parent=1 // pred_fallthru
      _
    // Predicated region
    $region58: #{tpu_custom_call.1} parent=1 // pred_check
      _
    $region59: #{tpu_custom_call.1} parent=1 // pred_check_branch
      %97 = sbr.rel (0) target = $region61
    $region60: #{tpu_custom_call.1} parent=1 // pred_region
      _
    $region61: #{tpu_custom_call.1} parent=1 // pred_fallthru
      _
    // Predicated region
    $region62: #{tpu_custom_call.1} parent=1 // pred_check
      _
    $region63: #{tpu_custom_call.1} parent=1 // pred_check_branch
      %99 = sbr.rel (0) target = $region65
    $region64: #{tpu_custom_call.1} parent=1 // pred_region
      _
    $region65: #{tpu_custom_call.1} parent=1 // pred_fallthru
      _
    // Predicated region
    $region66: #{tpu_custom_call.1} parent=1 // pred_check
      _
    $region67: #{tpu_custom_call.1} parent=1 // pred_check_branch
      %101 = sbr.rel (0) target = $region69
    $region68: #{tpu_custom_call.1} parent=1 // pred_region
      _
    $region69: #{tpu_custom_call.1} parent=1 // pred_fallthru
      _
    // Predicated region
    $region70: #{tpu_custom_call.1} parent=1 // pred_check
      _
    $region71: #{tpu_custom_call.1} parent=1 // pred_check_branch
      %103 = sbr.rel (0) target = $region73
    $region72: #{tpu_custom_call.1} parent=1 // pred_region
      %105 = dma.done [#allocation3], 256
    $region73: #{tpu_custom_call.1} parent=1 // pred_fallthru
      _
    // Predicated region
    $region74: #{tpu_custom_call.1} parent=1 // pred_check
      _
    $region75: #{tpu_custom_call.1} parent=1 // pred_check_branch
      %107 = sbr.rel (0) target = $region77
    $region76: #{tpu_custom_call.1} parent=1 // pred_region
      %109 = dma.done [#allocation6], 16
    $region77: #{tpu_custom_call.1} parent=1 // pred_fallthru
      _
    // Predicated region
    $region78: #{tpu_custom_call.1} parent=1 // pred_check
      _
    $region79: #{tpu_custom_call.1} parent=1 // pred_check_branch
      %111 = sbr.rel (0) target = $region81
    $region80: #{tpu_custom_call.1} parent=1 // pred_region
      %113 = dma.done [#allocation6], 512
    $region81: #{tpu_custom_call.1} parent=1 // pred_fallthru
      _
    // Predicated region
    $region82: #{tpu_custom_call.1} parent=1 // pred_check
      _
    $region83: #{tpu_custom_call.1} parent=1 // pred_check_branch
      %115 = sbr.rel (0) target = $region85
    $region84: #{tpu_custom_call.1} parent=1 // pred_region
      %117 = dma.done [#allocation9], 512
    $region85: #{tpu_custom_call.1} parent=1 // pred_fallthru
      _
    %v118 = vld [vmem:[#allocation2] sm:$0xff]
    %v119 = vld [vmem:[#allocation2 + $0x8] sm:$0xff]
    %v120 = vld [vmem:[#allocation5] sm:$0x1]
    %v121 = vld [vmem:[%s2] sm:$0x1]
    %vm122 = vcmask 261120
    %v123 = vsel %vm122, %v118, 0.0
    %124 = vadd.xlane.f32.xlu0 %v123
    %v125 = vpop.xlane.xlu0 %124
    %v126 = vsel %vm122, %v119, 0.0
    %127 = vadd.xlane.f32.xlu0 %v126
    %v128 = vpop.xlane.xlu0 %127
    %v129 = vrcp.pop 32.0
    %v130 = vmul.f32 32.0, %v129
    %v131 = vsub.f32 1.0, %v130
    %v132 = vmul.f32 %v129, %v131
    %v133 = vadd.f32 %v129, %v132
    %vm134 = vweird.f32 %v129
    %v135 = vsel %vm134, %v129, %v133
    %v136 = vmul.f32 %v125, %v135
    %v137 = vmul.f32 %v128, %v135
    %v138 = vsub.f32 %v118, %v136
    %v139 = vsub.f32 %v119, %v137
    %v140 = vmul.f32 %v138, %v138
    %v141 = vmul.f32 %v139, %v139
    %v142 = vsel %vm122, %v140, 0.0
    %143 = vadd.xlane.f32.xlu0 %v142
    %v144 = vpop.xlane.xlu0 %143
    %v145 = vsel %vm122, %v141, 0.0
    %146 = vadd.xlane.f32.xlu0 %v145
    %v147 = vpop.xlane.xlu0 %146
    %v148 = vmul.f32 %v144, %v135
    %v149 = vmul.f32 %v147, %v135
    %v150 = vadd.f32 %v148, 1e-05
    %v151 = vadd.f32 %v149, 1e-05
    %v152 = vrsqrt.pop %v150
    %v153 = vmul.f32 %v152, %v150
    %v154 = vmul.f32 %v153, %v152
    %v155 = vmul.f32 0.5, %v154
    %v156 = vsub.f32 1.5, %v155
    %v157 = vmul.f32 %v152, %v156
    %vm158 = vweird.f32 %v150
    %vm159 = vweird.f32 %v152
    %vm160 = vmor %vm158, %vm159
    %v161 = vsel %vm160, %v152, %v157
    %v162 = vrsqrt.pop %v151
    %v163 = vmul.f32 %v162, %v151
    %v164 = vmul.f32 %v163, %v162
    %v165 = vmul.f32 0.5, %v164
    %v166 = vsub.f32 1.5, %v165
    %v167 = vmul.f32 %v162, %v166
    %vm168 = vweird.f32 %v151
    %vm169 = vweird.f32 %v162
    %vm170 = vmor %vm168, %vm169
    %v171 = vsel %vm170, %v162, %v167
    %v172 = vmul.f32 %v138, %v161
    %v173 = vmul.f32 %v139, %v171
    %v175 = vperm.slane %v120, 0
    %v177 = vmul.f32 %v172, %v175
    %v178 = vmul.f32 %v173, %v175
    %v180 = vperm.slane %v121, 0
    %v182 = vadd.f32 %v177, %v180
    %v183 = vadd.f32 %v178, %v180
    %v184 = vld [vmem:[%s3] sm:$0xff]
    %v185 = vld [vmem:[%s3 + $0x8] sm:$0xff]
    %v186 = vld [vmem:[%s3 + $0x10] sm:$0xff]
    %v187 = vld [vmem:[%s3 + $0x18] sm:$0xff]
    %v188 = vld [vmem:[%s4] sm:$0x1]
    %v190 = vperm.slane %v188, 0
    %v193 = vsel %vm122, %v182, 0
    %v196 = vsel %vm122, %v183, 0
    %198 = vmatpush.msra.mxu0 0.0
    %199 = vmatpush.msra.mxu0 0.0
    %200 = vmatpush.msra.mxu0 0.0
    %201 = vmatpush.msra.mxu0 0.0
    %202 = vmatpush.msra.mxu0 0.0
    %203 = vmatpush.msra.mxu0 0.0
    %204 = vmatpush.msra.mxu0 0.0
    %205 = vmatpush.msra.mxu0 0.0
    %206 = vmatpush.msra.mxu0 0.0
    %207 = vmatpush.msra.mxu0 0.0
    %208 = vmatpush.msra.mxu0 0.0
    %209 = vmatpush.msra.mxu0 0.0
    %210 = vmatpush.msra.mxu0 %v187
    %211 = vmatpush.msra.mxu0 %v186
    %212 = vmatpush.msra.mxu0 %v185
    %213 = vmatpush.msra.mxu0 %v184
    %214 = vmatmul.f32.gmra.mxu0 %v193
    %v215 = vpop.f32.mrf.mxu0
    %v216 = vadd.f32 %v190, %v215
    %217 = vmatmul.f32.gmra.mxu0 %v196
    %v218 = vpop.f32.mrf.mxu0
    %v219 = vadd.f32 %v190, %v218
    %220 = vdwg.mxu0
    %v221 = vld [vmem:[%s5] sm:$0xff]
    %v222 = vld [vmem:[%s5 + $0x8] sm:$0xff]
    %v223 = vld [vmem:[%s5 + $0x10] sm:$0xff]
    %v224 = vld [vmem:[%s5 + $0x18] sm:$0xff]
    %v225 = vld [vmem:[%s6] sm:$0x1]
    %v227 = vperm.slane %v225, 0
    %229 = vmatpush.msra.mxu0 0.0
    %230 = vmatpush.msra.mxu0 0.0
    %231 = vmatpush.msra.mxu0 0.0
    %232 = vmatpush.msra.mxu0 0.0
    %233 = vmatpush.msra.mxu0 0.0
    %234 = vmatpush.msra.mxu0 0.0
    %235 = vmatpush.msra.mxu0 0.0
    %236 = vmatpush.msra.mxu0 0.0
    %237 = vmatpush.msra.mxu0 0.0
    %238 = vmatpush.msra.mxu0 0.0
    %239 = vmatpush.msra.mxu0 0.0
    %240 = vmatpush.msra.mxu0 0.0
    %241 = vmatpush.msra.mxu0 %v224
    %242 = vmatpush.msra.mxu0 %v223
    %243 = vmatpush.msra.mxu0 %v222
    %244 = vmatpush.msra.mxu0 %v221
    %245 = vmatmul.f32.gmra.mxu0 %v193
    %v246 = vpop.f32.mrf.mxu0
    %v247 = vadd.f32 %v227, %v246
    %248 = vmatmul.f32.gmra.mxu0 %v196
    %v249 = vpop.f32.mrf.mxu0
    %v250 = vadd.f32 %v227, %v249
    %251 = vdwg.mxu0
    %v252 = vld [vmem:[%s7] sm:$0xff]
    %v253 = vld [vmem:[%s7 + $0x8] sm:$0xff]
    %v254 = vld [vmem:[%s7 + $0x10] sm:$0xff]
    %v255 = vld [vmem:[%s7 + $0x18] sm:$0xff]
    %v256 = vld [vmem:[%s8] sm:$0x1]
    %v258 = vperm.slane %v256, 0
    %260 = vmatpush.msra.mxu0 0.0
    %261 = vmatpush.msra.mxu0 0.0
    %262 = vmatpush.msra.mxu0 0.0
    %263 = vmatpush.msra.mxu0 0.0
    %264 = vmatpush.msra.mxu0 0.0
    %265 = vmatpush.msra.mxu0 0.0
    %266 = vmatpush.msra.mxu0 0.0
    %267 = vmatpush.msra.mxu0 0.0
    %268 = vmatpush.msra.mxu0 0.0
    %269 = vmatpush.msra.mxu0 0.0
    %270 = vmatpush.msra.mxu0 0.0
    %271 = vmatpush.msra.mxu0 0.0
    %272 = vmatpush.msra.mxu0 %v255
    %273 = vmatpush.msra.mxu0 %v254
    %274 = vmatpush.msra.mxu0 %v253
    %275 = vmatpush.msra.mxu0 %v252
    %276 = vmatmul.f32.gmra.mxu0 %v193
    %v277 = vpop.f32.mrf.mxu0
    %v278 = vadd.f32 %v258, %v277
    %279 = vmatmul.f32.gmra.mxu0 %v196
    %v280 = vpop.f32.mrf.mxu0
    %v281 = vadd.f32 %v258, %v280
    %282 = vdwg.mxu0
    %285 = vrot.lane.b32.xlu0 %v216, 124
    %v286 = vpop.permute.xlu0 %285
    %287 = vrot.lane.b32.xlu0 %v219, 124
    %v288 = vpop.permute.xlu0 %287
    %291 = vrot.lane.b32.xlu0 %v216, 120
    %v292 = vpop.permute.xlu0 %291
    %293 = vrot.lane.b32.xlu0 %v219, 120
    %v294 = vpop.permute.xlu0 %293
    %297 = vrot.lane.b32.xlu0 %v216, 116
    %v298 = vpop.permute.xlu0 %297
    %299 = vrot.lane.b32.xlu0 %v219, 116
    %v300 = vpop.permute.xlu0 %299
    %303 = vrot.lane.b32.xlu0 %v216, 112
    %v304 = vpop.permute.xlu0 %303
    %305 = vrot.lane.b32.xlu0 %v219, 112
    %v306 = vpop.permute.xlu0 %305
    %309 = vrot.lane.b32.xlu0 %v216, 108
    %v310 = vpop.permute.xlu0 %309
    %311 = vrot.lane.b32.xlu0 %v219, 108
    %v312 = vpop.permute.xlu0 %311
    %315 = vrot.lane.b32.xlu0 %v216, 104
    %v316 = vpop.permute.xlu0 %315
    %317 = vrot.lane.b32.xlu0 %v219, 104
    %v318 = vpop.permute.xlu0 %317
    %321 = vrot.lane.b32.xlu0 %v216, 100
    %v322 = vpop.permute.xlu0 %321
    %323 = vrot.lane.b32.xlu0 %v219, 100
    %v324 = vpop.permute.xlu0 %323
    %v327 = vrot.slane %v292, 4
    %vm328 = vcmask 1047556
    %v329 = vsel %vm328, %v327, %v216
    %v330 = vrot.slane %v216, 4
    %v331 = vsel %vm328, %v292, %v330
    %v333 = vunpack.c.l.s4 1983009808
    %v334 = vunpack.c.0.s8 %v333
    %v335 = vperm.slane %v329, %v334
    %v337 = vunpack.c.l.s4 1983009808
    %v338 = vunpack.c.0.s8 %v337
    %v339 = vperm.slane %v331, %v338
    %v340 = vrot.slane %v298, 4
    %v341 = vsel %vm328, %v340, %v286
    %v342 = vrot.slane %v286, 4
    %v343 = vsel %vm328, %v298, %v342
    %v345 = vunpack.c.l.s4 1983009808
    %v346 = vunpack.c.0.s8 %v345
    %v347 = vperm.slane %v341, %v346
    %v349 = vunpack.c.l.s4 1983009808
    %v350 = vunpack.c.0.s8 %v349
    %v351 = vperm.slane %v343, %v350
    %v352 = vrot.slane %v316, 4
    %v353 = vsel %vm328, %v352, %v304
    %v354 = vrot.slane %v304, 4
    %v355 = vsel %vm328, %v316, %v354
    %v357 = vunpack.c.l.s4 1983009808
    %v358 = vunpack.c.0.s8 %v357
    %v359 = vperm.slane %v353, %v358
    %v361 = vunpack.c.l.s4 1983009808
    %v362 = vunpack.c.0.s8 %v361
    %v363 = vperm.slane %v355, %v362
    %v364 = vrot.slane %v322, 4
    %v365 = vsel %vm328, %v364, %v310
    %v366 = vrot.slane %v310, 4
    %v367 = vsel %vm328, %v322, %v366
    %v369 = vunpack.c.l.s4 1983009808
    %v370 = vunpack.c.0.s8 %v369
    %v371 = vperm.slane %v365, %v370
    %v373 = vunpack.c.l.s4 1983009808
    %v374 = vunpack.c.0.s8 %v373
    %v375 = vperm.slane %v367, %v374
    %v376 = vrot.slane %v347, 4
    %v377 = vsel %vm328, %v376, %v335
    %v378 = vrot.slane %v335, 4
    %v379 = vsel %vm328, %v347, %v378
    %v381 = vunpack.c.l.s4 1934713408
    %v382 = vunpack.c.0.s8 %v381
    %v383 = vperm.slane %v377, %v382
    %v385 = vunpack.c.l.s4 1934713408
    %v386 = vunpack.c.0.s8 %v385
    %v387 = vperm.slane %v379, %v386
    %v388 = vrot.slane %v351, 4
    %v389 = vsel %vm328, %v388, %v339
    %v390 = vrot.slane %v339, 4
    %v391 = vsel %vm328, %v351, %v390
    %v393 = vunpack.c.l.s4 1934713408
    %v394 = vunpack.c.0.s8 %v393
    %v395 = vperm.slane %v389, %v394
    %v397 = vunpack.c.l.s4 1934713408
    %v398 = vunpack.c.0.s8 %v397
    %v399 = vperm.slane %v391, %v398
    %v400 = vrot.slane %v371, 4
    %v401 = vsel %vm328, %v400, %v359
    %v402 = vrot.slane %v359, 4
    %v403 = vsel %vm328, %v371, %v402
    %v405 = vunpack.c.l.s4 1934713408
    %v406 = vunpack.c.0.s8 %v405
    %v407 = vperm.slane %v401, %v406
    %v409 = vunpack.c.l.s4 1934713408
    %v410 = vunpack.c.0.s8 %v409
    %v411 = vperm.slane %v403, %v410
    %v412 = vrot.slane %v375, 4
    %v413 = vsel %vm328, %v412, %v363
    %v414 = vrot.slane %v363, 4
    %v415 = vsel %vm328, %v375, %v414
    %v417 = vunpack.c.l.s4 1934713408
    %v418 = vunpack.c.0.s8 %v417
    %v419 = vperm.slane %v413, %v418
    %v421 = vunpack.c.l.s4 1934713408
    %v422 = vunpack.c.0.s8 %v421
    %v423 = vperm.slane %v415, %v422
    %v424 = vrot.slane %v407, 4
    %v425 = vsel %vm328, %v424, %v383
    %v426 = vrot.slane %v383, 4
    %v427 = vsel %vm328, %v407, %v426
    %v428 = vrot.slane %v411, 4
    %v429 = vsel %vm328, %v428, %v387
    %v430 = vrot.slane %v387, 4
    %v431 = vsel %vm328, %v411, %v430
    %v432 = vrot.slane %v419, 4
    %v433 = vsel %vm328, %v432, %v395
    %v434 = vrot.slane %v395, 4
    %v435 = vsel %vm328, %v419, %v434
    %v436 = vrot.slane %v423, 4
    %v437 = vsel %vm328, %v436, %v399
    %v438 = vrot.slane %v399, 4
    %v439 = vsel %vm328, %v423, %v438
    %v440 = vrot.slane %v294, 4
    %v441 = vsel %vm328, %v440, %v219
    %v442 = vrot.slane %v219, 4
    %v443 = vsel %vm328, %v294, %v442
    %v445 = vunpack.c.l.s4 1983009808
    %v446 = vunpack.c.0.s8 %v445
    %v447 = vperm.slane %v441, %v446
    %v449 = vunpack.c.l.s4 1983009808
    %v450 = vunpack.c.0.s8 %v449
    %v451 = vperm.slane %v443, %v450
    %v452 = vrot.slane %v300, 4
    %v453 = vsel %vm328, %v452, %v288
    %v454 = vrot.slane %v288, 4
    %v455 = vsel %vm328, %v300, %v454
    %v457 = vunpack.c.l.s4 1983009808
    %v458 = vunpack.c.0.s8 %v457
    %v459 = vperm.slane %v453, %v458
    %v461 = vunpack.c.l.s4 1983009808
    %v462 = vunpack.c.0.s8 %v461
    %v463 = vperm.slane %v455, %v462
    %v464 = vrot.slane %v318, 4
    %v465 = vsel %vm328, %v464, %v306
    %v466 = vrot.slane %v306, 4
    %v467 = vsel %vm328, %v318, %v466
    %v469 = vunpack.c.l.s4 1983009808
    %v470 = vunpack.c.0.s8 %v469
    %v471 = vperm.slane %v465, %v470
    %v473 = vunpack.c.l.s4 1983009808
    %v474 = vunpack.c.0.s8 %v473
    %v475 = vperm.slane %v467, %v474
    %v476 = vrot.slane %v324, 4
    %v477 = vsel %vm328, %v476, %v312
    %v478 = vrot.slane %v312, 4
    %v479 = vsel %vm328, %v324, %v478
    %v481 = vunpack.c.l.s4 1983009808
    %v482 = vunpack.c.0.s8 %v481
    %v483 = vperm.slane %v477, %v482
    %v485 = vunpack.c.l.s4 1983009808
    %v486 = vunpack.c.0.s8 %v485
    %v487 = vperm.slane %v479, %v486
    %v488 = vrot.slane %v459, 4
    %v489 = vsel %vm328, %v488, %v447
    %v490 = vrot.slane %v447, 4
    %v491 = vsel %vm328, %v459, %v490
    %v493 = vunpack.c.l.s4 1934713408
    %v494 = vunpack.c.0.s8 %v493
    %v495 = vperm.slane %v489, %v494
    %v497 = vunpack.c.l.s4 1934713408
    %v498 = vunpack.c.0.s8 %v497
    %v499 = vperm.slane %v491, %v498
    %v500 = vrot.slane %v463, 4
    %v501 = vsel %vm328, %v500, %v451
    %v502 = vrot.slane %v451, 4
    %v503 = vsel %vm328, %v463, %v502
    %v505 = vunpack.c.l.s4 1934713408
    %v506 = vunpack.c.0.s8 %v505
    %v507 = vperm.slane %v501, %v506
    %v509 = vunpack.c.l.s4 1934713408
    %v510 = vunpack.c.0.s8 %v509
    %v511 = vperm.slane %v503, %v510
    %v512 = vrot.slane %v483, 4
    %v513 = vsel %vm328, %v512, %v471
    %v514 = vrot.slane %v471, 4
    %v515 = vsel %vm328, %v483, %v514
    %v517 = vunpack.c.l.s4 1934713408
    %v518 = vunpack.c.0.s8 %v517
    %v519 = vperm.slane %v513, %v518
    %v521 = vunpack.c.l.s4 1934713408
    %v522 = vunpack.c.0.s8 %v521
    %v523 = vperm.slane %v515, %v522
    %v524 = vrot.slane %v487, 4
    %v525 = vsel %vm328, %v524, %v475
    %v526 = vrot.slane %v475, 4
    %v527 = vsel %vm328, %v487, %v526
    %v529 = vunpack.c.l.s4 1934713408
    %v530 = vunpack.c.0.s8 %v529
    %v531 = vperm.slane %v525, %v530
    %v533 = vunpack.c.l.s4 1934713408
    %v534 = vunpack.c.0.s8 %v533
    %v535 = vperm.slane %v527, %v534
    %v536 = vrot.slane %v519, 4
    %v537 = vsel %vm328, %v536, %v495
    %v538 = vrot.slane %v495, 4
    %v539 = vsel %vm328, %v519, %v538
    %v540 = vrot.slane %v523, 4
    %v541 = vsel %vm328, %v540, %v499
    %v542 = vrot.slane %v499, 4
    %v543 = vsel %vm328, %v523, %v542
    %v544 = vrot.slane %v531, 4
    %v545 = vsel %vm328, %v544, %v507
    %v546 = vrot.slane %v507, 4
    %v547 = vsel %vm328, %v531, %v546
    %v548 = vrot.slane %v535, 4
    %v549 = vsel %vm328, %v548, %v511
    %v550 = vrot.slane %v511, 4
    %v551 = vsel %vm328, %v535, %v550
    %v552 = vrot.slane %v429, 4
    %v553 = vsel %vm328, %v552, %v425
    %v554 = vrot.slane %v425, 4
    %v555 = vsel %vm328, %v429, %v554
    %v557 = vunpack.c.l.s4 1983009808
    %v558 = vunpack.c.0.s8 %v557
    %v559 = vperm.slane %v553, %v558
    %v561 = vunpack.c.l.s4 1983009808
    %v562 = vunpack.c.0.s8 %v561
    %v563 = vperm.slane %v555, %v562
    %v564 = vrot.slane %v431, 4
    %v565 = vsel %vm328, %v564, %v427
    %v566 = vrot.slane %v427, 4
    %v567 = vsel %vm328, %v431, %v566
    %v569 = vunpack.c.l.s4 1983009808
    %v570 = vunpack.c.0.s8 %v569
    %v571 = vperm.slane %v565, %v570
    %v573 = vunpack.c.l.s4 1983009808
    %v574 = vunpack.c.0.s8 %v573
    %v575 = vperm.slane %v567, %v574
    %v576 = vrot.slane %v437, 4
    %v577 = vsel %vm328, %v576, %v433
    %v578 = vrot.slane %v433, 4
    %v579 = vsel %vm328, %v437, %v578
    %v581 = vunpack.c.l.s4 1983009808
    %v582 = vunpack.c.0.s8 %v581
    %v583 = vperm.slane %v577, %v582
    %v585 = vunpack.c.l.s4 1983009808
    %v586 = vunpack.c.0.s8 %v585
    %v587 = vperm.slane %v579, %v586
    %v588 = vrot.slane %v439, 4
    %v589 = vsel %vm328, %v588, %v435
    %v590 = vrot.slane %v435, 4
    %v591 = vsel %vm328, %v439, %v590
    %v593 = vunpack.c.l.s4 1983009808
    %v594 = vunpack.c.0.s8 %v593
    %v595 = vperm.slane %v589, %v594
    %v597 = vunpack.c.l.s4 1983009808
    %v598 = vunpack.c.0.s8 %v597
    %v599 = vperm.slane %v591, %v598
    %v600 = vrot.slane %v571, 4
    %v601 = vsel %vm328, %v600, %v559
    %v602 = vrot.slane %v559, 4
    %v603 = vsel %vm328, %v571, %v602
    %v605 = vunpack.c.l.s4 1934713408
    %v606 = vunpack.c.0.s8 %v605
    %v607 = vperm.slane %v601, %v606
    %v609 = vunpack.c.l.s4 1934713408
    %v610 = vunpack.c.0.s8 %v609
    %v611 = vperm.slane %v603, %v610
    %v612 = vrot.slane %v575, 4
    %v613 = vsel %vm328, %v612, %v563
    %v614 = vrot.slane %v563, 4
    %v615 = vsel %vm328, %v575, %v614
    %v617 = vunpack.c.l.s4 1934713408
    %v618 = vunpack.c.0.s8 %v617
    %v619 = vperm.slane %v613, %v618
    %v621 = vunpack.c.l.s4 1934713408
    %v622 = vunpack.c.0.s8 %v621
    %v623 = vperm.slane %v615, %v622
    %v624 = vrot.slane %v595, 4
    %v625 = vsel %vm328, %v624, %v583
    %v626 = vrot.slane %v583, 4
    %v627 = vsel %vm328, %v595, %v626
    %v629 = vunpack.c.l.s4 1934713408
    %v630 = vunpack.c.0.s8 %v629
    %v631 = vperm.slane %v625, %v630
    %v633 = vunpack.c.l.s4 1934713408
    %v634 = vunpack.c.0.s8 %v633
    %v635 = vperm.slane %v627, %v634
    %v636 = vrot.slane %v599, 4
    %v637 = vsel %vm328, %v636, %v587
    %v638 = vrot.slane %v587, 4
    %v639 = vsel %vm328, %v599, %v638
    %v641 = vunpack.c.l.s4 1934713408
    %v642 = vunpack.c.0.s8 %v641
    %v643 = vperm.slane %v637, %v642
    %v645 = vunpack.c.l.s4 1934713408
    %v646 = vunpack.c.0.s8 %v645
    %v647 = vperm.slane %v639, %v646
    %v648 = vrot.slane %v631, 4
    %v649 = vsel %vm328, %v648, %v607
    %v650 = vrot.slane %v607, 4
    %v651 = vsel %vm328, %v631, %v650
    %v652 = vrot.slane %v635, 4
    %v653 = vsel %vm328, %v652, %v611
    %v654 = vrot.slane %v611, 4
    %v655 = vsel %vm328, %v635, %v654
    %v656 = vrot.slane %v643, 4
    %v657 = vsel %vm328, %v656, %v619
    %v658 = vrot.slane %v619, 4
    %v659 = vsel %vm328, %v643, %v658
    %v660 = vrot.slane %v647, 4
    %v661 = vsel %vm328, %v660, %v623
    %v662 = vrot.slane %v623, 4
    %v663 = vsel %vm328, %v647, %v662
    %v664 = vrot.slane %v541, 4
    %v665 = vsel %vm328, %v664, %v537
    %v666 = vrot.slane %v537, 4
    %v667 = vsel %vm328, %v541, %v666
    %v669 = vunpack.c.l.s4 1983009808
    %v670 = vunpack.c.0.s8 %v669
    %v671 = vperm.slane %v665, %v670
    %v673 = vunpack.c.l.s4 1983009808
    %v674 = vunpack.c.0.s8 %v673
    %v675 = vperm.slane %v667, %v674
    %v676 = vrot.slane %v543, 4
    %v677 = vsel %vm328, %v676, %v539
    %v678 = vrot.slane %v539, 4
    %v679 = vsel %vm328, %v543, %v678
    %v681 = vunpack.c.l.s4 1983009808
    %v682 = vunpack.c.0.s8 %v681
    %v683 = vperm.slane %v677, %v682
    %v685 = vunpack.c.l.s4 1983009808
    %v686 = vunpack.c.0.s8 %v685
    %v687 = vperm.slane %v679, %v686
    %v688 = vrot.slane %v549, 4
    %v689 = vsel %vm328, %v688, %v545
    %v690 = vrot.slane %v545, 4
    %v691 = vsel %vm328, %v549, %v690
    %v693 = vunpack.c.l.s4 1983009808
    %v694 = vunpack.c.0.s8 %v693
    %v695 = vperm.slane %v689, %v694
    %v697 = vunpack.c.l.s4 1983009808
    %v698 = vunpack.c.0.s8 %v697
    %v699 = vperm.slane %v691, %v698
    %v700 = vrot.slane %v551, 4
    %v701 = vsel %vm328, %v700, %v547
    %v702 = vrot.slane %v547, 4
    %v703 = vsel %vm328, %v551, %v702
    %v705 = vunpack.c.l.s4 1983009808
    %v706 = vunpack.c.0.s8 %v705
    %v707 = vperm.slane %v701, %v706
    %v709 = vunpack.c.l.s4 1983009808
    %v710 = vunpack.c.0.s8 %v709
    %v711 = vperm.slane %v703, %v710
    %v712 = vrot.slane %v683, 4
    %v713 = vsel %vm328, %v712, %v671
    %v714 = vrot.slane %v671, 4
    %v715 = vsel %vm328, %v683, %v714
    %v717 = vunpack.c.l.s4 1934713408
    %v718 = vunpack.c.0.s8 %v717
    %v719 = vperm.slane %v713, %v718
    %v721 = vunpack.c.l.s4 1934713408
    %v722 = vunpack.c.0.s8 %v721
    %v723 = vperm.slane %v715, %v722
    %v724 = vrot.slane %v687, 4
    %v725 = vsel %vm328, %v724, %v675
    %v726 = vrot.slane %v675, 4
    %v727 = vsel %vm328, %v687, %v726
    %v729 = vunpack.c.l.s4 1934713408
    %v730 = vunpack.c.0.s8 %v729
    %v731 = vperm.slane %v725, %v730
    %v733 = vunpack.c.l.s4 1934713408
    %v734 = vunpack.c.0.s8 %v733
    %v735 = vperm.slane %v727, %v734
    %v736 = vrot.slane %v707, 4
    %v737 = vsel %vm328, %v736, %v695
    %v738 = vrot.slane %v695, 4
    %v739 = vsel %vm328, %v707, %v738
    %v741 = vunpack.c.l.s4 1934713408
    %v742 = vunpack.c.0.s8 %v741
    %v743 = vperm.slane %v737, %v742
    %v745 = vunpack.c.l.s4 1934713408
    %v746 = vunpack.c.0.s8 %v745
    %v747 = vperm.slane %v739, %v746
    %v748 = vrot.slane %v711, 4
    %v749 = vsel %vm328, %v748, %v699
    %v750 = vrot.slane %v699, 4
    %v751 = vsel %vm328, %v711, %v750
    %v753 = vunpack.c.l.s4 1934713408
    %v754 = vunpack.c.0.s8 %v753
    %v755 = vperm.slane %v749, %v754
    %v757 = vunpack.c.l.s4 1934713408
    %v758 = vunpack.c.0.s8 %v757
    %v759 = vperm.slane %v751, %v758
    %v760 = vrot.slane %v743, 4
    %v761 = vsel %vm328, %v760, %v719
    %v762 = vrot.slane %v719, 4
    %v763 = vsel %vm328, %v743, %v762
    %v764 = vrot.slane %v747, 4
    %v765 = vsel %vm328, %v764, %v723
    %v766 = vrot.slane %v723, 4
    %v767 = vsel %vm328, %v747, %v766
    %v768 = vrot.slane %v755, 4
    %v769 = vsel %vm328, %v768, %v731
    %v770 = vrot.slane %v731, 4
    %v771 = vsel %vm328, %v755, %v770
    %v772 = vrot.slane %v759, 4
    %v773 = vsel %vm328, %v772, %v735
    %v774 = vrot.slane %v735, 4
    %v775 = vsel %vm328, %v759, %v774
    %778 = vrot.lane.b32.xlu0 %v247, 124
    %v779 = vpop.permute.xlu0 %778
    %780 = vrot.lane.b32.xlu0 %v250, 124
    %v781 = vpop.permute.xlu0 %780
    %784 = vrot.lane.b32.xlu0 %v247, 120
    %v785 = vpop.permute.xlu0 %784
    %786 = vrot.lane.b32.xlu0 %v250, 120
    %v787 = vpop.permute.xlu0 %786
    %790 = vrot.lane.b32.xlu0 %v247, 116
    %v791 = vpop.permute.xlu0 %790
    %792 = vrot.lane.b32.xlu0 %v250, 116
    %v793 = vpop.permute.xlu0 %792
    %796 = vrot.lane.b32.xlu0 %v247, 112
    %v797 = vpop.permute.xlu0 %796
    %798 = vrot.lane.b32.xlu0 %v250, 112
    %v799 = vpop.permute.xlu0 %798
    %802 = vrot.lane.b32.xlu0 %v247, 108
    %v803 = vpop.permute.xlu0 %802
    %804 = vrot.lane.b32.xlu0 %v250, 108
    %v805 = vpop.permute.xlu0 %804
    %808 = vrot.lane.b32.xlu0 %v247, 104
    %v809 = vpop.permute.xlu0 %808
    %810 = vrot.lane.b32.xlu0 %v250, 104
    %v811 = vpop.permute.xlu0 %810
    %814 = vrot.lane.b32.xlu0 %v247, 100
    %v815 = vpop.permute.xlu0 %814
    %816 = vrot.lane.b32.xlu0 %v250, 100
    %v817 = vpop.permute.xlu0 %816
    %v820 = vrot.slane %v785, 4
    %v821 = vsel %vm328, %v820, %v247
    %v822 = vrot.slane %v247, 4
    %v823 = vsel %vm328, %v785, %v822
    %v825 = vunpack.c.l.s4 1983009808
    %v826 = vunpack.c.0.s8 %v825
    %v827 = vperm.slane %v821, %v826
    %v829 = vunpack.c.l.s4 1983009808
    %v830 = vunpack.c.0.s8 %v829
    %v831 = vperm.slane %v823, %v830
    %v832 = vrot.slane %v791, 4
    %v833 = vsel %vm328, %v832, %v779
    %v834 = vrot.slane %v779, 4
    %v835 = vsel %vm328, %v791, %v834
    %v837 = vunpack.c.l.s4 1983009808
    %v838 = vunpack.c.0.s8 %v837
    %v839 = vperm.slane %v833, %v838
    %v841 = vunpack.c.l.s4 1983009808
    %v842 = vunpack.c.0.s8 %v841
    %v843 = vperm.slane %v835, %v842
    %v844 = vrot.slane %v809, 4
    %v845 = vsel %vm328, %v844, %v797
    %v846 = vrot.slane %v797, 4
    %v847 = vsel %vm328, %v809, %v846
    %v849 = vunpack.c.l.s4 1983009808
    %v850 = vunpack.c.0.s8 %v849
    %v851 = vperm.slane %v845, %v850
    %v853 = vunpack.c.l.s4 1983009808
    %v854 = vunpack.c.0.s8 %v853
    %v855 = vperm.slane %v847, %v854
    %v856 = vrot.slane %v815, 4
    %v857 = vsel %vm328, %v856, %v803
    %v858 = vrot.slane %v803, 4
    %v859 = vsel %vm328, %v815, %v858
    %v861 = vunpack.c.l.s4 1983009808
    %v862 = vunpack.c.0.s8 %v861
    %v863 = vperm.slane %v857, %v862
    %v865 = vunpack.c.l.s4 1983009808
    %v866 = vunpack.c.0.s8 %v865
    %v867 = vperm.slane %v859, %v866
    %v868 = vrot.slane %v839, 4
    %v869 = vsel %vm328, %v868, %v827
    %v870 = vrot.slane %v827, 4
    %v871 = vsel %vm328, %v839, %v870
    %v873 = vunpack.c.l.s4 1934713408
    %v874 = vunpack.c.0.s8 %v873
    %v875 = vperm.slane %v869, %v874
    %v877 = vunpack.c.l.s4 1934713408
    %v878 = vunpack.c.0.s8 %v877
    %v879 = vperm.slane %v871, %v878
    %v880 = vrot.slane %v843, 4
    %v881 = vsel %vm328, %v880, %v831
    %v882 = vrot.slane %v831, 4
    %v883 = vsel %vm328, %v843, %v882
    %v885 = vunpack.c.l.s4 1934713408
    %v886 = vunpack.c.0.s8 %v885
    %v887 = vperm.slane %v881, %v886
    %v889 = vunpack.c.l.s4 1934713408
    %v890 = vunpack.c.0.s8 %v889
    %v891 = vperm.slane %v883, %v890
    %v892 = vrot.slane %v863, 4
    %v893 = vsel %vm328, %v892, %v851
    %v894 = vrot.slane %v851, 4
    %v895 = vsel %vm328, %v863, %v894
    %v897 = vunpack.c.l.s4 1934713408
    %v898 = vunpack.c.0.s8 %v897
    %v899 = vperm.slane %v893, %v898
    %v901 = vunpack.c.l.s4 1934713408
    %v902 = vunpack.c.0.s8 %v901
    %v903 = vperm.slane %v895, %v902
    %v904 = vrot.slane %v867, 4
    %v905 = vsel %vm328, %v904, %v855
    %v906 = vrot.slane %v855, 4
    %v907 = vsel %vm328, %v867, %v906
    %v909 = vunpack.c.l.s4 1934713408
    %v910 = vunpack.c.0.s8 %v909
    %v911 = vperm.slane %v905, %v910
    %v913 = vunpack.c.l.s4 1934713408
    %v914 = vunpack.c.0.s8 %v913
    %v915 = vperm.slane %v907, %v914
    %v916 = vrot.slane %v899, 4
    %v917 = vsel %vm328, %v916, %v875
    %v918 = vrot.slane %v875, 4
    %v919 = vsel %vm328, %v899, %v918
    %v920 = vrot.slane %v903, 4
    %v921 = vsel %vm328, %v920, %v879
    %v922 = vrot.slane %v879, 4
    %v923 = vsel %vm328, %v903, %v922
    %v924 = vrot.slane %v911, 4
    %v925 = vsel %vm328, %v924, %v887
    %v926 = vrot.slane %v887, 4
    %v927 = vsel %vm328, %v911, %v926
    %v928 = vrot.slane %v915, 4
    %v929 = vsel %vm328, %v928, %v891
    %v930 = vrot.slane %v891, 4
    %v931 = vsel %vm328, %v915, %v930
    %v932 = vrot.slane %v787, 4
    %v933 = vsel %vm328, %v932, %v250
    %v934 = vrot.slane %v250, 4
    %v935 = vsel %vm328, %v787, %v934
    %v937 = vunpack.c.l.s4 1983009808
    %v938 = vunpack.c.0.s8 %v937
    %v939 = vperm.slane %v933, %v938
    %v941 = vunpack.c.l.s4 1983009808
    %v942 = vunpack.c.0.s8 %v941
    %v943 = vperm.slane %v935, %v942
    %v944 = vrot.slane %v793, 4
    %v945 = vsel %vm328, %v944, %v781
    %v946 = vrot.slane %v781, 4
    %v947 = vsel %vm328, %v793, %v946
    %v949 = vunpack.c.l.s4 1983009808
    %v950 = vunpack.c.0.s8 %v949
    %v951 = vperm.slane %v945, %v950
    %v953 = vunpack.c.l.s4 1983009808
    %v954 = vunpack.c.0.s8 %v953
    %v955 = vperm.slane %v947, %v954
    %v956 = vrot.slane %v811, 4
    %v957 = vsel %vm328, %v956, %v799
    %v958 = vrot.slane %v799, 4
    %v959 = vsel %vm328, %v811, %v958
    %v961 = vunpack.c.l.s4 1983009808
    %v962 = vunpack.c.0.s8 %v961
    %v963 = vperm.slane %v957, %v962
    %v965 = vunpack.c.l.s4 1983009808
    %v966 = vunpack.c.0.s8 %v965
    %v967 = vperm.slane %v959, %v966
    %v968 = vrot.slane %v817, 4
    %v969 = vsel %vm328, %v968, %v805
    %v970 = vrot.slane %v805, 4
    %v971 = vsel %vm328, %v817, %v970
    %v973 = vunpack.c.l.s4 1983009808
    %v974 = vunpack.c.0.s8 %v973
    %v975 = vperm.slane %v969, %v974
    %v977 = vunpack.c.l.s4 1983009808
    %v978 = vunpack.c.0.s8 %v977
    %v979 = vperm.slane %v971, %v978
    %v980 = vrot.slane %v951, 4
    %v981 = vsel %vm328, %v980, %v939
    %v982 = vrot.slane %v939, 4
    %v983 = vsel %vm328, %v951, %v982
    %v985 = vunpack.c.l.s4 1934713408
    %v986 = vunpack.c.0.s8 %v985
    %v987 = vperm.slane %v981, %v986
    %v989 = vunpack.c.l.s4 1934713408
    %v990 = vunpack.c.0.s8 %v989
    %v991 = vperm.slane %v983, %v990
    %v992 = vrot.slane %v955, 4
    %v993 = vsel %vm328, %v992, %v943
    %v994 = vrot.slane %v943, 4
    %v995 = vsel %vm328, %v955, %v994
    %v997 = vunpack.c.l.s4 1934713408
    %v998 = vunpack.c.0.s8 %v997
    %v999 = vperm.slane %v993, %v998
    %v1001 = vunpack.c.l.s4 1934713408
    %v1002 = vunpack.c.0.s8 %v1001
    %v1003 = vperm.slane %v995, %v1002
    %v1004 = vrot.slane %v975, 4
    %v1005 = vsel %vm328, %v1004, %v963
    %v1006 = vrot.slane %v963, 4
    %v1007 = vsel %vm328, %v975, %v1006
    %v1009 = vunpack.c.l.s4 1934713408
    %v1010 = vunpack.c.0.s8 %v1009
    %v1011 = vperm.slane %v1005, %v1010
    %v1013 = vunpack.c.l.s4 1934713408
    %v1014 = vunpack.c.0.s8 %v1013
    %v1015 = vperm.slane %v1007, %v1014
    %v1016 = vrot.slane %v979, 4
    %v1017 = vsel %vm328, %v1016, %v967
    %v1018 = vrot.slane %v967, 4
    %v1019 = vsel %vm328, %v979, %v1018
    %v1021 = vunpack.c.l.s4 1934713408
    %v1022 = vunpack.c.0.s8 %v1021
    %v1023 = vperm.slane %v1017, %v1022
    %v1025 = vunpack.c.l.s4 1934713408
    %v1026 = vunpack.c.0.s8 %v1025
    %v1027 = vperm.slane %v1019, %v1026
    %v1028 = vrot.slane %v1011, 4
    %v1029 = vsel %vm328, %v1028, %v987
    %v1030 = vrot.slane %v987, 4
    %v1031 = vsel %vm328, %v1011, %v1030
    %v1032 = vrot.slane %v1015, 4
    %v1033 = vsel %vm328, %v1032, %v991
    %v1034 = vrot.slane %v991, 4
    %v1035 = vsel %vm328, %v1015, %v1034
    %v1036 = vrot.slane %v1023, 4
    %v1037 = vsel %vm328, %v1036, %v999
    %v1038 = vrot.slane %v999, 4
    %v1039 = vsel %vm328, %v1023, %v1038
    %v1040 = vrot.slane %v1027, 4
    %v1041 = vsel %vm328, %v1040, %v1003
    %v1042 = vrot.slane %v1003, 4
    %v1043 = vsel %vm328, %v1027, %v1042
    %v1044 = vrot.slane %v921, 4
    %v1045 = vsel %vm328, %v1044, %v917
    %v1046 = vrot.slane %v917, 4
    %v1047 = vsel %vm328, %v921, %v1046
    %v1049 = vunpack.c.l.s4 1983009808
    %v1050 = vunpack.c.0.s8 %v1049
    %v1051 = vperm.slane %v1045, %v1050
    %v1053 = vunpack.c.l.s4 1983009808
    %v1054 = vunpack.c.0.s8 %v1053
    %v1055 = vperm.slane %v1047, %v1054
    %v1056 = vrot.slane %v923, 4
    %v1057 = vsel %vm328, %v1056, %v919
    %v1058 = vrot.slane %v919, 4
    %v1059 = vsel %vm328, %v923, %v1058
    %v1061 = vunpack.c.l.s4 1983009808
    %v1062 = vunpack.c.0.s8 %v1061
    %v1063 = vperm.slane %v1057, %v1062
    %v1065 = vunpack.c.l.s4 1983009808
    %v1066 = vunpack.c.0.s8 %v1065
    %v1067 = vperm.slane %v1059, %v1066
    %v1068 = vrot.slane %v929, 4
    %v1069 = vsel %vm328, %v1068, %v925
    %v1070 = vrot.slane %v925, 4
    %v1071 = vsel %vm328, %v929, %v1070
    %v1073 = vunpack.c.l.s4 1983009808
    %v1074 = vunpack.c.0.s8 %v1073
    %v1075 = vperm.slane %v1069, %v1074
    %v1077 = vunpack.c.l.s4 1983009808
    %v1078 = vunpack.c.0.s8 %v1077
    %v1079 = vperm.slane %v1071, %v1078
    %v1080 = vrot.slane %v931, 4
    %v1081 = vsel %vm328, %v1080, %v927
    %v1082 = vrot.slane %v927, 4
    %v1083 = vsel %vm328, %v931, %v1082
    %v1085 = vunpack.c.l.s4 1983009808
    %v1086 = vunpack.c.0.s8 %v1085
    %v1087 = vperm.slane %v1081, %v1086
    %v1089 = vunpack.c.l.s4 1983009808
    %v1090 = vunpack.c.0.s8 %v1089
    %v1091 = vperm.slane %v1083, %v1090
    %v1092 = vrot.slane %v1063, 4
    %v1093 = vsel %vm328, %v1092, %v1051
    %v1094 = vrot.slane %v1051, 4
    %v1095 = vsel %vm328, %v1063, %v1094
    %v1097 = vunpack.c.l.s4 1934713408
    %v1098 = vunpack.c.0.s8 %v1097
    %v1099 = vperm.slane %v1093, %v1098
    %v1101 = vunpack.c.l.s4 1934713408
    %v1102 = vunpack.c.0.s8 %v1101
    %v1103 = vperm.slane %v1095, %v1102
    %v1104 = vrot.slane %v1067, 4
    %v1105 = vsel %vm328, %v1104, %v1055
    %v1106 = vrot.slane %v1055, 4
    %v1107 = vsel %vm328, %v1067, %v1106
    %v1109 = vunpack.c.l.s4 1934713408
    %v1110 = vunpack.c.0.s8 %v1109
    %v1111 = vperm.slane %v1105, %v1110
    %v1113 = vunpack.c.l.s4 1934713408
    %v1114 = vunpack.c.0.s8 %v1113
    %v1115 = vperm.slane %v1107, %v1114
    %v1116 = vrot.slane %v1087, 4
    %v1117 = vsel %vm328, %v1116, %v1075
    %v1118 = vrot.slane %v1075, 4
    %v1119 = vsel %vm328, %v1087, %v1118
    %v1121 = vunpack.c.l.s4 1934713408
    %v1122 = vunpack.c.0.s8 %v1121
    %v1123 = vperm.slane %v1117, %v1122
    %v1125 = vunpack.c.l.s4 1934713408
    %v1126 = vunpack.c.0.s8 %v1125
    %v1127 = vperm.slane %v1119, %v1126
    %v1128 = vrot.slane %v1091, 4
    %v1129 = vsel %vm328, %v1128, %v1079
    %v1130 = vrot.slane %v1079, 4
    %v1131 = vsel %vm328, %v1091, %v1130
    %v1133 = vunpack.c.l.s4 1934713408
    %v1134 = vunpack.c.0.s8 %v1133
    %v1135 = vperm.slane %v1129, %v1134
    %v1137 = vunpack.c.l.s4 1934713408
    %v1138 = vunpack.c.0.s8 %v1137
    %v1139 = vperm.slane %v1131, %v1138
    %v1140 = vrot.slane %v1123, 4
    %v1141 = vsel %vm328, %v1140, %v1099
    %v1142 = vrot.slane %v1099, 4
    %v1143 = vsel %vm328, %v1123, %v1142
    %v1144 = vrot.slane %v1127, 4
    %v1145 = vsel %vm328, %v1144, %v1103
    %v1146 = vrot.slane %v1103, 4
    %v1147 = vsel %vm328, %v1127, %v1146
    %v1148 = vrot.slane %v1135, 4
    %v1149 = vsel %vm328, %v1148, %v1111
    %v1150 = vrot.slane %v1111, 4
    %v1151 = vsel %vm328, %v1135, %v1150
    %v1152 = vrot.slane %v1139, 4
    %v1153 = vsel %vm328, %v1152, %v1115
    %v1154 = vrot.slane %v1115, 4
    %v1155 = vsel %vm328, %v1139, %v1154
    %v1156 = vrot.slane %v1033, 4
    %v1157 = vsel %vm328, %v1156, %v1029
    %v1158 = vrot.slane %v1029, 4
    %v1159 = vsel %vm328, %v1033, %v1158
    %v1161 = vunpack.c.l.s4 1983009808
    %v1162 = vunpack.c.0.s8 %v1161
    %v1163 = vperm.slane %v1157, %v1162
    %v1165 = vunpack.c.l.s4 1983009808
    %v1166 = vunpack.c.0.s8 %v1165
    %v1167 = vperm.slane %v1159, %v1166
    %v1168 = vrot.slane %v1035, 4
    %v1169 = vsel %vm328, %v1168, %v1031
    %v1170 = vrot.slane %v1031, 4
    %v1171 = vsel %vm328, %v1035, %v1170
    %v1173 = vunpack.c.l.s4 1983009808
    %v1174 = vunpack.c.0.s8 %v1173
    %v1175 = vperm.slane %v1169, %v1174
    %v1177 = vunpack.c.l.s4 1983009808
    %v1178 = vunpack.c.0.s8 %v1177
    %v1179 = vperm.slane %v1171, %v1178
    %v1180 = vrot.slane %v1041, 4
    %v1181 = vsel %vm328, %v1180, %v1037
    %v1182 = vrot.slane %v1037, 4
    %v1183 = vsel %vm328, %v1041, %v1182
    %v1185 = vunpack.c.l.s4 1983009808
    %v1186 = vunpack.c.0.s8 %v1185
    %v1187 = vperm.slane %v1181, %v1186
    %v1189 = vunpack.c.l.s4 1983009808
    %v1190 = vunpack.c.0.s8 %v1189
    %v1191 = vperm.slane %v1183, %v1190
    %v1192 = vrot.slane %v1043, 4
    %v1193 = vsel %vm328, %v1192, %v1039
    %v1194 = vrot.slane %v1039, 4
    %v1195 = vsel %vm328, %v1043, %v1194
    %v1197 = vunpack.c.l.s4 1983009808
    %v1198 = vunpack.c.0.s8 %v1197
    %v1199 = vperm.slane %v1193, %v1198
    %v1201 = vunpack.c.l.s4 1983009808
    %v1202 = vunpack.c.0.s8 %v1201
    %v1203 = vperm.slane %v1195, %v1202
    %v1204 = vrot.slane %v1175, 4
    %v1205 = vsel %vm328, %v1204, %v1163
    %v1206 = vrot.slane %v1163, 4
    %v1207 = vsel %vm328, %v1175, %v1206
    %v1209 = vunpack.c.l.s4 1934713408
    %v1210 = vunpack.c.0.s8 %v1209
    %v1211 = vperm.slane %v1205, %v1210
    %v1213 = vunpack.c.l.s4 1934713408
    %v1214 = vunpack.c.0.s8 %v1213
    %v1215 = vperm.slane %v1207, %v1214
    %v1216 = vrot.slane %v1179, 4
    %v1217 = vsel %vm328, %v1216, %v1167
    %v1218 = vrot.slane %v1167, 4
    %v1219 = vsel %vm328, %v1179, %v1218
    %v1221 = vunpack.c.l.s4 1934713408
    %v1222 = vunpack.c.0.s8 %v1221
    %v1223 = vperm.slane %v1217, %v1222
    %v1225 = vunpack.c.l.s4 1934713408
    %v1226 = vunpack.c.0.s8 %v1225
    %v1227 = vperm.slane %v1219, %v1226
    %v1228 = vrot.slane %v1199, 4
    %v1229 = vsel %vm328, %v1228, %v1187
    %v1230 = vrot.slane %v1187, 4
    %v1231 = vsel %vm328, %v1199, %v1230
    %v1233 = vunpack.c.l.s4 1934713408
    %v1234 = vunpack.c.0.s8 %v1233
    %v1235 = vperm.slane %v1229, %v1234
    %v1237 = vunpack.c.l.s4 1934713408
    %v1238 = vunpack.c.0.s8 %v1237
    %v1239 = vperm.slane %v1231, %v1238
    %v1240 = vrot.slane %v1203, 4
    %v1241 = vsel %vm328, %v1240, %v1191
    %v1242 = vrot.slane %v1191, 4
    %v1243 = vsel %vm328, %v1203, %v1242
    %v1245 = vunpack.c.l.s4 1934713408
    %v1246 = vunpack.c.0.s8 %v1245
    %v1247 = vperm.slane %v1241, %v1246
    %v1249 = vunpack.c.l.s4 1934713408
    %v1250 = vunpack.c.0.s8 %v1249
    %v1251 = vperm.slane %v1243, %v1250
    %v1252 = vrot.slane %v1235, 4
    %v1253 = vsel %vm328, %v1252, %v1211
    %v1254 = vrot.slane %v1211, 4
    %v1255 = vsel %vm328, %v1235, %v1254
    %v1256 = vrot.slane %v1239, 4
    %v1257 = vsel %vm328, %v1256, %v1215
    %v1258 = vrot.slane %v1215, 4
    %v1259 = vsel %vm328, %v1239, %v1258
    %v1260 = vrot.slane %v1247, 4
    %v1261 = vsel %vm328, %v1260, %v1223
    %v1262 = vrot.slane %v1223, 4
    %v1263 = vsel %vm328, %v1247, %v1262
    %v1264 = vrot.slane %v1251, 4
    %v1265 = vsel %vm328, %v1264, %v1227
    %v1266 = vrot.slane %v1227, 4
    %v1267 = vsel %vm328, %v1251, %v1266
    %1270 = vrot.lane.b32.xlu0 %v278, 124
    %v1271 = vpop.permute.xlu0 %1270
    %1272 = vrot.lane.b32.xlu0 %v281, 124
    %v1273 = vpop.permute.xlu0 %1272
    %1276 = vrot.lane.b32.xlu0 %v278, 120
    %v1277 = vpop.permute.xlu0 %1276
    %1278 = vrot.lane.b32.xlu0 %v281, 120
    %v1279 = vpop.permute.xlu0 %1278
    %1282 = vrot.lane.b32.xlu0 %v278, 116
    %v1283 = vpop.permute.xlu0 %1282
    %1284 = vrot.lane.b32.xlu0 %v281, 116
    %v1285 = vpop.permute.xlu0 %1284
    %1288 = vrot.lane.b32.xlu0 %v278, 112
    %v1289 = vpop.permute.xlu0 %1288
    %1290 = vrot.lane.b32.xlu0 %v281, 112
    %v1291 = vpop.permute.xlu0 %1290
    %1294 = vrot.lane.b32.xlu0 %v278, 108
    %v1295 = vpop.permute.xlu0 %1294
    %1296 = vrot.lane.b32.xlu0 %v281, 108
    %v1297 = vpop.permute.xlu0 %1296
    %1300 = vrot.lane.b32.xlu0 %v278, 104
    %v1301 = vpop.permute.xlu0 %1300
    %1302 = vrot.lane.b32.xlu0 %v281, 104
    %v1303 = vpop.permute.xlu0 %1302
    %1306 = vrot.lane.b32.xlu0 %v278, 100
    %v1307 = vpop.permute.xlu0 %1306
    %1308 = vrot.lane.b32.xlu0 %v281, 100
    %v1309 = vpop.permute.xlu0 %1308
    %v1312 = vrot.slane %v1277, 4
    %v1313 = vsel %vm328, %v1312, %v278
    %v1314 = vrot.slane %v278, 4
    %v1315 = vsel %vm328, %v1277, %v1314
    %v1317 = vunpack.c.l.s4 1983009808
    %v1318 = vunpack.c.0.s8 %v1317
    %v1319 = vperm.slane %v1313, %v1318
    %v1321 = vunpack.c.l.s4 1983009808
    %v1322 = vunpack.c.0.s8 %v1321
    %v1323 = vperm.slane %v1315, %v1322
    %v1324 = vrot.slane %v1283, 4
    %v1325 = vsel %vm328, %v1324, %v1271
    %v1326 = vrot.slane %v1271, 4
    %v1327 = vsel %vm328, %v1283, %v1326
    %v1329 = vunpack.c.l.s4 1983009808
    %v1330 = vunpack.c.0.s8 %v1329
    %v1331 = vperm.slane %v1325, %v1330
    %v1333 = vunpack.c.l.s4 1983009808
    %v1334 = vunpack.c.0.s8 %v1333
    %v1335 = vperm.slane %v1327, %v1334
    %v1336 = vrot.slane %v1301, 4
    %v1337 = vsel %vm328, %v1336, %v1289
    %v1338 = vrot.slane %v1289, 4
    %v1339 = vsel %vm328, %v1301, %v1338
    %v1341 = vunpack.c.l.s4 1983009808
    %v1342 = vunpack.c.0.s8 %v1341
    %v1343 = vperm.slane %v1337, %v1342
    %v1345 = vunpack.c.l.s4 1983009808
    %v1346 = vunpack.c.0.s8 %v1345
    %v1347 = vperm.slane %v1339, %v1346
    %v1348 = vrot.slane %v1307, 4
    %v1349 = vsel %vm328, %v1348, %v1295
    %v1350 = vrot.slane %v1295, 4
    %v1351 = vsel %vm328, %v1307, %v1350
    %v1353 = vunpack.c.l.s4 1983009808
    %v1354 = vunpack.c.0.s8 %v1353
    %v1355 = vperm.slane %v1349, %v1354
    %v1357 = vunpack.c.l.s4 1983009808
    %v1358 = vunpack.c.0.s8 %v1357
    %v1359 = vperm.slane %v1351, %v1358
    %v1360 = vrot.slane %v1331, 4
    %v1361 = vsel %vm328, %v1360, %v1319
    %v1362 = vrot.slane %v1319, 4
    %v1363 = vsel %vm328, %v1331, %v1362
    %v1365 = vunpack.c.l.s4 1934713408
    %v1366 = vunpack.c.0.s8 %v1365
    %v1367 = vperm.slane %v1361, %v1366
    %v1369 = vunpack.c.l.s4 1934713408
    %v1370 = vunpack.c.0.s8 %v1369
    %v1371 = vperm.slane %v1363, %v1370
    %v1372 = vrot.slane %v1335, 4
    %v1373 = vsel %vm328, %v1372, %v1323
    %v1374 = vrot.slane %v1323, 4
    %v1375 = vsel %vm328, %v1335, %v1374
    %v1377 = vunpack.c.l.s4 1934713408
    %v1378 = vunpack.c.0.s8 %v1377
    %v1379 = vperm.slane %v1373, %v1378
    %v1381 = vunpack.c.l.s4 1934713408
    %v1382 = vunpack.c.0.s8 %v1381
    %v1383 = vperm.slane %v1375, %v1382
    %v1384 = vrot.slane %v1355, 4
    %v1385 = vsel %vm328, %v1384, %v1343
    %v1386 = vrot.slane %v1343, 4
    %v1387 = vsel %vm328, %v1355, %v1386
    %v1389 = vunpack.c.l.s4 1934713408
    %v1390 = vunpack.c.0.s8 %v1389
    %v1391 = vperm.slane %v1385, %v1390
    %v1393 = vunpack.c.l.s4 1934713408
    %v1394 = vunpack.c.0.s8 %v1393
    %v1395 = vperm.slane %v1387, %v1394
    %v1396 = vrot.slane %v1359, 4
    %v1397 = vsel %vm328, %v1396, %v1347
    %v1398 = vrot.slane %v1347, 4
    %v1399 = vsel %vm328, %v1359, %v1398
    %v1401 = vunpack.c.l.s4 1934713408
    %v1402 = vunpack.c.0.s8 %v1401
    %v1403 = vperm.slane %v1397, %v1402
    %v1405 = vunpack.c.l.s4 1934713408
    %v1406 = vunpack.c.0.s8 %v1405
    %v1407 = vperm.slane %v1399, %v1406
    %v1408 = vrot.slane %v1391, 4
    %v1409 = vsel %vm328, %v1408, %v1367
    %v1410 = vrot.slane %v1367, 4
    %v1411 = vsel %vm328, %v1391, %v1410
    %v1412 = vrot.slane %v1395, 4
    %v1413 = vsel %vm328, %v1412, %v1371
    %v1414 = vrot.slane %v1371, 4
    %v1415 = vsel %vm328, %v1395, %v1414
    %v1416 = vrot.slane %v1403, 4
    %v1417 = vsel %vm328, %v1416, %v1379
    %v1418 = vrot.slane %v1379, 4
    %v1419 = vsel %vm328, %v1403, %v1418
    %v1420 = vrot.slane %v1407, 4
    %v1421 = vsel %vm328, %v1420, %v1383
    %v1422 = vrot.slane %v1383, 4
    %v1423 = vsel %vm328, %v1407, %v1422
    %v1424 = vrot.slane %v1279, 4
    %v1425 = vsel %vm328, %v1424, %v281
    %v1426 = vrot.slane %v281, 4
    %v1427 = vsel %vm328, %v1279, %v1426
    %v1429 = vunpack.c.l.s4 1983009808
    %v1430 = vunpack.c.0.s8 %v1429
    %v1431 = vperm.slane %v1425, %v1430
    %v1433 = vunpack.c.l.s4 1983009808
    %v1434 = vunpack.c.0.s8 %v1433
    %v1435 = vperm.slane %v1427, %v1434
    %v1436 = vrot.slane %v1285, 4
    %v1437 = vsel %vm328, %v1436, %v1273
    %v1438 = vrot.slane %v1273, 4
    %v1439 = vsel %vm328, %v1285, %v1438
    %v1441 = vunpack.c.l.s4 1983009808
    %v1442 = vunpack.c.0.s8 %v1441
    %v1443 = vperm.slane %v1437, %v1442
    %v1445 = vunpack.c.l.s4 1983009808
    %v1446 = vunpack.c.0.s8 %v1445
    %v1447 = vperm.slane %v1439, %v1446
    %v1448 = vrot.slane %v1303, 4
    %v1449 = vsel %vm328, %v1448, %v1291
    %v1450 = vrot.slane %v1291, 4
    %v1451 = vsel %vm328, %v1303, %v1450
    %v1453 = vunpack.c.l.s4 1983009808
    %v1454 = vunpack.c.0.s8 %v1453
    %v1455 = vperm.slane %v1449, %v1454
    %v1457 = vunpack.c.l.s4 1983009808
    %v1458 = vunpack.c.0.s8 %v1457
    %v1459 = vperm.slane %v1451, %v1458
    %v1460 = vrot.slane %v1309, 4
    %v1461 = vsel %vm328, %v1460, %v1297
    %v1462 = vrot.slane %v1297, 4
    %v1463 = vsel %vm328, %v1309, %v1462
    %v1465 = vunpack.c.l.s4 1983009808
    %v1466 = vunpack.c.0.s8 %v1465
    %v1467 = vperm.slane %v1461, %v1466
    %v1469 = vunpack.c.l.s4 1983009808
    %v1470 = vunpack.c.0.s8 %v1469
    %v1471 = vperm.slane %v1463, %v1470
    %v1472 = vrot.slane %v1443, 4
    %v1473 = vsel %vm328, %v1472, %v1431
    %v1474 = vrot.slane %v1431, 4
    %v1475 = vsel %vm328, %v1443, %v1474
    %v1477 = vunpack.c.l.s4 1934713408
    %v1478 = vunpack.c.0.s8 %v1477
    %v1479 = vperm.slane %v1473, %v1478
    %v1481 = vunpack.c.l.s4 1934713408
    %v1482 = vunpack.c.0.s8 %v1481
    %v1483 = vperm.slane %v1475, %v1482
    %v1484 = vrot.slane %v1447, 4
    %v1485 = vsel %vm328, %v1484, %v1435
    %v1486 = vrot.slane %v1435, 4
    %v1487 = vsel %vm328, %v1447, %v1486
    %v1489 = vunpack.c.l.s4 1934713408
    %v1490 = vunpack.c.0.s8 %v1489
    %v1491 = vperm.slane %v1485, %v1490
    %v1493 = vunpack.c.l.s4 1934713408
    %v1494 = vunpack.c.0.s8 %v1493
    %v1495 = vperm.slane %v1487, %v1494
    %v1496 = vrot.slane %v1467, 4
    %v1497 = vsel %vm328, %v1496, %v1455
    %v1498 = vrot.slane %v1455, 4
    %v1499 = vsel %vm328, %v1467, %v1498
    %v1501 = vunpack.c.l.s4 1934713408
    %v1502 = vunpack.c.0.s8 %v1501
    %v1503 = vperm.slane %v1497, %v1502
    %v1505 = vunpack.c.l.s4 1934713408
    %v1506 = vunpack.c.0.s8 %v1505
    %v1507 = vperm.slane %v1499, %v1506
    %v1508 = vrot.slane %v1471, 4
    %v1509 = vsel %vm328, %v1508, %v1459
    %v1510 = vrot.slane %v1459, 4
    %v1511 = vsel %vm328, %v1471, %v1510
    %v1513 = vunpack.c.l.s4 1934713408
    %v1514 = vunpack.c.0.s8 %v1513
    %v1515 = vperm.slane %v1509, %v1514
    %v1517 = vunpack.c.l.s4 1934713408
    %v1518 = vunpack.c.0.s8 %v1517
    %v1519 = vperm.slane %v1511, %v1518
    %v1520 = vrot.slane %v1503, 4
    %v1521 = vsel %vm328, %v1520, %v1479
    %v1522 = vrot.slane %v1479, 4
    %v1523 = vsel %vm328, %v1503, %v1522
    %v1524 = vrot.slane %v1507, 4
    %v1525 = vsel %vm328, %v1524, %v1483
    %v1526 = vrot.slane %v1483, 4
    %v1527 = vsel %vm328, %v1507, %v1526
    %v1528 = vrot.slane %v1515, 4
    %v1529 = vsel %vm328, %v1528, %v1491
    %v1530 = vrot.slane %v1491, 4
    %v1531 = vsel %vm328, %v1515, %v1530
    %v1532 = vrot.slane %v1519, 4
    %v1533 = vsel %vm328, %v1532, %v1495
    %v1534 = vrot.slane %v1495, 4
    %v1535 = vsel %vm328, %v1519, %v1534
    %v1536 = vrot.slane %v1413, 4
    %v1537 = vsel %vm328, %v1536, %v1409
    %v1538 = vrot.slane %v1409, 4
    %v1539 = vsel %vm328, %v1413, %v1538
    %v1541 = vunpack.c.l.s4 1983009808
    %v1542 = vunpack.c.0.s8 %v1541
    %v1543 = vperm.slane %v1537, %v1542
    %v1545 = vunpack.c.l.s4 1983009808
    %v1546 = vunpack.c.0.s8 %v1545
    %v1547 = vperm.slane %v1539, %v1546
    %v1548 = vrot.slane %v1415, 4
    %v1549 = vsel %vm328, %v1548, %v1411
    %v1550 = vrot.slane %v1411, 4
    %v1551 = vsel %vm328, %v1415, %v1550
    %v1553 = vunpack.c.l.s4 1983009808
    %v1554 = vunpack.c.0.s8 %v1553
    %v1555 = vperm.slane %v1549, %v1554
    %v1557 = vunpack.c.l.s4 1983009808
    %v1558 = vunpack.c.0.s8 %v1557
    %v1559 = vperm.slane %v1551, %v1558
    %v1560 = vrot.slane %v1421, 4
    %v1561 = vsel %vm328, %v1560, %v1417
    %v1562 = vrot.slane %v1417, 4
    %v1563 = vsel %vm328, %v1421, %v1562
    %v1565 = vunpack.c.l.s4 1983009808
    %v1566 = vunpack.c.0.s8 %v1565
    %v1567 = vperm.slane %v1561, %v1566
    %v1569 = vunpack.c.l.s4 1983009808
    %v1570 = vunpack.c.0.s8 %v1569
    %v1571 = vperm.slane %v1563, %v1570
    %v1572 = vrot.slane %v1423, 4
    %v1573 = vsel %vm328, %v1572, %v1419
    %v1574 = vrot.slane %v1419, 4
    %v1575 = vsel %vm328, %v1423, %v1574
    %v1577 = vunpack.c.l.s4 1983009808
    %v1578 = vunpack.c.0.s8 %v1577
    %v1579 = vperm.slane %v1573, %v1578
    %v1581 = vunpack.c.l.s4 1983009808
    %v1582 = vunpack.c.0.s8 %v1581
    %v1583 = vperm.slane %v1575, %v1582
    %v1584 = vrot.slane %v1555, 4
    %v1585 = vsel %vm328, %v1584, %v1543
    %v1586 = vrot.slane %v1543, 4
    %v1587 = vsel %vm328, %v1555, %v1586
    %v1589 = vunpack.c.l.s4 1934713408
    %v1590 = vunpack.c.0.s8 %v1589
    %v1591 = vperm.slane %v1585, %v1590
    %v1593 = vunpack.c.l.s4 1934713408
    %v1594 = vunpack.c.0.s8 %v1593
    %v1595 = vperm.slane %v1587, %v1594
    %v1596 = vrot.slane %v1559, 4
    %v1597 = vsel %vm328, %v1596, %v1547
    %v1598 = vrot.slane %v1547, 4
    %v1599 = vsel %vm328, %v1559, %v1598
    %v1601 = vunpack.c.l.s4 1934713408
    %v1602 = vunpack.c.0.s8 %v1601
    %v1603 = vperm.slane %v1597, %v1602
    %v1605 = vunpack.c.l.s4 1934713408
    %v1606 = vunpack.c.0.s8 %v1605
    %v1607 = vperm.slane %v1599, %v1606
    %v1608 = vrot.slane %v1579, 4
    %v1609 = vsel %vm328, %v1608, %v1567
    %v1610 = vrot.slane %v1567, 4
    %v1611 = vsel %vm328, %v1579, %v1610
    %v1613 = vunpack.c.l.s4 1934713408
    %v1614 = vunpack.c.0.s8 %v1613
    %v1615 = vperm.slane %v1609, %v1614
    %v1617 = vunpack.c.l.s4 1934713408
    %v1618 = vunpack.c.0.s8 %v1617
    %v1619 = vperm.slane %v1611, %v1618
    %v1620 = vrot.slane %v1583, 4
    %v1621 = vsel %vm328, %v1620, %v1571
    %v1622 = vrot.slane %v1571, 4
    %v1623 = vsel %vm328, %v1583, %v1622
    %v1625 = vunpack.c.l.s4 1934713408
    %v1626 = vunpack.c.0.s8 %v1625
    %v1627 = vperm.slane %v1621, %v1626
    %v1629 = vunpack.c.l.s4 1934713408
    %v1630 = vunpack.c.0.s8 %v1629
    %v1631 = vperm.slane %v1623, %v1630
    %v1632 = vrot.slane %v1615, 4
    %v1633 = vsel %vm328, %v1632, %v1591
    %v1634 = vrot.slane %v1591, 4
    %v1635 = vsel %vm328, %v1615, %v1634
    %v1636 = vrot.slane %v1619, 4
    %v1637 = vsel %vm328, %v1636, %v1595
    %v1638 = vrot.slane %v1595, 4
    %v1639 = vsel %vm328, %v1619, %v1638
    %v1640 = vrot.slane %v1627, 4
    %v1641 = vsel %vm328, %v1640, %v1603
    %v1642 = vrot.slane %v1603, 4
    %v1643 = vsel %vm328, %v1627, %v1642
    %v1644 = vrot.slane %v1631, 4
    %v1645 = vsel %vm328, %v1644, %v1607
    %v1646 = vrot.slane %v1607, 4
    %v1647 = vsel %vm328, %v1631, %v1646
    %v1648 = vrot.slane %v1525, 4
    %v1649 = vsel %vm328, %v1648, %v1521
    %v1650 = vrot.slane %v1521, 4
    %v1651 = vsel %vm328, %v1525, %v1650
    %v1653 = vunpack.c.l.s4 1983009808
    %v1654 = vunpack.c.0.s8 %v1653
    %v1655 = vperm.slane %v1649, %v1654
    %v1657 = vunpack.c.l.s4 1983009808
    %v1658 = vunpack.c.0.s8 %v1657
    %v1659 = vperm.slane %v1651, %v1658
    %v1660 = vrot.slane %v1527, 4
    %v1661 = vsel %vm328, %v1660, %v1523
    %v1662 = vrot.slane %v1523, 4
    %v1663 = vsel %vm328, %v1527, %v1662
    %v1665 = vunpack.c.l.s4 1983009808
    %v1666 = vunpack.c.0.s8 %v1665
    %v1667 = vperm.slane %v1661, %v1666
    %v1669 = vunpack.c.l.s4 1983009808
    %v1670 = vunpack.c.0.s8 %v1669
    %v1671 = vperm.slane %v1663, %v1670
    %v1672 = vrot.slane %v1533, 4
    %v1673 = vsel %vm328, %v1672, %v1529
    %v1674 = vrot.slane %v1529, 4
    %v1675 = vsel %vm328, %v1533, %v1674
    %v1677 = vunpack.c.l.s4 1983009808
    %v1678 = vunpack.c.0.s8 %v1677
    %v1679 = vperm.slane %v1673, %v1678
    %v1681 = vunpack.c.l.s4 1983009808
    %v1682 = vunpack.c.0.s8 %v1681
    %v1683 = vperm.slane %v1675, %v1682
    %v1684 = vrot.slane %v1535, 4
    %v1685 = vsel %vm328, %v1684, %v1531
    %v1686 = vrot.slane %v1531, 4
    %v1687 = vsel %vm328, %v1535, %v1686
    %v1689 = vunpack.c.l.s4 1983009808
    %v1690 = vunpack.c.0.s8 %v1689
    %v1691 = vperm.slane %v1685, %v1690
    %v1693 = vunpack.c.l.s4 1983009808
    %v1694 = vunpack.c.0.s8 %v1693
    %v1695 = vperm.slane %v1687, %v1694
    %v1696 = vrot.slane %v1667, 4
    %v1697 = vsel %vm328, %v1696, %v1655
    %v1698 = vrot.slane %v1655, 4
    %v1699 = vsel %vm328, %v1667, %v1698
    %v1701 = vunpack.c.l.s4 1934713408
    %v1702 = vunpack.c.0.s8 %v1701
    %v1703 = vperm.slane %v1697, %v1702
    %v1705 = vunpack.c.l.s4 1934713408
    %v1706 = vunpack.c.0.s8 %v1705
    %v1707 = vperm.slane %v1699, %v1706
    %v1708 = vrot.slane %v1671, 4
    %v1709 = vsel %vm328, %v1708, %v1659
    %v1710 = vrot.slane %v1659, 4
    %v1711 = vsel %vm328, %v1671, %v1710
    %v1713 = vunpack.c.l.s4 1934713408
    %v1714 = vunpack.c.0.s8 %v1713
    %v1715 = vperm.slane %v1709, %v1714
    %v1717 = vunpack.c.l.s4 1934713408
    %v1718 = vunpack.c.0.s8 %v1717
    %v1719 = vperm.slane %v1711, %v1718
    %v1720 = vrot.slane %v1691, 4
    %v1721 = vsel %vm328, %v1720, %v1679
    %v1722 = vrot.slane %v1679, 4
    %v1723 = vsel %vm328, %v1691, %v1722
    %v1725 = vunpack.c.l.s4 1934713408
    %v1726 = vunpack.c.0.s8 %v1725
    %v1727 = vperm.slane %v1721, %v1726
    %v1729 = vunpack.c.l.s4 1934713408
    %v1730 = vunpack.c.0.s8 %v1729
    %v1731 = vperm.slane %v1723, %v1730
    %v1732 = vrot.slane %v1695, 4
    %v1733 = vsel %vm328, %v1732, %v1683
    %v1734 = vrot.slane %v1683, 4
    %v1735 = vsel %vm328, %v1695, %v1734
    %v1737 = vunpack.c.l.s4 1934713408
    %v1738 = vunpack.c.0.s8 %v1737
    %v1739 = vperm.slane %v1733, %v1738
    %v1741 = vunpack.c.l.s4 1934713408
    %v1742 = vunpack.c.0.s8 %v1741
    %v1743 = vperm.slane %v1735, %v1742
    %v1744 = vrot.slane %v1727, 4
    %v1745 = vsel %vm328, %v1744, %v1703
    %v1746 = vrot.slane %v1703, 4
    %v1747 = vsel %vm328, %v1727, %v1746
    %v1748 = vrot.slane %v1731, 4
    %v1749 = vsel %vm328, %v1748, %v1707
    %v1750 = vrot.slane %v1707, 4
    %v1751 = vsel %vm328, %v1731, %v1750
    %v1752 = vrot.slane %v1739, 4
    %v1753 = vsel %vm328, %v1752, %v1715
    %v1754 = vrot.slane %v1715, 4
    %v1755 = vsel %vm328, %v1739, %v1754
    %v1756 = vrot.slane %v1743, 4
    %v1757 = vsel %vm328, %v1756, %v1719
    %v1758 = vrot.slane %v1719, 4
    %v1759 = vsel %vm328, %v1743, %v1758
    %vm1760 = vcmask 31744
    %v1762 = vsel %vm1760, %v649, 0
    %v1765 = vsel %vm1760, %v1141, 0
    %1767 = vmatpush.xpose.msra.mxu0 0.0
    %1768 = vmatpush.xpose.msra.mxu0 0.0
    %1769 = vmatpush.xpose.msra.mxu0 0.0
    %1770 = vmatpush.xpose.msra.mxu0 0.0
    %1771 = vmatpush.xpose.msra.mxu0 0.0
    %1772 = vmatpush.xpose.msra.mxu0 0.0
    %1773 = vmatpush.xpose.msra.mxu0 0.0
    %1774 = vmatpush.xpose.msra.mxu0 0.0
    %1775 = vmatpush.xpose.msra.mxu0 0.0
    %1776 = vmatpush.xpose.msra.mxu0 0.0
    %1777 = vmatpush.xpose.msra.mxu0 0.0
    %1778 = vmatpush.xpose.msra.mxu0 0.0
    %1779 = vmatpush.xpose.msra.mxu0 0.0
    %1780 = vmatpush.xpose.msra.mxu0 0.0
    %1781 = vmatpush.xpose.msra.mxu0 0.0
    %1782 = vmatpush.xpose.msra.mxu0 %v1765
    %1783 = vmatmul.f32.gmra.mxu0 %v1762
    %v1784 = vpop.f32.mrf.mxu0
    %v1785 = vadd.f32 0.0, %v1784
    %1786 = vdwg.mxu0
    %v1788 = vsel %vm1760, %v651, 0
    %v1791 = vsel %vm1760, %v1143, 0
    %1793 = vmatpush.xpose.msra.mxu0 0.0
    %1794 = vmatpush.xpose.msra.mxu0 0.0
    %1795 = vmatpush.xpose.msra.mxu0 0.0
    %1796 = vmatpush.xpose.msra.mxu0 0.0
    %1797 = vmatpush.xpose.msra.mxu0 0.0
    %1798 = vmatpush.xpose.msra.mxu0 0.0
    %1799 = vmatpush.xpose.msra.mxu0 0.0
    %1800 = vmatpush.xpose.msra.mxu0 0.0
    %1801 = vmatpush.xpose.msra.mxu0 0.0
    %1802 = vmatpush.xpose.msra.mxu0 0.0
    %1803 = vmatpush.xpose.msra.mxu0 0.0
    %1804 = vmatpush.xpose.msra.mxu0 0.0
    %1805 = vmatpush.xpose.msra.mxu0 0.0
    %1806 = vmatpush.xpose.msra.mxu0 0.0
    %1807 = vmatpush.xpose.msra.mxu0 0.0
    %1808 = vmatpush.xpose.msra.mxu0 %v1791
    %1809 = vmatmul.f32.gmra.mxu0 %v1788
    %v1810 = vpop.f32.mrf.mxu0
    %v1811 = vadd.f32 0.0, %v1810
    %1812 = vdwg.mxu0
    %v1814 = vsel %vm1760, %v653, 0
    %v1817 = vsel %vm1760, %v1145, 0
    %1819 = vmatpush.xpose.msra.mxu0 0.0
    %1820 = vmatpush.xpose.msra.mxu0 0.0
    %1821 = vmatpush.xpose.msra.mxu0 0.0
    %1822 = vmatpush.xpose.msra.mxu0 0.0
    %1823 = vmatpush.xpose.msra.mxu0 0.0
    %1824 = vmatpush.xpose.msra.mxu0 0.0
    %1825 = vmatpush.xpose.msra.mxu0 0.0
    %1826 = vmatpush.xpose.msra.mxu0 0.0
    %1827 = vmatpush.xpose.msra.mxu0 0.0
    %1828 = vmatpush.xpose.msra.mxu0 0.0
    %1829 = vmatpush.xpose.msra.mxu0 0.0
    %1830 = vmatpush.xpose.msra.mxu0 0.0
    %1831 = vmatpush.xpose.msra.mxu0 0.0
    %1832 = vmatpush.xpose.msra.mxu0 0.0
    %1833 = vmatpush.xpose.msra.mxu0 0.0
    %1834 = vmatpush.xpose.msra.mxu0 %v1817
    %1835 = vmatmul.f32.gmra.mxu0 %v1814
    %v1836 = vpop.f32.mrf.mxu0
    %v1837 = vadd.f32 0.0, %v1836
    %1838 = vdwg.mxu0
    %v1840 = vsel %vm1760, %v655, 0
    %v1843 = vsel %vm1760, %v1147, 0
    %1845 = vmatpush.xpose.msra.mxu0 0.0
    %1846 = vmatpush.xpose.msra.mxu0 0.0
    %1847 = vmatpush.xpose.msra.mxu0 0.0
    %1848 = vmatpush.xpose.msra.mxu0 0.0
    %1849 = vmatpush.xpose.msra.mxu0 0.0
    %1850 = vmatpush.xpose.msra.mxu0 0.0
    %1851 = vmatpush.xpose.msra.mxu0 0.0
    %1852 = vmatpush.xpose.msra.mxu0 0.0
    %1853 = vmatpush.xpose.msra.mxu0 0.0
    %1854 = vmatpush.xpose.msra.mxu0 0.0
    %1855 = vmatpush.xpose.msra.mxu0 0.0
    %1856 = vmatpush.xpose.msra.mxu0 0.0
    %1857 = vmatpush.xpose.msra.mxu0 0.0
    %1858 = vmatpush.xpose.msra.mxu0 0.0
    %1859 = vmatpush.xpose.msra.mxu0 0.0
    %1860 = vmatpush.xpose.msra.mxu0 %v1843
    %1861 = vmatmul.f32.gmra.mxu0 %v1840
    %v1862 = vpop.f32.mrf.mxu0
    %v1863 = vadd.f32 0.0, %v1862
    %1864 = vdwg.mxu0
    %v1866 = vsel %vm1760, %v657, 0
    %v1869 = vsel %vm1760, %v1149, 0
    %1871 = vmatpush.xpose.msra.mxu0 0.0
    %1872 = vmatpush.xpose.msra.mxu0 0.0
    %1873 = vmatpush.xpose.msra.mxu0 0.0
    %1874 = vmatpush.xpose.msra.mxu0 0.0
    %1875 = vmatpush.xpose.msra.mxu0 0.0
    %1876 = vmatpush.xpose.msra.mxu0 0.0
    %1877 = vmatpush.xpose.msra.mxu0 0.0
    %1878 = vmatpush.xpose.msra.mxu0 0.0
    %1879 = vmatpush.xpose.msra.mxu0 0.0
    %1880 = vmatpush.xpose.msra.mxu0 0.0
    %1881 = vmatpush.xpose.msra.mxu0 0.0
    %1882 = vmatpush.xpose.msra.mxu0 0.0
    %1883 = vmatpush.xpose.msra.mxu0 0.0
    %1884 = vmatpush.xpose.msra.mxu0 0.0
    %1885 = vmatpush.xpose.msra.mxu0 0.0
    %1886 = vmatpush.xpose.msra.mxu0 %v1869
    %1887 = vmatmul.f32.gmra.mxu0 %v1866
    %v1888 = vpop.f32.mrf.mxu0
    %v1889 = vadd.f32 0.0, %v1888
    %1890 = vdwg.mxu0
    %v1892 = vsel %vm1760, %v659, 0
    %v1895 = vsel %vm1760, %v1151, 0
    %1897 = vmatpush.xpose.msra.mxu0 0.0
    %1898 = vmatpush.xpose.msra.mxu0 0.0
    %1899 = vmatpush.xpose.msra.mxu0 0.0
    %1900 = vmatpush.xpose.msra.mxu0 0.0
    %1901 = vmatpush.xpose.msra.mxu0 0.0
    %1902 = vmatpush.xpose.msra.mxu0 0.0
    %1903 = vmatpush.xpose.msra.mxu0 0.0
    %1904 = vmatpush.xpose.msra.mxu0 0.0
    %1905 = vmatpush.xpose.msra.mxu0 0.0
    %1906 = vmatpush.xpose.msra.mxu0 0.0
    %1907 = vmatpush.xpose.msra.mxu0 0.0
    %1908 = vmatpush.xpose.msra.mxu0 0.0
    %1909 = vmatpush.xpose.msra.mxu0 0.0
    %1910 = vmatpush.xpose.msra.mxu0 0.0
    %1911 = vmatpush.xpose.msra.mxu0 0.0
    %1912 = vmatpush.xpose.msra.mxu0 %v1895
    %1913 = vmatmul.f32.gmra.mxu0 %v1892
    %v1914 = vpop.f32.mrf.mxu0
    %v1915 = vadd.f32 0.0, %v1914
    %1916 = vdwg.mxu0
    %v1918 = vsel %vm1760, %v661, 0
    %v1921 = vsel %vm1760, %v1153, 0
    %1923 = vmatpush.xpose.msra.mxu0 0.0
    %1924 = vmatpush.xpose.msra.mxu0 0.0
    %1925 = vmatpush.xpose.msra.mxu0 0.0
    %1926 = vmatpush.xpose.msra.mxu0 0.0
    %1927 = vmatpush.xpose.msra.mxu0 0.0
    %1928 = vmatpush.xpose.msra.mxu0 0.0
    %1929 = vmatpush.xpose.msra.mxu0 0.0
    %1930 = vmatpush.xpose.msra.mxu0 0.0
    %1931 = vmatpush.xpose.msra.mxu0 0.0
    %1932 = vmatpush.xpose.msra.mxu0 0.0
    %1933 = vmatpush.xpose.msra.mxu0 0.0
    %1934 = vmatpush.xpose.msra.mxu0 0.0
    %1935 = vmatpush.xpose.msra.mxu0 0.0
    %1936 = vmatpush.xpose.msra.mxu0 0.0
    %1937 = vmatpush.xpose.msra.mxu0 0.0
    %1938 = vmatpush.xpose.msra.mxu0 %v1921
    %1939 = vmatmul.f32.gmra.mxu0 %v1918
    %v1940 = vpop.f32.mrf.mxu0
    %v1941 = vadd.f32 0.0, %v1940
    %1942 = vdwg.mxu0
    %v1944 = vsel %vm1760, %v663, 0
    %v1947 = vsel %vm1760, %v1155, 0
    %1949 = vmatpush.xpose.msra.mxu0 0.0
    %1950 = vmatpush.xpose.msra.mxu0 0.0
    %1951 = vmatpush.xpose.msra.mxu0 0.0
    %1952 = vmatpush.xpose.msra.mxu0 0.0
    %1953 = vmatpush.xpose.msra.mxu0 0.0
    %1954 = vmatpush.xpose.msra.mxu0 0.0
    %1955 = vmatpush.xpose.msra.mxu0 0.0
    %1956 = vmatpush.xpose.msra.mxu0 0.0
    %1957 = vmatpush.xpose.msra.mxu0 0.0
    %1958 = vmatpush.xpose.msra.mxu0 0.0
    %1959 = vmatpush.xpose.msra.mxu0 0.0
    %1960 = vmatpush.xpose.msra.mxu0 0.0
    %1961 = vmatpush.xpose.msra.mxu0 0.0
    %1962 = vmatpush.xpose.msra.mxu0 0.0
    %1963 = vmatpush.xpose.msra.mxu0 0.0
    %1964 = vmatpush.xpose.msra.mxu0 %v1947
    %1965 = vmatmul.f32.gmra.mxu0 %v1944
    %v1966 = vpop.f32.mrf.mxu0
    %v1967 = vadd.f32 0.0, %v1966
    %1968 = vdwg.mxu0
    %v1970 = vsel %vm1760, %v761, 0
    %v1973 = vsel %vm1760, %v1253, 0
    %1975 = vmatpush.xpose.msra.mxu0 0.0
    %1976 = vmatpush.xpose.msra.mxu0 0.0
    %1977 = vmatpush.xpose.msra.mxu0 0.0
    %1978 = vmatpush.xpose.msra.mxu0 0.0
    %1979 = vmatpush.xpose.msra.mxu0 0.0
    %1980 = vmatpush.xpose.msra.mxu0 0.0
    %1981 = vmatpush.xpose.msra.mxu0 0.0
    %1982 = vmatpush.xpose.msra.mxu0 0.0
    %1983 = vmatpush.xpose.msra.mxu0 0.0
    %1984 = vmatpush.xpose.msra.mxu0 0.0
    %1985 = vmatpush.xpose.msra.mxu0 0.0
    %1986 = vmatpush.xpose.msra.mxu0 0.0
    %1987 = vmatpush.xpose.msra.mxu0 0.0
    %1988 = vmatpush.xpose.msra.mxu0 0.0
    %1989 = vmatpush.xpose.msra.mxu0 0.0
    %1990 = vmatpush.xpose.msra.mxu0 %v1973
    %1991 = vmatmul.f32.gmra.mxu0 %v1970
    %v1992 = vpop.f32.mrf.mxu0
    %v1993 = vadd.f32 0.0, %v1992
    %1994 = vdwg.mxu0
    %v1996 = vsel %vm1760, %v763, 0
    %v1999 = vsel %vm1760, %v1255, 0
    %2001 = vmatpush.xpose.msra.mxu0 0.0
    %2002 = vmatpush.xpose.msra.mxu0 0.0
    %2003 = vmatpush.xpose.msra.mxu0 0.0
    %2004 = vmatpush.xpose.msra.mxu0 0.0
    %2005 = vmatpush.xpose.msra.mxu0 0.0
    %2006 = vmatpush.xpose.msra.mxu0 0.0
    %2007 = vmatpush.xpose.msra.mxu0 0.0
    %2008 = vmatpush.xpose.msra.mxu0 0.0
    %2009 = vmatpush.xpose.msra.mxu0 0.0
    %2010 = vmatpush.xpose.msra.mxu0 0.0
    %2011 = vmatpush.xpose.msra.mxu0 0.0
    %2012 = vmatpush.xpose.msra.mxu0 0.0
    %2013 = vmatpush.xpose.msra.mxu0 0.0
    %2014 = vmatpush.xpose.msra.mxu0 0.0
    %2015 = vmatpush.xpose.msra.mxu0 0.0
    %2016 = vmatpush.xpose.msra.mxu0 %v1999
    %2017 = vmatmul.f32.gmra.mxu0 %v1996
    %v2018 = vpop.f32.mrf.mxu0
    %v2019 = vadd.f32 0.0, %v2018
    %2020 = vdwg.mxu0
    %v2022 = vsel %vm1760, %v765, 0
    %v2025 = vsel %vm1760, %v1257, 0
    %2027 = vmatpush.xpose.msra.mxu0 0.0
    %2028 = vmatpush.xpose.msra.mxu0 0.0
    %2029 = vmatpush.xpose.msra.mxu0 0.0
    %2030 = vmatpush.xpose.msra.mxu0 0.0
    %2031 = vmatpush.xpose.msra.mxu0 0.0
    %2032 = vmatpush.xpose.msra.mxu0 0.0
    %2033 = vmatpush.xpose.msra.mxu0 0.0
    %2034 = vmatpush.xpose.msra.mxu0 0.0
    %2035 = vmatpush.xpose.msra.mxu0 0.0
    %2036 = vmatpush.xpose.msra.mxu0 0.0
    %2037 = vmatpush.xpose.msra.mxu0 0.0
    %2038 = vmatpush.xpose.msra.mxu0 0.0
    %2039 = vmatpush.xpose.msra.mxu0 0.0
    %2040 = vmatpush.xpose.msra.mxu0 0.0
    %2041 = vmatpush.xpose.msra.mxu0 0.0
    %2042 = vmatpush.xpose.msra.mxu0 %v2025
    %2043 = vmatmul.f32.gmra.mxu0 %v2022
    %v2044 = vpop.f32.mrf.mxu0
    %v2045 = vadd.f32 0.0, %v2044
    %2046 = vdwg.mxu0
    %v2048 = vsel %vm1760, %v767, 0
    %v2051 = vsel %vm1760, %v1259, 0
    %2053 = vmatpush.xpose.msra.mxu0 0.0
    %2054 = vmatpush.xpose.msra.mxu0 0.0
    %2055 = vmatpush.xpose.msra.mxu0 0.0
    %2056 = vmatpush.xpose.msra.mxu0 0.0
    %2057 = vmatpush.xpose.msra.mxu0 0.0
    %2058 = vmatpush.xpose.msra.mxu0 0.0
    %2059 = vmatpush.xpose.msra.mxu0 0.0
    %2060 = vmatpush.xpose.msra.mxu0 0.0
    %2061 = vmatpush.xpose.msra.mxu0 0.0
    %2062 = vmatpush.xpose.msra.mxu0 0.0
    %2063 = vmatpush.xpose.msra.mxu0 0.0
    %2064 = vmatpush.xpose.msra.mxu0 0.0
    %2065 = vmatpush.xpose.msra.mxu0 0.0
    %2066 = vmatpush.xpose.msra.mxu0 0.0
    %2067 = vmatpush.xpose.msra.mxu0 0.0
    %2068 = vmatpush.xpose.msra.mxu0 %v2051
    %2069 = vmatmul.f32.gmra.mxu0 %v2048
    %v2070 = vpop.f32.mrf.mxu0
    %v2071 = vadd.f32 0.0, %v2070
    %2072 = vdwg.mxu0
    %v2074 = vsel %vm1760, %v769, 0
    %v2077 = vsel %vm1760, %v1261, 0
    %2079 = vmatpush.xpose.msra.mxu0 0.0
    %2080 = vmatpush.xpose.msra.mxu0 0.0
    %2081 = vmatpush.xpose.msra.mxu0 0.0
    %2082 = vmatpush.xpose.msra.mxu0 0.0
    %2083 = vmatpush.xpose.msra.mxu0 0.0
    %2084 = vmatpush.xpose.msra.mxu0 0.0
    %2085 = vmatpush.xpose.msra.mxu0 0.0
    %2086 = vmatpush.xpose.msra.mxu0 0.0
    %2087 = vmatpush.xpose.msra.mxu0 0.0
    %2088 = vmatpush.xpose.msra.mxu0 0.0
    %2089 = vmatpush.xpose.msra.mxu0 0.0
    %2090 = vmatpush.xpose.msra.mxu0 0.0
    %2091 = vmatpush.xpose.msra.mxu0 0.0
    %2092 = vmatpush.xpose.msra.mxu0 0.0
    %2093 = vmatpush.xpose.msra.mxu0 0.0
    %2094 = vmatpush.xpose.msra.mxu0 %v2077
    %2095 = vmatmul.f32.gmra.mxu0 %v2074
    %v2096 = vpop.f32.mrf.mxu0
    %v2097 = vadd.f32 0.0, %v2096
    %2098 = vdwg.mxu0
    %v2100 = vsel %vm1760, %v771, 0
    %v2103 = vsel %vm1760, %v1263, 0
    %2105 = vmatpush.xpose.msra.mxu0 0.0
    %2106 = vmatpush.xpose.msra.mxu0 0.0
    %2107 = vmatpush.xpose.msra.mxu0 0.0
    %2108 = vmatpush.xpose.msra.mxu0 0.0
    %2109 = vmatpush.xpose.msra.mxu0 0.0
    %2110 = vmatpush.xpose.msra.mxu0 0.0
    %2111 = vmatpush.xpose.msra.mxu0 0.0
    %2112 = vmatpush.xpose.msra.mxu0 0.0
    %2113 = vmatpush.xpose.msra.mxu0 0.0
    %2114 = vmatpush.xpose.msra.mxu0 0.0
    %2115 = vmatpush.xpose.msra.mxu0 0.0
    %2116 = vmatpush.xpose.msra.mxu0 0.0
    %2117 = vmatpush.xpose.msra.mxu0 0.0
    %2118 = vmatpush.xpose.msra.mxu0 0.0
    %2119 = vmatpush.xpose.msra.mxu0 0.0
    %2120 = vmatpush.xpose.msra.mxu0 %v2103
    %2121 = vmatmul.f32.gmra.mxu0 %v2100
    %v2122 = vpop.f32.mrf.mxu0
    %v2123 = vadd.f32 0.0, %v2122
    %2124 = vdwg.mxu0
    %v2126 = vsel %vm1760, %v773, 0
    %v2129 = vsel %vm1760, %v1265, 0
    %2131 = vmatpush.xpose.msra.mxu0 0.0
    %2132 = vmatpush.xpose.msra.mxu0 0.0
    %2133 = vmatpush.xpose.msra.mxu0 0.0
    %2134 = vmatpush.xpose.msra.mxu0 0.0
    %2135 = vmatpush.xpose.msra.mxu0 0.0
    %2136 = vmatpush.xpose.msra.mxu0 0.0
    %2137 = vmatpush.xpose.msra.mxu0 0.0
    %2138 = vmatpush.xpose.msra.mxu0 0.0
    %2139 = vmatpush.xpose.msra.mxu0 0.0
    %2140 = vmatpush.xpose.msra.mxu0 0.0
    %2141 = vmatpush.xpose.msra.mxu0 0.0
    %2142 = vmatpush.xpose.msra.mxu0 0.0
    %2143 = vmatpush.xpose.msra.mxu0 0.0
    %2144 = vmatpush.xpose.msra.mxu0 0.0
    %2145 = vmatpush.xpose.msra.mxu0 0.0
    %2146 = vmatpush.xpose.msra.mxu0 %v2129
    %2147 = vmatmul.f32.gmra.mxu0 %v2126
    %v2148 = vpop.f32.mrf.mxu0
    %v2149 = vadd.f32 0.0, %v2148
    %2150 = vdwg.mxu0
    %v2152 = vsel %vm1760, %v775, 0
    %v2155 = vsel %vm1760, %v1267, 0
    %2157 = vmatpush.xpose.msra.mxu0 0.0
    %2158 = vmatpush.xpose.msra.mxu0 0.0
    %2159 = vmatpush.xpose.msra.mxu0 0.0
    %2160 = vmatpush.xpose.msra.mxu0 0.0
    %2161 = vmatpush.xpose.msra.mxu0 0.0
    %2162 = vmatpush.xpose.msra.mxu0 0.0
    %2163 = vmatpush.xpose.msra.mxu0 0.0
    %2164 = vmatpush.xpose.msra.mxu0 0.0
    %2165 = vmatpush.xpose.msra.mxu0 0.0
    %2166 = vmatpush.xpose.msra.mxu0 0.0
    %2167 = vmatpush.xpose.msra.mxu0 0.0
    %2168 = vmatpush.xpose.msra.mxu0 0.0
    %2169 = vmatpush.xpose.msra.mxu0 0.0
    %2170 = vmatpush.xpose.msra.mxu0 0.0
    %2171 = vmatpush.xpose.msra.mxu0 0.0
    %2172 = vmatpush.xpose.msra.mxu0 %v2155
    %2173 = vmatmul.f32.gmra.mxu0 %v2152
    %v2174 = vpop.f32.mrf.mxu0
    %v2175 = vadd.f32 0.0, %v2174
    %2176 = vdwg.mxu0
    %vm2177 = vcmask 64512
    %v2178 = vsel %vm2177, %v1785, -inf
    %2179 = vmax.xlane.f32.xlu0 %v2178
    %v2180 = vpop.xlane.xlu0 %2179
    %v2181 = vsel %vm2177, %v1811, -inf
    %2182 = vmax.xlane.f32.xlu0 %v2181
    %v2183 = vpop.xlane.xlu0 %2182
    %v2184 = vsel %vm2177, %v1837, -inf
    %2185 = vmax.xlane.f32.xlu0 %v2184
    %v2186 = vpop.xlane.xlu0 %2185
    %v2187 = vsel %vm2177, %v1863, -inf
    %2188 = vmax.xlane.f32.xlu0 %v2187
    %v2189 = vpop.xlane.xlu0 %2188
    %v2190 = vsel %vm2177, %v1889, -inf
    %2191 = vmax.xlane.f32.xlu0 %v2190
    %v2192 = vpop.xlane.xlu0 %2191
    %v2193 = vsel %vm2177, %v1915, -inf
    %2194 = vmax.xlane.f32.xlu0 %v2193
    %v2195 = vpop.xlane.xlu0 %2194
    %v2196 = vsel %vm2177, %v1941, -inf
    %2197 = vmax.xlane.f32.xlu0 %v2196
    %v2198 = vpop.xlane.xlu0 %2197
    %v2199 = vsel %vm2177, %v1967, -inf
    %2200 = vmax.xlane.f32.xlu0 %v2199
    %v2201 = vpop.xlane.xlu0 %2200
    %v2202 = vsel %vm2177, %v1993, -inf
    %2203 = vmax.xlane.f32.xlu0 %v2202
    %v2204 = vpop.xlane.xlu0 %2203
    %v2205 = vsel %vm2177, %v2019, -inf
    %2206 = vmax.xlane.f32.xlu0 %v2205
    %v2207 = vpop.xlane.xlu0 %2206
    %v2208 = vsel %vm2177, %v2045, -inf
    %2209 = vmax.xlane.f32.xlu0 %v2208
    %v2210 = vpop.xlane.xlu0 %2209
    %v2211 = vsel %vm2177, %v2071, -inf
    %2212 = vmax.xlane.f32.xlu0 %v2211
    %v2213 = vpop.xlane.xlu0 %2212
    %v2214 = vsel %vm2177, %v2097, -inf
    %2215 = vmax.xlane.f32.xlu0 %v2214
    %v2216 = vpop.xlane.xlu0 %2215
    %v2217 = vsel %vm2177, %v2123, -inf
    %2218 = vmax.xlane.f32.xlu0 %v2217
    %v2219 = vpop.xlane.xlu0 %2218
    %v2220 = vsel %vm2177, %v2149, -inf
    %2221 = vmax.xlane.f32.xlu0 %v2220
    %v2222 = vpop.xlane.xlu0 %2221
    %v2223 = vsel %vm2177, %v2175, -inf
    %2224 = vmax.xlane.f32.xlu0 %v2223
    %v2225 = vpop.xlane.xlu0 %2224
    %v2226 = vsub.f32 %v1785, %v2180
    %v2227 = vsub.f32 %v1811, %v2183
    %v2228 = vsub.f32 %v1837, %v2186
    %v2229 = vsub.f32 %v1863, %v2189
    %v2230 = vsub.f32 %v1889, %v2192
    %v2231 = vsub.f32 %v1915, %v2195
    %v2232 = vsub.f32 %v1941, %v2198
    %v2233 = vsub.f32 %v1967, %v2201
    %v2234 = vsub.f32 %v1993, %v2204
    %v2235 = vsub.f32 %v2019, %v2207
    %v2236 = vsub.f32 %v2045, %v2210
    %v2237 = vsub.f32 %v2071, %v2213
    %v2238 = vsub.f32 %v2097, %v2216
    %v2239 = vsub.f32 %v2123, %v2219
    %v2240 = vsub.f32 %v2149, %v2222
    %v2241 = vsub.f32 %v2175, %v2225
    %v2242 = vmul.f32 %v2226, 1.442695
    %v2243 = vpow.pop %v2242
    %v2244 = vmul.f32 %v2227, 1.442695
    %v2245 = vpow.pop %v2244
    %v2246 = vmul.f32 %v2228, 1.442695
    %v2247 = vpow.pop %v2246
    %v2248 = vmul.f32 %v2229, 1.442695
    %v2249 = vpow.pop %v2248
    %v2250 = vmul.f32 %v2230, 1.442695
    %v2251 = vpow.pop %v2250
    %v2252 = vmul.f32 %v2231, 1.442695
    %v2253 = vpow.pop %v2252
    %v2254 = vmul.f32 %v2232, 1.442695
    %v2255 = vpow.pop %v2254
    %v2256 = vmul.f32 %v2233, 1.442695
    %v2257 = vpow.pop %v2256
    %v2258 = vmul.f32 %v2234, 1.442695
    %v2259 = vpow.pop %v2258
    %v2260 = vmul.f32 %v2235, 1.442695
    %v2261 = vpow.pop %v2260
    %v2262 = vmul.f32 %v2236, 1.442695
    %v2263 = vpow.pop %v2262
    %v2264 = vmul.f32 %v2237, 1.442695
    %v2265 = vpow.pop %v2264
    %v2266 = vmul.f32 %v2238, 1.442695
    %v2267 = vpow.pop %v2266
    %v2268 = vmul.f32 %v2239, 1.442695
    %v2269 = vpow.pop %v2268
    %v2270 = vmul.f32 %v2240, 1.442695
    %v2271 = vpow.pop %v2270
    %v2272 = vmul.f32 %v2241, 1.442695
    %v2273 = vpow.pop %v2272
    %v2274 = vsel %vm2177, %v2243, 0.0
    %2275 = vadd.xlane.f32.xlu0 %v2274
    %v2276 = vpop.xlane.xlu0 %2275
    %v2277 = vsel %vm2177, %v2245, 0.0
    %2278 = vadd.xlane.f32.xlu0 %v2277
    %v2279 = vpop.xlane.xlu0 %2278
    %v2280 = vsel %vm2177, %v2247, 0.0
    %2281 = vadd.xlane.f32.xlu0 %v2280
    %v2282 = vpop.xlane.xlu0 %2281
    %v2283 = vsel %vm2177, %v2249, 0.0
    %2284 = vadd.xlane.f32.xlu0 %v2283
    %v2285 = vpop.xlane.xlu0 %2284
    %v2286 = vsel %vm2177, %v2251, 0.0
    %2287 = vadd.xlane.f32.xlu0 %v2286
    %v2288 = vpop.xlane.xlu0 %2287
    %v2289 = vsel %vm2177, %v2253, 0.0
    %2290 = vadd.xlane.f32.xlu0 %v2289
    %v2291 = vpop.xlane.xlu0 %2290
    %v2292 = vsel %vm2177, %v2255, 0.0
    %2293 = vadd.xlane.f32.xlu0 %v2292
    %v2294 = vpop.xlane.xlu0 %2293
    %v2295 = vsel %vm2177, %v2257, 0.0
    %2296 = vadd.xlane.f32.xlu0 %v2295
    %v2297 = vpop.xlane.xlu0 %2296
    %v2298 = vsel %vm2177, %v2259, 0.0
    %2299 = vadd.xlane.f32.xlu0 %v2298
    %v2300 = vpop.xlane.xlu0 %2299
    %v2301 = vsel %vm2177, %v2261, 0.0
    %2302 = vadd.xlane.f32.xlu0 %v2301
    %v2303 = vpop.xlane.xlu0 %2302
    %v2304 = vsel %vm2177, %v2263, 0.0
    %2305 = vadd.xlane.f32.xlu0 %v2304
    %v2306 = vpop.xlane.xlu0 %2305
    %v2307 = vsel %vm2177, %v2265, 0.0
    %2308 = vadd.xlane.f32.xlu0 %v2307
    %v2309 = vpop.xlane.xlu0 %2308
    %v2310 = vsel %vm2177, %v2267, 0.0
    %2311 = vadd.xlane.f32.xlu0 %v2310
    %v2312 = vpop.xlane.xlu0 %2311
    %v2313 = vsel %vm2177, %v2269, 0.0
    %2314 = vadd.xlane.f32.xlu0 %v2313
    %v2315 = vpop.xlane.xlu0 %2314
    %v2316 = vsel %vm2177, %v2271, 0.0
    %2317 = vadd.xlane.f32.xlu0 %v2316
    %v2318 = vpop.xlane.xlu0 %2317
    %v2319 = vsel %vm2177, %v2273, 0.0
    %2320 = vadd.xlane.f32.xlu0 %v2319
    %v2321 = vpop.xlane.xlu0 %2320
    %v2322 = vrcp.pop %v2276
    %v2323 = vrcp.pop %v2279
    %v2324 = vrcp.pop %v2282
    %v2325 = vrcp.pop %v2285
    %v2326 = vrcp.pop %v2288
    %v2327 = vrcp.pop %v2291
    %v2328 = vrcp.pop %v2294
    %v2329 = vrcp.pop %v2297
    %v2330 = vrcp.pop %v2300
    %v2331 = vrcp.pop %v2303
    %v2332 = vrcp.pop %v2306
    %v2333 = vrcp.pop %v2309
    %v2334 = vrcp.pop %v2312
    %v2335 = vrcp.pop %v2315
    %v2336 = vrcp.pop %v2318
    %v2337 = vrcp.pop %v2321
    %v2338 = vmul.f32 %v2243, %v2322
    %v2339 = vmul.f32 %v2245, %v2323
    %v2340 = vmul.f32 %v2247, %v2324
    %v2341 = vmul.f32 %v2249, %v2325
    %v2342 = vmul.f32 %v2251, %v2326
    %v2343 = vmul.f32 %v2253, %v2327
    %v2344 = vmul.f32 %v2255, %v2328
    %v2345 = vmul.f32 %v2257, %v2329
    %v2346 = vmul.f32 %v2259, %v2330
    %v2347 = vmul.f32 %v2261, %v2331
    %v2348 = vmul.f32 %v2263, %v2332
    %v2349 = vmul.f32 %v2265, %v2333
    %v2350 = vmul.f32 %v2267, %v2334
    %v2351 = vmul.f32 %v2269, %v2335
    %v2352 = vmul.f32 %v2271, %v2336
    %v2353 = vmul.f32 %v2273, %v2337
    %v2355 = vsel %vm2177, %v2338, 0
    %2357 = vmatpush.msra.mxu0 0.0
    %2358 = vmatpush.msra.mxu0 0.0
    %2359 = vmatpush.msra.mxu0 0.0
    %2360 = vmatpush.msra.mxu0 0.0
    %2361 = vmatpush.msra.mxu0 0.0
    %2362 = vmatpush.msra.mxu0 0.0
    %2363 = vmatpush.msra.mxu0 0.0
    %2364 = vmatpush.msra.mxu0 0.0
    %2365 = vmatpush.msra.mxu0 0.0
    %2366 = vmatpush.msra.mxu0 0.0
    %2367 = vmatpush.msra.mxu0 0.0
    %2368 = vmatpush.msra.mxu0 0.0
    %2369 = vmatpush.msra.mxu0 0.0
    %2370 = vmatpush.msra.mxu0 0.0
    %2371 = vmatpush.msra.mxu0 0.0
    %2372 = vmatpush.msra.mxu0 %v1633
    %2373 = vmatmul.f32.gmra.mxu0 %v2355
    %v2374 = vpop.f32.mrf.mxu0
    %v2375 = vadd.f32 0.0, %v2374
    %2376 = vdwg.mxu0
    %v2378 = vsel %vm2177, %v2339, 0
    %2380 = vmatpush.msra.mxu0 0.0
    %2381 = vmatpush.msra.mxu0 0.0
    %2382 = vmatpush.msra.mxu0 0.0
    %2383 = vmatpush.msra.mxu0 0.0
    %2384 = vmatpush.msra.mxu0 0.0
    %2385 = vmatpush.msra.mxu0 0.0
    %2386 = vmatpush.msra.mxu0 0.0
    %2387 = vmatpush.msra.mxu0 0.0
    %2388 = vmatpush.msra.mxu0 0.0
    %2389 = vmatpush.msra.mxu0 0.0
    %2390 = vmatpush.msra.mxu0 0.0
    %2391 = vmatpush.msra.mxu0 0.0
    %2392 = vmatpush.msra.mxu0 0.0
    %2393 = vmatpush.msra.mxu0 0.0
    %2394 = vmatpush.msra.mxu0 0.0
    %2395 = vmatpush.msra.mxu0 %v1635
    %2396 = vmatmul.f32.gmra.mxu0 %v2378
    %v2397 = vpop.f32.mrf.mxu0
    %v2398 = vadd.f32 0.0, %v2397
    %2399 = vdwg.mxu0
    %v2401 = vsel %vm2177, %v2340, 0
    %2403 = vmatpush.msra.mxu0 0.0
    %2404 = vmatpush.msra.mxu0 0.0
    %2405 = vmatpush.msra.mxu0 0.0
    %2406 = vmatpush.msra.mxu0 0.0
    %2407 = vmatpush.msra.mxu0 0.0
    %2408 = vmatpush.msra.mxu0 0.0
    %2409 = vmatpush.msra.mxu0 0.0
    %2410 = vmatpush.msra.mxu0 0.0
    %2411 = vmatpush.msra.mxu0 0.0
    %2412 = vmatpush.msra.mxu0 0.0
    %2413 = vmatpush.msra.mxu0 0.0
    %2414 = vmatpush.msra.mxu0 0.0
    %2415 = vmatpush.msra.mxu0 0.0
    %2416 = vmatpush.msra.mxu0 0.0
    %2417 = vmatpush.msra.mxu0 0.0
    %2418 = vmatpush.msra.mxu0 %v1637
    %2419 = vmatmul.f32.gmra.mxu0 %v2401
    %v2420 = vpop.f32.mrf.mxu0
    %v2421 = vadd.f32 0.0, %v2420
    %2422 = vdwg.mxu0
    %v2424 = vsel %vm2177, %v2341, 0
    %2426 = vmatpush.msra.mxu0 0.0
    %2427 = vmatpush.msra.mxu0 0.0
    %2428 = vmatpush.msra.mxu0 0.0
    %2429 = vmatpush.msra.mxu0 0.0
    %2430 = vmatpush.msra.mxu0 0.0
    %2431 = vmatpush.msra.mxu0 0.0
    %2432 = vmatpush.msra.mxu0 0.0
    %2433 = vmatpush.msra.mxu0 0.0
    %2434 = vmatpush.msra.mxu0 0.0
    %2435 = vmatpush.msra.mxu0 0.0
    %2436 = vmatpush.msra.mxu0 0.0
    %2437 = vmatpush.msra.mxu0 0.0
    %2438 = vmatpush.msra.mxu0 0.0
    %2439 = vmatpush.msra.mxu0 0.0
    %2440 = vmatpush.msra.mxu0 0.0
    %2441 = vmatpush.msra.mxu0 %v1639
    %2442 = vmatmul.f32.gmra.mxu0 %v2424
    %v2443 = vpop.f32.mrf.mxu0
    %v2444 = vadd.f32 0.0, %v2443
    %2445 = vdwg.mxu0
    %v2447 = vsel %vm2177, %v2342, 0
    %2449 = vmatpush.msra.mxu0 0.0
    %2450 = vmatpush.msra.mxu0 0.0
    %2451 = vmatpush.msra.mxu0 0.0
    %2452 = vmatpush.msra.mxu0 0.0
    %2453 = vmatpush.msra.mxu0 0.0
    %2454 = vmatpush.msra.mxu0 0.0
    %2455 = vmatpush.msra.mxu0 0.0
    %2456 = vmatpush.msra.mxu0 0.0
    %2457 = vmatpush.msra.mxu0 0.0
    %2458 = vmatpush.msra.mxu0 0.0
    %2459 = vmatpush.msra.mxu0 0.0
    %2460 = vmatpush.msra.mxu0 0.0
    %2461 = vmatpush.msra.mxu0 0.0
    %2462 = vmatpush.msra.mxu0 0.0
    %2463 = vmatpush.msra.mxu0 0.0
    %2464 = vmatpush.msra.mxu0 %v1641
    %2465 = vmatmul.f32.gmra.mxu0 %v2447
    %v2466 = vpop.f32.mrf.mxu0
    %v2467 = vadd.f32 0.0, %v2466
    %2468 = vdwg.mxu0
    %v2470 = vsel %vm2177, %v2343, 0
    %2472 = vmatpush.msra.mxu0 0.0
    %2473 = vmatpush.msra.mxu0 0.0
    %2474 = vmatpush.msra.mxu0 0.0
    %2475 = vmatpush.msra.mxu0 0.0
    %2476 = vmatpush.msra.mxu0 0.0
    %2477 = vmatpush.msra.mxu0 0.0
    %2478 = vmatpush.msra.mxu0 0.0
    %2479 = vmatpush.msra.mxu0 0.0
    %2480 = vmatpush.msra.mxu0 0.0
    %2481 = vmatpush.msra.mxu0 0.0
    %2482 = vmatpush.msra.mxu0 0.0
    %2483 = vmatpush.msra.mxu0 0.0
    %2484 = vmatpush.msra.mxu0 0.0
    %2485 = vmatpush.msra.mxu0 0.0
    %2486 = vmatpush.msra.mxu0 0.0
    %2487 = vmatpush.msra.mxu0 %v1643
    %2488 = vmatmul.f32.gmra.mxu0 %v2470
    %v2489 = vpop.f32.mrf.mxu0
    %v2490 = vadd.f32 0.0, %v2489
    %2491 = vdwg.mxu0
    %v2493 = vsel %vm2177, %v2344, 0
    %2495 = vmatpush.msra.mxu0 0.0
    %2496 = vmatpush.msra.mxu0 0.0
    %2497 = vmatpush.msra.mxu0 0.0
    %2498 = vmatpush.msra.mxu0 0.0
    %2499 = vmatpush.msra.mxu0 0.0
    %2500 = vmatpush.msra.mxu0 0.0
    %2501 = vmatpush.msra.mxu0 0.0
    %2502 = vmatpush.msra.mxu0 0.0
    %2503 = vmatpush.msra.mxu0 0.0
    %2504 = vmatpush.msra.mxu0 0.0
    %2505 = vmatpush.msra.mxu0 0.0
    %2506 = vmatpush.msra.mxu0 0.0
    %2507 = vmatpush.msra.mxu0 0.0
    %2508 = vmatpush.msra.mxu0 0.0
    %2509 = vmatpush.msra.mxu0 0.0
    %2510 = vmatpush.msra.mxu0 %v1645
    %2511 = vmatmul.f32.gmra.mxu0 %v2493
    %v2512 = vpop.f32.mrf.mxu0
    %v2513 = vadd.f32 0.0, %v2512
    %2514 = vdwg.mxu0
    %v2516 = vsel %vm2177, %v2345, 0
    %2518 = vmatpush.msra.mxu0 0.0
    %2519 = vmatpush.msra.mxu0 0.0
    %2520 = vmatpush.msra.mxu0 0.0
    %2521 = vmatpush.msra.mxu0 0.0
    %2522 = vmatpush.msra.mxu0 0.0
    %2523 = vmatpush.msra.mxu0 0.0
    %2524 = vmatpush.msra.mxu0 0.0
    %2525 = vmatpush.msra.mxu0 0.0
    %2526 = vmatpush.msra.mxu0 0.0
    %2527 = vmatpush.msra.mxu0 0.0
    %2528 = vmatpush.msra.mxu0 0.0
    %2529 = vmatpush.msra.mxu0 0.0
    %2530 = vmatpush.msra.mxu0 0.0
    %2531 = vmatpush.msra.mxu0 0.0
    %2532 = vmatpush.msra.mxu0 0.0
    %2533 = vmatpush.msra.mxu0 %v1647
    %2534 = vmatmul.f32.gmra.mxu0 %v2516
    %v2535 = vpop.f32.mrf.mxu0
    %v2536 = vadd.f32 0.0, %v2535
    %2537 = vdwg.mxu0
    %v2539 = vsel %vm2177, %v2346, 0
    %2541 = vmatpush.msra.mxu0 0.0
    %2542 = vmatpush.msra.mxu0 0.0
    %2543 = vmatpush.msra.mxu0 0.0
    %2544 = vmatpush.msra.mxu0 0.0
    %2545 = vmatpush.msra.mxu0 0.0
    %2546 = vmatpush.msra.mxu0 0.0
    %2547 = vmatpush.msra.mxu0 0.0
    %2548 = vmatpush.msra.mxu0 0.0
    %2549 = vmatpush.msra.mxu0 0.0
    %2550 = vmatpush.msra.mxu0 0.0
    %2551 = vmatpush.msra.mxu0 0.0
    %2552 = vmatpush.msra.mxu0 0.0
    %2553 = vmatpush.msra.mxu0 0.0
    %2554 = vmatpush.msra.mxu0 0.0
    %2555 = vmatpush.msra.mxu0 0.0
    %2556 = vmatpush.msra.mxu0 %v1745
    %2557 = vmatmul.f32.gmra.mxu0 %v2539
    %v2558 = vpop.f32.mrf.mxu0
    %v2559 = vadd.f32 0.0, %v2558
    %2560 = vdwg.mxu0
    %v2562 = vsel %vm2177, %v2347, 0
    %2564 = vmatpush.msra.mxu0 0.0
    %2565 = vmatpush.msra.mxu0 0.0
    %2566 = vmatpush.msra.mxu0 0.0
    %2567 = vmatpush.msra.mxu0 0.0
    %2568 = vmatpush.msra.mxu0 0.0
    %2569 = vmatpush.msra.mxu0 0.0
    %2570 = vmatpush.msra.mxu0 0.0
    %2571 = vmatpush.msra.mxu0 0.0
    %2572 = vmatpush.msra.mxu0 0.0
    %2573 = vmatpush.msra.mxu0 0.0
    %2574 = vmatpush.msra.mxu0 0.0
    %2575 = vmatpush.msra.mxu0 0.0
    %2576 = vmatpush.msra.mxu0 0.0
    %2577 = vmatpush.msra.mxu0 0.0
    %2578 = vmatpush.msra.mxu0 0.0
    %2579 = vmatpush.msra.mxu0 %v1747
    %2580 = vmatmul.f32.gmra.mxu0 %v2562
    %v2581 = vpop.f32.mrf.mxu0
    %v2582 = vadd.f32 0.0, %v2581
    %2583 = vdwg.mxu0
    %v2585 = vsel %vm2177, %v2348, 0
    %2587 = vmatpush.msra.mxu0 0.0
    %2588 = vmatpush.msra.mxu0 0.0
    %2589 = vmatpush.msra.mxu0 0.0
    %2590 = vmatpush.msra.mxu0 0.0
    %2591 = vmatpush.msra.mxu0 0.0
    %2592 = vmatpush.msra.mxu0 0.0
    %2593 = vmatpush.msra.mxu0 0.0
    %2594 = vmatpush.msra.mxu0 0.0
    %2595 = vmatpush.msra.mxu0 0.0
    %2596 = vmatpush.msra.mxu0 0.0
    %2597 = vmatpush.msra.mxu0 0.0
    %2598 = vmatpush.msra.mxu0 0.0
    %2599 = vmatpush.msra.mxu0 0.0
    %2600 = vmatpush.msra.mxu0 0.0
    %2601 = vmatpush.msra.mxu0 0.0
    %2602 = vmatpush.msra.mxu0 %v1749
    %2603 = vmatmul.f32.gmra.mxu0 %v2585
    %v2604 = vpop.f32.mrf.mxu0
    %v2605 = vadd.f32 0.0, %v2604
    %2606 = vdwg.mxu0
    %v2608 = vsel %vm2177, %v2349, 0
    %2610 = vmatpush.msra.mxu0 0.0
    %2611 = vmatpush.msra.mxu0 0.0
    %2612 = vmatpush.msra.mxu0 0.0
    %2613 = vmatpush.msra.mxu0 0.0
    %2614 = vmatpush.msra.mxu0 0.0
    %2615 = vmatpush.msra.mxu0 0.0
    %2616 = vmatpush.msra.mxu0 0.0
    %2617 = vmatpush.msra.mxu0 0.0
    %2618 = vmatpush.msra.mxu0 0.0
    %2619 = vmatpush.msra.mxu0 0.0
    %2620 = vmatpush.msra.mxu0 0.0
    %2621 = vmatpush.msra.mxu0 0.0
    %2622 = vmatpush.msra.mxu0 0.0
    %2623 = vmatpush.msra.mxu0 0.0
    %2624 = vmatpush.msra.mxu0 0.0
    %2625 = vmatpush.msra.mxu0 %v1751
    %2626 = vmatmul.f32.gmra.mxu0 %v2608
    %v2627 = vpop.f32.mrf.mxu0
    %v2628 = vadd.f32 0.0, %v2627
    %2629 = vdwg.mxu0
    %v2631 = vsel %vm2177, %v2350, 0
    %2633 = vmatpush.msra.mxu0 0.0
    %2634 = vmatpush.msra.mxu0 0.0
    %2635 = vmatpush.msra.mxu0 0.0
    %2636 = vmatpush.msra.mxu0 0.0
    %2637 = vmatpush.msra.mxu0 0.0
    %2638 = vmatpush.msra.mxu0 0.0
    %2639 = vmatpush.msra.mxu0 0.0
    %2640 = vmatpush.msra.mxu0 0.0
    %2641 = vmatpush.msra.mxu0 0.0
    %2642 = vmatpush.msra.mxu0 0.0
    %2643 = vmatpush.msra.mxu0 0.0
    %2644 = vmatpush.msra.mxu0 0.0
    %2645 = vmatpush.msra.mxu0 0.0
    %2646 = vmatpush.msra.mxu0 0.0
    %2647 = vmatpush.msra.mxu0 0.0
    %2648 = vmatpush.msra.mxu0 %v1753
    %2649 = vmatmul.f32.gmra.mxu0 %v2631
    %v2650 = vpop.f32.mrf.mxu0
    %v2651 = vadd.f32 0.0, %v2650
    %2652 = vdwg.mxu0
    %v2654 = vsel %vm2177, %v2351, 0
    %2656 = vmatpush.msra.mxu0 0.0
    %2657 = vmatpush.msra.mxu0 0.0
    %2658 = vmatpush.msra.mxu0 0.0
    %2659 = vmatpush.msra.mxu0 0.0
    %2660 = vmatpush.msra.mxu0 0.0
    %2661 = vmatpush.msra.mxu0 0.0
    %2662 = vmatpush.msra.mxu0 0.0
    %2663 = vmatpush.msra.mxu0 0.0
    %2664 = vmatpush.msra.mxu0 0.0
    %2665 = vmatpush.msra.mxu0 0.0
    %2666 = vmatpush.msra.mxu0 0.0
    %2667 = vmatpush.msra.mxu0 0.0
    %2668 = vmatpush.msra.mxu0 0.0
    %2669 = vmatpush.msra.mxu0 0.0
    %2670 = vmatpush.msra.mxu0 0.0
    %2671 = vmatpush.msra.mxu0 %v1755
    %2672 = vmatmul.f32.gmra.mxu0 %v2654
    %v2673 = vpop.f32.mrf.mxu0
    %v2674 = vadd.f32 0.0, %v2673
    %2675 = vdwg.mxu0
    %v2677 = vsel %vm2177, %v2352, 0
    %2679 = vmatpush.msra.mxu0 0.0
    %2680 = vmatpush.msra.mxu0 0.0
    %2681 = vmatpush.msra.mxu0 0.0
    %2682 = vmatpush.msra.mxu0 0.0
    %2683 = vmatpush.msra.mxu0 0.0
    %2684 = vmatpush.msra.mxu0 0.0
    %2685 = vmatpush.msra.mxu0 0.0
    %2686 = vmatpush.msra.mxu0 0.0
    %2687 = vmatpush.msra.mxu0 0.0
    %2688 = vmatpush.msra.mxu0 0.0
    %2689 = vmatpush.msra.mxu0 0.0
    %2690 = vmatpush.msra.mxu0 0.0
    %2691 = vmatpush.msra.mxu0 0.0
    %2692 = vmatpush.msra.mxu0 0.0
    %2693 = vmatpush.msra.mxu0 0.0
    %2694 = vmatpush.msra.mxu0 %v1757
    %2695 = vmatmul.f32.gmra.mxu0 %v2677
    %v2696 = vpop.f32.mrf.mxu0
    %v2697 = vadd.f32 0.0, %v2696
    %2698 = vdwg.mxu0
    %v2700 = vsel %vm2177, %v2353, 0
    %2702 = vmatpush.msra.mxu0 0.0
    %2703 = vmatpush.msra.mxu0 0.0
    %2704 = vmatpush.msra.mxu0 0.0
    %2705 = vmatpush.msra.mxu0 0.0
    %2706 = vmatpush.msra.mxu0 0.0
    %2707 = vmatpush.msra.mxu0 0.0
    %2708 = vmatpush.msra.mxu0 0.0
    %2709 = vmatpush.msra.mxu0 0.0
    %2710 = vmatpush.msra.mxu0 0.0
    %2711 = vmatpush.msra.mxu0 0.0
    %2712 = vmatpush.msra.mxu0 0.0
    %2713 = vmatpush.msra.mxu0 0.0
    %2714 = vmatpush.msra.mxu0 0.0
    %2715 = vmatpush.msra.mxu0 0.0
    %2716 = vmatpush.msra.mxu0 0.0
    %2717 = vmatpush.msra.mxu0 %v1759
    %2718 = vmatmul.f32.gmra.mxu0 %v2700
    %v2719 = vpop.f32.mrf.mxu0
    %v2720 = vadd.f32 0.0, %v2719
    %2721 = vdwg.mxu0
    %v2722 = vrot.slane %v2421, 4
    %v2723 = vsel %vm328, %v2722, %v2375
    %v2724 = vrot.slane %v2375, 4
    %v2725 = vsel %vm328, %v2421, %v2724
    %v2727 = vunpack.c.l.s4 1983009808
    %v2728 = vunpack.c.0.s8 %v2727
    %v2729 = vperm.slane %v2723, %v2728
    %v2731 = vunpack.c.l.s4 1983009808
    %v2732 = vunpack.c.0.s8 %v2731
    %v2733 = vperm.slane %v2725, %v2732
    %v2734 = vrot.slane %v2444, 4
    %v2735 = vsel %vm328, %v2734, %v2398
    %v2736 = vrot.slane %v2398, 4
    %v2737 = vsel %vm328, %v2444, %v2736
    %v2739 = vunpack.c.l.s4 1983009808
    %v2740 = vunpack.c.0.s8 %v2739
    %v2741 = vperm.slane %v2735, %v2740
    %v2743 = vunpack.c.l.s4 1983009808
    %v2744 = vunpack.c.0.s8 %v2743
    %v2745 = vperm.slane %v2737, %v2744
    %v2746 = vrot.slane %v2513, 4
    %v2747 = vsel %vm328, %v2746, %v2467
    %v2748 = vrot.slane %v2467, 4
    %v2749 = vsel %vm328, %v2513, %v2748
    %v2751 = vunpack.c.l.s4 1983009808
    %v2752 = vunpack.c.0.s8 %v2751
    %v2753 = vperm.slane %v2747, %v2752
    %v2755 = vunpack.c.l.s4 1983009808
    %v2756 = vunpack.c.0.s8 %v2755
    %v2757 = vperm.slane %v2749, %v2756
    %v2758 = vrot.slane %v2536, 4
    %v2759 = vsel %vm328, %v2758, %v2490
    %v2760 = vrot.slane %v2490, 4
    %v2761 = vsel %vm328, %v2536, %v2760
    %v2763 = vunpack.c.l.s4 1983009808
    %v2764 = vunpack.c.0.s8 %v2763
    %v2765 = vperm.slane %v2759, %v2764
    %v2767 = vunpack.c.l.s4 1983009808
    %v2768 = vunpack.c.0.s8 %v2767
    %v2769 = vperm.slane %v2761, %v2768
    %v2770 = vrot.slane %v2741, 4
    %v2771 = vsel %vm328, %v2770, %v2729
    %v2772 = vrot.slane %v2729, 4
    %v2773 = vsel %vm328, %v2741, %v2772
    %v2775 = vunpack.c.l.s4 1934713408
    %v2776 = vunpack.c.0.s8 %v2775
    %v2777 = vperm.slane %v2771, %v2776
    %v2779 = vunpack.c.l.s4 1934713408
    %v2780 = vunpack.c.0.s8 %v2779
    %v2781 = vperm.slane %v2773, %v2780
    %v2782 = vrot.slane %v2745, 4
    %v2783 = vsel %vm328, %v2782, %v2733
    %v2784 = vrot.slane %v2733, 4
    %v2785 = vsel %vm328, %v2745, %v2784
    %v2787 = vunpack.c.l.s4 1934713408
    %v2788 = vunpack.c.0.s8 %v2787
    %v2789 = vperm.slane %v2783, %v2788
    %v2791 = vunpack.c.l.s4 1934713408
    %v2792 = vunpack.c.0.s8 %v2791
    %v2793 = vperm.slane %v2785, %v2792
    %v2794 = vrot.slane %v2765, 4
    %v2795 = vsel %vm328, %v2794, %v2753
    %v2796 = vrot.slane %v2753, 4
    %v2797 = vsel %vm328, %v2765, %v2796
    %v2799 = vunpack.c.l.s4 1934713408
    %v2800 = vunpack.c.0.s8 %v2799
    %v2801 = vperm.slane %v2795, %v2800
    %v2803 = vunpack.c.l.s4 1934713408
    %v2804 = vunpack.c.0.s8 %v2803
    %v2805 = vperm.slane %v2797, %v2804
    %v2806 = vrot.slane %v2769, 4
    %v2807 = vsel %vm328, %v2806, %v2757
    %v2808 = vrot.slane %v2757, 4
    %v2809 = vsel %vm328, %v2769, %v2808
    %v2811 = vunpack.c.l.s4 1934713408
    %v2812 = vunpack.c.0.s8 %v2811
    %v2813 = vperm.slane %v2807, %v2812
    %v2815 = vunpack.c.l.s4 1934713408
    %v2816 = vunpack.c.0.s8 %v2815
    %v2817 = vperm.slane %v2809, %v2816
    %v2818 = vrot.slane %v2801, 4
    %v2819 = vsel %vm328, %v2818, %v2777
    %v2820 = vrot.slane %v2777, 4
    %v2821 = vsel %vm328, %v2801, %v2820
    %v2822 = vrot.slane %v2805, 4
    %v2823 = vsel %vm328, %v2822, %v2781
    %v2824 = vrot.slane %v2781, 4
    %v2825 = vsel %vm328, %v2805, %v2824
    %v2826 = vrot.slane %v2813, 4
    %v2827 = vsel %vm328, %v2826, %v2789
    %v2828 = vrot.slane %v2789, 4
    %v2829 = vsel %vm328, %v2813, %v2828
    %v2830 = vrot.slane %v2817, 4
    %v2831 = vsel %vm328, %v2830, %v2793
    %v2832 = vrot.slane %v2793, 4
    %v2833 = vsel %vm328, %v2817, %v2832
    %v2834 = vrot.slane %v2605, 4
    %v2835 = vsel %vm328, %v2834, %v2559
    %v2836 = vrot.slane %v2559, 4
    %v2837 = vsel %vm328, %v2605, %v2836
    %v2839 = vunpack.c.l.s4 1983009808
    %v2840 = vunpack.c.0.s8 %v2839
    %v2841 = vperm.slane %v2835, %v2840
    %v2843 = vunpack.c.l.s4 1983009808
    %v2844 = vunpack.c.0.s8 %v2843
    %v2845 = vperm.slane %v2837, %v2844
    %v2846 = vrot.slane %v2628, 4
    %v2847 = vsel %vm328, %v2846, %v2582
    %v2848 = vrot.slane %v2582, 4
    %v2849 = vsel %vm328, %v2628, %v2848
    %v2851 = vunpack.c.l.s4 1983009808
    %v2852 = vunpack.c.0.s8 %v2851
    %v2853 = vperm.slane %v2847, %v2852
    %v2855 = vunpack.c.l.s4 1983009808
    %v2856 = vunpack.c.0.s8 %v2855
    %v2857 = vperm.slane %v2849, %v2856
    %v2858 = vrot.slane %v2697, 4
    %v2859 = vsel %vm328, %v2858, %v2651
    %v2860 = vrot.slane %v2651, 4
    %v2861 = vsel %vm328, %v2697, %v2860
    %v2863 = vunpack.c.l.s4 1983009808
    %v2864 = vunpack.c.0.s8 %v2863
    %v2865 = vperm.slane %v2859, %v2864
    %v2867 = vunpack.c.l.s4 1983009808
    %v2868 = vunpack.c.0.s8 %v2867
    %v2869 = vperm.slane %v2861, %v2868
    %v2870 = vrot.slane %v2720, 4
    %v2871 = vsel %vm328, %v2870, %v2674
    %v2872 = vrot.slane %v2674, 4
    %v2873 = vsel %vm328, %v2720, %v2872
    %v2875 = vunpack.c.l.s4 1983009808
    %v2876 = vunpack.c.0.s8 %v2875
    %v2877 = vperm.slane %v2871, %v2876
    %v2879 = vunpack.c.l.s4 1983009808
    %v2880 = vunpack.c.0.s8 %v2879
    %v2881 = vperm.slane %v2873, %v2880
    %v2882 = vrot.slane %v2853, 4
    %v2883 = vsel %vm328, %v2882, %v2841
    %v2884 = vrot.slane %v2841, 4
    %v2885 = vsel %vm328, %v2853, %v2884
    %v2887 = vunpack.c.l.s4 1934713408
    %v2888 = vunpack.c.0.s8 %v2887
    %v2889 = vperm.slane %v2883, %v2888
    %v2891 = vunpack.c.l.s4 1934713408
    %v2892 = vunpack.c.0.s8 %v2891
    %v2893 = vperm.slane %v2885, %v2892
    %v2894 = vrot.slane %v2857, 4
    %v2895 = vsel %vm328, %v2894, %v2845
    %v2896 = vrot.slane %v2845, 4
    %v2897 = vsel %vm328, %v2857, %v2896
    %v2899 = vunpack.c.l.s4 1934713408
    %v2900 = vunpack.c.0.s8 %v2899
    %v2901 = vperm.slane %v2895, %v2900
    %v2903 = vunpack.c.l.s4 1934713408
    %v2904 = vunpack.c.0.s8 %v2903
    %v2905 = vperm.slane %v2897, %v2904
    %v2906 = vrot.slane %v2877, 4
    %v2907 = vsel %vm328, %v2906, %v2865
    %v2908 = vrot.slane %v2865, 4
    %v2909 = vsel %vm328, %v2877, %v2908
    %v2911 = vunpack.c.l.s4 1934713408
    %v2912 = vunpack.c.0.s8 %v2911
    %v2913 = vperm.slane %v2907, %v2912
    %v2915 = vunpack.c.l.s4 1934713408
    %v2916 = vunpack.c.0.s8 %v2915
    %v2917 = vperm.slane %v2909, %v2916
    %v2918 = vrot.slane %v2881, 4
    %v2919 = vsel %vm328, %v2918, %v2869
    %v2920 = vrot.slane %v2869, 4
    %v2921 = vsel %vm328, %v2881, %v2920
    %v2923 = vunpack.c.l.s4 1934713408
    %v2924 = vunpack.c.0.s8 %v2923
    %v2925 = vperm.slane %v2919, %v2924
    %v2927 = vunpack.c.l.s4 1934713408
    %v2928 = vunpack.c.0.s8 %v2927
    %v2929 = vperm.slane %v2921, %v2928
    %v2930 = vrot.slane %v2913, 4
    %v2931 = vsel %vm328, %v2930, %v2889
    %v2932 = vrot.slane %v2889, 4
    %v2933 = vsel %vm328, %v2913, %v2932
    %v2934 = vrot.slane %v2917, 4
    %v2935 = vsel %vm328, %v2934, %v2893
    %v2936 = vrot.slane %v2893, 4
    %v2937 = vsel %vm328, %v2917, %v2936
    %v2938 = vrot.slane %v2925, 4
    %v2939 = vsel %vm328, %v2938, %v2901
    %v2940 = vrot.slane %v2901, 4
    %v2941 = vsel %vm328, %v2925, %v2940
    %v2942 = vrot.slane %v2929, 4
    %v2943 = vsel %vm328, %v2942, %v2905
    %v2944 = vrot.slane %v2905, 4
    %v2945 = vsel %vm328, %v2929, %v2944
    %v2946 = vrot.slane %v2823, 4
    %v2947 = vsel %vm328, %v2946, %v2819
    %v2948 = vrot.slane %v2819, 4
    %v2949 = vsel %vm328, %v2823, %v2948
    %v2951 = vunpack.c.l.s4 1983009808
    %v2952 = vunpack.c.0.s8 %v2951
    %v2953 = vperm.slane %v2947, %v2952
    %v2955 = vunpack.c.l.s4 1983009808
    %v2956 = vunpack.c.0.s8 %v2955
    %v2957 = vperm.slane %v2949, %v2956
    %v2958 = vrot.slane %v2825, 4
    %v2959 = vsel %vm328, %v2958, %v2821
    %v2960 = vrot.slane %v2821, 4
    %v2961 = vsel %vm328, %v2825, %v2960
    %v2963 = vunpack.c.l.s4 1983009808
    %v2964 = vunpack.c.0.s8 %v2963
    %v2965 = vperm.slane %v2959, %v2964
    %v2967 = vunpack.c.l.s4 1983009808
    %v2968 = vunpack.c.0.s8 %v2967
    %v2969 = vperm.slane %v2961, %v2968
    %v2970 = vrot.slane %v2831, 4
    %v2971 = vsel %vm328, %v2970, %v2827
    %v2972 = vrot.slane %v2827, 4
    %v2973 = vsel %vm328, %v2831, %v2972
    %v2975 = vunpack.c.l.s4 1983009808
    %v2976 = vunpack.c.0.s8 %v2975
    %v2977 = vperm.slane %v2971, %v2976
    %v2979 = vunpack.c.l.s4 1983009808
    %v2980 = vunpack.c.0.s8 %v2979
    %v2981 = vperm.slane %v2973, %v2980
    %v2982 = vrot.slane %v2833, 4
    %v2983 = vsel %vm328, %v2982, %v2829
    %v2984 = vrot.slane %v2829, 4
    %v2985 = vsel %vm328, %v2833, %v2984
    %v2987 = vunpack.c.l.s4 1983009808
    %v2988 = vunpack.c.0.s8 %v2987
    %v2989 = vperm.slane %v2983, %v2988
    %v2991 = vunpack.c.l.s4 1983009808
    %v2992 = vunpack.c.0.s8 %v2991
    %v2993 = vperm.slane %v2985, %v2992
    %v2994 = vrot.slane %v2965, 4
    %v2995 = vsel %vm328, %v2994, %v2953
    %v2996 = vrot.slane %v2953, 4
    %v2997 = vsel %vm328, %v2965, %v2996
    %v2999 = vunpack.c.l.s4 1934713408
    %v3000 = vunpack.c.0.s8 %v2999
    %v3001 = vperm.slane %v2995, %v3000
    %v3003 = vunpack.c.l.s4 1934713408
    %v3004 = vunpack.c.0.s8 %v3003
    %v3005 = vperm.slane %v2997, %v3004
    %v3006 = vrot.slane %v2969, 4
    %v3007 = vsel %vm328, %v3006, %v2957
    %v3008 = vrot.slane %v2957, 4
    %v3009 = vsel %vm328, %v2969, %v3008
    %v3011 = vunpack.c.l.s4 1934713408
    %v3012 = vunpack.c.0.s8 %v3011
    %v3013 = vperm.slane %v3007, %v3012
    %v3015 = vunpack.c.l.s4 1934713408
    %v3016 = vunpack.c.0.s8 %v3015
    %v3017 = vperm.slane %v3009, %v3016
    %v3018 = vrot.slane %v2989, 4
    %v3019 = vsel %vm328, %v3018, %v2977
    %v3020 = vrot.slane %v2977, 4
    %v3021 = vsel %vm328, %v2989, %v3020
    %v3023 = vunpack.c.l.s4 1934713408
    %v3024 = vunpack.c.0.s8 %v3023
    %v3025 = vperm.slane %v3019, %v3024
    %v3027 = vunpack.c.l.s4 1934713408
    %v3028 = vunpack.c.0.s8 %v3027
    %v3029 = vperm.slane %v3021, %v3028
    %v3030 = vrot.slane %v2993, 4
    %v3031 = vsel %vm328, %v3030, %v2981
    %v3032 = vrot.slane %v2981, 4
    %v3033 = vsel %vm328, %v2993, %v3032
    %v3035 = vunpack.c.l.s4 1934713408
    %v3036 = vunpack.c.0.s8 %v3035
    %v3037 = vperm.slane %v3031, %v3036
    %v3039 = vunpack.c.l.s4 1934713408
    %v3040 = vunpack.c.0.s8 %v3039
    %v3041 = vperm.slane %v3033, %v3040
    %v3042 = vrot.slane %v3025, 4
    %v3043 = vsel %vm328, %v3042, %v3001
    %v3044 = vrot.slane %v3001, 4
    %v3045 = vsel %vm328, %v3025, %v3044
    %v3046 = vrot.slane %v3029, 4
    %v3047 = vsel %vm328, %v3046, %v3005
    %v3048 = vrot.slane %v3005, 4
    %v3049 = vsel %vm328, %v3029, %v3048
    %v3050 = vrot.slane %v3037, 4
    %v3051 = vsel %vm328, %v3050, %v3013
    %v3052 = vrot.slane %v3013, 4
    %v3053 = vsel %vm328, %v3037, %v3052
    %v3054 = vrot.slane %v3041, 4
    %v3055 = vsel %vm328, %v3054, %v3017
    %v3056 = vrot.slane %v3017, 4
    %v3057 = vsel %vm328, %v3041, %v3056
    %v3058 = vrot.slane %v2935, 4
    %v3059 = vsel %vm328, %v3058, %v2931
    %v3060 = vrot.slane %v2931, 4
    %v3061 = vsel %vm328, %v2935, %v3060
    %v3063 = vunpack.c.l.s4 1983009808
    %v3064 = vunpack.c.0.s8 %v3063
    %v3065 = vperm.slane %v3059, %v3064
    %v3067 = vunpack.c.l.s4 1983009808
    %v3068 = vunpack.c.0.s8 %v3067
    %v3069 = vperm.slane %v3061, %v3068
    %v3070 = vrot.slane %v2937, 4
    %v3071 = vsel %vm328, %v3070, %v2933
    %v3072 = vrot.slane %v2933, 4
    %v3073 = vsel %vm328, %v2937, %v3072
    %v3075 = vunpack.c.l.s4 1983009808
    %v3076 = vunpack.c.0.s8 %v3075
    %v3077 = vperm.slane %v3071, %v3076
    %v3079 = vunpack.c.l.s4 1983009808
    %v3080 = vunpack.c.0.s8 %v3079
    %v3081 = vperm.slane %v3073, %v3080
    %v3082 = vrot.slane %v2943, 4
    %v3083 = vsel %vm328, %v3082, %v2939
    %v3084 = vrot.slane %v2939, 4
    %v3085 = vsel %vm328, %v2943, %v3084
    %v3087 = vunpack.c.l.s4 1983009808
    %v3088 = vunpack.c.0.s8 %v3087
    %v3089 = vperm.slane %v3083, %v3088
    %v3091 = vunpack.c.l.s4 1983009808
    %v3092 = vunpack.c.0.s8 %v3091
    %v3093 = vperm.slane %v3085, %v3092
    %v3094 = vrot.slane %v2945, 4
    %v3095 = vsel %vm328, %v3094, %v2941
    %v3096 = vrot.slane %v2941, 4
    %v3097 = vsel %vm328, %v2945, %v3096
    %v3099 = vunpack.c.l.s4 1983009808
    %v3100 = vunpack.c.0.s8 %v3099
    %v3101 = vperm.slane %v3095, %v3100
    %v3103 = vunpack.c.l.s4 1983009808
    %v3104 = vunpack.c.0.s8 %v3103
    %v3105 = vperm.slane %v3097, %v3104
    %v3106 = vrot.slane %v3077, 4
    %v3107 = vsel %vm328, %v3106, %v3065
    %v3108 = vrot.slane %v3065, 4
    %v3109 = vsel %vm328, %v3077, %v3108
    %v3111 = vunpack.c.l.s4 1934713408
    %v3112 = vunpack.c.0.s8 %v3111
    %v3113 = vperm.slane %v3107, %v3112
    %v3115 = vunpack.c.l.s4 1934713408
    %v3116 = vunpack.c.0.s8 %v3115
    %v3117 = vperm.slane %v3109, %v3116
    %v3118 = vrot.slane %v3081, 4
    %v3119 = vsel %vm328, %v3118, %v3069
    %v3120 = vrot.slane %v3069, 4
    %v3121 = vsel %vm328, %v3081, %v3120
    %v3123 = vunpack.c.l.s4 1934713408
    %v3124 = vunpack.c.0.s8 %v3123
    %v3125 = vperm.slane %v3119, %v3124
    %v3127 = vunpack.c.l.s4 1934713408
    %v3128 = vunpack.c.0.s8 %v3127
    %v3129 = vperm.slane %v3121, %v3128
    %v3130 = vrot.slane %v3101, 4
    %v3131 = vsel %vm328, %v3130, %v3089
    %v3132 = vrot.slane %v3089, 4
    %v3133 = vsel %vm328, %v3101, %v3132
    %v3135 = vunpack.c.l.s4 1934713408
    %v3136 = vunpack.c.0.s8 %v3135
    %v3137 = vperm.slane %v3131, %v3136
    %v3139 = vunpack.c.l.s4 1934713408
    %v3140 = vunpack.c.0.s8 %v3139
    %v3141 = vperm.slane %v3133, %v3140
    %v3142 = vrot.slane %v3105, 4
    %v3143 = vsel %vm328, %v3142, %v3093
    %v3144 = vrot.slane %v3093, 4
    %v3145 = vsel %vm328, %v3105, %v3144
    %v3147 = vunpack.c.l.s4 1934713408
    %v3148 = vunpack.c.0.s8 %v3147
    %v3149 = vperm.slane %v3143, %v3148
    %v3151 = vunpack.c.l.s4 1934713408
    %v3152 = vunpack.c.0.s8 %v3151
    %v3153 = vperm.slane %v3145, %v3152
    %v3154 = vrot.slane %v3137, 4
    %v3155 = vsel %vm328, %v3154, %v3113
    %v3156 = vrot.slane %v3113, 4
    %v3157 = vsel %vm328, %v3137, %v3156
    %v3158 = vrot.slane %v3141, 4
    %v3159 = vsel %vm328, %v3158, %v3117
    %v3160 = vrot.slane %v3117, 4
    %v3161 = vsel %vm328, %v3141, %v3160
    %v3162 = vrot.slane %v3149, 4
    %v3163 = vsel %vm328, %v3162, %v3125
    %v3164 = vrot.slane %v3125, 4
    %v3165 = vsel %vm328, %v3149, %v3164
    %v3166 = vrot.slane %v3153, 4
    %v3167 = vsel %vm328, %v3166, %v3129
    %v3168 = vrot.slane %v3129, 4
    %v3169 = vsel %vm328, %v3153, %v3168
    %3172 = vrot.lane.b32.xlu0 %v3045, 4
    %v3173 = vpop.permute.xlu0 %3172
    %3174 = vrot.lane.b32.xlu0 %v3157, 4
    %v3175 = vpop.permute.xlu0 %3174
    %3180 = vrot.lane.b32.xlu0 %v3047, 8
    %v3181 = vpop.permute.xlu0 %3180
    %3182 = vrot.lane.b32.xlu0 %v3159, 8
    %v3183 = vpop.permute.xlu0 %3182
    %3188 = vrot.lane.b32.xlu0 %v3049, 12
    %v3189 = vpop.permute.xlu0 %3188
    %3190 = vrot.lane.b32.xlu0 %v3161, 12
    %v3191 = vpop.permute.xlu0 %3190
    %3196 = vrot.lane.b32.xlu0 %v3051, 16
    %v3197 = vpop.permute.xlu0 %3196
    %3198 = vrot.lane.b32.xlu0 %v3163, 16
    %v3199 = vpop.permute.xlu0 %3198
    %3204 = vrot.lane.b32.xlu0 %v3053, 20
    %v3205 = vpop.permute.xlu0 %3204
    %3206 = vrot.lane.b32.xlu0 %v3165, 20
    %v3207 = vpop.permute.xlu0 %3206
    %3212 = vrot.lane.b32.xlu0 %v3055, 24
    %v3213 = vpop.permute.xlu0 %3212
    %3214 = vrot.lane.b32.xlu0 %v3167, 24
    %v3215 = vpop.permute.xlu0 %3214
    %3220 = vrot.lane.b32.xlu0 %v3057, 28
    %v3221 = vpop.permute.xlu0 %3220
    %3222 = vrot.lane.b32.xlu0 %v3169, 28
    %v3223 = vpop.permute.xlu0 %3222
    %v3226 = vsel %vm1760, %v3043, %v3173
    %v3227 = vsel %vm1760, %v3155, %v3175
    %v3228 = vsel %vm2177, %v3226, %v3181
    %v3229 = vsel %vm2177, %v3227, %v3183
    %vm3230 = vcmask 97280
    %v3231 = vsel %vm3230, %v3228, %v3189
    %v3232 = vsel %vm3230, %v3229, %v3191
    %vm3233 = vcmask 130048
    %v3234 = vsel %vm3233, %v3231, %v3197
    %v3235 = vsel %vm3233, %v3232, %v3199
    %vm3236 = vcmask 162816
    %v3237 = vsel %vm3236, %v3234, %v3205
    %v3238 = vsel %vm3236, %v3235, %v3207
    %vm3239 = vcmask 195584
    %v3240 = vsel %vm3239, %v3237, %v3213
    %v3241 = vsel %vm3239, %v3238, %v3215
    %vm3242 = vcmask 228352
    %v3243 = vsel %vm3242, %v3240, %v3221
    %v3244 = vsel %vm3242, %v3241, %v3223
    %v3245 = vld [vmem:[#allocation7] sm:$0xff]
    %v3246 = vld [vmem:[#allocation7 + $0x8] sm:$0xff]
    %v3247 = vld [vmem:[#allocation7 + $0x10] sm:$0xff]
    %v3248 = vld [vmem:[#allocation7 + $0x18] sm:$0xff]
    %v3249 = vld [vmem:[%s10] sm:$0x1]
    %v3251 = vperm.slane %v3249, 0
    %v3254 = vsel %vm122, %v3243, 0
    %v3257 = vsel %vm122, %v3244, 0
    %3259 = vmatpush.msra.mxu0 0.0
    %3260 = vmatpush.msra.mxu0 0.0
    %3261 = vmatpush.msra.mxu0 0.0
    %3262 = vmatpush.msra.mxu0 0.0
    %3263 = vmatpush.msra.mxu0 0.0
    %3264 = vmatpush.msra.mxu0 0.0
    %3265 = vmatpush.msra.mxu0 0.0
    %3266 = vmatpush.msra.mxu0 0.0
    %3267 = vmatpush.msra.mxu0 0.0
    %3268 = vmatpush.msra.mxu0 0.0
    %3269 = vmatpush.msra.mxu0 0.0
    %3270 = vmatpush.msra.mxu0 0.0
    %3271 = vmatpush.msra.mxu0 %v3248
    %3272 = vmatpush.msra.mxu0 %v3247
    %3273 = vmatpush.msra.mxu0 %v3246
    %3274 = vmatpush.msra.mxu0 %v3245
    %3275 = vmatmul.f32.gmra.mxu0 %v3254
    %v3276 = vpop.f32.mrf.mxu0
    %v3277 = vadd.f32 %v3251, %v3276
    %3278 = vmatmul.f32.gmra.mxu0 %v3257
    %v3279 = vpop.f32.mrf.mxu0
    %v3280 = vadd.f32 %v3251, %v3279
    %3281 = vdwg.mxu0
    %v3282 = vadd.f32 %v3277, %v118
    %v3283 = vadd.f32 %v3280, %v119
    %v3284 = vld [vmem:[%s11] sm:$0x1]
    %v3285 = vld [vmem:[%s12] sm:$0x1]
    %v3286 = vsel %vm122, %v3282, 0.0
    %3287 = vadd.xlane.f32.xlu0 %v3286
    %v3288 = vpop.xlane.xlu0 %3287
    %v3289 = vsel %vm122, %v3283, 0.0
    %3290 = vadd.xlane.f32.xlu0 %v3289
    %v3291 = vpop.xlane.xlu0 %3290
    %v3292 = vmul.f32 %v3288, %v135
    %v3293 = vmul.f32 %v3291, %v135
    %v3294 = vsub.f32 %v3282, %v3292
    %v3295 = vsub.f32 %v3283, %v3293
    %v3296 = vmul.f32 %v3294, %v3294
    %v3297 = vmul.f32 %v3295, %v3295
    %v3298 = vsel %vm122, %v3296, 0.0
    %3299 = vadd.xlane.f32.xlu0 %v3298
    %v3300 = vpop.xlane.xlu0 %3299
    %v3301 = vsel %vm122, %v3297, 0.0
    %3302 = vadd.xlane.f32.xlu0 %v3301
    %v3303 = vpop.xlane.xlu0 %3302
    %v3304 = vmul.f32 %v3300, %v135
    %v3305 = vmul.f32 %v3303, %v135
    %v3306 = vadd.f32 %v3304, 1e-05
    %v3307 = vadd.f32 %v3305, 1e-05
    %v3308 = vrsqrt.pop %v3306
    %v3309 = vmul.f32 %v3308, %v3306
    %v3310 = vmul.f32 %v3309, %v3308
    %v3311 = vmul.f32 0.5, %v3310
    %v3312 = vsub.f32 1.5, %v3311
    %v3313 = vmul.f32 %v3308, %v3312
    %vm3314 = vweird.f32 %v3306
    %vm3315 = vweird.f32 %v3308
    %vm3316 = vmor %vm3314, %vm3315
    %v3317 = vsel %vm3316, %v3308, %v3313
    %v3318 = vrsqrt.pop %v3307
    %v3319 = vmul.f32 %v3318, %v3307
    %v3320 = vmul.f32 %v3319, %v3318
    %v3321 = vmul.f32 0.5, %v3320
    %v3322 = vsub.f32 1.5, %v3321
    %v3323 = vmul.f32 %v3318, %v3322
    %vm3324 = vweird.f32 %v3307
    %vm3325 = vweird.f32 %v3318
    %vm3326 = vmor %vm3324, %vm3325
    %v3327 = vsel %vm3326, %v3318, %v3323
    %v3328 = vmul.f32 %v3294, %v3317
    %v3329 = vmul.f32 %v3295, %v3327
    %v3331 = vperm.slane %v3284, 0
    %v3333 = vmul.f32 %v3328, %v3331
    %v3334 = vmul.f32 %v3329, %v3331
    %v3336 = vperm.slane %v3285, 0
    %v3338 = vadd.f32 %v3333, %v3336
    %v3339 = vadd.f32 %v3334, %v3336
    %v3340 = vld [vmem:[#allocation8] sm:$0xff]
    %v3341 = vld [vmem:[#allocation8 + $0x8] sm:$0xff]
    %v3342 = vld [vmem:[#allocation8 + $0x10] sm:$0xff]
    %v3343 = vld [vmem:[#allocation8 + $0x18] sm:$0xff]
    %v3344 = vld [vmem:[%s14] sm:$0x1]
    %v3346 = vperm.slane %v3344, 0
    %v3349 = vsel %vm122, %v3338, 0
    %v3352 = vsel %vm122, %v3339, 0
    %3354 = vmatpush.msra.mxu0 0.0
    %3355 = vmatpush.msra.mxu0 0.0
    %3356 = vmatpush.msra.mxu0 0.0
    %3357 = vmatpush.msra.mxu0 0.0
    %3358 = vmatpush.msra.mxu0 0.0
    %3359 = vmatpush.msra.mxu0 0.0
    %3360 = vmatpush.msra.mxu0 0.0
    %3361 = vmatpush.msra.mxu0 0.0
    %3362 = vmatpush.msra.mxu0 0.0
    %3363 = vmatpush.msra.mxu0 0.0
    %3364 = vmatpush.msra.mxu0 0.0
    %3365 = vmatpush.msra.mxu0 0.0
    %3366 = vmatpush.msra.mxu0 %v3343
    %3367 = vmatpush.msra.mxu0 %v3342
    %3368 = vmatpush.msra.mxu0 %v3341
    %3369 = vmatpush.msra.mxu0 %v3340
    %3370 = vmatmul.f32.gmra.mxu0 %v3349
    %v3371 = vpop.f32.mrf.mxu0
    %v3372 = vadd.f32 %v3346, %v3371
    %3373 = vmatmul.f32.gmra.mxu0 %v3352
    %v3374 = vpop.f32.mrf.mxu0
    %v3375 = vadd.f32 %v3346, %v3374
    %3376 = vdwg.mxu0
    %v3377 = vmul.f32 %v3372, 0.5
    %v3378 = vmul.f32 %v3375, 0.5
    %v3379 = vmul.f32 %v3372, 0.70710677
    %v3380 = vmul.f32 %v3375, 0.70710677
    %v3381 = vmul.f32 %v3379, %v3379
    %v3382 = vmin.f32 16.0, %v3381
    %v3383 = vmul.f32 %v3382, 2.1237322e-06
    %v3384 = vadd.f32 %v3383, 0.00028619796
    %v3385 = vmul.f32 %v3382, %v3384
    %v3386 = vadd.f32 %v3385, 0.0036580483
    %v3387 = vmul.f32 %v3382, %v3386
    %v3388 = vadd.f32 %v3387, 0.05243302
    %v3389 = vmul.f32 %v3382, %v3388
    %v3390 = vadd.f32 %v3389, 0.18741608
    %v3391 = vmul.f32 %v3382, %v3390
    %v3392 = vadd.f32 %v3391, 1.1283791
    %v3393 = vmul.f32 %v3379, %v3392
    %v3394 = vmul.f32 %v3382, 3.8918573e-05
    %v3395 = vadd.f32 %v3394, 0.001143296
    %v3396 = vmul.f32 %v3382, %v3395
    %v3397 = vadd.f32 %v3396, 0.014752088
    %v3398 = vmul.f32 %v3382, %v3397
    %v3399 = vadd.f32 %v3398, 0.112945676
    %v3400 = vmul.f32 %v3382, %v3399
    %v3401 = vadd.f32 %v3400, 0.4994258
    %v3402 = vmul.f32 %v3382, %v3401
    %v3403 = vadd.f32 %v3402, 1.0
    %v3404 = vrcp.pop %v3403
    %v3405 = vmul.f32 %v3403, %v3404
    %v3406 = vsub.f32 1.0, %v3405
    %v3407 = vmul.f32 %v3404, %v3406
    %v3408 = vadd.f32 %v3404, %v3407
    %vm3409 = vweird.f32 %v3403
    %vm3410 = vweird.f32 %v3404
    %vm3411 = vmor %vm3409, %vm3410
    %v3412 = vsel %vm3411, %v3404, %v3408
    %v3413 = vand.u32 2147483647, %v3403
    %vm3414 = vcmp.eq.f32.partialorder %v3413, 8.507059e+37
    %v3415 = vand.u32 %v3403, 2147483648
    %v3416 = vor.u32 1.1754944e-38, %v3415
    %v3417 = vsel %vm3414, %v3416, %v3412
    %v3418 = vmul.f32 %v3393, %v3417
    %v3419 = vmin.f32 %v3418, 1.0
    %v3420 = vmax.f32 %v3419, -1.0
    %v3421 = vmul.f32 %v3380, %v3380
    %v3422 = vmin.f32 16.0, %v3421
    %v3423 = vmul.f32 %v3422, 2.1237322e-06
    %v3424 = vadd.f32 %v3423, 0.00028619796
    %v3425 = vmul.f32 %v3422, %v3424
    %v3426 = vadd.f32 %v3425, 0.0036580483
    %v3427 = vmul.f32 %v3422, %v3426
    %v3428 = vadd.f32 %v3427, 0.05243302
    %v3429 = vmul.f32 %v3422, %v3428
    %v3430 = vadd.f32 %v3429, 0.18741608
    %v3431 = vmul.f32 %v3422, %v3430
    %v3432 = vadd.f32 %v3431, 1.1283791
    %v3433 = vmul.f32 %v3380, %v3432
    %v3434 = vmul.f32 %v3422, 3.8918573e-05
    %v3435 = vadd.f32 %v3434, 0.001143296
    %v3436 = vmul.f32 %v3422, %v3435
    %v3437 = vadd.f32 %v3436, 0.014752088
    %v3438 = vmul.f32 %v3422, %v3437
    %v3439 = vadd.f32 %v3438, 0.112945676
    %v3440 = vmul.f32 %v3422, %v3439
    %v3441 = vadd.f32 %v3440, 0.4994258
    %v3442 = vmul.f32 %v3422, %v3441
    %v3443 = vadd.f32 %v3442, 1.0
    %v3444 = vrcp.pop %v3443
    %v3445 = vmul.f32 %v3443, %v3444
    %v3446 = vsub.f32 1.0, %v3445
    %v3447 = vmul.f32 %v3444, %v3446
    %v3448 = vadd.f32 %v3444, %v3447
    %vm3449 = vweird.f32 %v3443
    %vm3450 = vweird.f32 %v3444
    %vm3451 = vmor %vm3449, %vm3450
    %v3452 = vsel %vm3451, %v3444, %v3448
    %v3453 = vand.u32 2147483647, %v3443
    %vm3454 = vcmp.eq.f32.partialorder %v3453, 8.507059e+37
    %v3455 = vand.u32 %v3443, 2147483648
    %v3456 = vor.u32 1.1754944e-38, %v3455
    %v3457 = vsel %vm3454, %v3456, %v3452
    %v3458 = vmul.f32 %v3433, %v3457
    %v3459 = vmin.f32 %v3458, 1.0
    %v3460 = vmax.f32 %v3459, -1.0
    %v3461 = vadd.f32 %v3420, 1.0
    %v3462 = vadd.f32 %v3460, 1.0
    %v3463 = vmul.f32 %v3377, %v3461
    %v3464 = vmul.f32 %v3378, %v3462
    %v3465 = vld [vmem:[%s15] sm:$0xff]
    %v3466 = vld [vmem:[%s15 + $0x8] sm:$0xff]
    %v3467 = vld [vmem:[%s15 + $0x10] sm:$0xff]
    %v3468 = vld [vmem:[%s15 + $0x18] sm:$0xff]
    %v3469 = vld [vmem:[%s15 + $0x20] sm:$0xff]
    %v3470 = vld [vmem:[%s15 + $0x28] sm:$0xff]
    %v3471 = vld [vmem:[%s15 + $0x30] sm:$0xff]
    %v3472 = vld [vmem:[%s15 + $0x38] sm:$0xff]
    %v3473 = vld [vmem:[%s16] sm:$0x1]
    %v3475 = vperm.slane %v3473, 0
    %vm3477 = vcmask 523264
    %v3479 = vsel %vm3477, %v3463, 0
    %v3482 = vsel %vm3477, %v3464, 0
    %3484 = vmatpush.msra.mxu0 0.0
    %3485 = vmatpush.msra.mxu0 0.0
    %3486 = vmatpush.msra.mxu0 0.0
    %3487 = vmatpush.msra.mxu0 0.0
    %3488 = vmatpush.msra.mxu0 0.0
    %3489 = vmatpush.msra.mxu0 0.0
    %3490 = vmatpush.msra.mxu0 0.0
    %3491 = vmatpush.msra.mxu0 0.0
    %3492 = vmatpush.msra.mxu0 %v3472
    %3493 = vmatpush.msra.mxu0 %v3471
    %3494 = vmatpush.msra.mxu0 %v3470
    %3495 = vmatpush.msra.mxu0 %v3469
    %3496 = vmatpush.msra.mxu0 %v3468
    %3497 = vmatpush.msra.mxu0 %v3467
    %3498 = vmatpush.msra.mxu0 %v3466
    %3499 = vmatpush.msra.mxu0 %v3465
    %3500 = vmatmul.f32.gmra.mxu0 %v3479
    %v3501 = vpop.f32.mrf.mxu0
    %v3502 = vadd.f32 %v3475, %v3501
    %3503 = vmatmul.f32.gmra.mxu0 %v3482
    %v3504 = vpop.f32.mrf.mxu0
    %v3505 = vadd.f32 %v3475, %v3504
    %3506 = vdwg.mxu0
    %v3507 = vmul.f32 %v3502, 0.5
    %v3508 = vmul.f32 %v3505, 0.5
    %v3509 = vmul.f32 %v3502, 0.70710677
    %v3510 = vmul.f32 %v3505, 0.70710677
    %v3511 = vmul.f32 %v3509, %v3509
    %v3512 = vmin.f32 16.0, %v3511
    %v3513 = vmul.f32 %v3512, 2.1237322e-06
    %v3514 = vadd.f32 %v3513, 0.00028619796
    %v3515 = vmul.f32 %v3512, %v3514
    %v3516 = vadd.f32 %v3515, 0.0036580483
    %v3517 = vmul.f32 %v3512, %v3516
    %v3518 = vadd.f32 %v3517, 0.05243302
    %v3519 = vmul.f32 %v3512, %v3518
    %v3520 = vadd.f32 %v3519, 0.18741608
    %v3521 = vmul.f32 %v3512, %v3520
    %v3522 = vadd.f32 %v3521, 1.1283791
    %v3523 = vmul.f32 %v3509, %v3522
    %v3524 = vmul.f32 %v3512, 3.8918573e-05
    %v3525 = vadd.f32 %v3524, 0.001143296
    %v3526 = vmul.f32 %v3512, %v3525
    %v3527 = vadd.f32 %v3526, 0.014752088
    %v3528 = vmul.f32 %v3512, %v3527
    %v3529 = vadd.f32 %v3528, 0.112945676
    %v3530 = vmul.f32 %v3512, %v3529
    %v3531 = vadd.f32 %v3530, 0.4994258
    %v3532 = vmul.f32 %v3512, %v3531
    %v3533 = vadd.f32 %v3532, 1.0
    %v3534 = vrcp.pop %v3533
    %v3535 = vmul.f32 %v3533, %v3534
    %v3536 = vsub.f32 1.0, %v3535
    %v3537 = vmul.f32 %v3534, %v3536
    %v3538 = vadd.f32 %v3534, %v3537
    %vm3539 = vweird.f32 %v3533
    %vm3540 = vweird.f32 %v3534
    %vm3541 = vmor %vm3539, %vm3540
    %v3542 = vsel %vm3541, %v3534, %v3538
    %v3543 = vand.u32 2147483647, %v3533
    %vm3544 = vcmp.eq.f32.partialorder %v3543, 8.507059e+37
    %v3545 = vand.u32 %v3533, 2147483648
    %v3546 = vor.u32 1.1754944e-38, %v3545
    %v3547 = vsel %vm3544, %v3546, %v3542
    %v3548 = vmul.f32 %v3523, %v3547
    %v3549 = vmin.f32 %v3548, 1.0
    %v3550 = vmax.f32 %v3549, -1.0
    %v3551 = vmul.f32 %v3510, %v3510
    %v3552 = vmin.f32 16.0, %v3551
    %v3553 = vmul.f32 %v3552, 2.1237322e-06
    %v3554 = vadd.f32 %v3553, 0.00028619796
    %v3555 = vmul.f32 %v3552, %v3554
    %v3556 = vadd.f32 %v3555, 0.0036580483
    %v3557 = vmul.f32 %v3552, %v3556
    %v3558 = vadd.f32 %v3557, 0.05243302
    %v3559 = vmul.f32 %v3552, %v3558
    %v3560 = vadd.f32 %v3559, 0.18741608
    %v3561 = vmul.f32 %v3552, %v3560
    %v3562 = vadd.f32 %v3561, 1.1283791
    %v3563 = vmul.f32 %v3510, %v3562
    %v3564 = vmul.f32 %v3552, 3.8918573e-05
    %v3565 = vadd.f32 %v3564, 0.001143296
    %v3566 = vmul.f32 %v3552, %v3565
    %v3567 = vadd.f32 %v3566, 0.014752088
    %v3568 = vmul.f32 %v3552, %v3567
    %v3569 = vadd.f32 %v3568, 0.112945676
    %v3570 = vmul.f32 %v3552, %v3569
    %v3571 = vadd.f32 %v3570, 0.4994258
    %v3572 = vmul.f32 %v3552, %v3571
    %v3573 = vadd.f32 %v3572, 1.0
    %v3574 = vrcp.pop %v3573
    %v3575 = vmul.f32 %v3573, %v3574
    %v3576 = vsub.f32 1.0, %v3575
    %v3577 = vmul.f32 %v3574, %v3576
    %v3578 = vadd.f32 %v3574, %v3577
    %vm3579 = vweird.f32 %v3573
    %vm3580 = vweird.f32 %v3574
    %vm3581 = vmor %vm3579, %vm3580
    %v3582 = vsel %vm3581, %v3574, %v3578
    %v3583 = vand.u32 2147483647, %v3573
    %vm3584 = vcmp.eq.f32.partialorder %v3583, 8.507059e+37
    %v3585 = vand.u32 %v3573, 2147483648
    %v3586 = vor.u32 1.1754944e-38, %v3585
    %v3587 = vsel %vm3584, %v3586, %v3582
    %v3588 = vmul.f32 %v3563, %v3587
    %v3589 = vmin.f32 %v3588, 1.0
    %v3590 = vmax.f32 %v3589, -1.0
    %v3591 = vadd.f32 %v3550, 1.0
    %v3592 = vadd.f32 %v3590, 1.0
    %v3593 = vmul.f32 %v3507, %v3591
    %v3594 = vmul.f32 %v3508, %v3592
    %v3595 = vadd.f32 %v3593, %v3282
    %v3596 = vadd.f32 %v3594, %v3283
    %3597 = vst.msk [vmem:[#allocation10] sm:$0xff] %vm122, %v3595
    %3598 = vst.msk [vmem:[#allocation10 + $0x8] sm:$0xff] %vm122, %v3596
    // Predicated region
    $region86: #{tpu_custom_call.1} parent=1 // pred_check
      _
    $region87: #{tpu_custom_call.1} parent=1 // pred_check_branch
      %3600 = sbr.rel (0) target = $region89
    $region88: #{tpu_custom_call.1} parent=1 // pred_region
      %3602 = vsyncadd [#allocation4], 0
      %s3603 = sshll.u32 [#allocation10], 4
      %s3604 = int_to_ptr.vmem [resolvable:$true] %s3603
      %s3605 = sshll.u32 %s17, 4
      %s3606 = int_to_ptr.hbm [resolvable:$true] %s3605
      %3611 = dma.vmem_to_hbm [thread:$0]  %s3604, 256, %s3606, [#allocation4], 128, 128, 8
    $region89: #{tpu_custom_call.1} parent=1 // pred_fallthru
      _
    // Predicated region
    $region90: #{tpu_custom_call.1} parent=1 // pred_check
      _
    $region91: #{tpu_custom_call.1} parent=1 // pred_check_branch
      %3613 = sbr.rel (0) target = $region93
    $region92: #{tpu_custom_call.1} parent=1 // pred_region
      %3615 = dma.done [#allocation4], 256
    $region93: #{tpu_custom_call.1} parent=1 // pred_fallthru
      _
    %3616 = vsyncpa [#allocation3], 1
    %3617 = vsyncpa [#allocation6], 1
    %3618 = vsyncpa [#allocation9], 1
    %3619 = vsyncpa [#allocation4], 1

// kernel: tpu_custom_call.1
$region0: #{tpu_custom_call.1}
  #allocation0 [shape = 'u32[]', space=smem, size = 0x4, offset = 0x4, fixed_abs, tag = 'smem constant byte address 0x4 - core index']
  #allocation1 [shape = 'u32[72,128]{1,0:T(1,128)}', space=vmem, size = 0x9000, scoped, tag = 'internal scratch']
  %s0 = inlined_call_operand.hbm [shape: f32[2,8,32], index: 0, kind: input, shape index: {}]
  %s1 = inlined_call_operand.hbm [shape: f32[1,32], index: 1, kind: input, shape index: {}]
  %s2 = inlined_call_operand.vmem [shape: f32[1,32], index: 2, kind: input, shape index: {}]
  %s3 = inlined_call_operand.vmem [shape: f32[32,32], index: 3, kind: input, shape index: {}]
  %s4 = inlined_call_operand.vmem [shape: f32[1,32], index: 4, kind: input, shape index: {}]
  %s5 = inlined_call_operand.vmem [shape: f32[32,32], index: 5, kind: input, shape index: {}]
  %s6 = inlined_call_operand.vmem [shape: f32[1,32], index: 6, kind: input, shape index: {}]
  %s7 = inlined_call_operand.vmem [shape: f32[32,32], index: 7, kind: input, shape index: {}]
  %s8 = inlined_call_operand.vmem [shape: f32[1,32], index: 8, kind: input, shape index: {}]
  %s9 = inlined_call_operand.hbm [shape: f32[32,32], index: 9, kind: input, shape index: {}]
  %s10 = inlined_call_operand.vmem [shape: f32[1,32], index: 10, kind: input, shape index: {}]
  %s11 = inlined_call_operand.vmem [shape: f32[1,32], index: 11, kind: input, shape index: {}]
  %s12 = inlined_call_operand.vmem [shape: f32[1,32], index: 12, kind: input, shape index: {}]
  %s13 = inlined_call_operand.hbm [shape: f32[32,64], index: 13, kind: input, shape index: {}]
  %s14 = inlined_call_operand.vmem [shape: f32[1,64], index: 14, kind: input, shape index: {}]
  %s15 = inlined_call_operand.vmem [shape: f32[64,32], index: 15, kind: input, shape index: {}]
  %s16 = inlined_call_operand.vmem [shape: f32[1,32], index: 16, kind: input, shape index: {}]
  %s17 = inlined_call_operand.hbm [shape: f32[2,8,32], index: 17, kind: output, shape index: {}]
  %s18 = sld [smem:[#allocation0]]
  $region94: #{tpu_custom_call.1} parent=0
    _
  %s20 = ssub.s32 1, %s18
  %s21 = scalar_select 0, %s20, %s18
  $region1: #{tpu_custom_call.1} parent=0
    #allocation2 [shape = 'u8[8192]{0}', space=vmem, size = 0x2000, scoped, tag = 'input window, operand 0, single buffered']
    #allocation3 [shape = 's32[1]{0}', space=sflag, size = 0x4, scoped, tag = 'scoped memory for tpu_custom_call.1']
    #allocation4 [shape = 's32[1]{0}', space=sflag, size = 0x4, scoped, tag = 'scoped memory for tpu_custom_call.1']
    #allocation5 [shape = 'u8[512]{0}', space=vmem, size = 0x400, scoped, tag = 'input window, operand 1, single buffered']
    #allocation6 [shape = 's32[1]{0}', space=sflag, size = 0x4, scoped, tag = 'scoped memory for tpu_custom_call.1']
    #allocation7 [shape = 'u8[16384]{0}', space=vmem, size = 0x4000, scoped, tag = 'input window, operand 9, single buffered']
    #allocation8 [shape = 'u8[16384]{0}', space=vmem, size = 0x4000, scoped, tag = 'input window, operand 13, single buffered']
    #allocation9 [shape = 's32[1]{0}', space=sflag, size = 0x4, scoped, tag = 'scoped memory for tpu_custom_call.1']
    #allocation10 [shape = 'u8[8192]{0}', space=vmem, size = 0x2000, scoped, tag = 'output window, operand 0, single buffered']
    %22 = vsyncpa [#allocation3], 0
    %23 = vsyncpa [#allocation6], 0
    %24 = vsyncpa [#allocation9], 0
    %25 = vsyncpa [#allocation4], 0
    // Predicated region
    $region2: #{tpu_custom_call.1} parent=1 // pred_check
      _
    $region3: #{tpu_custom_call.1} parent=1 // pred_check_branch
      %27 = sbr.rel (0) target = $region5
    $region4: #{tpu_custom_call.1} parent=1 // pred_region
      %29 = vsyncadd [#allocation3], 0
      %s30 = sshll.u32 %s0, 4
      %s31 = int_to_ptr.hbm [resolvable:$true] %s30
      %s32 = sshll.u32 [#allocation2], 4
      %s33 = int_to_ptr.vmem [resolvable:$true] %s32
      %38 = dma.hbm_to_vmem [thread:$0]  %s31, 256, %s33, [#allocation3], 128, 128, 8
    $region5: #{tpu_custom_call.1} parent=1 // pred_fallthru
      _
    // Predicated region
    $region6: #{tpu_custom_call.1} parent=1 // pred_check
      _
    $region7: #{tpu_custom_call.1} parent=1 // pred_check_branch
      %40 = sbr.rel (0) target = $region9
    $region8: #{tpu_custom_call.1} parent=1 // pred_region
      %42 = vsyncadd [#allocation6], 0
      %s44 = sshll.u32 %s1, 4
      %s45 = int_to_ptr.hbm [resolvable:$true] %s44
      %s46 = sshll.u32 [#allocation5], 4
      %s47 = int_to_ptr.vmem [resolvable:$true] %s46
      %49 = dma.hbm_to_vmem [thread:$0]  %s45, 16, %s47, [#allocation6]
    $region9: #{tpu_custom_call.1} parent=1 // pred_fallthru
      _
    // Predicated region
    $region10: #{tpu_custom_call.1} parent=1 // pred_check
      _
    $region11: #{tpu_custom_call.1} parent=1 // pred_check_branch
      %51 = sbr.rel (0) target = $region13
    $region12: #{tpu_custom_call.1} parent=1 // pred_region
      _
    $region13: #{tpu_custom_call.1} parent=1 // pred_fallthru
      _
    // Predicated region
    $region14: #{tpu_custom_call.1} parent=1 // pred_check
      _
    $region15: #{tpu_custom_call.1} parent=1 // pred_check_branch
      %53 = sbr.rel (0) target = $region17
    $region16: #{tpu_custom_call.1} parent=1 // pred_region
      _
    $region17: #{tpu_custom_call.1} parent=1 // pred_fallthru
      _
    // Predicated region
    $region18: #{tpu_custom_call.1} parent=1 // pred_check
      _
    $region19: #{tpu_custom_call.1} parent=1 // pred_check_branch
      %55 = sbr.rel (0) target = $region21
    $region20: #{tpu_custom_call.1} parent=1 // pred_region
      _
    $region21: #{tpu_custom_call.1} parent=1 // pred_fallthru
      _
    // Predicated region
    $region22: #{tpu_custom_call.1} parent=1 // pred_check
      _
    $region23: #{tpu_custom_call.1} parent=1 // pred_check_branch
      %57 = sbr.rel (0) target = $region25
    $region24: #{tpu_custom_call.1} parent=1 // pred_region
      _
    $region25: #{tpu_custom_call.1} parent=1 // pred_fallthru
      _
    // Predicated region
    $region26: #{tpu_custom_call.1} parent=1 // pred_check
      _
    $region27: #{tpu_custom_call.1} parent=1 // pred_check_branch
      %59 = sbr.rel (0) target = $region29
    $region28: #{tpu_custom_call.1} parent=1 // pred_region
      _
    $region29: #{tpu_custom_call.1} parent=1 // pred_fallthru
      _
    // Predicated region
    $region30: #{tpu_custom_call.1} parent=1 // pred_check
      _
    $region31: #{tpu_custom_call.1} parent=1 // pred_check_branch
      %61 = sbr.rel (0) target = $region33
    $region32: #{tpu_custom_call.1} parent=1 // pred_region
      _
    $region33: #{tpu_custom_call.1} parent=1 // pred_fallthru
      _
    // Predicated region
    $region34: #{tpu_custom_call.1} parent=1 // pred_check
      _
    $region35: #{tpu_custom_call.1} parent=1 // pred_check_branch
      %63 = sbr.rel (0) target = $region37
    $region36: #{tpu_custom_call.1} parent=1 // pred_region
      _
    $region37: #{tpu_custom_call.1} parent=1 // pred_fallthru
      _
    // Predicated region
    $region38: #{tpu_custom_call.1} parent=1 // pred_check
      _
    $region39: #{tpu_custom_call.1} parent=1 // pred_check_branch
      %65 = sbr.rel (0) target = $region41
    $region40: #{tpu_custom_call.1} parent=1 // pred_region
      %67 = vsyncadd [#allocation6], 0
      %s68 = sshll.u32 %s9, 4
      %s69 = int_to_ptr.hbm [resolvable:$true] %s68
      %s70 = sshll.u32 [#allocation7], 4
      %s71 = int_to_ptr.vmem [resolvable:$true] %s70
      %76 = dma.hbm_to_vmem [thread:$0]  %s69, 512, %s71, [#allocation6], 128, 128, 8
    $region41: #{tpu_custom_call.1} parent=1 // pred_fallthru
      _
    // Predicated region
    $region42: #{tpu_custom_call.1} parent=1 // pred_check
      _
    $region43: #{tpu_custom_call.1} parent=1 // pred_check_branch
      %78 = sbr.rel (0) target = $region45
    $region44: #{tpu_custom_call.1} parent=1 // pred_region
      _
    $region45: #{tpu_custom_call.1} parent=1 // pred_fallthru
      _
    // Predicated region
    $region46: #{tpu_custom_call.1} parent=1 // pred_check
      _
    $region47: #{tpu_custom_call.1} parent=1 // pred_check_branch
      %80 = sbr.rel (0) target = $region49
    $region48: #{tpu_custom_call.1} parent=1 // pred_region
      _
    $region49: #{tpu_custom_call.1} parent=1 // pred_fallthru
      _
    // Predicated region
    $region50: #{tpu_custom_call.1} parent=1 // pred_check
      _
    $region51: #{tpu_custom_call.1} parent=1 // pred_check_branch
      %82 = sbr.rel (0) target = $region53
    $region52: #{tpu_custom_call.1} parent=1 // pred_region
      _
    $region53: #{tpu_custom_call.1} parent=1 // pred_fallthru
      _
    // Predicated region
    $region54: #{tpu_custom_call.1} parent=1 // pred_check
      _
    $region55: #{tpu_custom_call.1} parent=1 // pred_check_branch
      %84 = sbr.rel (0) target = $region57
    $region56: #{tpu_custom_call.1} parent=1 // pred_region
      %86 = vsyncadd [#allocation9], 0
      %s87 = sshll.u32 %s13, 4
      %s88 = int_to_ptr.hbm [resolvable:$true] %s87
      %s89 = sshll.u32 [#allocation8], 4
      %s90 = int_to_ptr.vmem [resolvable:$true] %s89
      %95 = dma.hbm_to_vmem [thread:$0]  %s88, 512, %s90, [#allocation9], 128, 128, 8
    $region57: #{tpu_custom_call.1} parent=1 // pred_fallthru
      _
    // Predicated region
    $region58: #{tpu_custom_call.1} parent=1 // pred_check
      _
    $region59: #{tpu_custom_call.1} parent=1 // pred_check_branch
      %97 = sbr.rel (0) target = $region61
    $region60: #{tpu_custom_call.1} parent=1 // pred_region
      _
    $region61: #{tpu_custom_call.1} parent=1 // pred_fallthru
      _
    // Predicated region
    $region62: #{tpu_custom_call.1} parent=1 // pred_check
      _
    $region63: #{tpu_custom_call.1} parent=1 // pred_check_branch
      %99 = sbr.rel (0) target = $region65
    $region64: #{tpu_custom_call.1} parent=1 // pred_region
      _
    $region65: #{tpu_custom_call.1} parent=1 // pred_fallthru
      _
    // Predicated region
    $region66: #{tpu_custom_call.1} parent=1 // pred_check
      _
    $region67: #{tpu_custom_call.1} parent=1 // pred_check_branch
      %101 = sbr.rel (0) target = $region69
    $region68: #{tpu_custom_call.1} parent=1 // pred_region
      _
    $region69: #{tpu_custom_call.1} parent=1 // pred_fallthru
      _
    // Predicated region
    $region70: #{tpu_custom_call.1} parent=1 // pred_check
      _
    $region71: #{tpu_custom_call.1} parent=1 // pred_check_branch
      %103 = sbr.rel (0) target = $region73
    $region72: #{tpu_custom_call.1} parent=1 // pred_region
      %105 = dma.done [#allocation3], 256
    $region73: #{tpu_custom_call.1} parent=1 // pred_fallthru
      _
    // Predicated region
    $region74: #{tpu_custom_call.1} parent=1 // pred_check
      _
    $region75: #{tpu_custom_call.1} parent=1 // pred_check_branch
      %107 = sbr.rel (0) target = $region77
    $region76: #{tpu_custom_call.1} parent=1 // pred_region
      %109 = dma.done [#allocation6], 16
    $region77: #{tpu_custom_call.1} parent=1 // pred_fallthru
      _
    // Predicated region
    $region78: #{tpu_custom_call.1} parent=1 // pred_check
      _
    $region79: #{tpu_custom_call.1} parent=1 // pred_check_branch
      %111 = sbr.rel (0) target = $region81
    $region80: #{tpu_custom_call.1} parent=1 // pred_region
      %113 = dma.done [#allocation6], 512
    $region81: #{tpu_custom_call.1} parent=1 // pred_fallthru
      _
    // Predicated region
    $region82: #{tpu_custom_call.1} parent=1 // pred_check
      _
    $region83: #{tpu_custom_call.1} parent=1 // pred_check_branch
      %115 = sbr.rel (0) target = $region85
    $region84: #{tpu_custom_call.1} parent=1 // pred_region
      %117 = dma.done [#allocation9], 512
    $region85: #{tpu_custom_call.1} parent=1 // pred_fallthru
      _
    %v118 = vld [vmem:[#allocation2] sm:$0xff]
    %v119 = vld [vmem:[#allocation2 + $0x8] sm:$0xff]
    %v120 = vld [vmem:[#allocation5] sm:$0x1]
    %v121 = vld [vmem:[%s2] sm:$0x1]
    %vm122 = vcmask 261120
    %v123 = vsel %vm122, %v118, 0.0
    %124 = vadd.xlane.f32.xlu0 %v123
    %v125 = vpop.xlane.xlu0 %124
    %v126 = vsel %vm122, %v119, 0.0
    %127 = vadd.xlane.f32.xlu0 %v126
    %v128 = vpop.xlane.xlu0 %127
    %v129 = vrcp.pop 32.0
    %v130 = vmul.f32 32.0, %v129
    %v131 = vsub.f32 1.0, %v130
    %v132 = vmul.f32 %v129, %v131
    %v133 = vadd.f32 %v129, %v132
    %vm134 = vweird.f32 %v129
    %v135 = vsel %vm134, %v129, %v133
    %v136 = vmul.f32 %v125, %v135
    %v137 = vmul.f32 %v128, %v135
    %v138 = vsub.f32 %v118, %v136
    %v139 = vsub.f32 %v119, %v137
    %v140 = vmul.f32 %v138, %v138
    %v141 = vmul.f32 %v139, %v139
    %v142 = vsel %vm122, %v140, 0.0
    %143 = vadd.xlane.f32.xlu0 %v142
    %v144 = vpop.xlane.xlu0 %143
    %v145 = vsel %vm122, %v141, 0.0
    %146 = vadd.xlane.f32.xlu0 %v145
    %v147 = vpop.xlane.xlu0 %146
    %v148 = vmul.f32 %v144, %v135
    %v149 = vmul.f32 %v147, %v135
    %v150 = vadd.f32 %v148, 1e-05
    %v151 = vadd.f32 %v149, 1e-05
    %v152 = vrsqrt.pop %v150
    %v153 = vmul.f32 %v152, %v150
    %v154 = vmul.f32 %v153, %v152
    %v155 = vmul.f32 0.5, %v154
    %v156 = vsub.f32 1.5, %v155
    %v157 = vmul.f32 %v152, %v156
    %vm158 = vweird.f32 %v150
    %vm159 = vweird.f32 %v152
    %vm160 = vmor %vm158, %vm159
    %v161 = vsel %vm160, %v152, %v157
    %v162 = vrsqrt.pop %v151
    %v163 = vmul.f32 %v162, %v151
    %v164 = vmul.f32 %v163, %v162
    %v165 = vmul.f32 0.5, %v164
    %v166 = vsub.f32 1.5, %v165
    %v167 = vmul.f32 %v162, %v166
    %vm168 = vweird.f32 %v151
    %vm169 = vweird.f32 %v162
    %vm170 = vmor %vm168, %vm169
    %v171 = vsel %vm170, %v162, %v167
    %v172 = vmul.f32 %v138, %v161
    %v173 = vmul.f32 %v139, %v171
    %v175 = vperm.slane %v120, 0
    %v177 = vmul.f32 %v172, %v175
    %v178 = vmul.f32 %v173, %v175
    %v180 = vperm.slane %v121, 0
    %v182 = vadd.f32 %v177, %v180
    %v183 = vadd.f32 %v178, %v180
    %v184 = vld [vmem:[%s3] sm:$0xff]
    %v185 = vld [vmem:[%s3 + $0x8] sm:$0xff]
    %v186 = vld [vmem:[%s3 + $0x10] sm:$0xff]
    %v187 = vld [vmem:[%s3 + $0x18] sm:$0xff]
    %v188 = vld [vmem:[%s4] sm:$0x1]
    %v190 = vperm.slane %v188, 0
    %v193 = vsel %vm122, %v182, 0
    %v196 = vsel %vm122, %v183, 0
    %198 = vmatpush.msra.mxu0 0.0
    %199 = vmatpush.msra.mxu0 0.0
    %200 = vmatpush.msra.mxu0 0.0
    %201 = vmatpush.msra.mxu0 0.0
    %202 = vmatpush.msra.mxu0 0.0
    %203 = vmatpush.msra.mxu0 0.0
    %204 = vmatpush.msra.mxu0 0.0
    %205 = vmatpush.msra.mxu0 0.0
    %206 = vmatpush.msra.mxu0 0.0
    %207 = vmatpush.msra.mxu0 0.0
    %208 = vmatpush.msra.mxu0 0.0
    %209 = vmatpush.msra.mxu0 0.0
    %210 = vmatpush.msra.mxu0 %v187
    %211 = vmatpush.msra.mxu0 %v186
    %212 = vmatpush.msra.mxu0 %v185
    %213 = vmatpush.msra.mxu0 %v184
    %214 = vmatmul.f32.gmra.mxu0 %v193
    %v215 = vpop.f32.mrf.mxu0
    %v216 = vadd.f32 %v190, %v215
    %217 = vmatmul.f32.gmra.mxu0 %v196
    %v218 = vpop.f32.mrf.mxu0
    %v219 = vadd.f32 %v190, %v218
    %220 = vdwg.mxu0
    %v221 = vld [vmem:[%s5] sm:$0xff]
    %v222 = vld [vmem:[%s5 + $0x8] sm:$0xff]
    %v223 = vld [vmem:[%s5 + $0x10] sm:$0xff]
    %v224 = vld [vmem:[%s5 + $0x18] sm:$0xff]
    %v225 = vld [vmem:[%s6] sm:$0x1]
    %v227 = vperm.slane %v225, 0
    %229 = vmatpush.msra.mxu0 0.0
    %230 = vmatpush.msra.mxu0 0.0
    %231 = vmatpush.msra.mxu0 0.0
    %232 = vmatpush.msra.mxu0 0.0
    %233 = vmatpush.msra.mxu0 0.0
    %234 = vmatpush.msra.mxu0 0.0
    %235 = vmatpush.msra.mxu0 0.0
    %236 = vmatpush.msra.mxu0 0.0
    %237 = vmatpush.msra.mxu0 0.0
    %238 = vmatpush.msra.mxu0 0.0
    %239 = vmatpush.msra.mxu0 0.0
    %240 = vmatpush.msra.mxu0 0.0
    %241 = vmatpush.msra.mxu0 %v224
    %242 = vmatpush.msra.mxu0 %v223
    %243 = vmatpush.msra.mxu0 %v222
    %244 = vmatpush.msra.mxu0 %v221
    %245 = vmatmul.f32.gmra.mxu0 %v193
    %v246 = vpop.f32.mrf.mxu0
    %v247 = vadd.f32 %v227, %v246
    %248 = vmatmul.f32.gmra.mxu0 %v196
    %v249 = vpop.f32.mrf.mxu0
    %v250 = vadd.f32 %v227, %v249
    %251 = vdwg.mxu0
    %v252 = vld [vmem:[%s7] sm:$0xff]
    %v253 = vld [vmem:[%s7 + $0x8] sm:$0xff]
    %v254 = vld [vmem:[%s7 + $0x10] sm:$0xff]
    %v255 = vld [vmem:[%s7 + $0x18] sm:$0xff]
    %v256 = vld [vmem:[%s8] sm:$0x1]
    %v258 = vperm.slane %v256, 0
    %260 = vmatpush.msra.mxu0 0.0
    %261 = vmatpush.msra.mxu0 0.0
    %262 = vmatpush.msra.mxu0 0.0
    %263 = vmatpush.msra.mxu0 0.0
    %264 = vmatpush.msra.mxu0 0.0
    %265 = vmatpush.msra.mxu0 0.0
    %266 = vmatpush.msra.mxu0 0.0
    %267 = vmatpush.msra.mxu0 0.0
    %268 = vmatpush.msra.mxu0 0.0
    %269 = vmatpush.msra.mxu0 0.0
    %270 = vmatpush.msra.mxu0 0.0
    %271 = vmatpush.msra.mxu0 0.0
    %272 = vmatpush.msra.mxu0 %v255
    %273 = vmatpush.msra.mxu0 %v254
    %274 = vmatpush.msra.mxu0 %v253
    %275 = vmatpush.msra.mxu0 %v252
    %276 = vmatmul.f32.gmra.mxu0 %v193
    %v277 = vpop.f32.mrf.mxu0
    %v278 = vadd.f32 %v258, %v277
    %279 = vmatmul.f32.gmra.mxu0 %v196
    %v280 = vpop.f32.mrf.mxu0
    %v281 = vadd.f32 %v258, %v280
    %282 = vdwg.mxu0
    %285 = vrot.lane.b32.xlu0 %v216, 124
    %v286 = vpop.permute.xlu0 %285
    %287 = vrot.lane.b32.xlu0 %v219, 124
    %v288 = vpop.permute.xlu0 %287
    %291 = vrot.lane.b32.xlu0 %v216, 120
    %v292 = vpop.permute.xlu0 %291
    %293 = vrot.lane.b32.xlu0 %v219, 120
    %v294 = vpop.permute.xlu0 %293
    %297 = vrot.lane.b32.xlu0 %v216, 116
    %v298 = vpop.permute.xlu0 %297
    %299 = vrot.lane.b32.xlu0 %v219, 116
    %v300 = vpop.permute.xlu0 %299
    %303 = vrot.lane.b32.xlu0 %v216, 112
    %v304 = vpop.permute.xlu0 %303
    %305 = vrot.lane.b32.xlu0 %v219, 112
    %v306 = vpop.permute.xlu0 %305
    %309 = vrot.lane.b32.xlu0 %v216, 108
    %v310 = vpop.permute.xlu0 %309
    %311 = vrot.lane.b32.xlu0 %v219, 108
    %v312 = vpop.permute.xlu0 %311
    %315 = vrot.lane.b32.xlu0 %v216, 104
    %v316 = vpop.permute.xlu0 %315
    %317 = vrot.lane.b32.xlu0 %v219, 104
    %v318 = vpop.permute.xlu0 %317
    %321 = vrot.lane.b32.xlu0 %v216, 100
    %v322 = vpop.permute.xlu0 %321
    %323 = vrot.lane.b32.xlu0 %v219, 100
    %v324 = vpop.permute.xlu0 %323
    %v327 = vrot.slane %v292, 4
    %vm328 = vcmask 1047556
    %v329 = vsel %vm328, %v327, %v216
    %v330 = vrot.slane %v216, 4
    %v331 = vsel %vm328, %v292, %v330
    %v333 = vunpack.c.l.s4 1983009808
    %v334 = vunpack.c.0.s8 %v333
    %v335 = vperm.slane %v329, %v334
    %v337 = vunpack.c.l.s4 1983009808
    %v338 = vunpack.c.0.s8 %v337
    %v339 = vperm.slane %v331, %v338
    %v340 = vrot.slane %v298, 4
    %v341 = vsel %vm328, %v340, %v286
    %v342 = vrot.slane %v286, 4
    %v343 = vsel %vm328, %v298, %v342
    %v345 = vunpack.c.l.s4 1983009808
    %v346 = vunpack.c.0.s8 %v345
    %v347 = vperm.slane %v341, %v346
    %v349 = vunpack.c.l.s4 1983009808
    %v350 = vunpack.c.0.s8 %v349
    %v351 = vperm.slane %v343, %v350
    %v352 = vrot.slane %v316, 4
    %v353 = vsel %vm328, %v352, %v304
    %v354 = vrot.slane %v304, 4
    %v355 = vsel %vm328, %v316, %v354
    %v357 = vunpack.c.l.s4 1983009808
    %v358 = vunpack.c.0.s8 %v357
    %v359 = vperm.slane %v353, %v358
    %v361 = vunpack.c.l.s4 1983009808
    %v362 = vunpack.c.0.s8 %v361
    %v363 = vperm.slane %v355, %v362
    %v364 = vrot.slane %v322, 4
    %v365 = vsel %vm328, %v364, %v310
    %v366 = vrot.slane %v310, 4
    %v367 = vsel %vm328, %v322, %v366
    %v369 = vunpack.c.l.s4 1983009808
    %v370 = vunpack.c.0.s8 %v369
    %v371 = vperm.slane %v365, %v370
    %v373 = vunpack.c.l.s4 1983009808
    %v374 = vunpack.c.0.s8 %v373
    %v375 = vperm.slane %v367, %v374
    %v376 = vrot.slane %v347, 4
    %v377 = vsel %vm328, %v376, %v335
    %v378 = vrot.slane %v335, 4
    %v379 = vsel %vm328, %v347, %v378
    %v381 = vunpack.c.l.s4 1934713408
    %v382 = vunpack.c.0.s8 %v381
    %v383 = vperm.slane %v377, %v382
    %v385 = vunpack.c.l.s4 1934713408
    %v386 = vunpack.c.0.s8 %v385
    %v387 = vperm.slane %v379, %v386
    %v388 = vrot.slane %v351, 4
    %v389 = vsel %vm328, %v388, %v339
    %v390 = vrot.slane %v339, 4
    %v391 = vsel %vm328, %v351, %v390
    %v393 = vunpack.c.l.s4 1934713408
    %v394 = vunpack.c.0.s8 %v393
    %v395 = vperm.slane %v389, %v394
    %v397 = vunpack.c.l.s4 1934713408
    %v398 = vunpack.c.0.s8 %v397
    %v399 = vperm.slane %v391, %v398
    %v400 = vrot.slane %v371, 4
    %v401 = vsel %vm328, %v400, %v359
    %v402 = vrot.slane %v359, 4
    %v403 = vsel %vm328, %v371, %v402
    %v405 = vunpack.c.l.s4 1934713408
    %v406 = vunpack.c.0.s8 %v405
    %v407 = vperm.slane %v401, %v406
    %v409 = vunpack.c.l.s4 1934713408
    %v410 = vunpack.c.0.s8 %v409
    %v411 = vperm.slane %v403, %v410
    %v412 = vrot.slane %v375, 4
    %v413 = vsel %vm328, %v412, %v363
    %v414 = vrot.slane %v363, 4
    %v415 = vsel %vm328, %v375, %v414
    %v417 = vunpack.c.l.s4 1934713408
    %v418 = vunpack.c.0.s8 %v417
    %v419 = vperm.slane %v413, %v418
    %v421 = vunpack.c.l.s4 1934713408
    %v422 = vunpack.c.0.s8 %v421
    %v423 = vperm.slane %v415, %v422
    %v424 = vrot.slane %v407, 4
    %v425 = vsel %vm328, %v424, %v383
    %v426 = vrot.slane %v383, 4
    %v427 = vsel %vm328, %v407, %v426
    %v428 = vrot.slane %v411, 4
    %v429 = vsel %vm328, %v428, %v387
    %v430 = vrot.slane %v387, 4
    %v431 = vsel %vm328, %v411, %v430
    %v432 = vrot.slane %v419, 4
    %v433 = vsel %vm328, %v432, %v395
    %v434 = vrot.slane %v395, 4
    %v435 = vsel %vm328, %v419, %v434
    %v436 = vrot.slane %v423, 4
    %v437 = vsel %vm328, %v436, %v399
    %v438 = vrot.slane %v399, 4
    %v439 = vsel %vm328, %v423, %v438
    %v440 = vrot.slane %v294, 4
    %v441 = vsel %vm328, %v440, %v219
    %v442 = vrot.slane %v219, 4
    %v443 = vsel %vm328, %v294, %v442
    %v445 = vunpack.c.l.s4 1983009808
    %v446 = vunpack.c.0.s8 %v445
    %v447 = vperm.slane %v441, %v446
    %v449 = vunpack.c.l.s4 1983009808
    %v450 = vunpack.c.0.s8 %v449
    %v451 = vperm.slane %v443, %v450
    %v452 = vrot.slane %v300, 4
    %v453 = vsel %vm328, %v452, %v288
    %v454 = vrot.slane %v288, 4
    %v455 = vsel %vm328, %v300, %v454
    %v457 = vunpack.c.l.s4 1983009808
    %v458 = vunpack.c.0.s8 %v457
    %v459 = vperm.slane %v453, %v458
    %v461 = vunpack.c.l.s4 1983009808
    %v462 = vunpack.c.0.s8 %v461
    %v463 = vperm.slane %v455, %v462
    %v464 = vrot.slane %v318, 4
    %v465 = vsel %vm328, %v464, %v306
    %v466 = vrot.slane %v306, 4
    %v467 = vsel %vm328, %v318, %v466
    %v469 = vunpack.c.l.s4 1983009808
    %v470 = vunpack.c.0.s8 %v469
    %v471 = vperm.slane %v465, %v470
    %v473 = vunpack.c.l.s4 1983009808
    %v474 = vunpack.c.0.s8 %v473
    %v475 = vperm.slane %v467, %v474
    %v476 = vrot.slane %v324, 4
    %v477 = vsel %vm328, %v476, %v312
    %v478 = vrot.slane %v312, 4
    %v479 = vsel %vm328, %v324, %v478
    %v481 = vunpack.c.l.s4 1983009808
    %v482 = vunpack.c.0.s8 %v481
    %v483 = vperm.slane %v477, %v482
    %v485 = vunpack.c.l.s4 1983009808
    %v486 = vunpack.c.0.s8 %v485
    %v487 = vperm.slane %v479, %v486
    %v488 = vrot.slane %v459, 4
    %v489 = vsel %vm328, %v488, %v447
    %v490 = vrot.slane %v447, 4
    %v491 = vsel %vm328, %v459, %v490
    %v493 = vunpack.c.l.s4 1934713408
    %v494 = vunpack.c.0.s8 %v493
    %v495 = vperm.slane %v489, %v494
    %v497 = vunpack.c.l.s4 1934713408
    %v498 = vunpack.c.0.s8 %v497
    %v499 = vperm.slane %v491, %v498
    %v500 = vrot.slane %v463, 4
    %v501 = vsel %vm328, %v500, %v451
    %v502 = vrot.slane %v451, 4
    %v503 = vsel %vm328, %v463, %v502
    %v505 = vunpack.c.l.s4 1934713408
    %v506 = vunpack.c.0.s8 %v505
    %v507 = vperm.slane %v501, %v506
    %v509 = vunpack.c.l.s4 1934713408
    %v510 = vunpack.c.0.s8 %v509
    %v511 = vperm.slane %v503, %v510
    %v512 = vrot.slane %v483, 4
    %v513 = vsel %vm328, %v512, %v471
    %v514 = vrot.slane %v471, 4
    %v515 = vsel %vm328, %v483, %v514
    %v517 = vunpack.c.l.s4 1934713408
    %v518 = vunpack.c.0.s8 %v517
    %v519 = vperm.slane %v513, %v518
    %v521 = vunpack.c.l.s4 1934713408
    %v522 = vunpack.c.0.s8 %v521
    %v523 = vperm.slane %v515, %v522
    %v524 = vrot.slane %v487, 4
    %v525 = vsel %vm328, %v524, %v475
    %v526 = vrot.slane %v475, 4
    %v527 = vsel %vm328, %v487, %v526
    %v529 = vunpack.c.l.s4 1934713408
    %v530 = vunpack.c.0.s8 %v529
    %v531 = vperm.slane %v525, %v530
    %v533 = vunpack.c.l.s4 1934713408
    %v534 = vunpack.c.0.s8 %v533
    %v535 = vperm.slane %v527, %v534
    %v536 = vrot.slane %v519, 4
    %v537 = vsel %vm328, %v536, %v495
    %v538 = vrot.slane %v495, 4
    %v539 = vsel %vm328, %v519, %v538
    %v540 = vrot.slane %v523, 4
    %v541 = vsel %vm328, %v540, %v499
    %v542 = vrot.slane %v499, 4
    %v543 = vsel %vm328, %v523, %v542
    %v544 = vrot.slane %v531, 4
    %v545 = vsel %vm328, %v544, %v507
    %v546 = vrot.slane %v507, 4
    %v547 = vsel %vm328, %v531, %v546
    %v548 = vrot.slane %v535, 4
    %v549 = vsel %vm328, %v548, %v511
    %v550 = vrot.slane %v511, 4
    %v551 = vsel %vm328, %v535, %v550
    %v552 = vrot.slane %v429, 4
    %v553 = vsel %vm328, %v552, %v425
    %v554 = vrot.slane %v425, 4
    %v555 = vsel %vm328, %v429, %v554
    %v557 = vunpack.c.l.s4 1983009808
    %v558 = vunpack.c.0.s8 %v557
    %v559 = vperm.slane %v553, %v558
    %v561 = vunpack.c.l.s4 1983009808
    %v562 = vunpack.c.0.s8 %v561
    %v563 = vperm.slane %v555, %v562
    %v564 = vrot.slane %v431, 4
    %v565 = vsel %vm328, %v564, %v427
    %v566 = vrot.slane %v427, 4
    %v567 = vsel %vm328, %v431, %v566
    %v569 = vunpack.c.l.s4 1983009808
    %v570 = vunpack.c.0.s8 %v569
    %v571 = vperm.slane %v565, %v570
    %v573 = vunpack.c.l.s4 1983009808
    %v574 = vunpack.c.0.s8 %v573
    %v575 = vperm.slane %v567, %v574
    %v576 = vrot.slane %v437, 4
    %v577 = vsel %vm328, %v576, %v433
    %v578 = vrot.slane %v433, 4
    %v579 = vsel %vm328, %v437, %v578
    %v581 = vunpack.c.l.s4 1983009808
    %v582 = vunpack.c.0.s8 %v581
    %v583 = vperm.slane %v577, %v582
    %v585 = vunpack.c.l.s4 1983009808
    %v586 = vunpack.c.0.s8 %v585
    %v587 = vperm.slane %v579, %v586
    %v588 = vrot.slane %v439, 4
    %v589 = vsel %vm328, %v588, %v435
    %v590 = vrot.slane %v435, 4
    %v591 = vsel %vm328, %v439, %v590
    %v593 = vunpack.c.l.s4 1983009808
    %v594 = vunpack.c.0.s8 %v593
    %v595 = vperm.slane %v589, %v594
    %v597 = vunpack.c.l.s4 1983009808
    %v598 = vunpack.c.0.s8 %v597
    %v599 = vperm.slane %v591, %v598
    %v600 = vrot.slane %v571, 4
    %v601 = vsel %vm328, %v600, %v559
    %v602 = vrot.slane %v559, 4
    %v603 = vsel %vm328, %v571, %v602
    %v605 = vunpack.c.l.s4 1934713408
    %v606 = vunpack.c.0.s8 %v605
    %v607 = vperm.slane %v601, %v606
    %v609 = vunpack.c.l.s4 1934713408
    %v610 = vunpack.c.0.s8 %v609
    %v611 = vperm.slane %v603, %v610
    %v612 = vrot.slane %v575, 4
    %v613 = vsel %vm328, %v612, %v563
    %v614 = vrot.slane %v563, 4
    %v615 = vsel %vm328, %v575, %v614
    %v617 = vunpack.c.l.s4 1934713408
    %v618 = vunpack.c.0.s8 %v617
    %v619 = vperm.slane %v613, %v618
    %v621 = vunpack.c.l.s4 1934713408
    %v622 = vunpack.c.0.s8 %v621
    %v623 = vperm.slane %v615, %v622
    %v624 = vrot.slane %v595, 4
    %v625 = vsel %vm328, %v624, %v583
    %v626 = vrot.slane %v583, 4
    %v627 = vsel %vm328, %v595, %v626
    %v629 = vunpack.c.l.s4 1934713408
    %v630 = vunpack.c.0.s8 %v629
    %v631 = vperm.slane %v625, %v630
    %v633 = vunpack.c.l.s4 1934713408
    %v634 = vunpack.c.0.s8 %v633
    %v635 = vperm.slane %v627, %v634
    %v636 = vrot.slane %v599, 4
    %v637 = vsel %vm328, %v636, %v587
    %v638 = vrot.slane %v587, 4
    %v639 = vsel %vm328, %v599, %v638
    %v641 = vunpack.c.l.s4 1934713408
    %v642 = vunpack.c.0.s8 %v641
    %v643 = vperm.slane %v637, %v642
    %v645 = vunpack.c.l.s4 1934713408
    %v646 = vunpack.c.0.s8 %v645
    %v647 = vperm.slane %v639, %v646
    %v648 = vrot.slane %v631, 4
    %v649 = vsel %vm328, %v648, %v607
    %v650 = vrot.slane %v607, 4
    %v651 = vsel %vm328, %v631, %v650
    %v652 = vrot.slane %v635, 4
    %v653 = vsel %vm328, %v652, %v611
    %v654 = vrot.slane %v611, 4
    %v655 = vsel %vm328, %v635, %v654
    %v656 = vrot.slane %v643, 4
    %v657 = vsel %vm328, %v656, %v619
    %v658 = vrot.slane %v619, 4
    %v659 = vsel %vm328, %v643, %v658
    %v660 = vrot.slane %v647, 4
    %v661 = vsel %vm328, %v660, %v623
    %v662 = vrot.slane %v623, 4
    %v663 = vsel %vm328, %v647, %v662
    %v664 = vrot.slane %v541, 4
    %v665 = vsel %vm328, %v664, %v537
    %v666 = vrot.slane %v537, 4
    %v667 = vsel %vm328, %v541, %v666
    %v669 = vunpack.c.l.s4 1983009808
    %v670 = vunpack.c.0.s8 %v669
    %v671 = vperm.slane %v665, %v670
    %v673 = vunpack.c.l.s4 1983009808
    %v674 = vunpack.c.0.s8 %v673
    %v675 = vperm.slane %v667, %v674
    %v676 = vrot.slane %v543, 4
    %v677 = vsel %vm328, %v676, %v539
    %v678 = vrot.slane %v539, 4
    %v679 = vsel %vm328, %v543, %v678
    %v681 = vunpack.c.l.s4 1983009808
    %v682 = vunpack.c.0.s8 %v681
    %v683 = vperm.slane %v677, %v682
    %v685 = vunpack.c.l.s4 1983009808
    %v686 = vunpack.c.0.s8 %v685
    %v687 = vperm.slane %v679, %v686
    %v688 = vrot.slane %v549, 4
    %v689 = vsel %vm328, %v688, %v545
    %v690 = vrot.slane %v545, 4
    %v691 = vsel %vm328, %v549, %v690
    %v693 = vunpack.c.l.s4 1983009808
    %v694 = vunpack.c.0.s8 %v693
    %v695 = vperm.slane %v689, %v694
    %v697 = vunpack.c.l.s4 1983009808
    %v698 = vunpack.c.0.s8 %v697
    %v699 = vperm.slane %v691, %v698
    %v700 = vrot.slane %v551, 4
    %v701 = vsel %vm328, %v700, %v547
    %v702 = vrot.slane %v547, 4
    %v703 = vsel %vm328, %v551, %v702
    %v705 = vunpack.c.l.s4 1983009808
    %v706 = vunpack.c.0.s8 %v705
    %v707 = vperm.slane %v701, %v706
    %v709 = vunpack.c.l.s4 1983009808
    %v710 = vunpack.c.0.s8 %v709
    %v711 = vperm.slane %v703, %v710
    %v712 = vrot.slane %v683, 4
    %v713 = vsel %vm328, %v712, %v671
    %v714 = vrot.slane %v671, 4
    %v715 = vsel %vm328, %v683, %v714
    %v717 = vunpack.c.l.s4 1934713408
    %v718 = vunpack.c.0.s8 %v717
    %v719 = vperm.slane %v713, %v718
    %v721 = vunpack.c.l.s4 1934713408
    %v722 = vunpack.c.0.s8 %v721
    %v723 = vperm.slane %v715, %v722
    %v724 = vrot.slane %v687, 4
    %v725 = vsel %vm328, %v724, %v675
    %v726 = vrot.slane %v675, 4
    %v727 = vsel %vm328, %v687, %v726
    %v729 = vunpack.c.l.s4 1934713408
    %v730 = vunpack.c.0.s8 %v729
    %v731 = vperm.slane %v725, %v730
    %v733 = vunpack.c.l.s4 1934713408
    %v734 = vunpack.c.0.s8 %v733
    %v735 = vperm.slane %v727, %v734
    %v736 = vrot.slane %v707, 4
    %v737 = vsel %vm328, %v736, %v695
    %v738 = vrot.slane %v695, 4
    %v739 = vsel %vm328, %v707, %v738
    %v741 = vunpack.c.l.s4 1934713408
    %v742 = vunpack.c.0.s8 %v741
    %v743 = vperm.slane %v737, %v742
    %v745 = vunpack.c.l.s4 1934713408
    %v746 = vunpack.c.0.s8 %v745
    %v747 = vperm.slane %v739, %v746
    %v748 = vrot.slane %v711, 4
    %v749 = vsel %vm328, %v748, %v699
    %v750 = vrot.slane %v699, 4
    %v751 = vsel %vm328, %v711, %v750
    %v753 = vunpack.c.l.s4 1934713408
    %v754 = vunpack.c.0.s8 %v753
    %v755 = vperm.slane %v749, %v754
    %v757 = vunpack.c.l.s4 1934713408
    %v758 = vunpack.c.0.s8 %v757
    %v759 = vperm.slane %v751, %v758
    %v760 = vrot.slane %v743, 4
    %v761 = vsel %vm328, %v760, %v719
    %v762 = vrot.slane %v719, 4
    %v763 = vsel %vm328, %v743, %v762
    %v764 = vrot.slane %v747, 4
    %v765 = vsel %vm328, %v764, %v723
    %v766 = vrot.slane %v723, 4
    %v767 = vsel %vm328, %v747, %v766
    %v768 = vrot.slane %v755, 4
    %v769 = vsel %vm328, %v768, %v731
    %v770 = vrot.slane %v731, 4
    %v771 = vsel %vm328, %v755, %v770
    %v772 = vrot.slane %v759, 4
    %v773 = vsel %vm328, %v772, %v735
    %v774 = vrot.slane %v735, 4
    %v775 = vsel %vm328, %v759, %v774
    %778 = vrot.lane.b32.xlu0 %v247, 124
    %v779 = vpop.permute.xlu0 %778
    %780 = vrot.lane.b32.xlu0 %v250, 124
    %v781 = vpop.permute.xlu0 %780
    %784 = vrot.lane.b32.xlu0 %v247, 120
    %v785 = vpop.permute.xlu0 %784
    %786 = vrot.lane.b32.xlu0 %v250, 120
    %v787 = vpop.permute.xlu0 %786
    %790 = vrot.lane.b32.xlu0 %v247, 116
    %v791 = vpop.permute.xlu0 %790
    %792 = vrot.lane.b32.xlu0 %v250, 116
    %v793 = vpop.permute.xlu0 %792
    %796 = vrot.lane.b32.xlu0 %v247, 112
    %v797 = vpop.permute.xlu0 %796
    %798 = vrot.lane.b32.xlu0 %v250, 112
    %v799 = vpop.permute.xlu0 %798
    %802 = vrot.lane.b32.xlu0 %v247, 108
    %v803 = vpop.permute.xlu0 %802
    %804 = vrot.lane.b32.xlu0 %v250, 108
    %v805 = vpop.permute.xlu0 %804
    %808 = vrot.lane.b32.xlu0 %v247, 104
    %v809 = vpop.permute.xlu0 %808
    %810 = vrot.lane.b32.xlu0 %v250, 104
    %v811 = vpop.permute.xlu0 %810
    %814 = vrot.lane.b32.xlu0 %v247, 100
    %v815 = vpop.permute.xlu0 %814
    %816 = vrot.lane.b32.xlu0 %v250, 100
    %v817 = vpop.permute.xlu0 %816
    %v820 = vrot.slane %v785, 4
    %v821 = vsel %vm328, %v820, %v247
    %v822 = vrot.slane %v247, 4
    %v823 = vsel %vm328, %v785, %v822
    %v825 = vunpack.c.l.s4 1983009808
    %v826 = vunpack.c.0.s8 %v825
    %v827 = vperm.slane %v821, %v826
    %v829 = vunpack.c.l.s4 1983009808
    %v830 = vunpack.c.0.s8 %v829
    %v831 = vperm.slane %v823, %v830
    %v832 = vrot.slane %v791, 4
    %v833 = vsel %vm328, %v832, %v779
    %v834 = vrot.slane %v779, 4
    %v835 = vsel %vm328, %v791, %v834
    %v837 = vunpack.c.l.s4 1983009808
    %v838 = vunpack.c.0.s8 %v837
    %v839 = vperm.slane %v833, %v838
    %v841 = vunpack.c.l.s4 1983009808
    %v842 = vunpack.c.0.s8 %v841
    %v843 = vperm.slane %v835, %v842
    %v844 = vrot.slane %v809, 4
    %v845 = vsel %vm328, %v844, %v797
    %v846 = vrot.slane %v797, 4
    %v847 = vsel %vm328, %v809, %v846
    %v849 = vunpack.c.l.s4 1983009808
    %v850 = vunpack.c.0.s8 %v849
    %v851 = vperm.slane %v845, %v850
    %v853 = vunpack.c.l.s4 1983009808
    %v854 = vunpack.c.0.s8 %v853
    %v855 = vperm.slane %v847, %v854
    %v856 = vrot.slane %v815, 4
    %v857 = vsel %vm328, %v856, %v803
    %v858 = vrot.slane %v803, 4
    %v859 = vsel %vm328, %v815, %v858
    %v861 = vunpack.c.l.s4 1983009808
    %v862 = vunpack.c.0.s8 %v861
    %v863 = vperm.slane %v857, %v862
    %v865 = vunpack.c.l.s4 1983009808
    %v866 = vunpack.c.0.s8 %v865
    %v867 = vperm.slane %v859, %v866
    %v868 = vrot.slane %v839, 4
    %v869 = vsel %vm328, %v868, %v827
    %v870 = vrot.slane %v827, 4
    %v871 = vsel %vm328, %v839, %v870
    %v873 = vunpack.c.l.s4 1934713408
    %v874 = vunpack.c.0.s8 %v873
    %v875 = vperm.slane %v869, %v874
    %v877 = vunpack.c.l.s4 1934713408
    %v878 = vunpack.c.0.s8 %v877
    %v879 = vperm.slane %v871, %v878
    %v880 = vrot.slane %v843, 4
    %v881 = vsel %vm328, %v880, %v831
    %v882 = vrot.slane %v831, 4
    %v883 = vsel %vm328, %v843, %v882
    %v885 = vunpack.c.l.s4 1934713408
    %v886 = vunpack.c.0.s8 %v885
    %v887 = vperm.slane %v881, %v886
    %v889 = vunpack.c.l.s4 1934713408
    %v890 = vunpack.c.0.s8 %v889
    %v891 = vperm.slane %v883, %v890
    %v892 = vrot.slane %v863, 4
    %v893 = vsel %vm328, %v892, %v851
    %v894 = vrot.slane %v851, 4
    %v895 = vsel %vm328, %v863, %v894
    %v897 = vunpack.c.l.s4 1934713408
    %v898 = vunpack.c.0.s8 %v897
    %v899 = vperm.slane %v893, %v898
    %v901 = vunpack.c.l.s4 1934713408
    %v902 = vunpack.c.0.s8 %v901
    %v903 = vperm.slane %v895, %v902
    %v904 = vrot.slane %v867, 4
    %v905 = vsel %vm328, %v904, %v855
    %v906 = vrot.slane %v855, 4
    %v907 = vsel %vm328, %v867, %v906
    %v909 = vunpack.c.l.s4 1934713408
    %v910 = vunpack.c.0.s8 %v909
    %v911 = vperm.slane %v905, %v910
    %v913 = vunpack.c.l.s4 1934713408
    %v914 = vunpack.c.0.s8 %v913
    %v915 = vperm.slane %v907, %v914
    %v916 = vrot.slane %v899, 4
    %v917 = vsel %vm328, %v916, %v875
    %v918 = vrot.slane %v875, 4
    %v919 = vsel %vm328, %v899, %v918
    %v920 = vrot.slane %v903, 4
    %v921 = vsel %vm328, %v920, %v879
    %v922 = vrot.slane %v879, 4
    %v923 = vsel %vm328, %v903, %v922
    %v924 = vrot.slane %v911, 4
    %v925 = vsel %vm328, %v924, %v887
    %v926 = vrot.slane %v887, 4
    %v927 = vsel %vm328, %v911, %v926
    %v928 = vrot.slane %v915, 4
    %v929 = vsel %vm328, %v928, %v891
    %v930 = vrot.slane %v891, 4
    %v931 = vsel %vm328, %v915, %v930
    %v932 = vrot.slane %v787, 4
    %v933 = vsel %vm328, %v932, %v250
    %v934 = vrot.slane %v250, 4
    %v935 = vsel %vm328, %v787, %v934
    %v937 = vunpack.c.l.s4 1983009808
    %v938 = vunpack.c.0.s8 %v937
    %v939 = vperm.slane %v933, %v938
    %v941 = vunpack.c.l.s4 1983009808
    %v942 = vunpack.c.0.s8 %v941
    %v943 = vperm.slane %v935, %v942
    %v944 = vrot.slane %v793, 4
    %v945 = vsel %vm328, %v944, %v781
    %v946 = vrot.slane %v781, 4
    %v947 = vsel %vm328, %v793, %v946
    %v949 = vunpack.c.l.s4 1983009808
    %v950 = vunpack.c.0.s8 %v949
    %v951 = vperm.slane %v945, %v950
    %v953 = vunpack.c.l.s4 1983009808
    %v954 = vunpack.c.0.s8 %v953
    %v955 = vperm.slane %v947, %v954
    %v956 = vrot.slane %v811, 4
    %v957 = vsel %vm328, %v956, %v799
    %v958 = vrot.slane %v799, 4
    %v959 = vsel %vm328, %v811, %v958
    %v961 = vunpack.c.l.s4 1983009808
    %v962 = vunpack.c.0.s8 %v961
    %v963 = vperm.slane %v957, %v962
    %v965 = vunpack.c.l.s4 1983009808
    %v966 = vunpack.c.0.s8 %v965
    %v967 = vperm.slane %v959, %v966
    %v968 = vrot.slane %v817, 4
    %v969 = vsel %vm328, %v968, %v805
    %v970 = vrot.slane %v805, 4
    %v971 = vsel %vm328, %v817, %v970
    %v973 = vunpack.c.l.s4 1983009808
    %v974 = vunpack.c.0.s8 %v973
    %v975 = vperm.slane %v969, %v974
    %v977 = vunpack.c.l.s4 1983009808
    %v978 = vunpack.c.0.s8 %v977
    %v979 = vperm.slane %v971, %v978
    %v980 = vrot.slane %v951, 4
    %v981 = vsel %vm328, %v980, %v939
    %v982 = vrot.slane %v939, 4
    %v983 = vsel %vm328, %v951, %v982
    %v985 = vunpack.c.l.s4 1934713408
    %v986 = vunpack.c.0.s8 %v985
    %v987 = vperm.slane %v981, %v986
    %v989 = vunpack.c.l.s4 1934713408
    %v990 = vunpack.c.0.s8 %v989
    %v991 = vperm.slane %v983, %v990
    %v992 = vrot.slane %v955, 4
    %v993 = vsel %vm328, %v992, %v943
    %v994 = vrot.slane %v943, 4
    %v995 = vsel %vm328, %v955, %v994
    %v997 = vunpack.c.l.s4 1934713408
    %v998 = vunpack.c.0.s8 %v997
    %v999 = vperm.slane %v993, %v998
    %v1001 = vunpack.c.l.s4 1934713408
    %v1002 = vunpack.c.0.s8 %v1001
    %v1003 = vperm.slane %v995, %v1002
    %v1004 = vrot.slane %v975, 4
    %v1005 = vsel %vm328, %v1004, %v963
    %v1006 = vrot.slane %v963, 4
    %v1007 = vsel %vm328, %v975, %v1006
    %v1009 = vunpack.c.l.s4 1934713408
    %v1010 = vunpack.c.0.s8 %v1009
    %v1011 = vperm.slane %v1005, %v1010
    %v1013 = vunpack.c.l.s4 1934713408
    %v1014 = vunpack.c.0.s8 %v1013
    %v1015 = vperm.slane %v1007, %v1014
    %v1016 = vrot.slane %v979, 4
    %v1017 = vsel %vm328, %v1016, %v967
    %v1018 = vrot.slane %v967, 4
    %v1019 = vsel %vm328, %v979, %v1018
    %v1021 = vunpack.c.l.s4 1934713408
    %v1022 = vunpack.c.0.s8 %v1021
    %v1023 = vperm.slane %v1017, %v1022
    %v1025 = vunpack.c.l.s4 1934713408
    %v1026 = vunpack.c.0.s8 %v1025
    %v1027 = vperm.slane %v1019, %v1026
    %v1028 = vrot.slane %v1011, 4
    %v1029 = vsel %vm328, %v1028, %v987
    %v1030 = vrot.slane %v987, 4
    %v1031 = vsel %vm328, %v1011, %v1030
    %v1032 = vrot.slane %v1015, 4
    %v1033 = vsel %vm328, %v1032, %v991
    %v1034 = vrot.slane %v991, 4
    %v1035 = vsel %vm328, %v1015, %v1034
    %v1036 = vrot.slane %v1023, 4
    %v1037 = vsel %vm328, %v1036, %v999
    %v1038 = vrot.slane %v999, 4
    %v1039 = vsel %vm328, %v1023, %v1038
    %v1040 = vrot.slane %v1027, 4
    %v1041 = vsel %vm328, %v1040, %v1003
    %v1042 = vrot.slane %v1003, 4
    %v1043 = vsel %vm328, %v1027, %v1042
    %v1044 = vrot.slane %v921, 4
    %v1045 = vsel %vm328, %v1044, %v917
    %v1046 = vrot.slane %v917, 4
    %v1047 = vsel %vm328, %v921, %v1046
    %v1049 = vunpack.c.l.s4 1983009808
    %v1050 = vunpack.c.0.s8 %v1049
    %v1051 = vperm.slane %v1045, %v1050
    %v1053 = vunpack.c.l.s4 1983009808
    %v1054 = vunpack.c.0.s8 %v1053
    %v1055 = vperm.slane %v1047, %v1054
    %v1056 = vrot.slane %v923, 4
    %v1057 = vsel %vm328, %v1056, %v919
    %v1058 = vrot.slane %v919, 4
    %v1059 = vsel %vm328, %v923, %v1058
    %v1061 = vunpack.c.l.s4 1983009808
    %v1062 = vunpack.c.0.s8 %v1061
    %v1063 = vperm.slane %v1057, %v1062
    %v1065 = vunpack.c.l.s4 1983009808
    %v1066 = vunpack.c.0.s8 %v1065
    %v1067 = vperm.slane %v1059, %v1066
    %v1068 = vrot.slane %v929, 4
    %v1069 = vsel %vm328, %v1068, %v925
    %v1070 = vrot.slane %v925, 4
    %v1071 = vsel %vm328, %v929, %v1070
    %v1073 = vunpack.c.l.s4 1983009808
    %v1074 = vunpack.c.0.s8 %v1073
    %v1075 = vperm.slane %v1069, %v1074
    %v1077 = vunpack.c.l.s4 1983009808
    %v1078 = vunpack.c.0.s8 %v1077
    %v1079 = vperm.slane %v1071, %v1078
    %v1080 = vrot.slane %v931, 4
    %v1081 = vsel %vm328, %v1080, %v927
    %v1082 = vrot.slane %v927, 4
    %v1083 = vsel %vm328, %v931, %v1082
    %v1085 = vunpack.c.l.s4 1983009808
    %v1086 = vunpack.c.0.s8 %v1085
    %v1087 = vperm.slane %v1081, %v1086
    %v1089 = vunpack.c.l.s4 1983009808
    %v1090 = vunpack.c.0.s8 %v1089
    %v1091 = vperm.slane %v1083, %v1090
    %v1092 = vrot.slane %v1063, 4
    %v1093 = vsel %vm328, %v1092, %v1051
    %v1094 = vrot.slane %v1051, 4
    %v1095 = vsel %vm328, %v1063, %v1094
    %v1097 = vunpack.c.l.s4 1934713408
    %v1098 = vunpack.c.0.s8 %v1097
    %v1099 = vperm.slane %v1093, %v1098
    %v1101 = vunpack.c.l.s4 1934713408
    %v1102 = vunpack.c.0.s8 %v1101
    %v1103 = vperm.slane %v1095, %v1102
    %v1104 = vrot.slane %v1067, 4
    %v1105 = vsel %vm328, %v1104, %v1055
    %v1106 = vrot.slane %v1055, 4
    %v1107 = vsel %vm328, %v1067, %v1106
    %v1109 = vunpack.c.l.s4 1934713408
    %v1110 = vunpack.c.0.s8 %v1109
    %v1111 = vperm.slane %v1105, %v1110
    %v1113 = vunpack.c.l.s4 1934713408
    %v1114 = vunpack.c.0.s8 %v1113
    %v1115 = vperm.slane %v1107, %v1114
    %v1116 = vrot.slane %v1087, 4
    %v1117 = vsel %vm328, %v1116, %v1075
    %v1118 = vrot.slane %v1075, 4
    %v1119 = vsel %vm328, %v1087, %v1118
    %v1121 = vunpack.c.l.s4 1934713408
    %v1122 = vunpack.c.0.s8 %v1121
    %v1123 = vperm.slane %v1117, %v1122
    %v1125 = vunpack.c.l.s4 1934713408
    %v1126 = vunpack.c.0.s8 %v1125
    %v1127 = vperm.slane %v1119, %v1126
    %v1128 = vrot.slane %v1091, 4
    %v1129 = vsel %vm328, %v1128, %v1079
    %v1130 = vrot.slane %v1079, 4
    %v1131 = vsel %vm328, %v1091, %v1130
    %v1133 = vunpack.c.l.s4 1934713408
    %v1134 = vunpack.c.0.s8 %v1133
    %v1135 = vperm.slane %v1129, %v1134
    %v1137 = vunpack.c.l.s4 1934713408
    %v1138 = vunpack.c.0.s8 %v1137
    %v1139 = vperm.slane %v1131, %v1138
    %v1140 = vrot.slane %v1123, 4
    %v1141 = vsel %vm328, %v1140, %v1099
    %v1142 = vrot.slane %v1099, 4
    %v1143 = vsel %vm328, %v1123, %v1142
    %v1144 = vrot.slane %v1127, 4
    %v1145 = vsel %vm328, %v1144, %v1103
    %v1146 = vrot.slane %v1103, 4
    %v1147 = vsel %vm328, %v1127, %v1146
    %v1148 = vrot.slane %v1135, 4
    %v1149 = vsel %vm328, %v1148, %v1111
    %v1150 = vrot.slane %v1111, 4
    %v1151 = vsel %vm328, %v1135, %v1150
    %v1152 = vrot.slane %v1139, 4
    %v1153 = vsel %vm328, %v1152, %v1115
    %v1154 = vrot.slane %v1115, 4
    %v1155 = vsel %vm328, %v1139, %v1154
    %v1156 = vrot.slane %v1033, 4
    %v1157 = vsel %vm328, %v1156, %v1029
    %v1158 = vrot.slane %v1029, 4
    %v1159 = vsel %vm328, %v1033, %v1158
    %v1161 = vunpack.c.l.s4 1983009808
    %v1162 = vunpack.c.0.s8 %v1161
    %v1163 = vperm.slane %v1157, %v1162
    %v1165 = vunpack.c.l.s4 1983009808
    %v1166 = vunpack.c.0.s8 %v1165
    %v1167 = vperm.slane %v1159, %v1166
    %v1168 = vrot.slane %v1035, 4
    %v1169 = vsel %vm328, %v1168, %v1031
    %v1170 = vrot.slane %v1031, 4
    %v1171 = vsel %vm328, %v1035, %v1170
    %v1173 = vunpack.c.l.s4 1983009808
    %v1174 = vunpack.c.0.s8 %v1173
    %v1175 = vperm.slane %v1169, %v1174
    %v1177 = vunpack.c.l.s4 1983009808
    %v1178 = vunpack.c.0.s8 %v1177
    %v1179 = vperm.slane %v1171, %v1178
    %v1180 = vrot.slane %v1041, 4
    %v1181 = vsel %vm328, %v1180, %v1037
    %v1182 = vrot.slane %v1037, 4
    %v1183 = vsel %vm328, %v1041, %v1182
    %v1185 = vunpack.c.l.s4 1983009808
    %v1186 = vunpack.c.0.s8 %v1185
    %v1187 = vperm.slane %v1181, %v1186
    %v1189 = vunpack.c.l.s4 1983009808
    %v1190 = vunpack.c.0.s8 %v1189
    %v1191 = vperm.slane %v1183, %v1190
    %v1192 = vrot.slane %v1043, 4
    %v1193 = vsel %vm328, %v1192, %v1039
    %v1194 = vrot.slane %v1039, 4
    %v1195 = vsel %vm328, %v1043, %v1194
    %v1197 = vunpack.c.l.s4 1983009808
    %v1198 = vunpack.c.0.s8 %v1197
    %v1199 = vperm.slane %v1193, %v1198
    %v1201 = vunpack.c.l.s4 1983009808
    %v1202 = vunpack.c.0.s8 %v1201
    %v1203 = vperm.slane %v1195, %v1202
    %v1204 = vrot.slane %v1175, 4
    %v1205 = vsel %vm328, %v1204, %v1163
    %v1206 = vrot.slane %v1163, 4
    %v1207 = vsel %vm328, %v1175, %v1206
    %v1209 = vunpack.c.l.s4 1934713408
    %v1210 = vunpack.c.0.s8 %v1209
    %v1211 = vperm.slane %v1205, %v1210
    %v1213 = vunpack.c.l.s4 1934713408
    %v1214 = vunpack.c.0.s8 %v1213
    %v1215 = vperm.slane %v1207, %v1214
    %v1216 = vrot.slane %v1179, 4
    %v1217 = vsel %vm328, %v1216, %v1167
    %v1218 = vrot.slane %v1167, 4
    %v1219 = vsel %vm328, %v1179, %v1218
    %v1221 = vunpack.c.l.s4 1934713408
    %v1222 = vunpack.c.0.s8 %v1221
    %v1223 = vperm.slane %v1217, %v1222
    %v1225 = vunpack.c.l.s4 1934713408
    %v1226 = vunpack.c.0.s8 %v1225
    %v1227 = vperm.slane %v1219, %v1226
    %v1228 = vrot.slane %v1199, 4
    %v1229 = vsel %vm328, %v1228, %v1187
    %v1230 = vrot.slane %v1187, 4
    %v1231 = vsel %vm328, %v1199, %v1230
    %v1233 = vunpack.c.l.s4 1934713408
    %v1234 = vunpack.c.0.s8 %v1233
    %v1235 = vperm.slane %v1229, %v1234
    %v1237 = vunpack.c.l.s4 1934713408
    %v1238 = vunpack.c.0.s8 %v1237
    %v1239 = vperm.slane %v1231, %v1238
    %v1240 = vrot.slane %v1203, 4
    %v1241 = vsel %vm328, %v1240, %v1191
    %v1242 = vrot.slane %v1191, 4
    %v1243 = vsel %vm328, %v1203, %v1242
    %v1245 = vunpack.c.l.s4 1934713408
    %v1246 = vunpack.c.0.s8 %v1245
    %v1247 = vperm.slane %v1241, %v1246
    %v1249 = vunpack.c.l.s4 1934713408
    %v1250 = vunpack.c.0.s8 %v1249
    %v1251 = vperm.slane %v1243, %v1250
    %v1252 = vrot.slane %v1235, 4
    %v1253 = vsel %vm328, %v1252, %v1211
    %v1254 = vrot.slane %v1211, 4
    %v1255 = vsel %vm328, %v1235, %v1254
    %v1256 = vrot.slane %v1239, 4
    %v1257 = vsel %vm328, %v1256, %v1215
    %v1258 = vrot.slane %v1215, 4
    %v1259 = vsel %vm328, %v1239, %v1258
    %v1260 = vrot.slane %v1247, 4
    %v1261 = vsel %vm328, %v1260, %v1223
    %v1262 = vrot.slane %v1223, 4
    %v1263 = vsel %vm328, %v1247, %v1262
    %v1264 = vrot.slane %v1251, 4
    %v1265 = vsel %vm328, %v1264, %v1227
    %v1266 = vrot.slane %v1227, 4
    %v1267 = vsel %vm328, %v1251, %v1266
    %1270 = vrot.lane.b32.xlu0 %v278, 124
    %v1271 = vpop.permute.xlu0 %1270
    %1272 = vrot.lane.b32.xlu0 %v281, 124
    %v1273 = vpop.permute.xlu0 %1272
    %1276 = vrot.lane.b32.xlu0 %v278, 120
    %v1277 = vpop.permute.xlu0 %1276
    %1278 = vrot.lane.b32.xlu0 %v281, 120
    %v1279 = vpop.permute.xlu0 %1278
    %1282 = vrot.lane.b32.xlu0 %v278, 116
    %v1283 = vpop.permute.xlu0 %1282
    %1284 = vrot.lane.b32.xlu0 %v281, 116
    %v1285 = vpop.permute.xlu0 %1284
    %1288 = vrot.lane.b32.xlu0 %v278, 112
    %v1289 = vpop.permute.xlu0 %1288
    %1290 = vrot.lane.b32.xlu0 %v281, 112
    %v1291 = vpop.permute.xlu0 %1290
    %1294 = vrot.lane.b32.xlu0 %v278, 108
    %v1295 = vpop.permute.xlu0 %1294
    %1296 = vrot.lane.b32.xlu0 %v281, 108
    %v1297 = vpop.permute.xlu0 %1296
    %1300 = vrot.lane.b32.xlu0 %v278, 104
    %v1301 = vpop.permute.xlu0 %1300
    %1302 = vrot.lane.b32.xlu0 %v281, 104
    %v1303 = vpop.permute.xlu0 %1302
    %1306 = vrot.lane.b32.xlu0 %v278, 100
    %v1307 = vpop.permute.xlu0 %1306
    %1308 = vrot.lane.b32.xlu0 %v281, 100
    %v1309 = vpop.permute.xlu0 %1308
    %v1312 = vrot.slane %v1277, 4
    %v1313 = vsel %vm328, %v1312, %v278
    %v1314 = vrot.slane %v278, 4
    %v1315 = vsel %vm328, %v1277, %v1314
    %v1317 = vunpack.c.l.s4 1983009808
    %v1318 = vunpack.c.0.s8 %v1317
    %v1319 = vperm.slane %v1313, %v1318
    %v1321 = vunpack.c.l.s4 1983009808
    %v1322 = vunpack.c.0.s8 %v1321
    %v1323 = vperm.slane %v1315, %v1322
    %v1324 = vrot.slane %v1283, 4
    %v1325 = vsel %vm328, %v1324, %v1271
    %v1326 = vrot.slane %v1271, 4
    %v1327 = vsel %vm328, %v1283, %v1326
    %v1329 = vunpack.c.l.s4 1983009808
    %v1330 = vunpack.c.0.s8 %v1329
    %v1331 = vperm.slane %v1325, %v1330
    %v1333 = vunpack.c.l.s4 1983009808
    %v1334 = vunpack.c.0.s8 %v1333
    %v1335 = vperm.slane %v1327, %v1334
    %v1336 = vrot.slane %v1301, 4
    %v1337 = vsel %vm328, %v1336, %v1289
    %v1338 = vrot.slane %v1289, 4
    %v1339 = vsel %vm328, %v1301, %v1338
    %v1341 = vunpack.c.l.s4 1983009808
    %v1342 = vunpack.c.0.s8 %v1341
    %v1343 = vperm.slane %v1337, %v1342
    %v1345 = vunpack.c.l.s4 1983009808
    %v1346 = vunpack.c.0.s8 %v1345
    %v1347 = vperm.slane %v1339, %v1346
    %v1348 = vrot.slane %v1307, 4
    %v1349 = vsel %vm328, %v1348, %v1295
    %v1350 = vrot.slane %v1295, 4
    %v1351 = vsel %vm328, %v1307, %v1350
    %v1353 = vunpack.c.l.s4 1983009808
    %v1354 = vunpack.c.0.s8 %v1353
    %v1355 = vperm.slane %v1349, %v1354
    %v1357 = vunpack.c.l.s4 1983009808
    %v1358 = vunpack.c.0.s8 %v1357
    %v1359 = vperm.slane %v1351, %v1358
    %v1360 = vrot.slane %v1331, 4
    %v1361 = vsel %vm328, %v1360, %v1319
    %v1362 = vrot.slane %v1319, 4
    %v1363 = vsel %vm328, %v1331, %v1362
    %v1365 = vunpack.c.l.s4 1934713408
    %v1366 = vunpack.c.0.s8 %v1365
    %v1367 = vperm.slane %v1361, %v1366
    %v1369 = vunpack.c.l.s4 1934713408
    %v1370 = vunpack.c.0.s8 %v1369
    %v1371 = vperm.slane %v1363, %v1370
    %v1372 = vrot.slane %v1335, 4
    %v1373 = vsel %vm328, %v1372, %v1323
    %v1374 = vrot.slane %v1323, 4
    %v1375 = vsel %vm328, %v1335, %v1374
    %v1377 = vunpack.c.l.s4 1934713408
    %v1378 = vunpack.c.0.s8 %v1377
    %v1379 = vperm.slane %v1373, %v1378
    %v1381 = vunpack.c.l.s4 1934713408
    %v1382 = vunpack.c.0.s8 %v1381
    %v1383 = vperm.slane %v1375, %v1382
    %v1384 = vrot.slane %v1355, 4
    %v1385 = vsel %vm328, %v1384, %v1343
    %v1386 = vrot.slane %v1343, 4
    %v1387 = vsel %vm328, %v1355, %v1386
    %v1389 = vunpack.c.l.s4 1934713408
    %v1390 = vunpack.c.0.s8 %v1389
    %v1391 = vperm.slane %v1385, %v1390
    %v1393 = vunpack.c.l.s4 1934713408
    %v1394 = vunpack.c.0.s8 %v1393
    %v1395 = vperm.slane %v1387, %v1394
    %v1396 = vrot.slane %v1359, 4
    %v1397 = vsel %vm328, %v1396, %v1347
    %v1398 = vrot.slane %v1347, 4
    %v1399 = vsel %vm328, %v1359, %v1398
    %v1401 = vunpack.c.l.s4 1934713408
    %v1402 = vunpack.c.0.s8 %v1401
    %v1403 = vperm.slane %v1397, %v1402
    %v1405 = vunpack.c.l.s4 1934713408
    %v1406 = vunpack.c.0.s8 %v1405
    %v1407 = vperm.slane %v1399, %v1406
    %v1408 = vrot.slane %v1391, 4
    %v1409 = vsel %vm328, %v1408, %v1367
    %v1410 = vrot.slane %v1367, 4
    %v1411 = vsel %vm328, %v1391, %v1410
    %v1412 = vrot.slane %v1395, 4
    %v1413 = vsel %vm328, %v1412, %v1371
    %v1414 = vrot.slane %v1371, 4
    %v1415 = vsel %vm328, %v1395, %v1414
    %v1416 = vrot.slane %v1403, 4
    %v1417 = vsel %vm328, %v1416, %v1379
    %v1418 = vrot.slane %v1379, 4
    %v1419 = vsel %vm328, %v1403, %v1418
    %v1420 = vrot.slane %v1407, 4
    %v1421 = vsel %vm328, %v1420, %v1383
    %v1422 = vrot.slane %v1383, 4
    %v1423 = vsel %vm328, %v1407, %v1422
    %v1424 = vrot.slane %v1279, 4
    %v1425 = vsel %vm328, %v1424, %v281
    %v1426 = vrot.slane %v281, 4
    %v1427 = vsel %vm328, %v1279, %v1426
    %v1429 = vunpack.c.l.s4 1983009808
    %v1430 = vunpack.c.0.s8 %v1429
    %v1431 = vperm.slane %v1425, %v1430
    %v1433 = vunpack.c.l.s4 1983009808
    %v1434 = vunpack.c.0.s8 %v1433
    %v1435 = vperm.slane %v1427, %v1434
    %v1436 = vrot.slane %v1285, 4
    %v1437 = vsel %vm328, %v1436, %v1273
    %v1438 = vrot.slane %v1273, 4
    %v1439 = vsel %vm328, %v1285, %v1438
    %v1441 = vunpack.c.l.s4 1983009808
    %v1442 = vunpack.c.0.s8 %v1441
    %v1443 = vperm.slane %v1437, %v1442
    %v1445 = vunpack.c.l.s4 1983009808
    %v1446 = vunpack.c.0.s8 %v1445
    %v1447 = vperm.slane %v1439, %v1446
    %v1448 = vrot.slane %v1303, 4
    %v1449 = vsel %vm328, %v1448, %v1291
    %v1450 = vrot.slane %v1291, 4
    %v1451 = vsel %vm328, %v1303, %v1450
    %v1453 = vunpack.c.l.s4 1983009808
    %v1454 = vunpack.c.0.s8 %v1453
    %v1455 = vperm.slane %v1449, %v1454
    %v1457 = vunpack.c.l.s4 1983009808
    %v1458 = vunpack.c.0.s8 %v1457
    %v1459 = vperm.slane %v1451, %v1458
    %v1460 = vrot.slane %v1309, 4
    %v1461 = vsel %vm328, %v1460, %v1297
    %v1462 = vrot.slane %v1297, 4
    %v1463 = vsel %vm328, %v1309, %v1462
    %v1465 = vunpack.c.l.s4 1983009808
    %v1466 = vunpack.c.0.s8 %v1465
    %v1467 = vperm.slane %v1461, %v1466
    %v1469 = vunpack.c.l.s4 1983009808
    %v1470 = vunpack.c.0.s8 %v1469
    %v1471 = vperm.slane %v1463, %v1470
    %v1472 = vrot.slane %v1443, 4
    %v1473 = vsel %vm328, %v1472, %v1431
    %v1474 = vrot.slane %v1431, 4
    %v1475 = vsel %vm328, %v1443, %v1474
    %v1477 = vunpack.c.l.s4 1934713408
    %v1478 = vunpack.c.0.s8 %v1477
    %v1479 = vperm.slane %v1473, %v1478
    %v1481 = vunpack.c.l.s4 1934713408
    %v1482 = vunpack.c.0.s8 %v1481
    %v1483 = vperm.slane %v1475, %v1482
    %v1484 = vrot.slane %v1447, 4
    %v1485 = vsel %vm328, %v1484, %v1435
    %v1486 = vrot.slane %v1435, 4
    %v1487 = vsel %vm328, %v1447, %v1486
    %v1489 = vunpack.c.l.s4 1934713408
    %v1490 = vunpack.c.0.s8 %v1489
    %v1491 = vperm.slane %v1485, %v1490
    %v1493 = vunpack.c.l.s4 1934713408
    %v1494 = vunpack.c.0.s8 %v1493
    %v1495 = vperm.slane %v1487, %v1494
    %v1496 = vrot.slane %v1467, 4
    %v1497 = vsel %vm328, %v1496, %v1455
    %v1498 = vrot.slane %v1455, 4
    %v1499 = vsel %vm328, %v1467, %v1498
    %v1501 = vunpack.c.l.s4 1934713408
    %v1502 = vunpack.c.0.s8 %v1501
    %v1503 = vperm.slane %v1497, %v1502
    %v1505 = vunpack.c.l.s4 1934713408
    %v1506 = vunpack.c.0.s8 %v1505
    %v1507 = vperm.slane %v1499, %v1506
    %v1508 = vrot.slane %v1471, 4
    %v1509 = vsel %vm328, %v1508, %v1459
    %v1510 = vrot.slane %v1459, 4
    %v1511 = vsel %vm328, %v1471, %v1510
    %v1513 = vunpack.c.l.s4 1934713408
    %v1514 = vunpack.c.0.s8 %v1513
    %v1515 = vperm.slane %v1509, %v1514
    %v1517 = vunpack.c.l.s4 1934713408
    %v1518 = vunpack.c.0.s8 %v1517
    %v1519 = vperm.slane %v1511, %v1518
    %v1520 = vrot.slane %v1503, 4
    %v1521 = vsel %vm328, %v1520, %v1479
    %v1522 = vrot.slane %v1479, 4
    %v1523 = vsel %vm328, %v1503, %v1522
    %v1524 = vrot.slane %v1507, 4
    %v1525 = vsel %vm328, %v1524, %v1483
    %v1526 = vrot.slane %v1483, 4
    %v1527 = vsel %vm328, %v1507, %v1526
    %v1528 = vrot.slane %v1515, 4
    %v1529 = vsel %vm328, %v1528, %v1491
    %v1530 = vrot.slane %v1491, 4
    %v1531 = vsel %vm328, %v1515, %v1530
    %v1532 = vrot.slane %v1519, 4
    %v1533 = vsel %vm328, %v1532, %v1495
    %v1534 = vrot.slane %v1495, 4
    %v1535 = vsel %vm328, %v1519, %v1534
    %v1536 = vrot.slane %v1413, 4
    %v1537 = vsel %vm328, %v1536, %v1409
    %v1538 = vrot.slane %v1409, 4
    %v1539 = vsel %vm328, %v1413, %v1538
    %v1541 = vunpack.c.l.s4 1983009808
    %v1542 = vunpack.c.0.s8 %v1541
    %v1543 = vperm.slane %v1537, %v1542
    %v1545 = vunpack.c.l.s4 1983009808
    %v1546 = vunpack.c.0.s8 %v1545
    %v1547 = vperm.slane %v1539, %v1546
    %v1548 = vrot.slane %v1415, 4
    %v1549 = vsel %vm328, %v1548, %v1411
    %v1550 = vrot.slane %v1411, 4
    %v1551 = vsel %vm328, %v1415, %v1550
    %v1553 = vunpack.c.l.s4 1983009808
    %v1554 = vunpack.c.0.s8 %v1553
    %v1555 = vperm.slane %v1549, %v1554
    %v1557 = vunpack.c.l.s4 1983009808
    %v1558 = vunpack.c.0.s8 %v1557
    %v1559 = vperm.slane %v1551, %v1558
    %v1560 = vrot.slane %v1421, 4
    %v1561 = vsel %vm328, %v1560, %v1417
    %v1562 = vrot.slane %v1417, 4
    %v1563 = vsel %vm328, %v1421, %v1562
    %v1565 = vunpack.c.l.s4 1983009808
    %v1566 = vunpack.c.0.s8 %v1565
    %v1567 = vperm.slane %v1561, %v1566
    %v1569 = vunpack.c.l.s4 1983009808
    %v1570 = vunpack.c.0.s8 %v1569
    %v1571 = vperm.slane %v1563, %v1570
    %v1572 = vrot.slane %v1423, 4
    %v1573 = vsel %vm328, %v1572, %v1419
    %v1574 = vrot.slane %v1419, 4
    %v1575 = vsel %vm328, %v1423, %v1574
    %v1577 = vunpack.c.l.s4 1983009808
    %v1578 = vunpack.c.0.s8 %v1577
    %v1579 = vperm.slane %v1573, %v1578
    %v1581 = vunpack.c.l.s4 1983009808
    %v1582 = vunpack.c.0.s8 %v1581
    %v1583 = vperm.slane %v1575, %v1582
    %v1584 = vrot.slane %v1555, 4
    %v1585 = vsel %vm328, %v1584, %v1543
    %v1586 = vrot.slane %v1543, 4
    %v1587 = vsel %vm328, %v1555, %v1586
    %v1589 = vunpack.c.l.s4 1934713408
    %v1590 = vunpack.c.0.s8 %v1589
    %v1591 = vperm.slane %v1585, %v1590
    %v1593 = vunpack.c.l.s4 1934713408
    %v1594 = vunpack.c.0.s8 %v1593
    %v1595 = vperm.slane %v1587, %v1594
    %v1596 = vrot.slane %v1559, 4
    %v1597 = vsel %vm328, %v1596, %v1547
    %v1598 = vrot.slane %v1547, 4
    %v1599 = vsel %vm328, %v1559, %v1598
    %v1601 = vunpack.c.l.s4 1934713408
    %v1602 = vunpack.c.0.s8 %v1601
    %v1603 = vperm.slane %v1597, %v1602
    %v1605 = vunpack.c.l.s4 1934713408
    %v1606 = vunpack.c.0.s8 %v1605
    %v1607 = vperm.slane %v1599, %v1606
    %v1608 = vrot.slane %v1579, 4
    %v1609 = vsel %vm328, %v1608, %v1567
    %v1610 = vrot.slane %v1567, 4
    %v1611 = vsel %vm328, %v1579, %v1610
    %v1613 = vunpack.c.l.s4 1934713408
    %v1614 = vunpack.c.0.s8 %v1613
    %v1615 = vperm.slane %v1609, %v1614
    %v1617 = vunpack.c.l.s4 1934713408
    %v1618 = vunpack.c.0.s8 %v1617
    %v1619 = vperm.slane %v1611, %v1618
    %v1620 = vrot.slane %v1583, 4
    %v1621 = vsel %vm328, %v1620, %v1571
    %v1622 = vrot.slane %v1571, 4
    %v1623 = vsel %vm328, %v1583, %v1622
    %v1625 = vunpack.c.l.s4 1934713408
    %v1626 = vunpack.c.0.s8 %v1625
    %v1627 = vperm.slane %v1621, %v1626
    %v1629 = vunpack.c.l.s4 1934713408
    %v1630 = vunpack.c.0.s8 %v1629
    %v1631 = vperm.slane %v1623, %v1630
    %v1632 = vrot.slane %v1615, 4
    %v1633 = vsel %vm328, %v1632, %v1591
    %v1634 = vrot.slane %v1591, 4
    %v1635 = vsel %vm328, %v1615, %v1634
    %v1636 = vrot.slane %v1619, 4
    %v1637 = vsel %vm328, %v1636, %v1595
    %v1638 = vrot.slane %v1595, 4
    %v1639 = vsel %vm328, %v1619, %v1638
    %v1640 = vrot.slane %v1627, 4
    %v1641 = vsel %vm328, %v1640, %v1603
    %v1642 = vrot.slane %v1603, 4
    %v1643 = vsel %vm328, %v1627, %v1642
    %v1644 = vrot.slane %v1631, 4
    %v1645 = vsel %vm328, %v1644, %v1607
    %v1646 = vrot.slane %v1607, 4
    %v1647 = vsel %vm328, %v1631, %v1646
    %v1648 = vrot.slane %v1525, 4
    %v1649 = vsel %vm328, %v1648, %v1521
    %v1650 = vrot.slane %v1521, 4
    %v1651 = vsel %vm328, %v1525, %v1650
    %v1653 = vunpack.c.l.s4 1983009808
    %v1654 = vunpack.c.0.s8 %v1653
    %v1655 = vperm.slane %v1649, %v1654
    %v1657 = vunpack.c.l.s4 1983009808
    %v1658 = vunpack.c.0.s8 %v1657
    %v1659 = vperm.slane %v1651, %v1658
    %v1660 = vrot.slane %v1527, 4
    %v1661 = vsel %vm328, %v1660, %v1523
    %v1662 = vrot.slane %v1523, 4
    %v1663 = vsel %vm328, %v1527, %v1662
    %v1665 = vunpack.c.l.s4 1983009808
    %v1666 = vunpack.c.0.s8 %v1665
    %v1667 = vperm.slane %v1661, %v1666
    %v1669 = vunpack.c.l.s4 1983009808
    %v1670 = vunpack.c.0.s8 %v1669
    %v1671 = vperm.slane %v1663, %v1670
    %v1672 = vrot.slane %v1533, 4
    %v1673 = vsel %vm328, %v1672, %v1529
    %v1674 = vrot.slane %v1529, 4
    %v1675 = vsel %vm328, %v1533, %v1674
    %v1677 = vunpack.c.l.s4 1983009808
    %v1678 = vunpack.c.0.s8 %v1677
    %v1679 = vperm.slane %v1673, %v1678
    %v1681 = vunpack.c.l.s4 1983009808
    %v1682 = vunpack.c.0.s8 %v1681
    %v1683 = vperm.slane %v1675, %v1682
    %v1684 = vrot.slane %v1535, 4
    %v1685 = vsel %vm328, %v1684, %v1531
    %v1686 = vrot.slane %v1531, 4
    %v1687 = vsel %vm328, %v1535, %v1686
    %v1689 = vunpack.c.l.s4 1983009808
    %v1690 = vunpack.c.0.s8 %v1689
    %v1691 = vperm.slane %v1685, %v1690
    %v1693 = vunpack.c.l.s4 1983009808
    %v1694 = vunpack.c.0.s8 %v1693
    %v1695 = vperm.slane %v1687, %v1694
    %v1696 = vrot.slane %v1667, 4
    %v1697 = vsel %vm328, %v1696, %v1655
    %v1698 = vrot.slane %v1655, 4
    %v1699 = vsel %vm328, %v1667, %v1698
    %v1701 = vunpack.c.l.s4 1934713408
    %v1702 = vunpack.c.0.s8 %v1701
    %v1703 = vperm.slane %v1697, %v1702
    %v1705 = vunpack.c.l.s4 1934713408
    %v1706 = vunpack.c.0.s8 %v1705
    %v1707 = vperm.slane %v1699, %v1706
    %v1708 = vrot.slane %v1671, 4
    %v1709 = vsel %vm328, %v1708, %v1659
    %v1710 = vrot.slane %v1659, 4
    %v1711 = vsel %vm328, %v1671, %v1710
    %v1713 = vunpack.c.l.s4 1934713408
    %v1714 = vunpack.c.0.s8 %v1713
    %v1715 = vperm.slane %v1709, %v1714
    %v1717 = vunpack.c.l.s4 1934713408
    %v1718 = vunpack.c.0.s8 %v1717
    %v1719 = vperm.slane %v1711, %v1718
    %v1720 = vrot.slane %v1691, 4
    %v1721 = vsel %vm328, %v1720, %v1679
    %v1722 = vrot.slane %v1679, 4
    %v1723 = vsel %vm328, %v1691, %v1722
    %v1725 = vunpack.c.l.s4 1934713408
    %v1726 = vunpack.c.0.s8 %v1725
    %v1727 = vperm.slane %v1721, %v1726
    %v1729 = vunpack.c.l.s4 1934713408
    %v1730 = vunpack.c.0.s8 %v1729
    %v1731 = vperm.slane %v1723, %v1730
    %v1732 = vrot.slane %v1695, 4
    %v1733 = vsel %vm328, %v1732, %v1683
    %v1734 = vrot.slane %v1683, 4
    %v1735 = vsel %vm328, %v1695, %v1734
    %v1737 = vunpack.c.l.s4 1934713408
    %v1738 = vunpack.c.0.s8 %v1737
    %v1739 = vperm.slane %v1733, %v1738
    %v1741 = vunpack.c.l.s4 1934713408
    %v1742 = vunpack.c.0.s8 %v1741
    %v1743 = vperm.slane %v1735, %v1742
    %v1744 = vrot.slane %v1727, 4
    %v1745 = vsel %vm328, %v1744, %v1703
    %v1746 = vrot.slane %v1703, 4
    %v1747 = vsel %vm328, %v1727, %v1746
    %v1748 = vrot.slane %v1731, 4
    %v1749 = vsel %vm328, %v1748, %v1707
    %v1750 = vrot.slane %v1707, 4
    %v1751 = vsel %vm328, %v1731, %v1750
    %v1752 = vrot.slane %v1739, 4
    %v1753 = vsel %vm328, %v1752, %v1715
    %v1754 = vrot.slane %v1715, 4
    %v1755 = vsel %vm328, %v1739, %v1754
    %v1756 = vrot.slane %v1743, 4
    %v1757 = vsel %vm328, %v1756, %v1719
    %v1758 = vrot.slane %v1719, 4
    %v1759 = vsel %vm328, %v1743, %v1758
    %vm1760 = vcmask 31744
    %v1762 = vsel %vm1760, %v649, 0
    %v1765 = vsel %vm1760, %v1141, 0
    %1767 = vmatpush.xpose.msra.mxu0 0.0
    %1768 = vmatpush.xpose.msra.mxu0 0.0
    %1769 = vmatpush.xpose.msra.mxu0 0.0
    %1770 = vmatpush.xpose.msra.mxu0 0.0
    %1771 = vmatpush.xpose.msra.mxu0 0.0
    %1772 = vmatpush.xpose.msra.mxu0 0.0
    %1773 = vmatpush.xpose.msra.mxu0 0.0
    %1774 = vmatpush.xpose.msra.mxu0 0.0
    %1775 = vmatpush.xpose.msra.mxu0 0.0
    %1776 = vmatpush.xpose.msra.mxu0 0.0
    %1777 = vmatpush.xpose.msra.mxu0 0.0
    %1778 = vmatpush.xpose.msra.mxu0 0.0
    %1779 = vmatpush.xpose.msra.mxu0 0.0
    %1780 = vmatpush.xpose.msra.mxu0 0.0
    %1781 = vmatpush.xpose.msra.mxu0 0.0
    %1782 = vmatpush.xpose.msra.mxu0 %v1765
    %1783 = vmatmul.f32.gmra.mxu0 %v1762
    %v1784 = vpop.f32.mrf.mxu0
    %v1785 = vadd.f32 0.0, %v1784
    %1786 = vdwg.mxu0
    %v1788 = vsel %vm1760, %v651, 0
    %v1791 = vsel %vm1760, %v1143, 0
    %1793 = vmatpush.xpose.msra.mxu0 0.0
    %1794 = vmatpush.xpose.msra.mxu0 0.0
    %1795 = vmatpush.xpose.msra.mxu0 0.0
    %1796 = vmatpush.xpose.msra.mxu0 0.0
    %1797 = vmatpush.xpose.msra.mxu0 0.0
    %1798 = vmatpush.xpose.msra.mxu0 0.0
    %1799 = vmatpush.xpose.msra.mxu0 0.0
    %1800 = vmatpush.xpose.msra.mxu0 0.0
    %1801 = vmatpush.xpose.msra.mxu0 0.0
    %1802 = vmatpush.xpose.msra.mxu0 0.0
    %1803 = vmatpush.xpose.msra.mxu0 0.0
    %1804 = vmatpush.xpose.msra.mxu0 0.0
    %1805 = vmatpush.xpose.msra.mxu0 0.0
    %1806 = vmatpush.xpose.msra.mxu0 0.0
    %1807 = vmatpush.xpose.msra.mxu0 0.0
    %1808 = vmatpush.xpose.msra.mxu0 %v1791
    %1809 = vmatmul.f32.gmra.mxu0 %v1788
    %v1810 = vpop.f32.mrf.mxu0
    %v1811 = vadd.f32 0.0, %v1810
    %1812 = vdwg.mxu0
    %v1814 = vsel %vm1760, %v653, 0
    %v1817 = vsel %vm1760, %v1145, 0
    %1819 = vmatpush.xpose.msra.mxu0 0.0
    %1820 = vmatpush.xpose.msra.mxu0 0.0
    %1821 = vmatpush.xpose.msra.mxu0 0.0
    %1822 = vmatpush.xpose.msra.mxu0 0.0
    %1823 = vmatpush.xpose.msra.mxu0 0.0
    %1824 = vmatpush.xpose.msra.mxu0 0.0
    %1825 = vmatpush.xpose.msra.mxu0 0.0
    %1826 = vmatpush.xpose.msra.mxu0 0.0
    %1827 = vmatpush.xpose.msra.mxu0 0.0
    %1828 = vmatpush.xpose.msra.mxu0 0.0
    %1829 = vmatpush.xpose.msra.mxu0 0.0
    %1830 = vmatpush.xpose.msra.mxu0 0.0
    %1831 = vmatpush.xpose.msra.mxu0 0.0
    %1832 = vmatpush.xpose.msra.mxu0 0.0
    %1833 = vmatpush.xpose.msra.mxu0 0.0
    %1834 = vmatpush.xpose.msra.mxu0 %v1817
    %1835 = vmatmul.f32.gmra.mxu0 %v1814
    %v1836 = vpop.f32.mrf.mxu0
    %v1837 = vadd.f32 0.0, %v1836
    %1838 = vdwg.mxu0
    %v1840 = vsel %vm1760, %v655, 0
    %v1843 = vsel %vm1760, %v1147, 0
    %1845 = vmatpush.xpose.msra.mxu0 0.0
    %1846 = vmatpush.xpose.msra.mxu0 0.0
    %1847 = vmatpush.xpose.msra.mxu0 0.0
    %1848 = vmatpush.xpose.msra.mxu0 0.0
    %1849 = vmatpush.xpose.msra.mxu0 0.0
    %1850 = vmatpush.xpose.msra.mxu0 0.0
    %1851 = vmatpush.xpose.msra.mxu0 0.0
    %1852 = vmatpush.xpose.msra.mxu0 0.0
    %1853 = vmatpush.xpose.msra.mxu0 0.0
    %1854 = vmatpush.xpose.msra.mxu0 0.0
    %1855 = vmatpush.xpose.msra.mxu0 0.0
    %1856 = vmatpush.xpose.msra.mxu0 0.0
    %1857 = vmatpush.xpose.msra.mxu0 0.0
    %1858 = vmatpush.xpose.msra.mxu0 0.0
    %1859 = vmatpush.xpose.msra.mxu0 0.0
    %1860 = vmatpush.xpose.msra.mxu0 %v1843
    %1861 = vmatmul.f32.gmra.mxu0 %v1840
    %v1862 = vpop.f32.mrf.mxu0
    %v1863 = vadd.f32 0.0, %v1862
    %1864 = vdwg.mxu0
    %v1866 = vsel %vm1760, %v657, 0
    %v1869 = vsel %vm1760, %v1149, 0
    %1871 = vmatpush.xpose.msra.mxu0 0.0
    %1872 = vmatpush.xpose.msra.mxu0 0.0
    %1873 = vmatpush.xpose.msra.mxu0 0.0
    %1874 = vmatpush.xpose.msra.mxu0 0.0
    %1875 = vmatpush.xpose.msra.mxu0 0.0
    %1876 = vmatpush.xpose.msra.mxu0 0.0
    %1877 = vmatpush.xpose.msra.mxu0 0.0
    %1878 = vmatpush.xpose.msra.mxu0 0.0
    %1879 = vmatpush.xpose.msra.mxu0 0.0
    %1880 = vmatpush.xpose.msra.mxu0 0.0
    %1881 = vmatpush.xpose.msra.mxu0 0.0
    %1882 = vmatpush.xpose.msra.mxu0 0.0
    %1883 = vmatpush.xpose.msra.mxu0 0.0
    %1884 = vmatpush.xpose.msra.mxu0 0.0
    %1885 = vmatpush.xpose.msra.mxu0 0.0
    %1886 = vmatpush.xpose.msra.mxu0 %v1869
    %1887 = vmatmul.f32.gmra.mxu0 %v1866
    %v1888 = vpop.f32.mrf.mxu0
    %v1889 = vadd.f32 0.0, %v1888
    %1890 = vdwg.mxu0
    %v1892 = vsel %vm1760, %v659, 0
    %v1895 = vsel %vm1760, %v1151, 0
    %1897 = vmatpush.xpose.msra.mxu0 0.0
    %1898 = vmatpush.xpose.msra.mxu0 0.0
    %1899 = vmatpush.xpose.msra.mxu0 0.0
    %1900 = vmatpush.xpose.msra.mxu0 0.0
    %1901 = vmatpush.xpose.msra.mxu0 0.0
    %1902 = vmatpush.xpose.msra.mxu0 0.0
    %1903 = vmatpush.xpose.msra.mxu0 0.0
    %1904 = vmatpush.xpose.msra.mxu0 0.0
    %1905 = vmatpush.xpose.msra.mxu0 0.0
    %1906 = vmatpush.xpose.msra.mxu0 0.0
    %1907 = vmatpush.xpose.msra.mxu0 0.0
    %1908 = vmatpush.xpose.msra.mxu0 0.0
    %1909 = vmatpush.xpose.msra.mxu0 0.0
    %1910 = vmatpush.xpose.msra.mxu0 0.0
    %1911 = vmatpush.xpose.msra.mxu0 0.0
    %1912 = vmatpush.xpose.msra.mxu0 %v1895
    %1913 = vmatmul.f32.gmra.mxu0 %v1892
    %v1914 = vpop.f32.mrf.mxu0
    %v1915 = vadd.f32 0.0, %v1914
    %1916 = vdwg.mxu0
    %v1918 = vsel %vm1760, %v661, 0
    %v1921 = vsel %vm1760, %v1153, 0
    %1923 = vmatpush.xpose.msra.mxu0 0.0
    %1924 = vmatpush.xpose.msra.mxu0 0.0
    %1925 = vmatpush.xpose.msra.mxu0 0.0
    %1926 = vmatpush.xpose.msra.mxu0 0.0
    %1927 = vmatpush.xpose.msra.mxu0 0.0
    %1928 = vmatpush.xpose.msra.mxu0 0.0
    %1929 = vmatpush.xpose.msra.mxu0 0.0
    %1930 = vmatpush.xpose.msra.mxu0 0.0
    %1931 = vmatpush.xpose.msra.mxu0 0.0
    %1932 = vmatpush.xpose.msra.mxu0 0.0
    %1933 = vmatpush.xpose.msra.mxu0 0.0
    %1934 = vmatpush.xpose.msra.mxu0 0.0
    %1935 = vmatpush.xpose.msra.mxu0 0.0
    %1936 = vmatpush.xpose.msra.mxu0 0.0
    %1937 = vmatpush.xpose.msra.mxu0 0.0
    %1938 = vmatpush.xpose.msra.mxu0 %v1921
    %1939 = vmatmul.f32.gmra.mxu0 %v1918
    %v1940 = vpop.f32.mrf.mxu0
    %v1941 = vadd.f32 0.0, %v1940
    %1942 = vdwg.mxu0
    %v1944 = vsel %vm1760, %v663, 0
    %v1947 = vsel %vm1760, %v1155, 0
    %1949 = vmatpush.xpose.msra.mxu0 0.0
    %1950 = vmatpush.xpose.msra.mxu0 0.0
    %1951 = vmatpush.xpose.msra.mxu0 0.0
    %1952 = vmatpush.xpose.msra.mxu0 0.0
    %1953 = vmatpush.xpose.msra.mxu0 0.0
    %1954 = vmatpush.xpose.msra.mxu0 0.0
    %1955 = vmatpush.xpose.msra.mxu0 0.0
    %1956 = vmatpush.xpose.msra.mxu0 0.0
    %1957 = vmatpush.xpose.msra.mxu0 0.0
    %1958 = vmatpush.xpose.msra.mxu0 0.0
    %1959 = vmatpush.xpose.msra.mxu0 0.0
    %1960 = vmatpush.xpose.msra.mxu0 0.0
    %1961 = vmatpush.xpose.msra.mxu0 0.0
    %1962 = vmatpush.xpose.msra.mxu0 0.0
    %1963 = vmatpush.xpose.msra.mxu0 0.0
    %1964 = vmatpush.xpose.msra.mxu0 %v1947
    %1965 = vmatmul.f32.gmra.mxu0 %v1944
    %v1966 = vpop.f32.mrf.mxu0
    %v1967 = vadd.f32 0.0, %v1966
    %1968 = vdwg.mxu0
    %v1970 = vsel %vm1760, %v761, 0
    %v1973 = vsel %vm1760, %v1253, 0
    %1975 = vmatpush.xpose.msra.mxu0 0.0
    %1976 = vmatpush.xpose.msra.mxu0 0.0
    %1977 = vmatpush.xpose.msra.mxu0 0.0
    %1978 = vmatpush.xpose.msra.mxu0 0.0
    %1979 = vmatpush.xpose.msra.mxu0 0.0
    %1980 = vmatpush.xpose.msra.mxu0 0.0
    %1981 = vmatpush.xpose.msra.mxu0 0.0
    %1982 = vmatpush.xpose.msra.mxu0 0.0
    %1983 = vmatpush.xpose.msra.mxu0 0.0
    %1984 = vmatpush.xpose.msra.mxu0 0.0
    %1985 = vmatpush.xpose.msra.mxu0 0.0
    %1986 = vmatpush.xpose.msra.mxu0 0.0
    %1987 = vmatpush.xpose.msra.mxu0 0.0
    %1988 = vmatpush.xpose.msra.mxu0 0.0
    %1989 = vmatpush.xpose.msra.mxu0 0.0
    %1990 = vmatpush.xpose.msra.mxu0 %v1973
    %1991 = vmatmul.f32.gmra.mxu0 %v1970
    %v1992 = vpop.f32.mrf.mxu0
    %v1993 = vadd.f32 0.0, %v1992
    %1994 = vdwg.mxu0
    %v1996 = vsel %vm1760, %v763, 0
    %v1999 = vsel %vm1760, %v1255, 0
    %2001 = vmatpush.xpose.msra.mxu0 0.0
    %2002 = vmatpush.xpose.msra.mxu0 0.0
    %2003 = vmatpush.xpose.msra.mxu0 0.0
    %2004 = vmatpush.xpose.msra.mxu0 0.0
    %2005 = vmatpush.xpose.msra.mxu0 0.0
    %2006 = vmatpush.xpose.msra.mxu0 0.0
    %2007 = vmatpush.xpose.msra.mxu0 0.0
    %2008 = vmatpush.xpose.msra.mxu0 0.0
    %2009 = vmatpush.xpose.msra.mxu0 0.0
    %2010 = vmatpush.xpose.msra.mxu0 0.0
    %2011 = vmatpush.xpose.msra.mxu0 0.0
    %2012 = vmatpush.xpose.msra.mxu0 0.0
    %2013 = vmatpush.xpose.msra.mxu0 0.0
    %2014 = vmatpush.xpose.msra.mxu0 0.0
    %2015 = vmatpush.xpose.msra.mxu0 0.0
    %2016 = vmatpush.xpose.msra.mxu0 %v1999
    %2017 = vmatmul.f32.gmra.mxu0 %v1996
    %v2018 = vpop.f32.mrf.mxu0
    %v2019 = vadd.f32 0.0, %v2018
    %2020 = vdwg.mxu0
    %v2022 = vsel %vm1760, %v765, 0
    %v2025 = vsel %vm1760, %v1257, 0
    %2027 = vmatpush.xpose.msra.mxu0 0.0
    %2028 = vmatpush.xpose.msra.mxu0 0.0
    %2029 = vmatpush.xpose.msra.mxu0 0.0
    %2030 = vmatpush.xpose.msra.mxu0 0.0
    %2031 = vmatpush.xpose.msra.mxu0 0.0
    %2032 = vmatpush.xpose.msra.mxu0 0.0
    %2033 = vmatpush.xpose.msra.mxu0 0.0
    %2034 = vmatpush.xpose.msra.mxu0 0.0
    %2035 = vmatpush.xpose.msra.mxu0 0.0
    %2036 = vmatpush.xpose.msra.mxu0 0.0
    %2037 = vmatpush.xpose.msra.mxu0 0.0
    %2038 = vmatpush.xpose.msra.mxu0 0.0
    %2039 = vmatpush.xpose.msra.mxu0 0.0
    %2040 = vmatpush.xpose.msra.mxu0 0.0
    %2041 = vmatpush.xpose.msra.mxu0 0.0
    %2042 = vmatpush.xpose.msra.mxu0 %v2025
    %2043 = vmatmul.f32.gmra.mxu0 %v2022
    %v2044 = vpop.f32.mrf.mxu0
    %v2045 = vadd.f32 0.0, %v2044
    %2046 = vdwg.mxu0
    %v2048 = vsel %vm1760, %v767, 0
    %v2051 = vsel %vm1760, %v1259, 0
    %2053 = vmatpush.xpose.msra.mxu0 0.0
    %2054 = vmatpush.xpose.msra.mxu0 0.0
    %2055 = vmatpush.xpose.msra.mxu0 0.0
    %2056 = vmatpush.xpose.msra.mxu0 0.0
    %2057 = vmatpush.xpose.msra.mxu0 0.0
    %2058 = vmatpush.xpose.msra.mxu0 0.0
    %2059 = vmatpush.xpose.msra.mxu0 0.0
    %2060 = vmatpush.xpose.msra.mxu0 0.0
    %2061 = vmatpush.xpose.msra.mxu0 0.0
    %2062 = vmatpush.xpose.msra.mxu0 0.0
    %2063 = vmatpush.xpose.msra.mxu0 0.0
    %2064 = vmatpush.xpose.msra.mxu0 0.0
    %2065 = vmatpush.xpose.msra.mxu0 0.0
    %2066 = vmatpush.xpose.msra.mxu0 0.0
    %2067 = vmatpush.xpose.msra.mxu0 0.0
    %2068 = vmatpush.xpose.msra.mxu0 %v2051
    %2069 = vmatmul.f32.gmra.mxu0 %v2048
    %v2070 = vpop.f32.mrf.mxu0
    %v2071 = vadd.f32 0.0, %v2070
    %2072 = vdwg.mxu0
    %v2074 = vsel %vm1760, %v769, 0
    %v2077 = vsel %vm1760, %v1261, 0
    %2079 = vmatpush.xpose.msra.mxu0 0.0
    %2080 = vmatpush.xpose.msra.mxu0 0.0
    %2081 = vmatpush.xpose.msra.mxu0 0.0
    %2082 = vmatpush.xpose.msra.mxu0 0.0
    %2083 = vmatpush.xpose.msra.mxu0 0.0
    %2084 = vmatpush.xpose.msra.mxu0 0.0
    %2085 = vmatpush.xpose.msra.mxu0 0.0
    %2086 = vmatpush.xpose.msra.mxu0 0.0
    %2087 = vmatpush.xpose.msra.mxu0 0.0
    %2088 = vmatpush.xpose.msra.mxu0 0.0
    %2089 = vmatpush.xpose.msra.mxu0 0.0
    %2090 = vmatpush.xpose.msra.mxu0 0.0
    %2091 = vmatpush.xpose.msra.mxu0 0.0
    %2092 = vmatpush.xpose.msra.mxu0 0.0
    %2093 = vmatpush.xpose.msra.mxu0 0.0
    %2094 = vmatpush.xpose.msra.mxu0 %v2077
    %2095 = vmatmul.f32.gmra.mxu0 %v2074
    %v2096 = vpop.f32.mrf.mxu0
    %v2097 = vadd.f32 0.0, %v2096
    %2098 = vdwg.mxu0
    %v2100 = vsel %vm1760, %v771, 0
    %v2103 = vsel %vm1760, %v1263, 0
    %2105 = vmatpush.xpose.msra.mxu0 0.0
    %2106 = vmatpush.xpose.msra.mxu0 0.0
    %2107 = vmatpush.xpose.msra.mxu0 0.0
    %2108 = vmatpush.xpose.msra.mxu0 0.0
    %2109 = vmatpush.xpose.msra.mxu0 0.0
    %2110 = vmatpush.xpose.msra.mxu0 0.0
    %2111 = vmatpush.xpose.msra.mxu0 0.0
    %2112 = vmatpush.xpose.msra.mxu0 0.0
    %2113 = vmatpush.xpose.msra.mxu0 0.0
    %2114 = vmatpush.xpose.msra.mxu0 0.0
    %2115 = vmatpush.xpose.msra.mxu0 0.0
    %2116 = vmatpush.xpose.msra.mxu0 0.0
    %2117 = vmatpush.xpose.msra.mxu0 0.0
    %2118 = vmatpush.xpose.msra.mxu0 0.0
    %2119 = vmatpush.xpose.msra.mxu0 0.0
    %2120 = vmatpush.xpose.msra.mxu0 %v2103
    %2121 = vmatmul.f32.gmra.mxu0 %v2100
    %v2122 = vpop.f32.mrf.mxu0
    %v2123 = vadd.f32 0.0, %v2122
    %2124 = vdwg.mxu0
    %v2126 = vsel %vm1760, %v773, 0
    %v2129 = vsel %vm1760, %v1265, 0
    %2131 = vmatpush.xpose.msra.mxu0 0.0
    %2132 = vmatpush.xpose.msra.mxu0 0.0
    %2133 = vmatpush.xpose.msra.mxu0 0.0
    %2134 = vmatpush.xpose.msra.mxu0 0.0
    %2135 = vmatpush.xpose.msra.mxu0 0.0
    %2136 = vmatpush.xpose.msra.mxu0 0.0
    %2137 = vmatpush.xpose.msra.mxu0 0.0
    %2138 = vmatpush.xpose.msra.mxu0 0.0
    %2139 = vmatpush.xpose.msra.mxu0 0.0
    %2140 = vmatpush.xpose.msra.mxu0 0.0
    %2141 = vmatpush.xpose.msra.mxu0 0.0
    %2142 = vmatpush.xpose.msra.mxu0 0.0
    %2143 = vmatpush.xpose.msra.mxu0 0.0
    %2144 = vmatpush.xpose.msra.mxu0 0.0
    %2145 = vmatpush.xpose.msra.mxu0 0.0
    %2146 = vmatpush.xpose.msra.mxu0 %v2129
    %2147 = vmatmul.f32.gmra.mxu0 %v2126
    %v2148 = vpop.f32.mrf.mxu0
    %v2149 = vadd.f32 0.0, %v2148
    %2150 = vdwg.mxu0
    %v2152 = vsel %vm1760, %v775, 0
    %v2155 = vsel %vm1760, %v1267, 0
    %2157 = vmatpush.xpose.msra.mxu0 0.0
    %2158 = vmatpush.xpose.msra.mxu0 0.0
    %2159 = vmatpush.xpose.msra.mxu0 0.0
    %2160 = vmatpush.xpose.msra.mxu0 0.0
    %2161 = vmatpush.xpose.msra.mxu0 0.0
    %2162 = vmatpush.xpose.msra.mxu0 0.0
    %2163 = vmatpush.xpose.msra.mxu0 0.0
    %2164 = vmatpush.xpose.msra.mxu0 0.0
    %2165 = vmatpush.xpose.msra.mxu0 0.0
    %2166 = vmatpush.xpose.msra.mxu0 0.0
    %2167 = vmatpush.xpose.msra.mxu0 0.0
    %2168 = vmatpush.xpose.msra.mxu0 0.0
    %2169 = vmatpush.xpose.msra.mxu0 0.0
    %2170 = vmatpush.xpose.msra.mxu0 0.0
    %2171 = vmatpush.xpose.msra.mxu0 0.0
    %2172 = vmatpush.xpose.msra.mxu0 %v2155
    %2173 = vmatmul.f32.gmra.mxu0 %v2152
    %v2174 = vpop.f32.mrf.mxu0
    %v2175 = vadd.f32 0.0, %v2174
    %2176 = vdwg.mxu0
    %vm2177 = vcmask 64512
    %v2178 = vsel %vm2177, %v1785, -inf
    %2179 = vmax.xlane.f32.xlu0 %v2178
    %v2180 = vpop.xlane.xlu0 %2179
    %v2181 = vsel %vm2177, %v1811, -inf
    %2182 = vmax.xlane.f32.xlu0 %v2181
    %v2183 = vpop.xlane.xlu0 %2182
    %v2184 = vsel %vm2177, %v1837, -inf
    %2185 = vmax.xlane.f32.xlu0 %v2184
    %v2186 = vpop.xlane.xlu0 %2185
    %v2187 = vsel %vm2177, %v1863, -inf
    %2188 = vmax.xlane.f32.xlu0 %v2187
    %v2189 = vpop.xlane.xlu0 %2188
    %v2190 = vsel %vm2177, %v1889, -inf
    %2191 = vmax.xlane.f32.xlu0 %v2190
    %v2192 = vpop.xlane.xlu0 %2191
    %v2193 = vsel %vm2177, %v1915, -inf
    %2194 = vmax.xlane.f32.xlu0 %v2193
    %v2195 = vpop.xlane.xlu0 %2194
    %v2196 = vsel %vm2177, %v1941, -inf
    %2197 = vmax.xlane.f32.xlu0 %v2196
    %v2198 = vpop.xlane.xlu0 %2197
    %v2199 = vsel %vm2177, %v1967, -inf
    %2200 = vmax.xlane.f32.xlu0 %v2199
    %v2201 = vpop.xlane.xlu0 %2200
    %v2202 = vsel %vm2177, %v1993, -inf
    %2203 = vmax.xlane.f32.xlu0 %v2202
    %v2204 = vpop.xlane.xlu0 %2203
    %v2205 = vsel %vm2177, %v2019, -inf
    %2206 = vmax.xlane.f32.xlu0 %v2205
    %v2207 = vpop.xlane.xlu0 %2206
    %v2208 = vsel %vm2177, %v2045, -inf
    %2209 = vmax.xlane.f32.xlu0 %v2208
    %v2210 = vpop.xlane.xlu0 %2209
    %v2211 = vsel %vm2177, %v2071, -inf
    %2212 = vmax.xlane.f32.xlu0 %v2211
    %v2213 = vpop.xlane.xlu0 %2212
    %v2214 = vsel %vm2177, %v2097, -inf
    %2215 = vmax.xlane.f32.xlu0 %v2214
    %v2216 = vpop.xlane.xlu0 %2215
    %v2217 = vsel %vm2177, %v2123, -inf
    %2218 = vmax.xlane.f32.xlu0 %v2217
    %v2219 = vpop.xlane.xlu0 %2218
    %v2220 = vsel %vm2177, %v2149, -inf
    %2221 = vmax.xlane.f32.xlu0 %v2220
    %v2222 = vpop.xlane.xlu0 %2221
    %v2223 = vsel %vm2177, %v2175, -inf
    %2224 = vmax.xlane.f32.xlu0 %v2223
    %v2225 = vpop.xlane.xlu0 %2224
    %v2226 = vsub.f32 %v1785, %v2180
    %v2227 = vsub.f32 %v1811, %v2183
    %v2228 = vsub.f32 %v1837, %v2186
    %v2229 = vsub.f32 %v1863, %v2189
    %v2230 = vsub.f32 %v1889, %v2192
    %v2231 = vsub.f32 %v1915, %v2195
    %v2232 = vsub.f32 %v1941, %v2198
    %v2233 = vsub.f32 %v1967, %v2201
    %v2234 = vsub.f32 %v1993, %v2204
    %v2235 = vsub.f32 %v2019, %v2207
    %v2236 = vsub.f32 %v2045, %v2210
    %v2237 = vsub.f32 %v2071, %v2213
    %v2238 = vsub.f32 %v2097, %v2216
    %v2239 = vsub.f32 %v2123, %v2219
    %v2240 = vsub.f32 %v2149, %v2222
    %v2241 = vsub.f32 %v2175, %v2225
    %v2242 = vmul.f32 %v2226, 1.442695
    %v2243 = vpow.pop %v2242
    %v2244 = vmul.f32 %v2227, 1.442695
    %v2245 = vpow.pop %v2244
    %v2246 = vmul.f32 %v2228, 1.442695
    %v2247 = vpow.pop %v2246
    %v2248 = vmul.f32 %v2229, 1.442695
    %v2249 = vpow.pop %v2248
    %v2250 = vmul.f32 %v2230, 1.442695
    %v2251 = vpow.pop %v2250
    %v2252 = vmul.f32 %v2231, 1.442695
    %v2253 = vpow.pop %v2252
    %v2254 = vmul.f32 %v2232, 1.442695
    %v2255 = vpow.pop %v2254
    %v2256 = vmul.f32 %v2233, 1.442695
    %v2257 = vpow.pop %v2256
    %v2258 = vmul.f32 %v2234, 1.442695
    %v2259 = vpow.pop %v2258
    %v2260 = vmul.f32 %v2235, 1.442695
    %v2261 = vpow.pop %v2260
    %v2262 = vmul.f32 %v2236, 1.442695
    %v2263 = vpow.pop %v2262
    %v2264 = vmul.f32 %v2237, 1.442695
    %v2265 = vpow.pop %v2264
    %v2266 = vmul.f32 %v2238, 1.442695
    %v2267 = vpow.pop %v2266
    %v2268 = vmul.f32 %v2239, 1.442695
    %v2269 = vpow.pop %v2268
    %v2270 = vmul.f32 %v2240, 1.442695
    %v2271 = vpow.pop %v2270
    %v2272 = vmul.f32 %v2241, 1.442695
    %v2273 = vpow.pop %v2272
    %v2274 = vsel %vm2177, %v2243, 0.0
    %2275 = vadd.xlane.f32.xlu0 %v2274
    %v2276 = vpop.xlane.xlu0 %2275
    %v2277 = vsel %vm2177, %v2245, 0.0
    %2278 = vadd.xlane.f32.xlu0 %v2277
    %v2279 = vpop.xlane.xlu0 %2278
    %v2280 = vsel %vm2177, %v2247, 0.0
    %2281 = vadd.xlane.f32.xlu0 %v2280
    %v2282 = vpop.xlane.xlu0 %2281
    %v2283 = vsel %vm2177, %v2249, 0.0
    %2284 = vadd.xlane.f32.xlu0 %v2283
    %v2285 = vpop.xlane.xlu0 %2284
    %v2286 = vsel %vm2177, %v2251, 0.0
    %2287 = vadd.xlane.f32.xlu0 %v2286
    %v2288 = vpop.xlane.xlu0 %2287
    %v2289 = vsel %vm2177, %v2253, 0.0
    %2290 = vadd.xlane.f32.xlu0 %v2289
    %v2291 = vpop.xlane.xlu0 %2290
    %v2292 = vsel %vm2177, %v2255, 0.0
    %2293 = vadd.xlane.f32.xlu0 %v2292
    %v2294 = vpop.xlane.xlu0 %2293
    %v2295 = vsel %vm2177, %v2257, 0.0
    %2296 = vadd.xlane.f32.xlu0 %v2295
    %v2297 = vpop.xlane.xlu0 %2296
    %v2298 = vsel %vm2177, %v2259, 0.0
    %2299 = vadd.xlane.f32.xlu0 %v2298
    %v2300 = vpop.xlane.xlu0 %2299
    %v2301 = vsel %vm2177, %v2261, 0.0
    %2302 = vadd.xlane.f32.xlu0 %v2301
    %v2303 = vpop.xlane.xlu0 %2302
    %v2304 = vsel %vm2177, %v2263, 0.0
    %2305 = vadd.xlane.f32.xlu0 %v2304
    %v2306 = vpop.xlane.xlu0 %2305
    %v2307 = vsel %vm2177, %v2265, 0.0
    %2308 = vadd.xlane.f32.xlu0 %v2307
    %v2309 = vpop.xlane.xlu0 %2308
    %v2310 = vsel %vm2177, %v2267, 0.0
    %2311 = vadd.xlane.f32.xlu0 %v2310
    %v2312 = vpop.xlane.xlu0 %2311
    %v2313 = vsel %vm2177, %v2269, 0.0
    %2314 = vadd.xlane.f32.xlu0 %v2313
    %v2315 = vpop.xlane.xlu0 %2314
    %v2316 = vsel %vm2177, %v2271, 0.0
    %2317 = vadd.xlane.f32.xlu0 %v2316
    %v2318 = vpop.xlane.xlu0 %2317
    %v2319 = vsel %vm2177, %v2273, 0.0
    %2320 = vadd.xlane.f32.xlu0 %v2319
    %v2321 = vpop.xlane.xlu0 %2320
    %v2322 = vrcp.pop %v2276
    %v2323 = vrcp.pop %v2279
    %v2324 = vrcp.pop %v2282
    %v2325 = vrcp.pop %v2285
    %v2326 = vrcp.pop %v2288
    %v2327 = vrcp.pop %v2291
    %v2328 = vrcp.pop %v2294
    %v2329 = vrcp.pop %v2297
    %v2330 = vrcp.pop %v2300
    %v2331 = vrcp.pop %v2303
    %v2332 = vrcp.pop %v2306
    %v2333 = vrcp.pop %v2309
    %v2334 = vrcp.pop %v2312
    %v2335 = vrcp.pop %v2315
    %v2336 = vrcp.pop %v2318
    %v2337 = vrcp.pop %v2321
    %v2338 = vmul.f32 %v2243, %v2322
    %v2339 = vmul.f32 %v2245, %v2323
    %v2340 = vmul.f32 %v2247, %v2324
    %v2341 = vmul.f32 %v2249, %v2325
    %v2342 = vmul.f32 %v2251, %v2326
    %v2343 = vmul.f32 %v2253, %v2327
    %v2344 = vmul.f32 %v2255, %v2328
    %v2345 = vmul.f32 %v2257, %v2329
    %v2346 = vmul.f32 %v2259, %v2330
    %v2347 = vmul.f32 %v2261, %v2331
    %v2348 = vmul.f32 %v2263, %v2332
    %v2349 = vmul.f32 %v2265, %v2333
    %v2350 = vmul.f32 %v2267, %v2334
    %v2351 = vmul.f32 %v2269, %v2335
    %v2352 = vmul.f32 %v2271, %v2336
    %v2353 = vmul.f32 %v2273, %v2337
    %v2355 = vsel %vm2177, %v2338, 0
    %2357 = vmatpush.msra.mxu0 0.0
    %2358 = vmatpush.msra.mxu0 0.0
    %2359 = vmatpush.msra.mxu0 0.0
    %2360 = vmatpush.msra.mxu0 0.0
    %2361 = vmatpush.msra.mxu0 0.0
    %2362 = vmatpush.msra.mxu0 0.0
    %2363 = vmatpush.msra.mxu0 0.0
    %2364 = vmatpush.msra.mxu0 0.0
    %2365 = vmatpush.msra.mxu0 0.0
    %2366 = vmatpush.msra.mxu0 0.0
    %2367 = vmatpush.msra.mxu0 0.0
    %2368 = vmatpush.msra.mxu0 0.0
    %2369 = vmatpush.msra.mxu0 0.0
    %2370 = vmatpush.msra.mxu0 0.0
    %2371 = vmatpush.msra.mxu0 0.0
    %2372 = vmatpush.msra.mxu0 %v1633
    %2373 = vmatmul.f32.gmra.mxu0 %v2355
    %v2374 = vpop.f32.mrf.mxu0
    %v2375 = vadd.f32 0.0, %v2374
    %2376 = vdwg.mxu0
    %v2378 = vsel %vm2177, %v2339, 0
    %2380 = vmatpush.msra.mxu0 0.0
    %2381 = vmatpush.msra.mxu0 0.0
    %2382 = vmatpush.msra.mxu0 0.0
    %2383 = vmatpush.msra.mxu0 0.0
    %2384 = vmatpush.msra.mxu0 0.0
    %2385 = vmatpush.msra.mxu0 0.0
    %2386 = vmatpush.msra.mxu0 0.0
    %2387 = vmatpush.msra.mxu0 0.0
    %2388 = vmatpush.msra.mxu0 0.0
    %2389 = vmatpush.msra.mxu0 0.0
    %2390 = vmatpush.msra.mxu0 0.0
    %2391 = vmatpush.msra.mxu0 0.0
    %2392 = vmatpush.msra.mxu0 0.0
    %2393 = vmatpush.msra.mxu0 0.0
    %2394 = vmatpush.msra.mxu0 0.0
    %2395 = vmatpush.msra.mxu0 %v1635
    %2396 = vmatmul.f32.gmra.mxu0 %v2378
    %v2397 = vpop.f32.mrf.mxu0
    %v2398 = vadd.f32 0.0, %v2397
    %2399 = vdwg.mxu0
    %v2401 = vsel %vm2177, %v2340, 0
    %2403 = vmatpush.msra.mxu0 0.0
    %2404 = vmatpush.msra.mxu0 0.0
    %2405 = vmatpush.msra.mxu0 0.0
    %2406 = vmatpush.msra.mxu0 0.0
    %2407 = vmatpush.msra.mxu0 0.0
    %2408 = vmatpush.msra.mxu0 0.0
    %2409 = vmatpush.msra.mxu0 0.0
    %2410 = vmatpush.msra.mxu0 0.0
    %2411 = vmatpush.msra.mxu0 0.0
    %2412 = vmatpush.msra.mxu0 0.0
    %2413 = vmatpush.msra.mxu0 0.0
    %2414 = vmatpush.msra.mxu0 0.0
    %2415 = vmatpush.msra.mxu0 0.0
    %2416 = vmatpush.msra.mxu0 0.0
    %2417 = vmatpush.msra.mxu0 0.0
    %2418 = vmatpush.msra.mxu0 %v1637
    %2419 = vmatmul.f32.gmra.mxu0 %v2401
    %v2420 = vpop.f32.mrf.mxu0
    %v2421 = vadd.f32 0.0, %v2420
    %2422 = vdwg.mxu0
    %v2424 = vsel %vm2177, %v2341, 0
    %2426 = vmatpush.msra.mxu0 0.0
    %2427 = vmatpush.msra.mxu0 0.0
    %2428 = vmatpush.msra.mxu0 0.0
    %2429 = vmatpush.msra.mxu0 0.0
    %2430 = vmatpush.msra.mxu0 0.0
    %2431 = vmatpush.msra.mxu0 0.0
    %2432 = vmatpush.msra.mxu0 0.0
    %2433 = vmatpush.msra.mxu0 0.0
    %2434 = vmatpush.msra.mxu0 0.0
    %2435 = vmatpush.msra.mxu0 0.0
    %2436 = vmatpush.msra.mxu0 0.0
    %2437 = vmatpush.msra.mxu0 0.0
    %2438 = vmatpush.msra.mxu0 0.0
    %2439 = vmatpush.msra.mxu0 0.0
    %2440 = vmatpush.msra.mxu0 0.0
    %2441 = vmatpush.msra.mxu0 %v1639
    %2442 = vmatmul.f32.gmra.mxu0 %v2424
    %v2443 = vpop.f32.mrf.mxu0
    %v2444 = vadd.f32 0.0, %v2443
    %2445 = vdwg.mxu0
    %v2447 = vsel %vm2177, %v2342, 0
    %2449 = vmatpush.msra.mxu0 0.0
    %2450 = vmatpush.msra.mxu0 0.0
    %2451 = vmatpush.msra.mxu0 0.0
    %2452 = vmatpush.msra.mxu0 0.0
    %2453 = vmatpush.msra.mxu0 0.0
    %2454 = vmatpush.msra.mxu0 0.0
    %2455 = vmatpush.msra.mxu0 0.0
    %2456 = vmatpush.msra.mxu0 0.0
    %2457 = vmatpush.msra.mxu0 0.0
    %2458 = vmatpush.msra.mxu0 0.0
    %2459 = vmatpush.msra.mxu0 0.0
    %2460 = vmatpush.msra.mxu0 0.0
    %2461 = vmatpush.msra.mxu0 0.0
    %2462 = vmatpush.msra.mxu0 0.0
    %2463 = vmatpush.msra.mxu0 0.0
    %2464 = vmatpush.msra.mxu0 %v1641
    %2465 = vmatmul.f32.gmra.mxu0 %v2447
    %v2466 = vpop.f32.mrf.mxu0
    %v2467 = vadd.f32 0.0, %v2466
    %2468 = vdwg.mxu0
    %v2470 = vsel %vm2177, %v2343, 0
    %2472 = vmatpush.msra.mxu0 0.0
    %2473 = vmatpush.msra.mxu0 0.0
    %2474 = vmatpush.msra.mxu0 0.0
    %2475 = vmatpush.msra.mxu0 0.0
    %2476 = vmatpush.msra.mxu0 0.0
    %2477 = vmatpush.msra.mxu0 0.0
    %2478 = vmatpush.msra.mxu0 0.0
    %2479 = vmatpush.msra.mxu0 0.0
    %2480 = vmatpush.msra.mxu0 0.0
    %2481 = vmatpush.msra.mxu0 0.0
    %2482 = vmatpush.msra.mxu0 0.0
    %2483 = vmatpush.msra.mxu0 0.0
    %2484 = vmatpush.msra.mxu0 0.0
    %2485 = vmatpush.msra.mxu0 0.0
    %2486 = vmatpush.msra.mxu0 0.0
    %2487 = vmatpush.msra.mxu0 %v1643
    %2488 = vmatmul.f32.gmra.mxu0 %v2470
    %v2489 = vpop.f32.mrf.mxu0
    %v2490 = vadd.f32 0.0, %v2489
    %2491 = vdwg.mxu0
    %v2493 = vsel %vm2177, %v2344, 0
    %2495 = vmatpush.msra.mxu0 0.0
    %2496 = vmatpush.msra.mxu0 0.0
    %2497 = vmatpush.msra.mxu0 0.0
    %2498 = vmatpush.msra.mxu0 0.0
    %2499 = vmatpush.msra.mxu0 0.0
    %2500 = vmatpush.msra.mxu0 0.0
    %2501 = vmatpush.msra.mxu0 0.0
    %2502 = vmatpush.msra.mxu0 0.0
    %2503 = vmatpush.msra.mxu0 0.0
    %2504 = vmatpush.msra.mxu0 0.0
    %2505 = vmatpush.msra.mxu0 0.0
    %2506 = vmatpush.msra.mxu0 0.0
    %2507 = vmatpush.msra.mxu0 0.0
    %2508 = vmatpush.msra.mxu0 0.0
    %2509 = vmatpush.msra.mxu0 0.0
    %2510 = vmatpush.msra.mxu0 %v1645
    %2511 = vmatmul.f32.gmra.mxu0 %v2493
    %v2512 = vpop.f32.mrf.mxu0
    %v2513 = vadd.f32 0.0, %v2512
    %2514 = vdwg.mxu0
    %v2516 = vsel %vm2177, %v2345, 0
    %2518 = vmatpush.msra.mxu0 0.0
    %2519 = vmatpush.msra.mxu0 0.0
    %2520 = vmatpush.msra.mxu0 0.0
    %2521 = vmatpush.msra.mxu0 0.0
    %2522 = vmatpush.msra.mxu0 0.0
    %2523 = vmatpush.msra.mxu0 0.0
    %2524 = vmatpush.msra.mxu0 0.0
    %2525 = vmatpush.msra.mxu0 0.0
    %2526 = vmatpush.msra.mxu0 0.0
    %2527 = vmatpush.msra.mxu0 0.0
    %2528 = vmatpush.msra.mxu0 0.0
    %2529 = vmatpush.msra.mxu0 0.0
    %2530 = vmatpush.msra.mxu0 0.0
    %2531 = vmatpush.msra.mxu0 0.0
    %2532 = vmatpush.msra.mxu0 0.0
    %2533 = vmatpush.msra.mxu0 %v1647
    %2534 = vmatmul.f32.gmra.mxu0 %v2516
    %v2535 = vpop.f32.mrf.mxu0
    %v2536 = vadd.f32 0.0, %v2535
    %2537 = vdwg.mxu0
    %v2539 = vsel %vm2177, %v2346, 0
    %2541 = vmatpush.msra.mxu0 0.0
    %2542 = vmatpush.msra.mxu0 0.0
    %2543 = vmatpush.msra.mxu0 0.0
    %2544 = vmatpush.msra.mxu0 0.0
    %2545 = vmatpush.msra.mxu0 0.0
    %2546 = vmatpush.msra.mxu0 0.0
    %2547 = vmatpush.msra.mxu0 0.0
    %2548 = vmatpush.msra.mxu0 0.0
    %2549 = vmatpush.msra.mxu0 0.0
    %2550 = vmatpush.msra.mxu0 0.0
    %2551 = vmatpush.msra.mxu0 0.0
    %2552 = vmatpush.msra.mxu0 0.0
    %2553 = vmatpush.msra.mxu0 0.0
    %2554 = vmatpush.msra.mxu0 0.0
    %2555 = vmatpush.msra.mxu0 0.0
    %2556 = vmatpush.msra.mxu0 %v1745
    %2557 = vmatmul.f32.gmra.mxu0 %v2539
    %v2558 = vpop.f32.mrf.mxu0
    %v2559 = vadd.f32 0.0, %v2558
    %2560 = vdwg.mxu0
    %v2562 = vsel %vm2177, %v2347, 0
    %2564 = vmatpush.msra.mxu0 0.0
    %2565 = vmatpush.msra.mxu0 0.0
    %2566 = vmatpush.msra.mxu0 0.0
    %2567 = vmatpush.msra.mxu0 0.0
    %2568 = vmatpush.msra.mxu0 0.0
    %2569 = vmatpush.msra.mxu0 0.0
    %2570 = vmatpush.msra.mxu0 0.0
    %2571 = vmatpush.msra.mxu0 0.0
    %2572 = vmatpush.msra.mxu0 0.0
    %2573 = vmatpush.msra.mxu0 0.0
    %2574 = vmatpush.msra.mxu0 0.0
    %2575 = vmatpush.msra.mxu0 0.0
    %2576 = vmatpush.msra.mxu0 0.0
    %2577 = vmatpush.msra.mxu0 0.0
    %2578 = vmatpush.msra.mxu0 0.0
    %2579 = vmatpush.msra.mxu0 %v1747
    %2580 = vmatmul.f32.gmra.mxu0 %v2562
    %v2581 = vpop.f32.mrf.mxu0
    %v2582 = vadd.f32 0.0, %v2581
    %2583 = vdwg.mxu0
    %v2585 = vsel %vm2177, %v2348, 0
    %2587 = vmatpush.msra.mxu0 0.0
    %2588 = vmatpush.msra.mxu0 0.0
    %2589 = vmatpush.msra.mxu0 0.0
    %2590 = vmatpush.msra.mxu0 0.0
    %2591 = vmatpush.msra.mxu0 0.0
    %2592 = vmatpush.msra.mxu0 0.0
    %2593 = vmatpush.msra.mxu0 0.0
    %2594 = vmatpush.msra.mxu0 0.0
    %2595 = vmatpush.msra.mxu0 0.0
    %2596 = vmatpush.msra.mxu0 0.0
    %2597 = vmatpush.msra.mxu0 0.0
    %2598 = vmatpush.msra.mxu0 0.0
    %2599 = vmatpush.msra.mxu0 0.0
    %2600 = vmatpush.msra.mxu0 0.0
    %2601 = vmatpush.msra.mxu0 0.0
    %2602 = vmatpush.msra.mxu0 %v1749
    %2603 = vmatmul.f32.gmra.mxu0 %v2585
    %v2604 = vpop.f32.mrf.mxu0
    %v2605 = vadd.f32 0.0, %v2604
    %2606 = vdwg.mxu0
    %v2608 = vsel %vm2177, %v2349, 0
    %2610 = vmatpush.msra.mxu0 0.0
    %2611 = vmatpush.msra.mxu0 0.0
    %2612 = vmatpush.msra.mxu0 0.0
    %2613 = vmatpush.msra.mxu0 0.0
    %2614 = vmatpush.msra.mxu0 0.0
    %2615 = vmatpush.msra.mxu0 0.0
    %2616 = vmatpush.msra.mxu0 0.0
    %2617 = vmatpush.msra.mxu0 0.0
    %2618 = vmatpush.msra.mxu0 0.0
    %2619 = vmatpush.msra.mxu0 0.0
    %2620 = vmatpush.msra.mxu0 0.0
    %2621 = vmatpush.msra.mxu0 0.0
    %2622 = vmatpush.msra.mxu0 0.0
    %2623 = vmatpush.msra.mxu0 0.0
    %2624 = vmatpush.msra.mxu0 0.0
    %2625 = vmatpush.msra.mxu0 %v1751
    %2626 = vmatmul.f32.gmra.mxu0 %v2608
    %v2627 = vpop.f32.mrf.mxu0
    %v2628 = vadd.f32 0.0, %v2627
    %2629 = vdwg.mxu0
    %v2631 = vsel %vm2177, %v2350, 0
    %2633 = vmatpush.msra.mxu0 0.0
    %2634 = vmatpush.msra.mxu0 0.0
    %2635 = vmatpush.msra.mxu0 0.0
    %2636 = vmatpush.msra.mxu0 0.0
    %2637 = vmatpush.msra.mxu0 0.0
    %2638 = vmatpush.msra.mxu0 0.0
    %2639 = vmatpush.msra.mxu0 0.0
    %2640 = vmatpush.msra.mxu0 0.0
    %2641 = vmatpush.msra.mxu0 0.0
    %2642 = vmatpush.msra.mxu0 0.0
    %2643 = vmatpush.msra.mxu0 0.0
    %2644 = vmatpush.msra.mxu0 0.0
    %2645 = vmatpush.msra.mxu0 0.0
    %2646 = vmatpush.msra.mxu0 0.0
    %2647 = vmatpush.msra.mxu0 0.0
    %2648 = vmatpush.msra.mxu0 %v1753
    %2649 = vmatmul.f32.gmra.mxu0 %v2631
    %v2650 = vpop.f32.mrf.mxu0
    %v2651 = vadd.f32 0.0, %v2650
    %2652 = vdwg.mxu0
    %v2654 = vsel %vm2177, %v2351, 0
    %2656 = vmatpush.msra.mxu0 0.0
    %2657 = vmatpush.msra.mxu0 0.0
    %2658 = vmatpush.msra.mxu0 0.0
    %2659 = vmatpush.msra.mxu0 0.0
    %2660 = vmatpush.msra.mxu0 0.0
    %2661 = vmatpush.msra.mxu0 0.0
    %2662 = vmatpush.msra.mxu0 0.0
    %2663 = vmatpush.msra.mxu0 0.0
    %2664 = vmatpush.msra.mxu0 0.0
    %2665 = vmatpush.msra.mxu0 0.0
    %2666 = vmatpush.msra.mxu0 0.0
    %2667 = vmatpush.msra.mxu0 0.0
    %2668 = vmatpush.msra.mxu0 0.0
    %2669 = vmatpush.msra.mxu0 0.0
    %2670 = vmatpush.msra.mxu0 0.0
    %2671 = vmatpush.msra.mxu0 %v1755
    %2672 = vmatmul.f32.gmra.mxu0 %v2654
    %v2673 = vpop.f32.mrf.mxu0
    %v2674 = vadd.f32 0.0, %v2673
    %2675 = vdwg.mxu0
    %v2677 = vsel %vm2177, %v2352, 0
    %2679 = vmatpush.msra.mxu0 0.0
    %2680 = vmatpush.msra.mxu0 0.0
    %2681 = vmatpush.msra.mxu0 0.0
    %2682 = vmatpush.msra.mxu0 0.0
    %2683 = vmatpush.msra.mxu0 0.0
    %2684 = vmatpush.msra.mxu0 0.0
    %2685 = vmatpush.msra.mxu0 0.0
    %2686 = vmatpush.msra.mxu0 0.0
    %2687 = vmatpush.msra.mxu0 0.0
    %2688 = vmatpush.msra.mxu0 0.0
    %2689 = vmatpush.msra.mxu0 0.0
    %2690 = vmatpush.msra.mxu0 0.0
    %2691 = vmatpush.msra.mxu0 0.0
    %2692 = vmatpush.msra.mxu0 0.0
    %2693 = vmatpush.msra.mxu0 0.0
    %2694 = vmatpush.msra.mxu0 %v1757
    %2695 = vmatmul.f32.gmra.mxu0 %v2677
    %v2696 = vpop.f32.mrf.mxu0
    %v2697 = vadd.f32 0.0, %v2696
    %2698 = vdwg.mxu0
    %v2700 = vsel %vm2177, %v2353, 0
    %2702 = vmatpush.msra.mxu0 0.0
    %2703 = vmatpush.msra.mxu0 0.0
    %2704 = vmatpush.msra.mxu0 0.0
    %2705 = vmatpush.msra.mxu0 0.0
    %2706 = vmatpush.msra.mxu0 0.0
    %2707 = vmatpush.msra.mxu0 0.0
    %2708 = vmatpush.msra.mxu0 0.0
    %2709 = vmatpush.msra.mxu0 0.0
    %2710 = vmatpush.msra.mxu0 0.0
    %2711 = vmatpush.msra.mxu0 0.0
    %2712 = vmatpush.msra.mxu0 0.0
    %2713 = vmatpush.msra.mxu0 0.0
    %2714 = vmatpush.msra.mxu0 0.0
    %2715 = vmatpush.msra.mxu0 0.0
    %2716 = vmatpush.msra.mxu0 0.0
    %2717 = vmatpush.msra.mxu0 %v1759
    %2718 = vmatmul.f32.gmra.mxu0 %v2700
    %v2719 = vpop.f32.mrf.mxu0
    %v2720 = vadd.f32 0.0, %v2719
    %2721 = vdwg.mxu0
    %v2722 = vrot.slane %v2421, 4
    %v2723 = vsel %vm328, %v2722, %v2375
    %v2724 = vrot.slane %v2375, 4
    %v2725 = vsel %vm328, %v2421, %v2724
    %v2727 = vunpack.c.l.s4 1983009808
    %v2728 = vunpack.c.0.s8 %v2727
    %v2729 = vperm.slane %v2723, %v2728
    %v2731 = vunpack.c.l.s4 1983009808
    %v2732 = vunpack.c.0.s8 %v2731
    %v2733 = vperm.slane %v2725, %v2732
    %v2734 = vrot.slane %v2444, 4
    %v2735 = vsel %vm328, %v2734, %v2398
    %v2736 = vrot.slane %v2398, 4
    %v2737 = vsel %vm328, %v2444, %v2736
    %v2739 = vunpack.c.l.s4 1983009808
    %v2740 = vunpack.c.0.s8 %v2739
    %v2741 = vperm.slane %v2735, %v2740
    %v2743 = vunpack.c.l.s4 1983009808
    %v2744 = vunpack.c.0.s8 %v2743
    %v2745 = vperm.slane %v2737, %v2744
    %v2746 = vrot.slane %v2513, 4
    %v2747 = vsel %vm328, %v2746, %v2467
    %v2748 = vrot.slane %v2467, 4
    %v2749 = vsel %vm328, %v2513, %v2748
    %v2751 = vunpack.c.l.s4 1983009808
    %v2752 = vunpack.c.0.s8 %v2751
    %v2753 = vperm.slane %v2747, %v2752
    %v2755 = vunpack.c.l.s4 1983009808
    %v2756 = vunpack.c.0.s8 %v2755
    %v2757 = vperm.slane %v2749, %v2756
    %v2758 = vrot.slane %v2536, 4
    %v2759 = vsel %vm328, %v2758, %v2490
    %v2760 = vrot.slane %v2490, 4
    %v2761 = vsel %vm328, %v2536, %v2760
    %v2763 = vunpack.c.l.s4 1983009808
    %v2764 = vunpack.c.0.s8 %v2763
    %v2765 = vperm.slane %v2759, %v2764
    %v2767 = vunpack.c.l.s4 1983009808
    %v2768 = vunpack.c.0.s8 %v2767
    %v2769 = vperm.slane %v2761, %v2768
    %v2770 = vrot.slane %v2741, 4
    %v2771 = vsel %vm328, %v2770, %v2729
    %v2772 = vrot.slane %v2729, 4
    %v2773 = vsel %vm328, %v2741, %v2772
    %v2775 = vunpack.c.l.s4 1934713408
    %v2776 = vunpack.c.0.s8 %v2775
    %v2777 = vperm.slane %v2771, %v2776
    %v2779 = vunpack.c.l.s4 1934713408
    %v2780 = vunpack.c.0.s8 %v2779
    %v2781 = vperm.slane %v2773, %v2780
    %v2782 = vrot.slane %v2745, 4
    %v2783 = vsel %vm328, %v2782, %v2733
    %v2784 = vrot.slane %v2733, 4
    %v2785 = vsel %vm328, %v2745, %v2784
    %v2787 = vunpack.c.l.s4 1934713408
    %v2788 = vunpack.c.0.s8 %v2787
    %v2789 = vperm.slane %v2783, %v2788
    %v2791 = vunpack.c.l.s4 1934713408
    %v2792 = vunpack.c.0.s8 %v2791
    %v2793 = vperm.slane %v2785, %v2792
    %v2794 = vrot.slane %v2765, 4
    %v2795 = vsel %vm328, %v2794, %v2753
    %v2796 = vrot.slane %v2753, 4
    %v2797 = vsel %vm328, %v2765, %v2796
    %v2799 = vunpack.c.l.s4 1934713408
    %v2800 = vunpack.c.0.s8 %v2799
    %v2801 = vperm.slane %v2795, %v2800
    %v2803 = vunpack.c.l.s4 1934713408
    %v2804 = vunpack.c.0.s8 %v2803
    %v2805 = vperm.slane %v2797, %v2804
    %v2806 = vrot.slane %v2769, 4
    %v2807 = vsel %vm328, %v2806, %v2757
    %v2808 = vrot.slane %v2757, 4
    %v2809 = vsel %vm328, %v2769, %v2808
    %v2811 = vunpack.c.l.s4 1934713408
    %v2812 = vunpack.c.0.s8 %v2811
    %v2813 = vperm.slane %v2807, %v2812
    %v2815 = vunpack.c.l.s4 1934713408
    %v2816 = vunpack.c.0.s8 %v2815
    %v2817 = vperm.slane %v2809, %v2816
    %v2818 = vrot.slane %v2801, 4
    %v2819 = vsel %vm328, %v2818, %v2777
    %v2820 = vrot.slane %v2777, 4
    %v2821 = vsel %vm328, %v2801, %v2820
    %v2822 = vrot.slane %v2805, 4
    %v2823 = vsel %vm328, %v2822, %v2781
    %v2824 = vrot.slane %v2781, 4
    %v2825 = vsel %vm328, %v2805, %v2824
    %v2826 = vrot.slane %v2813, 4
    %v2827 = vsel %vm328, %v2826, %v2789
    %v2828 = vrot.slane %v2789, 4
    %v2829 = vsel %vm328, %v2813, %v2828
    %v2830 = vrot.slane %v2817, 4
    %v2831 = vsel %vm328, %v2830, %v2793
    %v2832 = vrot.slane %v2793, 4
    %v2833 = vsel %vm328, %v2817, %v2832
    %v2834 = vrot.slane %v2605, 4
    %v2835 = vsel %vm328, %v2834, %v2559
    %v2836 = vrot.slane %v2559, 4
    %v2837 = vsel %vm328, %v2605, %v2836
    %v2839 = vunpack.c.l.s4 1983009808
    %v2840 = vunpack.c.0.s8 %v2839
    %v2841 = vperm.slane %v2835, %v2840
    %v2843 = vunpack.c.l.s4 1983009808
    %v2844 = vunpack.c.0.s8 %v2843
    %v2845 = vperm.slane %v2837, %v2844
    %v2846 = vrot.slane %v2628, 4
    %v2847 = vsel %vm328, %v2846, %v2582
    %v2848 = vrot.slane %v2582, 4
    %v2849 = vsel %vm328, %v2628, %v2848
    %v2851 = vunpack.c.l.s4 1983009808
    %v2852 = vunpack.c.0.s8 %v2851
    %v2853 = vperm.slane %v2847, %v2852
    %v2855 = vunpack.c.l.s4 1983009808
    %v2856 = vunpack.c.0.s8 %v2855
    %v2857 = vperm.slane %v2849, %v2856
    %v2858 = vrot.slane %v2697, 4
    %v2859 = vsel %vm328, %v2858, %v2651
    %v2860 = vrot.slane %v2651, 4
    %v2861 = vsel %vm328, %v2697, %v2860
    %v2863 = vunpack.c.l.s4 1983009808
    %v2864 = vunpack.c.0.s8 %v2863
    %v2865 = vperm.slane %v2859, %v2864
    %v2867 = vunpack.c.l.s4 1983009808
    %v2868 = vunpack.c.0.s8 %v2867
    %v2869 = vperm.slane %v2861, %v2868
    %v2870 = vrot.slane %v2720, 4
    %v2871 = vsel %vm328, %v2870, %v2674
    %v2872 = vrot.slane %v2674, 4
    %v2873 = vsel %vm328, %v2720, %v2872
    %v2875 = vunpack.c.l.s4 1983009808
    %v2876 = vunpack.c.0.s8 %v2875
    %v2877 = vperm.slane %v2871, %v2876
    %v2879 = vunpack.c.l.s4 1983009808
    %v2880 = vunpack.c.0.s8 %v2879
    %v2881 = vperm.slane %v2873, %v2880
    %v2882 = vrot.slane %v2853, 4
    %v2883 = vsel %vm328, %v2882, %v2841
    %v2884 = vrot.slane %v2841, 4
    %v2885 = vsel %vm328, %v2853, %v2884
    %v2887 = vunpack.c.l.s4 1934713408
    %v2888 = vunpack.c.0.s8 %v2887
    %v2889 = vperm.slane %v2883, %v2888
    %v2891 = vunpack.c.l.s4 1934713408
    %v2892 = vunpack.c.0.s8 %v2891
    %v2893 = vperm.slane %v2885, %v2892
    %v2894 = vrot.slane %v2857, 4
    %v2895 = vsel %vm328, %v2894, %v2845
    %v2896 = vrot.slane %v2845, 4
    %v2897 = vsel %vm328, %v2857, %v2896
    %v2899 = vunpack.c.l.s4 1934713408
    %v2900 = vunpack.c.0.s8 %v2899
    %v2901 = vperm.slane %v2895, %v2900
    %v2903 = vunpack.c.l.s4 1934713408
    %v2904 = vunpack.c.0.s8 %v2903
    %v2905 = vperm.slane %v2897, %v2904
    %v2906 = vrot.slane %v2877, 4
    %v2907 = vsel %vm328, %v2906, %v2865
    %v2908 = vrot.slane %v2865, 4
    %v2909 = vsel %vm328, %v2877, %v2908
    %v2911 = vunpack.c.l.s4 1934713408
    %v2912 = vunpack.c.0.s8 %v2911
    %v2913 = vperm.slane %v2907, %v2912
    %v2915 = vunpack.c.l.s4 1934713408
    %v2916 = vunpack.c.0.s8 %v2915
    %v2917 = vperm.slane %v2909, %v2916
    %v2918 = vrot.slane %v2881, 4
    %v2919 = vsel %vm328, %v2918, %v2869
    %v2920 = vrot.slane %v2869, 4
    %v2921 = vsel %vm328, %v2881, %v2920
    %v2923 = vunpack.c.l.s4 1934713408
    %v2924 = vunpack.c.0.s8 %v2923
    %v2925 = vperm.slane %v2919, %v2924
    %v2927 = vunpack.c.l.s4 1934713408
    %v2928 = vunpack.c.0.s8 %v2927
    %v2929 = vperm.slane %v2921, %v2928
    %v2930 = vrot.slane %v2913, 4
    %v2931 = vsel %vm328, %v2930, %v2889
    %v2932 = vrot.slane %v2889, 4
    %v2933 = vsel %vm328, %v2913, %v2932
    %v2934 = vrot.slane %v2917, 4
    %v2935 = vsel %vm328, %v2934, %v2893
    %v2936 = vrot.slane %v2893, 4
    %v2937 = vsel %vm328, %v2917, %v2936
    %v2938 = vrot.slane %v2925, 4
    %v2939 = vsel %vm328, %v2938, %v2901
    %v2940 = vrot.slane %v2901, 4
    %v2941 = vsel %vm328, %v2925, %v2940
    %v2942 = vrot.slane %v2929, 4
    %v2943 = vsel %vm328, %v2942, %v2905
    %v2944 = vrot.slane %v2905, 4
    %v2945 = vsel %vm328, %v2929, %v2944
    %v2946 = vrot.slane %v2823, 4
    %v2947 = vsel %vm328, %v2946, %v2819
    %v2948 = vrot.slane %v2819, 4
    %v2949 = vsel %vm328, %v2823, %v2948
    %v2951 = vunpack.c.l.s4 1983009808
    %v2952 = vunpack.c.0.s8 %v2951
    %v2953 = vperm.slane %v2947, %v2952
    %v2955 = vunpack.c.l.s4 1983009808
    %v2956 = vunpack.c.0.s8 %v2955
    %v2957 = vperm.slane %v2949, %v2956
    %v2958 = vrot.slane %v2825, 4
    %v2959 = vsel %vm328, %v2958, %v2821
    %v2960 = vrot.slane %v2821, 4
    %v2961 = vsel %vm328, %v2825, %v2960
    %v2963 = vunpack.c.l.s4 1983009808
    %v2964 = vunpack.c.0.s8 %v2963
    %v2965 = vperm.slane %v2959, %v2964
    %v2967 = vunpack.c.l.s4 1983009808
    %v2968 = vunpack.c.0.s8 %v2967
    %v2969 = vperm.slane %v2961, %v2968
    %v2970 = vrot.slane %v2831, 4
    %v2971 = vsel %vm328, %v2970, %v2827
    %v2972 = vrot.slane %v2827, 4
    %v2973 = vsel %vm328, %v2831, %v2972
    %v2975 = vunpack.c.l.s4 1983009808
    %v2976 = vunpack.c.0.s8 %v2975
    %v2977 = vperm.slane %v2971, %v2976
    %v2979 = vunpack.c.l.s4 1983009808
    %v2980 = vunpack.c.0.s8 %v2979
    %v2981 = vperm.slane %v2973, %v2980
    %v2982 = vrot.slane %v2833, 4
    %v2983 = vsel %vm328, %v2982, %v2829
    %v2984 = vrot.slane %v2829, 4
    %v2985 = vsel %vm328, %v2833, %v2984
    %v2987 = vunpack.c.l.s4 1983009808
    %v2988 = vunpack.c.0.s8 %v2987
    %v2989 = vperm.slane %v2983, %v2988
    %v2991 = vunpack.c.l.s4 1983009808
    %v2992 = vunpack.c.0.s8 %v2991
    %v2993 = vperm.slane %v2985, %v2992
    %v2994 = vrot.slane %v2965, 4
    %v2995 = vsel %vm328, %v2994, %v2953
    %v2996 = vrot.slane %v2953, 4
    %v2997 = vsel %vm328, %v2965, %v2996
    %v2999 = vunpack.c.l.s4 1934713408
    %v3000 = vunpack.c.0.s8 %v2999
    %v3001 = vperm.slane %v2995, %v3000
    %v3003 = vunpack.c.l.s4 1934713408
    %v3004 = vunpack.c.0.s8 %v3003
    %v3005 = vperm.slane %v2997, %v3004
    %v3006 = vrot.slane %v2969, 4
    %v3007 = vsel %vm328, %v3006, %v2957
    %v3008 = vrot.slane %v2957, 4
    %v3009 = vsel %vm328, %v2969, %v3008
    %v3011 = vunpack.c.l.s4 1934713408
    %v3012 = vunpack.c.0.s8 %v3011
    %v3013 = vperm.slane %v3007, %v3012
    %v3015 = vunpack.c.l.s4 1934713408
    %v3016 = vunpack.c.0.s8 %v3015
    %v3017 = vperm.slane %v3009, %v3016
    %v3018 = vrot.slane %v2989, 4
    %v3019 = vsel %vm328, %v3018, %v2977
    %v3020 = vrot.slane %v2977, 4
    %v3021 = vsel %vm328, %v2989, %v3020
    %v3023 = vunpack.c.l.s4 1934713408
    %v3024 = vunpack.c.0.s8 %v3023
    %v3025 = vperm.slane %v3019, %v3024
    %v3027 = vunpack.c.l.s4 1934713408
    %v3028 = vunpack.c.0.s8 %v3027
    %v3029 = vperm.slane %v3021, %v3028
    %v3030 = vrot.slane %v2993, 4
    %v3031 = vsel %vm328, %v3030, %v2981
    %v3032 = vrot.slane %v2981, 4
    %v3033 = vsel %vm328, %v2993, %v3032
    %v3035 = vunpack.c.l.s4 1934713408
    %v3036 = vunpack.c.0.s8 %v3035
    %v3037 = vperm.slane %v3031, %v3036
    %v3039 = vunpack.c.l.s4 1934713408
    %v3040 = vunpack.c.0.s8 %v3039
    %v3041 = vperm.slane %v3033, %v3040
    %v3042 = vrot.slane %v3025, 4
    %v3043 = vsel %vm328, %v3042, %v3001
    %v3044 = vrot.slane %v3001, 4
    %v3045 = vsel %vm328, %v3025, %v3044
    %v3046 = vrot.slane %v3029, 4
    %v3047 = vsel %vm328, %v3046, %v3005
    %v3048 = vrot.slane %v3005, 4
    %v3049 = vsel %vm328, %v3029, %v3048
    %v3050 = vrot.slane %v3037, 4
    %v3051 = vsel %vm328, %v3050, %v3013
    %v3052 = vrot.slane %v3013, 4
    %v3053 = vsel %vm328, %v3037, %v3052
    %v3054 = vrot.slane %v3041, 4
    %v3055 = vsel %vm328, %v3054, %v3017
    %v3056 = vrot.slane %v3017, 4
    %v3057 = vsel %vm328, %v3041, %v3056
    %v3058 = vrot.slane %v2935, 4
    %v3059 = vsel %vm328, %v3058, %v2931
    %v3060 = vrot.slane %v2931, 4
    %v3061 = vsel %vm328, %v2935, %v3060
    %v3063 = vunpack.c.l.s4 1983009808
    %v3064 = vunpack.c.0.s8 %v3063
    %v3065 = vperm.slane %v3059, %v3064
    %v3067 = vunpack.c.l.s4 1983009808
    %v3068 = vunpack.c.0.s8 %v3067
    %v3069 = vperm.slane %v3061, %v3068
    %v3070 = vrot.slane %v2937, 4
    %v3071 = vsel %vm328, %v3070, %v2933
    %v3072 = vrot.slane %v2933, 4
    %v3073 = vsel %vm328, %v2937, %v3072
    %v3075 = vunpack.c.l.s4 1983009808
    %v3076 = vunpack.c.0.s8 %v3075
    %v3077 = vperm.slane %v3071, %v3076
    %v3079 = vunpack.c.l.s4 1983009808
    %v3080 = vunpack.c.0.s8 %v3079
    %v3081 = vperm.slane %v3073, %v3080
    %v3082 = vrot.slane %v2943, 4
    %v3083 = vsel %vm328, %v3082, %v2939
    %v3084 = vrot.slane %v2939, 4
    %v3085 = vsel %vm328, %v2943, %v3084
    %v3087 = vunpack.c.l.s4 1983009808
    %v3088 = vunpack.c.0.s8 %v3087
    %v3089 = vperm.slane %v3083, %v3088
    %v3091 = vunpack.c.l.s4 1983009808
    %v3092 = vunpack.c.0.s8 %v3091
    %v3093 = vperm.slane %v3085, %v3092
    %v3094 = vrot.slane %v2945, 4
    %v3095 = vsel %vm328, %v3094, %v2941
    %v3096 = vrot.slane %v2941, 4
    %v3097 = vsel %vm328, %v2945, %v3096
    %v3099 = vunpack.c.l.s4 1983009808
    %v3100 = vunpack.c.0.s8 %v3099
    %v3101 = vperm.slane %v3095, %v3100
    %v3103 = vunpack.c.l.s4 1983009808
    %v3104 = vunpack.c.0.s8 %v3103
    %v3105 = vperm.slane %v3097, %v3104
    %v3106 = vrot.slane %v3077, 4
    %v3107 = vsel %vm328, %v3106, %v3065
    %v3108 = vrot.slane %v3065, 4
    %v3109 = vsel %vm328, %v3077, %v3108
    %v3111 = vunpack.c.l.s4 1934713408
    %v3112 = vunpack.c.0.s8 %v3111
    %v3113 = vperm.slane %v3107, %v3112
    %v3115 = vunpack.c.l.s4 1934713408
    %v3116 = vunpack.c.0.s8 %v3115
    %v3117 = vperm.slane %v3109, %v3116
    %v3118 = vrot.slane %v3081, 4
    %v3119 = vsel %vm328, %v3118, %v3069
    %v3120 = vrot.slane %v3069, 4
    %v3121 = vsel %vm328, %v3081, %v3120
    %v3123 = vunpack.c.l.s4 1934713408
    %v3124 = vunpack.c.0.s8 %v3123
    %v3125 = vperm.slane %v3119, %v3124
    %v3127 = vunpack.c.l.s4 1934713408
    %v3128 = vunpack.c.0.s8 %v3127
    %v3129 = vperm.slane %v3121, %v3128
    %v3130 = vrot.slane %v3101, 4
    %v3131 = vsel %vm328, %v3130, %v3089
    %v3132 = vrot.slane %v3089, 4
    %v3133 = vsel %vm328, %v3101, %v3132
    %v3135 = vunpack.c.l.s4 1934713408
    %v3136 = vunpack.c.0.s8 %v3135
    %v3137 = vperm.slane %v3131, %v3136
    %v3139 = vunpack.c.l.s4 1934713408
    %v3140 = vunpack.c.0.s8 %v3139
    %v3141 = vperm.slane %v3133, %v3140
    %v3142 = vrot.slane %v3105, 4
    %v3143 = vsel %vm328, %v3142, %v3093
    %v3144 = vrot.slane %v3093, 4
    %v3145 = vsel %vm328, %v3105, %v3144
    %v3147 = vunpack.c.l.s4 1934713408
    %v3148 = vunpack.c.0.s8 %v3147
    %v3149 = vperm.slane %v3143, %v3148
    %v3151 = vunpack.c.l.s4 1934713408
    %v3152 = vunpack.c.0.s8 %v3151
    %v3153 = vperm.slane %v3145, %v3152
    %v3154 = vrot.slane %v3137, 4
    %v3155 = vsel %vm328, %v3154, %v3113
    %v3156 = vrot.slane %v3113, 4
    %v3157 = vsel %vm328, %v3137, %v3156
    %v3158 = vrot.slane %v3141, 4
    %v3159 = vsel %vm328, %v3158, %v3117
    %v3160 = vrot.slane %v3117, 4
    %v3161 = vsel %vm328, %v3141, %v3160
    %v3162 = vrot.slane %v3149, 4
    %v3163 = vsel %vm328, %v3162, %v3125
    %v3164 = vrot.slane %v3125, 4
    %v3165 = vsel %vm328, %v3149, %v3164
    %v3166 = vrot.slane %v3153, 4
    %v3167 = vsel %vm328, %v3166, %v3129
    %v3168 = vrot.slane %v3129, 4
    %v3169 = vsel %vm328, %v3153, %v3168
    %3172 = vrot.lane.b32.xlu0 %v3045, 4
    %v3173 = vpop.permute.xlu0 %3172
    %3174 = vrot.lane.b32.xlu0 %v3157, 4
    %v3175 = vpop.permute.xlu0 %3174
    %3180 = vrot.lane.b32.xlu0 %v3047, 8
    %v3181 = vpop.permute.xlu0 %3180
    %3182 = vrot.lane.b32.xlu0 %v3159, 8
    %v3183 = vpop.permute.xlu0 %3182
    %3188 = vrot.lane.b32.xlu0 %v3049, 12
    %v3189 = vpop.permute.xlu0 %3188
    %3190 = vrot.lane.b32.xlu0 %v3161, 12
    %v3191 = vpop.permute.xlu0 %3190
    %3196 = vrot.lane.b32.xlu0 %v3051, 16
    %v3197 = vpop.permute.xlu0 %3196
    %3198 = vrot.lane.b32.xlu0 %v3163, 16
    %v3199 = vpop.permute.xlu0 %3198
    %3204 = vrot.lane.b32.xlu0 %v3053, 20
    %v3205 = vpop.permute.xlu0 %3204
    %3206 = vrot.lane.b32.xlu0 %v3165, 20
    %v3207 = vpop.permute.xlu0 %3206
    %3212 = vrot.lane.b32.xlu0 %v3055, 24
    %v3213 = vpop.permute.xlu0 %3212
    %3214 = vrot.lane.b32.xlu0 %v3167, 24
    %v3215 = vpop.permute.xlu0 %3214
    %3220 = vrot.lane.b32.xlu0 %v3057, 28
    %v3221 = vpop.permute.xlu0 %3220
    %3222 = vrot.lane.b32.xlu0 %v3169, 28
    %v3223 = vpop.permute.xlu0 %3222
    %v3226 = vsel %vm1760, %v3043, %v3173
    %v3227 = vsel %vm1760, %v3155, %v3175
    %v3228 = vsel %vm2177, %v3226, %v3181
    %v3229 = vsel %vm2177, %v3227, %v3183
    %vm3230 = vcmask 97280
    %v3231 = vsel %vm3230, %v3228, %v3189
    %v3232 = vsel %vm3230, %v3229, %v3191
    %vm3233 = vcmask 130048
    %v3234 = vsel %vm3233, %v3231, %v3197
    %v3235 = vsel %vm3233, %v3232, %v3199
    %vm3236 = vcmask 162816
    %v3237 = vsel %vm3236, %v3234, %v3205
    %v3238 = vsel %vm3236, %v3235, %v3207
    %vm3239 = vcmask 195584
    %v3240 = vsel %vm3239, %v3237, %v3213
    %v3241 = vsel %vm3239, %v3238, %v3215
    %vm3242 = vcmask 228352
    %v3243 = vsel %vm3242, %v3240, %v3221
    %v3244 = vsel %vm3242, %v3241, %v3223
    %v3245 = vld [vmem:[#allocation7] sm:$0xff]
    %v3246 = vld [vmem:[#allocation7 + $0x8] sm:$0xff]
    %v3247 = vld [vmem:[#allocation7 + $0x10] sm:$0xff]
    %v3248 = vld [vmem:[#allocation7 + $0x18] sm:$0xff]
    %v3249 = vld [vmem:[%s10] sm:$0x1]
    %v3251 = vperm.slane %v3249, 0
    %v3254 = vsel %vm122, %v3243, 0
    %v3257 = vsel %vm122, %v3244, 0
    %3259 = vmatpush.msra.mxu0 0.0
    %3260 = vmatpush.msra.mxu0 0.0
    %3261 = vmatpush.msra.mxu0 0.0
    %3262 = vmatpush.msra.mxu0 0.0
    %3263 = vmatpush.msra.mxu0 0.0
    %3264 = vmatpush.msra.mxu0 0.0
    %3265 = vmatpush.msra.mxu0 0.0
    %3266 = vmatpush.msra.mxu0 0.0
    %3267 = vmatpush.msra.mxu0 0.0
    %3268 = vmatpush.msra.mxu0 0.0
    %3269 = vmatpush.msra.mxu0 0.0
    %3270 = vmatpush.msra.mxu0 0.0
    %3271 = vmatpush.msra.mxu0 %v3248
    %3272 = vmatpush.msra.mxu0 %v3247
    %3273 = vmatpush.msra.mxu0 %v3246
    %3274 = vmatpush.msra.mxu0 %v3245
    %3275 = vmatmul.f32.gmra.mxu0 %v3254
    %v3276 = vpop.f32.mrf.mxu0
    %v3277 = vadd.f32 %v3251, %v3276
    %3278 = vmatmul.f32.gmra.mxu0 %v3257
    %v3279 = vpop.f32.mrf.mxu0
    %v3280 = vadd.f32 %v3251, %v3279
    %3281 = vdwg.mxu0
    %v3282 = vadd.f32 %v3277, %v118
    %v3283 = vadd.f32 %v3280, %v119
    %v3284 = vld [vmem:[%s11] sm:$0x1]
    %v3285 = vld [vmem:[%s12] sm:$0x1]
    %v3286 = vsel %vm122, %v3282, 0.0
    %3287 = vadd.xlane.f32.xlu0 %v3286
    %v3288 = vpop.xlane.xlu0 %3287
    %v3289 = vsel %vm122, %v3283, 0.0
    %3290 = vadd.xlane.f32.xlu0 %v3289
    %v3291 = vpop.xlane.xlu0 %3290
    %v3292 = vmul.f32 %v3288, %v135
    %v3293 = vmul.f32 %v3291, %v135
    %v3294 = vsub.f32 %v3282, %v3292
    %v3295 = vsub.f32 %v3283, %v3293
    %v3296 = vmul.f32 %v3294, %v3294
    %v3297 = vmul.f32 %v3295, %v3295
    %v3298 = vsel %vm122, %v3296, 0.0
    %3299 = vadd.xlane.f32.xlu0 %v3298
    %v3300 = vpop.xlane.xlu0 %3299
    %v3301 = vsel %vm122, %v3297, 0.0
    %3302 = vadd.xlane.f32.xlu0 %v3301
    %v3303 = vpop.xlane.xlu0 %3302
    %v3304 = vmul.f32 %v3300, %v135
    %v3305 = vmul.f32 %v3303, %v135
    %v3306 = vadd.f32 %v3304, 1e-05
    %v3307 = vadd.f32 %v3305, 1e-05
    %v3308 = vrsqrt.pop %v3306
    %v3309 = vmul.f32 %v3308, %v3306
    %v3310 = vmul.f32 %v3309, %v3308
    %v3311 = vmul.f32 0.5, %v3310
    %v3312 = vsub.f32 1.5, %v3311
    %v3313 = vmul.f32 %v3308, %v3312
    %vm3314 = vweird.f32 %v3306
    %vm3315 = vweird.f32 %v3308
    %vm3316 = vmor %vm3314, %vm3315
    %v3317 = vsel %vm3316, %v3308, %v3313
    %v3318 = vrsqrt.pop %v3307
    %v3319 = vmul.f32 %v3318, %v3307
    %v3320 = vmul.f32 %v3319, %v3318
    %v3321 = vmul.f32 0.5, %v3320
    %v3322 = vsub.f32 1.5, %v3321
    %v3323 = vmul.f32 %v3318, %v3322
    %vm3324 = vweird.f32 %v3307
    %vm3325 = vweird.f32 %v3318
    %vm3326 = vmor %vm3324, %vm3325
    %v3327 = vsel %vm3326, %v3318, %v3323
    %v3328 = vmul.f32 %v3294, %v3317
    %v3329 = vmul.f32 %v3295, %v3327
    %v3331 = vperm.slane %v3284, 0
    %v3333 = vmul.f32 %v3328, %v3331
    %v3334 = vmul.f32 %v3329, %v3331
    %v3336 = vperm.slane %v3285, 0
    %v3338 = vadd.f32 %v3333, %v3336
    %v3339 = vadd.f32 %v3334, %v3336
    %v3340 = vld [vmem:[#allocation8] sm:$0xff]
    %v3341 = vld [vmem:[#allocation8 + $0x8] sm:$0xff]
    %v3342 = vld [vmem:[#allocation8 + $0x10] sm:$0xff]
    %v3343 = vld [vmem:[#allocation8 + $0x18] sm:$0xff]
    %v3344 = vld [vmem:[%s14] sm:$0x1]
    %v3346 = vperm.slane %v3344, 0
    %v3349 = vsel %vm122, %v3338, 0
    %v3352 = vsel %vm122, %v3339, 0
    %3354 = vmatpush.msra.mxu0 0.0
    %3355 = vmatpush.msra.mxu0 0.0
    %3356 = vmatpush.msra.mxu0 0.0
    %3357 = vmatpush.msra.mxu0 0.0
    %3358 = vmatpush.msra.mxu0 0.0
    %3359 = vmatpush.msra.mxu0 0.0
    %3360 = vmatpush.msra.mxu0 0.0
    %3361 = vmatpush.msra.mxu0 0.0
    %3362 = vmatpush.msra.mxu0 0.0
    %3363 = vmatpush.msra.mxu0 0.0
    %3364 = vmatpush.msra.mxu0 0.0
    %3365 = vmatpush.msra.mxu0 0.0
    %3366 = vmatpush.msra.mxu0 %v3343
    %3367 = vmatpush.msra.mxu0 %v3342
    %3368 = vmatpush.msra.mxu0 %v3341
    %3369 = vmatpush.msra.mxu0 %v3340
    %3370 = vmatmul.f32.gmra.mxu0 %v3349
    %v3371 = vpop.f32.mrf.mxu0
    %v3372 = vadd.f32 %v3346, %v3371
    %3373 = vmatmul.f32.gmra.mxu0 %v3352
    %v3374 = vpop.f32.mrf.mxu0
    %v3375 = vadd.f32 %v3346, %v3374
    %3376 = vdwg.mxu0
    %v3377 = vmul.f32 %v3372, 0.5
    %v3378 = vmul.f32 %v3375, 0.5
    %v3379 = vmul.f32 %v3372, 0.70710677
    %v3380 = vmul.f32 %v3375, 0.70710677
    %v3381 = vmul.f32 %v3379, %v3379
    %v3382 = vmin.f32 16.0, %v3381
    %v3383 = vmul.f32 %v3382, 2.1237322e-06
    %v3384 = vadd.f32 %v3383, 0.00028619796
    %v3385 = vmul.f32 %v3382, %v3384
    %v3386 = vadd.f32 %v3385, 0.0036580483
    %v3387 = vmul.f32 %v3382, %v3386
    %v3388 = vadd.f32 %v3387, 0.05243302
    %v3389 = vmul.f32 %v3382, %v3388
    %v3390 = vadd.f32 %v3389, 0.18741608
    %v3391 = vmul.f32 %v3382, %v3390
    %v3392 = vadd.f32 %v3391, 1.1283791
    %v3393 = vmul.f32 %v3379, %v3392
    %v3394 = vmul.f32 %v3382, 3.8918573e-05
    %v3395 = vadd.f32 %v3394, 0.001143296
    %v3396 = vmul.f32 %v3382, %v3395
    %v3397 = vadd.f32 %v3396, 0.014752088
    %v3398 = vmul.f32 %v3382, %v3397
    %v3399 = vadd.f32 %v3398, 0.112945676
    %v3400 = vmul.f32 %v3382, %v3399
    %v3401 = vadd.f32 %v3400, 0.4994258
    %v3402 = vmul.f32 %v3382, %v3401
    %v3403 = vadd.f32 %v3402, 1.0
    %v3404 = vrcp.pop %v3403
    %v3405 = vmul.f32 %v3403, %v3404
    %v3406 = vsub.f32 1.0, %v3405
    %v3407 = vmul.f32 %v3404, %v3406
    %v3408 = vadd.f32 %v3404, %v3407
    %vm3409 = vweird.f32 %v3403
    %vm3410 = vweird.f32 %v3404
    %vm3411 = vmor %vm3409, %vm3410
    %v3412 = vsel %vm3411, %v3404, %v3408
    %v3413 = vand.u32 2147483647, %v3403
    %vm3414 = vcmp.eq.f32.partialorder %v3413, 8.507059e+37
    %v3415 = vand.u32 %v3403, 2147483648
    %v3416 = vor.u32 1.1754944e-38, %v3415
    %v3417 = vsel %vm3414, %v3416, %v3412
    %v3418 = vmul.f32 %v3393, %v3417
    %v3419 = vmin.f32 %v3418, 1.0
    %v3420 = vmax.f32 %v3419, -1.0
    %v3421 = vmul.f32 %v3380, %v3380
    %v3422 = vmin.f32 16.0, %v3421
    %v3423 = vmul.f32 %v3422, 2.1237322e-06
    %v3424 = vadd.f32 %v3423, 0.00028619796
    %v3425 = vmul.f32 %v3422, %v3424
    %v3426 = vadd.f32 %v3425, 0.0036580483
    %v3427 = vmul.f32 %v3422, %v3426
    %v3428 = vadd.f32 %v3427, 0.05243302
    %v3429 = vmul.f32 %v3422, %v3428
    %v3430 = vadd.f32 %v3429, 0.18741608
    %v3431 = vmul.f32 %v3422, %v3430
    %v3432 = vadd.f32 %v3431, 1.1283791
    %v3433 = vmul.f32 %v3380, %v3432
    %v3434 = vmul.f32 %v3422, 3.8918573e-05
    %v3435 = vadd.f32 %v3434, 0.001143296
    %v3436 = vmul.f32 %v3422, %v3435
    %v3437 = vadd.f32 %v3436, 0.014752088
    %v3438 = vmul.f32 %v3422, %v3437
    %v3439 = vadd.f32 %v3438, 0.112945676
    %v3440 = vmul.f32 %v3422, %v3439
    %v3441 = vadd.f32 %v3440, 0.4994258
    %v3442 = vmul.f32 %v3422, %v3441
    %v3443 = vadd.f32 %v3442, 1.0
    %v3444 = vrcp.pop %v3443
    %v3445 = vmul.f32 %v3443, %v3444
    %v3446 = vsub.f32 1.0, %v3445
    %v3447 = vmul.f32 %v3444, %v3446
    %v3448 = vadd.f32 %v3444, %v3447
    %vm3449 = vweird.f32 %v3443
    %vm3450 = vweird.f32 %v3444
    %vm3451 = vmor %vm3449, %vm3450
    %v3452 = vsel %vm3451, %v3444, %v3448
    %v3453 = vand.u32 2147483647, %v3443
    %vm3454 = vcmp.eq.f32.partialorder %v3453, 8.507059e+37
    %v3455 = vand.u32 %v3443, 2147483648
    %v3456 = vor.u32 1.1754944e-38, %v3455
    %v3457 = vsel %vm3454, %v3456, %v3452
    %v3458 = vmul.f32 %v3433, %v3457
    %v3459 = vmin.f32 %v3458, 1.0
    %v3460 = vmax.f32 %v3459, -1.0
    %v3461 = vadd.f32 %v3420, 1.0
    %v3462 = vadd.f32 %v3460, 1.0
    %v3463 = vmul.f32 %v3377, %v3461
    %v3464 = vmul.f32 %v3378, %v3462
    %v3465 = vld [vmem:[%s15] sm:$0xff]
    %v3466 = vld [vmem:[%s15 + $0x8] sm:$0xff]
    %v3467 = vld [vmem:[%s15 + $0x10] sm:$0xff]
    %v3468 = vld [vmem:[%s15 + $0x18] sm:$0xff]
    %v3469 = vld [vmem:[%s15 + $0x20] sm:$0xff]
    %v3470 = vld [vmem:[%s15 + $0x28] sm:$0xff]
    %v3471 = vld [vmem:[%s15 + $0x30] sm:$0xff]
    %v3472 = vld [vmem:[%s15 + $0x38] sm:$0xff]
    %v3473 = vld [vmem:[%s16] sm:$0x1]
    %v3475 = vperm.slane %v3473, 0
    %vm3477 = vcmask 523264
    %v3479 = vsel %vm3477, %v3463, 0
    %v3482 = vsel %vm3477, %v3464, 0
    %3484 = vmatpush.msra.mxu0 0.0
    %3485 = vmatpush.msra.mxu0 0.0
    %3486 = vmatpush.msra.mxu0 0.0
    %3487 = vmatpush.msra.mxu0 0.0
    %3488 = vmatpush.msra.mxu0 0.0
    %3489 = vmatpush.msra.mxu0 0.0
    %3490 = vmatpush.msra.mxu0 0.0
    %3491 = vmatpush.msra.mxu0 0.0
    %3492 = vmatpush.msra.mxu0 %v3472
    %3493 = vmatpush.msra.mxu0 %v3471
    %3494 = vmatpush.msra.mxu0 %v3470
    %3495 = vmatpush.msra.mxu0 %v3469
    %3496 = vmatpush.msra.mxu0 %v3468
    %3497 = vmatpush.msra.mxu0 %v3467
    %3498 = vmatpush.msra.mxu0 %v3466
    %3499 = vmatpush.msra.mxu0 %v3465
    %3500 = vmatmul.f32.gmra.mxu0 %v3479
    %v3501 = vpop.f32.mrf.mxu0
    %v3502 = vadd.f32 %v3475, %v3501
    %3503 = vmatmul.f32.gmra.mxu0 %v3482
    %v3504 = vpop.f32.mrf.mxu0
    %v3505 = vadd.f32 %v3475, %v3504
    %3506 = vdwg.mxu0
    %v3507 = vmul.f32 %v3502, 0.5
    %v3508 = vmul.f32 %v3505, 0.5
    %v3509 = vmul.f32 %v3502, 0.70710677
    %v3510 = vmul.f32 %v3505, 0.70710677
    %v3511 = vmul.f32 %v3509, %v3509
    %v3512 = vmin.f32 16.0, %v3511
    %v3513 = vmul.f32 %v3512, 2.1237322e-06
    %v3514 = vadd.f32 %v3513, 0.00028619796
    %v3515 = vmul.f32 %v3512, %v3514
    %v3516 = vadd.f32 %v3515, 0.0036580483
    %v3517 = vmul.f32 %v3512, %v3516
    %v3518 = vadd.f32 %v3517, 0.05243302
    %v3519 = vmul.f32 %v3512, %v3518
    %v3520 = vadd.f32 %v3519, 0.18741608
    %v3521 = vmul.f32 %v3512, %v3520
    %v3522 = vadd.f32 %v3521, 1.1283791
    %v3523 = vmul.f32 %v3509, %v3522
    %v3524 = vmul.f32 %v3512, 3.8918573e-05
    %v3525 = vadd.f32 %v3524, 0.001143296
    %v3526 = vmul.f32 %v3512, %v3525
    %v3527 = vadd.f32 %v3526, 0.014752088
    %v3528 = vmul.f32 %v3512, %v3527
    %v3529 = vadd.f32 %v3528, 0.112945676
    %v3530 = vmul.f32 %v3512, %v3529
    %v3531 = vadd.f32 %v3530, 0.4994258
    %v3532 = vmul.f32 %v3512, %v3531
    %v3533 = vadd.f32 %v3532, 1.0
    %v3534 = vrcp.pop %v3533
    %v3535 = vmul.f32 %v3533, %v3534
    %v3536 = vsub.f32 1.0, %v3535
    %v3537 = vmul.f32 %v3534, %v3536
    %v3538 = vadd.f32 %v3534, %v3537
    %vm3539 = vweird.f32 %v3533
    %vm3540 = vweird.f32 %v3534
    %vm3541 = vmor %vm3539, %vm3540
    %v3542 = vsel %vm3541, %v3534, %v3538
    %v3543 = vand.u32 2147483647, %v3533
    %vm3544 = vcmp.eq.f32.partialorder %v3543, 8.507059e+37
    %v3545 = vand.u32 %v3533, 2147483648
    %v3546 = vor.u32 1.1754944e-38, %v3545
    %v3547 = vsel %vm3544, %v3546, %v3542
    %v3548 = vmul.f32 %v3523, %v3547
    %v3549 = vmin.f32 %v3548, 1.0
    %v3550 = vmax.f32 %v3549, -1.0
    %v3551 = vmul.f32 %v3510, %v3510
    %v3552 = vmin.f32 16.0, %v3551
    %v3553 = vmul.f32 %v3552, 2.1237322e-06
    %v3554 = vadd.f32 %v3553, 0.00028619796
    %v3555 = vmul.f32 %v3552, %v3554
    %v3556 = vadd.f32 %v3555, 0.0036580483
    %v3557 = vmul.f32 %v3552, %v3556
    %v3558 = vadd.f32 %v3557, 0.05243302
    %v3559 = vmul.f32 %v3552, %v3558
    %v3560 = vadd.f32 %v3559, 0.18741608
    %v3561 = vmul.f32 %v3552, %v3560
    %v3562 = vadd.f32 %v3561, 1.1283791
    %v3563 = vmul.f32 %v3510, %v3562
    %v3564 = vmul.f32 %v3552, 3.8918573e-05
    %v3565 = vadd.f32 %v3564, 0.001143296
    %v3566 = vmul.f32 %v3552, %v3565
    %v3567 = vadd.f32 %v3566, 0.014752088
    %v3568 = vmul.f32 %v3552, %v3567
    %v3569 = vadd.f32 %v3568, 0.112945676
    %v3570 = vmul.f32 %v3552, %v3569
    %v3571 = vadd.f32 %v3570, 0.4994258
    %v3572 = vmul.f32 %v3552, %v3571
    %v3573 = vadd.f32 %v3572, 1.0
    %v3574 = vrcp.pop %v3573
    %v3575 = vmul.f32 %v3573, %v3574
    %v3576 = vsub.f32 1.0, %v3575
    %v3577 = vmul.f32 %v3574, %v3576
    %v3578 = vadd.f32 %v3574, %v3577
    %vm3579 = vweird.f32 %v3573
    %vm3580 = vweird.f32 %v3574
    %vm3581 = vmor %vm3579, %vm3580
    %v3582 = vsel %vm3581, %v3574, %v3578
    %v3583 = vand.u32 2147483647, %v3573
    %vm3584 = vcmp.eq.f32.partialorder %v3583, 8.507059e+37
    %v3585 = vand.u32 %v3573, 2147483648
    %v3586 = vor.u32 1.1754944e-38, %v3585
    %v3587 = vsel %vm3584, %v3586, %v3582
    %v3588 = vmul.f32 %v3563, %v3587
    %v3589 = vmin.f32 %v3588, 1.0
    %v3590 = vmax.f32 %v3589, -1.0
    %v3591 = vadd.f32 %v3550, 1.0
    %v3592 = vadd.f32 %v3590, 1.0
    %v3593 = vmul.f32 %v3507, %v3591
    %v3594 = vmul.f32 %v3508, %v3592
    %v3595 = vadd.f32 %v3593, %v3282
    %v3596 = vadd.f32 %v3594, %v3283
    %3597 = vst.msk [vmem:[#allocation10] sm:$0xff] %vm122, %v3595
    %3598 = vst.msk [vmem:[#allocation10 + $0x8] sm:$0xff] %vm122, %v3596
    // Predicated region
    $region86: #{tpu_custom_call.1} parent=1 // pred_check
      _
    $region87: #{tpu_custom_call.1} parent=1 // pred_check_branch
      %3600 = sbr.rel (0) target = $region89
    $region88: #{tpu_custom_call.1} parent=1 // pred_region
      %3602 = vsyncadd [#allocation4], 0
      %s3603 = sshll.u32 [#allocation10], 4
      %s3604 = int_to_ptr.vmem [resolvable:$true] %s3603
      %s3605 = sshll.u32 %s17, 4
      %s3606 = int_to_ptr.hbm [resolvable:$true] %s3605
      %3611 = dma.vmem_to_hbm [thread:$0]  %s3604, 256, %s3606, [#allocation4], 128, 128, 8
    $region89: #{tpu_custom_call.1} parent=1 // pred_fallthru
      _
    // Predicated region
    $region90: #{tpu_custom_call.1} parent=1 // pred_check
      _
    $region91: #{tpu_custom_call.1} parent=1 // pred_check_branch
      %3613 = sbr.rel (0) target = $region93
    $region92: #{tpu_custom_call.1} parent=1 // pred_region
      %3615 = dma.done [#allocation4], 256
    $region93: #{tpu_custom_call.1} parent=1 // pred_fallthru
      _
    %3616 = vsyncpa [#allocation3], 1
    %3617 = vsyncpa [#allocation6], 1
    %3618 = vsyncpa [#allocation9], 1
    %3619 = vsyncpa [#allocation4], 1

</llo_original>
